<compile_context>
chip_gen: v6e
topology: v6e:2x2x1
jax: 0.10.0
libtpu: 0.0.40
codegen_flags: <defaults>
</compile_context>

<pallas_src>
import functools
import math

import jax
import jax.numpy as jnp
from jax.experimental import pallas as pl
from jax.experimental.pallas import tpu as pltpu

LANES = 128            # every matmul N dim is zero-padded to one full lane tile
CONV_BATCH_TILE = 8    # images per conv grid step (safe on v5e/v6e/v7x default VMEM;
                       # tune to ~16 on v7x, ~32 on v6e with vmem_limit_bytes headroom)

# Fixed CIFAR10Net geometry (forced by fc1 = 16*5*5 -> input must be (B, 3, 32, 32)).
C_IN, C1, C2, KSIZE, N_CLASSES = 3, 6, 16, 5, 10


def _round_up(n, m):
    return ((n + m - 1) // m) * m


# ----------------------------- Pallas kernels ------------------------------

def _conv_relu_pool_kernel(p_ref, w_ref, b_ref, o_ref, *, q_rows, c_keep):
    """Fused conv(as im2col matmul) + 2x2 maxpool + bias + ReLU for a TB-image block.

    p_ref: (TB, 4*q_rows, K)    bf16  im2col patches, rows grouped by pool quadrant
    w_ref: (K, 128)             bf16  conv weight, out channels zero-padded to 128 lanes
    b_ref: (1, 128)             f32   bias, zero-padded
    o_ref: (TB, q_rows, c_keep) bf16  pooled activations (row = hp*Wp + wp), lane-packed

    Bias/ReLU commute with the max, so pooling happens on the raw matmul result:
        pool(relu(conv + b)) == relu(max_quadrant(conv) + b).
    """
    tb = p_ref.shape[0]
    k = p_ref.shape[2]
    w = w_ref[...]
    best = None
    for qi in range(4):                                     # the four 2x2-pool quadrants
        blk = p_ref[:, pl.ds(qi * q_rows, q_rows), :].reshape(tb * q_rows, k)
        acc = jnp.dot(blk, w, preferred_element_type=jnp.float32)
        best = acc if best is None else jnp.maximum(best, acc)
    best = jnp.maximum(best + b_ref[...], 0.0)              # f32 epilogue
    best = best.reshape(tb, q_rows, LANES)[:, :, :c_keep]   # lane-pack valid channels
    o_ref[...] = best.astype(o_ref.dtype)


def _fc_stack_kernel(x_ref, w1_ref, b1_ref, w2_ref, b2_ref, w3_ref, b3_ref, o_ref):
    """fc1+ReLU -> fc2+ReLU -> fc3 for a row block; intermediates stay on-chip."""
    h = jnp.dot(x_ref[...], w1_ref[...], preferred_element_type=jnp.float32)
    h = jnp.maximum(h + b1_ref[...], 0.0)
    h = jnp.dot(h.astype(w2_ref.dtype), w2_ref[...], preferred_element_type=jnp.float32)
    h = jnp.maximum(h + b2_ref[...], 0.0)
    h = jnp.dot(h.astype(w3_ref.dtype), w3_ref[...], preferred_element_type=jnp.float32)
    o_ref[...] = (h + b3_ref[...]).astype(o_ref.dtype)


# --------------------------- pallas_call wrappers ---------------------------

def conv_relu_pool(patches, w, b, q_rows, c_keep, tb):
    """patches: (Bp, 4*q_rows, K) bf16 -> (Bp, q_rows, c_keep) bf16; Bp % tb == 0."""
    Bp, M, K = patches.shape
    assert M == 4 * q_rows and Bp % tb == 0
    flops = 2 * Bp * M * K * LANES + 4 * Bp * M * LANES
    bytes_acc = 2 * patches.size + 2 * w.size + 4 * b.size + 2 * Bp * q_rows * c_keep
    kernel = functools.partial(_conv_relu_pool_kernel, q_rows=q_rows, c_keep=c_keep)
    return pl.pallas_call(
        kernel,
        out_shape=jax.ShapeDtypeStruct((Bp, q_rows, c_keep), jnp.bfloat16),
        grid=(Bp // tb,),
        in_specs=[
            pl.BlockSpec((tb, M, K), lambda i: (i, 0, 0)),
            pl.BlockSpec((K, LANES), lambda i: (0, 0)),   # constant index -> stays resident
            pl.BlockSpec((1, LANES), lambda i: (0, 0)),
        ],
        out_specs=pl.BlockSpec((tb, q_rows, c_keep), lambda i: (i, 0, 0)),
        # "parallel" lets megacore shard batch tiles; on v7x consider pltpu.CORE_PARALLEL
        # if profiling shows only one TensorCore active.
        compiler_params=pltpu.CompilerParams(dimension_semantics=("parallel",)),
        cost_estimate=pl.CostEstimate(
            flops=int(flops), transcendentals=0, bytes_accessed=int(bytes_acc)),
    )(patches, w, b)


def fc_stack(x, w1, b1, w2, b2, w3, b3, tb):
    """x: (Bp, 400) bf16 -> (Bp, 128) f32 logits block (first 10 lanes valid)."""
    Bp, K = x.shape
    assert Bp % tb == 0
    flops = 2 * Bp * (K * LANES + 2 * LANES * LANES)
    bytes_acc = (2 * (x.size + w1.size + w2.size + w3.size)
                 + 4 * (b1.size + b2.size + b3.size) + 4 * Bp * LANES)
    return pl.pallas_call(
        _fc_stack_kernel,
        out_shape=jax.ShapeDtypeStruct((Bp, LANES), jnp.float32),
        grid=(Bp // tb,),
        in_specs=[
            pl.BlockSpec((tb, K), lambda i: (i, 0)),
            pl.BlockSpec(w1.shape, lambda i: (0, 0)),
            pl.BlockSpec(b1.shape, lambda i: (0, 0)),
            pl.BlockSpec(w2.shape, lambda i: (0, 0)),
            pl.BlockSpec(b2.shape, lambda i: (0, 0)),
            pl.BlockSpec(w3.shape, lambda i: (0, 0)),
            pl.BlockSpec(b3.shape, lambda i: (0, 0)),
        ],
        out_specs=pl.BlockSpec((tb, LANES), lambda i: (i, 0)),
        compiler_params=pltpu.CompilerParams(dimension_semantics=("parallel",)),
        cost_estimate=pl.CostEstimate(
            flops=int(flops), transcendentals=0, bytes_accessed=int(bytes_acc)),
    )(x, w1, b1, w2, b2, w3, b3)


# ------------------------------- JAX glue -----------------------------------

def _patches_quadrant(x_nhwc, kh, kw):
    """NHWC -> im2col patches with conv-output rows grouped into the four 2x2-pool
    quadrants so the kernel can pool with an elementwise max of row blocks.

    Returns (B, 4*q8, k8) and (Hp, Wp, q8), q8 = roundup(Hp*Wp, 8), k8 = roundup(kh*kw*C, 8).
    Row q*q8 + hp*Wp + wp holds the patch for conv output position
    (2*hp + q//2, 2*wp + q%2); features ordered (i, j, c) to match the weight prep.
    """
    B, H, W, C = x_nhwc.shape
    Ho, Wo = H - kh + 1, W - kw + 1          # valid conv (even for this net)
    Hp, Wp = Ho // 2, Wo // 2
    K = kh * kw * C
    cols = [x_nhwc[:, i:i + Ho, j:j + Wo, :] for i in range(kh) for j in range(kw)]
    p = jnp.concatenate(cols, axis=-1)                       # (B, Ho, Wo, K)
    p = p.reshape(B, Hp, 2, Wp, 2, K).transpose(0, 2, 4, 1, 3, 5)
    p = p.reshape(B, 4, Hp * Wp, K)                          # quadrant-major rows
    q8, k8 = _round_up(Hp * Wp, 8), _round_up(K, 8)
    p = jnp.pad(p, ((0, 0), (0, 0), (0, q8 - Hp * Wp), (0, k8 - K)))
    return p.reshape(B, 4 * q8, k8), (Hp, Wp, q8)


def prepare_params(p):
    """One-time weight prep (hoisted out of the forward): pad to 128 lanes, permute fc1
    rows to the kernel's (hw, c) flatten order, and cast MXU inputs to bf16."""
    def conv_prep(w, b):
        cout, cin, kh, kw = w.shape
        k = kh * kw * cin
        k8 = _round_up(k, 8)
        wk = jnp.transpose(w, (2, 3, 1, 0)).reshape(k, cout)          # (i, j, c) rows
        wk = jnp.pad(wk, ((0, k8 - k), (0, LANES - cout))).astype(jnp.bfloat16)
        bk = jnp.pad(b.reshape(1, cout), ((0, 0), (0, LANES - cout))).astype(jnp.float32)
        return wk, bk

    c1w, c1b = conv_prep(p["conv1_w"], p["conv1_b"])
    c2w, c2b = conv_prep(p["conv2_w"], p["conv2_b"])

    # fc1: torch flatten order is (c*25 + hw); kernel feats are (hw*16 + c) -> permute rows.
    kin, n1 = p["fc1_w"].shape                                        # (400, 120)
    s = kin // C2                                                     # 25
    w1 = p["fc1_w"].reshape(C2, s, n1).transpose(1, 0, 2).reshape(kin, n1)
    w1 = jnp.pad(w1, ((0, 0), (0, LANES - n1))).astype(jnp.bfloat16)
    b1 = jnp.pad(p["fc1_b"].reshape(1, n1), ((0, 0), (0, LANES - n1))).astype(jnp.float32)
    n2 = p["fc2_w"].shape[1]                                          # 84
    w2 = jnp.pad(p["fc2_w"], ((0, LANES - n1), (0, LANES - n2))).astype(jnp.bfloat16)
    b2 = jnp.pad(p["fc2_b"].reshape(1, n2), ((0, 0), (0, LANES - n2))).astype(jnp.float32)
    n3 = p["fc3_w"].shape[1]                                          # 10
    w3 = jnp.pad(p["fc3_w"], ((0, LANES - n2), (0, LANES - n3))).astype(jnp.bfloat16)
    b3 = jnp.pad(p["fc3_b"].reshape(1, n3), ((0, 0), (0, LANES - n3))).astype(jnp.float32)

    return {"conv1_w": c1w, "conv1_b": c1b, "conv2_w": c2w, "conv2_b": c2b,
            "fc1_w": w1, "fc1_b": b1, "fc2_w": w2, "fc2_b": b2, "fc3_w": w3, "fc3_b": b3}


def cifar10net_forward(x, prep):
    """x: (B, 3, 32, 32) NCHW float32 (matches PyTorch). Returns (B, 10) f32 logits."""
    B = x.shape[0]
    Bp = _round_up(B, CONV_BATCH_TILE)            # pad batch -> aligned M dims / stores
    if Bp != B:
        x = jnp.pad(x, ((0, Bp - B), (0, 0), (0, 0), (0, 0)))
    xh = jnp.transpose(x, (0, 2, 3, 1)).astype(jnp.bfloat16)   # one NCHW->NHWC, then stay NHWC

    # conv1 + ReLU + maxpool (one fused, batch-blocked kernel)
    p1, (hp1, wp1, q1) = _patches_quadrant(xh, KSIZE, KSIZE)              # (Bp, 800, 80) bf16
    a1 = conv_relu_pool(p1, prep["conv1_w"], prep["conv1_b"], q1,
                        c_keep=8, tb=CONV_BATCH_TILE)                     # (Bp, 200, 8) bf16
    a1 = a1[:, :hp1 * wp1, :C1].reshape(Bp, hp1, wp1, C1)                 # (Bp, 14, 14, 6)

    # conv2 + ReLU + maxpool (same fused kernel, different shapes)
    p2, (hp2, wp2, q2) = _patches_quadrant(a1, KSIZE, KSIZE)              # (Bp, 128, 152) bf16
    a2 = conv_relu_pool(p2, prep["conv2_w"], prep["conv2_b"], q2,
                        c_keep=C2, tb=CONV_BATCH_TILE)                    # (Bp, 32, 16) bf16

    # flatten in (hw, c) order; fc1 weight rows were permuted to match
    feats = a2[:, :hp2 * wp2, :].reshape(Bp, hp2 * wp2 * C2)              # (Bp, 400) bf16

    # fused fc1/fc2/fc3 with a parallel batch grid (largest row block dividing Bp)
    tbf = max(t for t in (128, 64, 32, 16, 8) if Bp % t == 0)
    logits = fc_stack(feats, prep["fc1_w"], prep["fc1_b"], prep["fc2_w"],
                      prep["fc2_b"], prep["fc3_w"], prep["fc3_b"], tb=tbf)  # (Bp, 128) f32
    return logits[:B, :N_CLASSES]                                         # (B, 10)


def init_params(key):
    """Deterministic PyTorch-style U(-1/sqrt(fan_in), 1/sqrt(fan_in)) init."""
    def uniform(k, shape, fan_in):
        bound = 1.0 / math.sqrt(fan_in)
        return jax.random.uniform(k, shape, jnp.float32, -bound, bound)

    ks = jax.random.split(key, 10)
    return {
        "conv1_w": uniform(ks[0], (6, 3, 5, 5), 3 * 25),
        "conv1_b": uniform(ks[1], (6,), 3 * 25),
        "conv2_w": uniform(ks[2], (16, 6, 5, 5), 6 * 25),
        "conv2_b": uniform(ks[3], (16,), 6 * 25),
        "fc1_w": uniform(ks[4], (400, 120), 400),   # stored transposed vs torch
        "fc1_b": uniform(ks[5], (1, 120), 400),
        "fc2_w": uniform(ks[6], (120, 84), 120),
        "fc2_b": uniform(ks[7], (84,), 120),
        "fc3_w": uniform(ks[8], (84, 10), 84),
        "fc3_b": uniform(ks[9], (10,), 84),
    }


if __name__ == "__main__":
    root = jax.random.PRNGKey(0)
    k_params, k_input = jax.random.split(root)

    params = init_params(k_params)
    prep = prepare_params(params)       # one-time weight prep, outside the jitted forward

    # CIFAR-10 geometry is forced by fc1 (16*5*5): input must be (B, 3, 32, 32).
    x = jax.random.normal(k_input, (2, 3, 32, 32), dtype=jnp.float32)

    fwd = jax.jit(cifar10net_forward)
    out = fwd(x, prep)
    jax.block_until_ready(out)

    assert out.shape == (2, 10), out.shape
    assert out.dtype == jnp.float32
    print("KERNEL_OK")
</pallas_src>

<mosaic_0001>
module attributes {stable_mosaic.version = 11 : i64} {
  func.func @_conv_relu_pool_kernel(%arg0: i32, %arg1: memref<8x800x80xbf16, #tpu.memory_space<vmem>>, %arg2: memref<80x128xbf16, #tpu.memory_space<vmem>>, %arg3: memref<1x128xf32, #tpu.memory_space<vmem>>, %arg4: memref<8x200x8xbf16, #tpu.memory_space<vmem>>) attributes {dimension_semantics = [#tpu.dimension_semantics<parallel>], iteration_bounds = array<i64: 1>, scalar_prefetch = 0 : i64, scratch_operands = 0 : i64, tpu.core_type = #tpu.core_type<tc>, window_params = [{transform_indices = @transform_0, window_bounds = array<i64: 8, 800, 80>}, {pipeline_mode = #tpu.pipeline_mode<synchronous>, transform_indices = @transform_1, window_bounds = array<i64: 80, 128>}, {pipeline_mode = #tpu.pipeline_mode<synchronous>, transform_indices = @transform_2, window_bounds = array<i64: 1, 128>}, {transform_indices = @transform_3, window_bounds = array<i64: 8, 200, 8>}]} {
    %c0 = arith.constant 0 : index
    %c0_0 = arith.constant 0 : index
    %0 = vector.load %arg2[%c0, %c0_0] : memref<80x128xbf16, #tpu.memory_space<vmem>>, vector<80x128xbf16>
    %c0_1 = arith.constant 0 : index
    %c0_2 = arith.constant 0 : index
    %c0_3 = arith.constant 0 : index
    %1 = vector.load %arg1[%c0_1, %c0_2, %c0_3] : memref<8x800x80xbf16, #tpu.memory_space<vmem>>, vector<8x200x80xbf16>
    %2 = vector.shape_cast %1 : vector<8x200x80xbf16> to vector<1600x80xbf16>
    %cst = arith.constant dense<0.000000e+00> : vector<1600x128xf32>
    %3 = tpu.matmul %2, %0, %cst {dimension_numbers = #tpu.dot_dimension_numbers<[1], [0], [0], [1], [0, 0, 1, 1], [], []>} : vector<1600x80xbf16>, vector<80x128xbf16>, vector<1600x128xf32> -> vector<1600x128xf32>
    %c0_4 = arith.constant 0 : index
    %c200 = arith.constant 200 : index
    %c0_5 = arith.constant 0 : index
    %4 = vector.load %arg1[%c0_4, %c200, %c0_5] : memref<8x800x80xbf16, #tpu.memory_space<vmem>>, vector<8x200x80xbf16>
    %5 = vector.shape_cast %4 : vector<8x200x80xbf16> to vector<1600x80xbf16>
    %cst_6 = arith.constant dense<0.000000e+00> : vector<1600x128xf32>
    %6 = tpu.matmul %5, %0, %cst_6 {dimension_numbers = #tpu.dot_dimension_numbers<[1], [0], [0], [1], [0, 0, 1, 1], [], []>} : vector<1600x80xbf16>, vector<80x128xbf16>, vector<1600x128xf32> -> vector<1600x128xf32>
    %7 = arith.maximumf %3, %6 : vector<1600x128xf32>
    %c0_7 = arith.constant 0 : index
    %c400 = arith.constant 400 : index
    %c0_8 = arith.constant 0 : index
    %8 = vector.load %arg1[%c0_7, %c400, %c0_8] : memref<8x800x80xbf16, #tpu.memory_space<vmem>>, vector<8x200x80xbf16>
    %9 = vector.shape_cast %8 : vector<8x200x80xbf16> to vector<1600x80xbf16>
    %cst_9 = arith.constant dense<0.000000e+00> : vector<1600x128xf32>
    %10 = tpu.matmul %9, %0, %cst_9 {dimension_numbers = #tpu.dot_dimension_numbers<[1], [0], [0], [1], [0, 0, 1, 1], [], []>} : vector<1600x80xbf16>, vector<80x128xbf16>, vector<1600x128xf32> -> vector<1600x128xf32>
    %11 = arith.maximumf %7, %10 : vector<1600x128xf32>
    %c0_10 = arith.constant 0 : index
    %c600 = arith.constant 600 : index
    %c0_11 = arith.constant 0 : index
    %12 = vector.load %arg1[%c0_10, %c600, %c0_11] : memref<8x800x80xbf16, #tpu.memory_space<vmem>>, vector<8x200x80xbf16>
    %13 = vector.shape_cast %12 : vector<8x200x80xbf16> to vector<1600x80xbf16>
    %cst_12 = arith.constant dense<0.000000e+00> : vector<1600x128xf32>
    %14 = tpu.matmul %13, %0, %cst_12 {dimension_numbers = #tpu.dot_dimension_numbers<[1], [0], [0], [1], [0, 0, 1, 1], [], []>} : vector<1600x80xbf16>, vector<80x128xbf16>, vector<1600x128xf32> -> vector<1600x128xf32>
    %15 = arith.maximumf %11, %14 : vector<1600x128xf32>
    %c0_13 = arith.constant 0 : index
    %c0_14 = arith.constant 0 : index
    %16 = vector.load %arg3[%c0_13, %c0_14] : memref<1x128xf32, #tpu.memory_space<vmem>>, vector<1x128xf32>
    %17 = vector.broadcast %16 : vector<1x128xf32> to vector<1600x128xf32>
    %18 = arith.addf %15, %17 : vector<1600x128xf32>
    %cst_15 = arith.constant 0.000000e+00 : f32
    %19 = vector.broadcast %cst_15 : f32 to vector<1600x128xf32>
    %20 = arith.maximumf %18, %19 : vector<1600x128xf32>
    %21 = vector.shape_cast %20 : vector<1600x128xf32> to vector<8x200x128xf32>
    %22 = vector.extract_strided_slice %21 {offsets = [0, 0, 0], sizes = [8, 200, 8], strides = [1, 1, 1]} : vector<8x200x128xf32> to vector<8x200x8xf32>
    %23 = arith.truncf %22 : vector<8x200x8xf32> to vector<8x200x8xbf16>
    %c0_16 = arith.constant 0 : index
    %c0_17 = arith.constant 0 : index
    %c0_18 = arith.constant 0 : index
    %24 = vector.load %arg4[%c0_16, %c0_17, %c0_18] : memref<8x200x8xbf16, #tpu.memory_space<vmem>>, vector<8x200x8xbf16>
    tpu.vector_store %arg4[%c0_16, %c0_17, %c0_18], %23 {strides = array<i32>} : memref<8x200x8xbf16, #tpu.memory_space<vmem>>, vector<8x200x8xbf16>,
    return
  }
  func.func @transform_0(%arg0: i32) -> (i32, i32, i32) {
    %c0_i32 = arith.constant 0 : i32
    %c0_i32_0 = arith.constant 0 : i32
    %c0_i32_1 = arith.constant 0 : i32
    return %arg0, %c0_i32, %c0_i32_0 : i32, i32, i32
  }
  func.func @transform_1(%arg0: i32) -> (i32, i32) {
    %c0_i32 = arith.constant 0 : i32
    %c0_i32_0 = arith.constant 0 : i32
    %c0_i32_1 = arith.constant 0 : i32
    return %c0_i32, %c0_i32_0 : i32, i32
  }
  func.func @transform_2(%arg0: i32) -> (i32, i32) {
    %c0_i32 = arith.constant 0 : i32
    %c0_i32_0 = arith.constant 0 : i32
    %c0_i32_1 = arith.constant 0 : i32
    return %c0_i32, %c0_i32_0 : i32, i32
  }
  func.func @transform_3(%arg0: i32) -> (i32, i32, i32) {
    %c0_i32 = arith.constant 0 : i32
    %c0_i32_0 = arith.constant 0 : i32
    %c0_i32_1 = arith.constant 0 : i32
    return %arg0, %c0_i32, %c0_i32_0 : i32, i32, i32
  }
}

module attributes {stable_mosaic.version = 11 : i64} {
  func.func @_conv_relu_pool_kernel(%arg0: i32, %arg1: memref<8x128x152xbf16, #tpu.memory_space<vmem>>, %arg2: memref<152x128xbf16, #tpu.memory_space<vmem>>, %arg3: memref<1x128xf32, #tpu.memory_space<vmem>>, %arg4: memref<8x32x16xbf16, #tpu.memory_space<vmem>>) attributes {dimension_semantics = [#tpu.dimension_semantics<parallel>], iteration_bounds = array<i64: 1>, scalar_prefetch = 0 : i64, scratch_operands = 0 : i64, tpu.core_type = #tpu.core_type<tc>, window_params = [{transform_indices = @transform_0, window_bounds = array<i64: 8, 128, 152>}, {pipeline_mode = #tpu.pipeline_mode<synchronous>, transform_indices = @transform_1, window_bounds = array<i64: 152, 128>}, {pipeline_mode = #tpu.pipeline_mode<synchronous>, transform_indices = @transform_2, window_bounds = array<i64: 1, 128>}, {transform_indices = @transform_3, window_bounds = array<i64: 8, 32, 16>}]} {
    %c0 = arith.constant 0 : index
    %c0_0 = arith.constant 0 : index
    %0 = vector.load %arg2[%c0, %c0_0] : memref<152x128xbf16, #tpu.memory_space<vmem>>, vector<152x128xbf16>
    %c0_1 = arith.constant 0 : index
    %c0_2 = arith.constant 0 : index
    %c0_3 = arith.constant 0 : index
    %1 = vector.load %arg1[%c0_1, %c0_2, %c0_3] : memref<8x128x152xbf16, #tpu.memory_space<vmem>>, vector<8x32x152xbf16>
    %2 = vector.shape_cast %1 : vector<8x32x152xbf16> to vector<256x152xbf16>
    %cst = arith.constant dense<0.000000e+00> : vector<256x128xf32>
    %3 = tpu.matmul %2, %0, %cst {dimension_numbers = #tpu.dot_dimension_numbers<[1], [0], [0], [1], [0, 0, 1, 1], [], []>} : vector<256x152xbf16>, vector<152x128xbf16>, vector<256x128xf32> -> vector<256x128xf32>
    %c0_4 = arith.constant 0 : index
    %c32 = arith.constant 32 : index
    %c0_5 = arith.constant 0 : index
    %4 = vector.load %arg1[%c0_4, %c32, %c0_5] : memref<8x128x152xbf16, #tpu.memory_space<vmem>>, vector<8x32x152xbf16>
    %5 = vector.shape_cast %4 : vector<8x32x152xbf16> to vector<256x152xbf16>
    %cst_6 = arith.constant dense<0.000000e+00> : vector<256x128xf32>
    %6 = tpu.matmul %5, %0, %cst_6 {dimension_numbers = #tpu.dot_dimension_numbers<[1], [0], [0], [1], [0, 0, 1, 1], [], []>} : vector<256x152xbf16>, vector<152x128xbf16>, vector<256x128xf32> -> vector<256x128xf32>
    %7 = arith.maximumf %3, %6 : vector<256x128xf32>
    %c0_7 = arith.constant 0 : index
    %c64 = arith.constant 64 : index
    %c0_8 = arith.constant 0 : index
    %8 = vector.load %arg1[%c0_7, %c64, %c0_8] : memref<8x128x152xbf16, #tpu.memory_space<vmem>>, vector<8x32x152xbf16>
    %9 = vector.shape_cast %8 : vector<8x32x152xbf16> to vector<256x152xbf16>
    %cst_9 = arith.constant dense<0.000000e+00> : vector<256x128xf32>
    %10 = tpu.matmul %9, %0, %cst_9 {dimension_numbers = #tpu.dot_dimension_numbers<[1], [0], [0], [1], [0, 0, 1, 1], [], []>} : vector<256x152xbf16>, vector<152x128xbf16>, vector<256x128xf32> -> vector<256x128xf32>
    %11 = arith.maximumf %7, %10 : vector<256x128xf32>
    %c0_10 = arith.constant 0 : index
    %c96 = arith.constant 96 : index
    %c0_11 = arith.constant 0 : index
    %12 = vector.load %arg1[%c0_10, %c96, %c0_11] : memref<8x128x152xbf16, #tpu.memory_space<vmem>>, vector<8x32x152xbf16>
    %13 = vector.shape_cast %12 : vector<8x32x152xbf16> to vector<256x152xbf16>
    %cst_12 = arith.constant dense<0.000000e+00> : vector<256x128xf32>
    %14 = tpu.matmul %13, %0, %cst_12 {dimension_numbers = #tpu.dot_dimension_numbers<[1], [0], [0], [1], [0, 0, 1, 1], [], []>} : vector<256x152xbf16>, vector<152x128xbf16>, vector<256x128xf32> -> vector<256x128xf32>
    %15 = arith.maximumf %11, %14 : vector<256x128xf32>
    %c0_13 = arith.constant 0 : index
    %c0_14 = arith.constant 0 : index
    %16 = vector.load %arg3[%c0_13, %c0_14] : memref<1x128xf32, #tpu.memory_space<vmem>>, vector<1x128xf32>
    %17 = vector.broadcast %16 : vector<1x128xf32> to vector<256x128xf32>
    %18 = arith.addf %15, %17 : vector<256x128xf32>
    %cst_15 = arith.constant 0.000000e+00 : f32
    %19 = vector.broadcast %cst_15 : f32 to vector<256x128xf32>
    %20 = arith.maximumf %18, %19 : vector<256x128xf32>
    %21 = vector.shape_cast %20 : vector<256x128xf32> to vector<8x32x128xf32>
    %22 = vector.extract_strided_slice %21 {offsets = [0, 0, 0], sizes = [8, 32, 16], strides = [1, 1, 1]} : vector<8x32x128xf32> to vector<8x32x16xf32>
    %23 = arith.truncf %22 : vector<8x32x16xf32> to vector<8x32x16xbf16>
    %c0_16 = arith.constant 0 : index
    %c0_17 = arith.constant 0 : index
    %c0_18 = arith.constant 0 : index
    %24 = vector.load %arg4[%c0_16, %c0_17, %c0_18] : memref<8x32x16xbf16, #tpu.memory_space<vmem>>, vector<8x32x16xbf16>
    tpu.vector_store %arg4[%c0_16, %c0_17, %c0_18], %23 {strides = array<i32>} : memref<8x32x16xbf16, #tpu.memory_space<vmem>>, vector<8x32x16xbf16>,
    return
  }
  func.func @transform_0(%arg0: i32) -> (i32, i32, i32) {
    %c0_i32 = arith.constant 0 : i32
    %c0_i32_0 = arith.constant 0 : i32
    %c0_i32_1 = arith.constant 0 : i32
    return %arg0, %c0_i32, %c0_i32_0 : i32, i32, i32
  }
  func.func @transform_1(%arg0: i32) -> (i32, i32) {
    %c0_i32 = arith.constant 0 : i32
    %c0_i32_0 = arith.constant 0 : i32
    %c0_i32_1 = arith.constant 0 : i32
    return %c0_i32, %c0_i32_0 : i32, i32
  }
  func.func @transform_2(%arg0: i32) -> (i32, i32) {
    %c0_i32 = arith.constant 0 : i32
    %c0_i32_0 = arith.constant 0 : i32
    %c0_i32_1 = arith.constant 0 : i32
    return %c0_i32, %c0_i32_0 : i32, i32
  }
  func.func @transform_3(%arg0: i32) -> (i32, i32, i32) {
    %c0_i32 = arith.constant 0 : i32
    %c0_i32_0 = arith.constant 0 : i32
    %c0_i32_1 = arith.constant 0 : i32
    return %arg0, %c0_i32, %c0_i32_0 : i32, i32, i32
  }
}

module attributes {stable_mosaic.version = 11 : i64} {
  func.func @_fc_stack_kernel(%arg0: i32, %arg1: memref<8x400xbf16, #tpu.memory_space<vmem>>, %arg2: memref<400x128xbf16, #tpu.memory_space<vmem>>, %arg3: memref<1x128xf32, #tpu.memory_space<vmem>>, %arg4: memref<128x128xbf16, #tpu.memory_space<vmem>>, %arg5: memref<1x128xf32, #tpu.memory_space<vmem>>, %arg6: memref<128x128xbf16, #tpu.memory_space<vmem>>, %arg7: memref<1x128xf32, #tpu.memory_space<vmem>>, %arg8: memref<8x128xf32, #tpu.memory_space<vmem>>) attributes {dimension_semantics = [#tpu.dimension_semantics<parallel>], iteration_bounds = array<i64: 1>, scalar_prefetch = 0 : i64, scratch_operands = 0 : i64, tpu.core_type = #tpu.core_type<tc>, window_params = [{transform_indices = @transform_0, window_bounds = array<i64: 8, 400>}, {pipeline_mode = #tpu.pipeline_mode<synchronous>, transform_indices = @transform_1, window_bounds = array<i64: 400, 128>}, {pipeline_mode = #tpu.pipeline_mode<synchronous>, transform_indices = @transform_2, window_bounds = array<i64: 1, 128>}, {pipeline_mode = #tpu.pipeline_mode<synchronous>, transform_indices = @transform_3, window_bounds = array<i64: 128, 128>}, {pipeline_mode = #tpu.pipeline_mode<synchronous>, transform_indices = @transform_4, window_bounds = array<i64: 1, 128>}, {pipeline_mode = #tpu.pipeline_mode<synchronous>, transform_indices = @transform_5, window_bounds = array<i64: 128, 128>}, {pipeline_mode = #tpu.pipeline_mode<synchronous>, transform_indices = @transform_6, window_bounds = array<i64: 1, 128>}, {transform_indices = @transform_7, window_bounds = array<i64: 8, 128>}]} {
    %c0 = arith.constant 0 : index
    %c0_0 = arith.constant 0 : index
    %0 = vector.load %arg1[%c0, %c0_0] : memref<8x400xbf16, #tpu.memory_space<vmem>>, vector<8x400xbf16>
    %c0_1 = arith.constant 0 : index
    %c0_2 = arith.constant 0 : index
    %1 = vector.load %arg2[%c0_1, %c0_2] : memref<400x128xbf16, #tpu.memory_space<vmem>>, vector<400x128xbf16>
    %cst = arith.constant dense<0.000000e+00> : vector<8x128xf32>
    %2 = tpu.matmul %0, %1, %cst {dimension_numbers = #tpu.dot_dimension_numbers<[1], [0], [0], [1], [0, 0, 1, 1], [], []>} : vector<8x400xbf16>, vector<400x128xbf16>, vector<8x128xf32> -> vector<8x128xf32>
    %c0_3 = arith.constant 0 : index
    %c0_4 = arith.constant 0 : index
    %3 = vector.load %arg3[%c0_3, %c0_4] : memref<1x128xf32, #tpu.memory_space<vmem>>, vector<1x128xf32>
    %4 = vector.broadcast %3 : vector<1x128xf32> to vector<8x128xf32>
    %5 = arith.addf %2, %4 : vector<8x128xf32>
    %cst_5 = arith.constant 0.000000e+00 : f32
    %6 = vector.broadcast %cst_5 : f32 to vector<8x128xf32>
    %7 = arith.maximumf %5, %6 : vector<8x128xf32>
    %8 = arith.truncf %7 : vector<8x128xf32> to vector<8x128xbf16>
    %c0_6 = arith.constant 0 : index
    %c0_7 = arith.constant 0 : index
    %9 = vector.load %arg4[%c0_6, %c0_7] : memref<128x128xbf16, #tpu.memory_space<vmem>>, vector<128x128xbf16>
    %cst_8 = arith.constant dense<0.000000e+00> : vector<8x128xf32>
    %10 = tpu.matmul %8, %9, %cst_8 {dimension_numbers = #tpu.dot_dimension_numbers<[1], [0], [0], [1], [0, 0, 1, 1], [], []>} : vector<8x128xbf16>, vector<128x128xbf16>, vector<8x128xf32> -> vector<8x128xf32>
    %c0_9 = arith.constant 0 : index
    %c0_10 = arith.constant 0 : index
    %11 = vector.load %arg5[%c0_9, %c0_10] : memref<1x128xf32, #tpu.memory_space<vmem>>, vector<1x128xf32>
    %12 = vector.broadcast %11 : vector<1x128xf32> to vector<8x128xf32>
    %13 = arith.addf %10, %12 : vector<8x128xf32>
    %cst_11 = arith.constant 0.000000e+00 : f32
    %14 = vector.broadcast %cst_11 : f32 to vector<8x128xf32>
    %15 = arith.maximumf %13, %14 : vector<8x128xf32>
    %16 = arith.truncf %15 : vector<8x128xf32> to vector<8x128xbf16>
    %c0_12 = arith.constant 0 : index
    %c0_13 = arith.constant 0 : index
    %17 = vector.load %arg6[%c0_12, %c0_13] : memref<128x128xbf16, #tpu.memory_space<vmem>>, vector<128x128xbf16>
    %cst_14 = arith.constant dense<0.000000e+00> : vector<8x128xf32>
    %18 = tpu.matmul %16, %17, %cst_14 {dimension_numbers = #tpu.dot_dimension_numbers<[1], [0], [0], [1], [0, 0, 1, 1], [], []>} : vector<8x128xbf16>, vector<128x128xbf16>, vector<8x128xf32> -> vector<8x128xf32>
    %c0_15 = arith.constant 0 : index
    %c0_16 = arith.constant 0 : index
    %19 = vector.load %arg7[%c0_15, %c0_16] : memref<1x128xf32, #tpu.memory_space<vmem>>, vector<1x128xf32>
    %20 = vector.broadcast %19 : vector<1x128xf32> to vector<8x128xf32>
    %21 = arith.addf %18, %20 : vector<8x128xf32>
    %c0_17 = arith.constant 0 : index
    %c0_18 = arith.constant 0 : index
    %22 = vector.load %arg8[%c0_17, %c0_18] : memref<8x128xf32, #tpu.memory_space<vmem>>, vector<8x128xf32>
    tpu.vector_store %arg8[%c0_17, %c0_18], %21 {strides = array<i32>} : memref<8x128xf32, #tpu.memory_space<vmem>>, vector<8x128xf32>,
    return
  }
  func.func @transform_0(%arg0: i32) -> (i32, i32) {
    %c0_i32 = arith.constant 0 : i32
    %c0_i32_0 = arith.constant 0 : i32
    return %arg0, %c0_i32 : i32, i32
  }
  func.func @transform_1(%arg0: i32) -> (i32, i32) {
    %c0_i32 = arith.constant 0 : i32
    %c0_i32_0 = arith.constant 0 : i32
    %c0_i32_1 = arith.constant 0 : i32
    return %c0_i32, %c0_i32_0 : i32, i32
  }
  func.func @transform_2(%arg0: i32) -> (i32, i32) {
    %c0_i32 = arith.constant 0 : i32
    %c0_i32_0 = arith.constant 0 : i32
    %c0_i32_1 = arith.constant 0 : i32
    return %c0_i32, %c0_i32_0 : i32, i32
  }
  func.func @transform_3(%arg0: i32) -> (i32, i32) {
    %c0_i32 = arith.constant 0 : i32
    %c0_i32_0 = arith.constant 0 : i32
    %c0_i32_1 = arith.constant 0 : i32
    return %c0_i32, %c0_i32_0 : i32, i32
  }
  func.func @transform_4(%arg0: i32) -> (i32, i32) {
    %c0_i32 = arith.constant 0 : i32
    %c0_i32_0 = arith.constant 0 : i32
    %c0_i32_1 = arith.constant 0 : i32
    return %c0_i32, %c0_i32_0 : i32, i32
  }
  func.func @transform_5(%arg0: i32) -> (i32, i32) {
    %c0_i32 = arith.constant 0 : i32
    %c0_i32_0 = arith.constant 0 : i32
    %c0_i32_1 = arith.constant 0 : i32
    return %c0_i32, %c0_i32_0 : i32, i32
  }
  func.func @transform_6(%arg0: i32) -> (i32, i32) {
    %c0_i32 = arith.constant 0 : i32
    %c0_i32_0 = arith.constant 0 : i32
    %c0_i32_1 = arith.constant 0 : i32
    return %c0_i32, %c0_i32_0 : i32, i32
  }
  func.func @transform_7(%arg0: i32) -> (i32, i32) {
    %c0_i32 = arith.constant 0 : i32
    %c0_i32_0 = arith.constant 0 : i32
    return %arg0, %c0_i32 : i32, i32
  }
}

</mosaic_0001>

<llo_original>
// kernel: cifar10net_forward.3
$region0: #{cifar10net_forward.3}
  #allocation0 [shape = 'u32[]', space=smem, size = 0x4, offset = 0x4, fixed_abs, tag = 'smem constant byte address 0x4 - core index']
  #allocation1 [shape = 'u32[144,128]{1,0:T(1,128)}', space=vmem, size = 0x12000, scoped, tag = 'internal scratch']
  %s0 = inlined_call_operand.vmem [shape: bf16[8,800,80], index: 0, kind: input, shape index: {}]
  %s1 = inlined_call_operand.vmem [shape: bf16[80,128], index: 1, kind: input, shape index: {}]
  %s2 = inlined_call_operand.vmem [shape: f32[1,128], index: 2, kind: input, shape index: {}]
  %s3 = inlined_call_operand.vmem [shape: bf16[8,200,8], index: 3, kind: output, shape index: {}]
  %s4 = sld [smem:[#allocation0]]
  $region22: #{cifar10net_forward.3} parent=0
    _
  %s6 = ssub.s32 1, %s4
  %s7 = scalar_select 0, %s6, %s4
  // Predicated region
  $region2: #{cifar10net_forward.3} parent=0 // pred_check
    _
  $region3: #{cifar10net_forward.3} parent=0 // pred_check_branch
    %9 = sbr.rel (0) target = $region5
  $region4: #{cifar10net_forward.3} parent=0 // pred_region
    _
  $region5: #{cifar10net_forward.3} parent=0 // pred_fallthru
    _
  // Predicated region
  $region6: #{cifar10net_forward.3} parent=0 // pred_check
    _
  $region7: #{cifar10net_forward.3} parent=0 // pred_check_branch
    %11 = sbr.rel (0) target = $region9
  $region8: #{cifar10net_forward.3} parent=0 // pred_region
    _
  $region9: #{cifar10net_forward.3} parent=0 // pred_fallthru
    _
  // Predicated region
  $region10: #{cifar10net_forward.3} parent=0 // pred_check
    _
  $region11: #{cifar10net_forward.3} parent=0 // pred_check_branch
    %13 = sbr.rel (0) target = $region13
  $region12: #{cifar10net_forward.3} parent=0 // pred_region
    _
  $region13: #{cifar10net_forward.3} parent=0 // pred_fallthru
    _
  %v15 = vld [vmem:[%s1] sm:$0xf]
  %v16 = vld [vmem:[%s1 + $0x4] sm:$0xf]
  %v17 = vld [vmem:[%s1 + $0x8] sm:$0xf]
  %v18 = vld [vmem:[%s1 + $0xc] sm:$0xf]
  %v19 = vld [vmem:[%s1 + $0x10] sm:$0xf]
  %v20 = vld [vmem:[%s1 + $0x14] sm:$0xf]
  %v21 = vld [vmem:[%s1 + $0x18] sm:$0xf]
  %v22 = vld [vmem:[%s1 + $0x1c] sm:$0xf]
  %v23 = vld [vmem:[%s1 + $0x20] sm:$0xf]
  %v24 = vld [vmem:[%s1 + $0x24] sm:$0xf]
  %v25 = vld [vmem:[%s0] sm:$0xf]
  %v26 = vld [vmem:[%s0 + $0x4] sm:$0xf]
  %v27 = vld [vmem:[%s0 + $0x8] sm:$0xf]
  %v28 = vld [vmem:[%s0 + $0xc] sm:$0xf]
  %v29 = vld [vmem:[%s0 + $0x10] sm:$0xf]
  %v30 = vld [vmem:[%s0 + $0x14] sm:$0xf]
  %v31 = vld [vmem:[%s0 + $0x18] sm:$0xf]
  %v32 = vld [vmem:[%s0 + $0x1c] sm:$0xf]
  %v33 = vld [vmem:[%s0 + $0x20] sm:$0xf]
  %v34 = vld [vmem:[%s0 + $0x24] sm:$0xf]
  %v35 = vld [vmem:[%s0 + $0x28] sm:$0xf]
  %v36 = vld [vmem:[%s0 + $0x2c] sm:$0xf]
  %v37 = vld [vmem:[%s0 + $0x30] sm:$0xf]
  %v38 = vld [vmem:[%s0 + $0x34] sm:$0xf]
  %v39 = vld [vmem:[%s0 + $0x38] sm:$0xf]
  %v40 = vld [vmem:[%s0 + $0x3c] sm:$0xf]
  %v41 = vld [vmem:[%s0 + $0x40] sm:$0xf]
  %v42 = vld [vmem:[%s0 + $0x44] sm:$0xf]
  %v43 = vld [vmem:[%s0 + $0x48] sm:$0xf]
  %v44 = vld [vmem:[%s0 + $0x4c] sm:$0xf]
  %v45 = vld [vmem:[%s0 + $0x50] sm:$0xf]
  %v46 = vld [vmem:[%s0 + $0x54] sm:$0xf]
  %v47 = vld [vmem:[%s0 + $0x58] sm:$0xf]
  %v48 = vld [vmem:[%s0 + $0x5c] sm:$0xf]
  %v49 = vld [vmem:[%s0 + $0x60] sm:$0xf]
  %v50 = vld [vmem:[%s0 + $0x190] sm:$0xf]
  %v51 = vld [vmem:[%s0 + $0x194] sm:$0xf]
  %v52 = vld [vmem:[%s0 + $0x198] sm:$0xf]
  %v53 = vld [vmem:[%s0 + $0x19c] sm:$0xf]
  %v54 = vld [vmem:[%s0 + $0x1a0] sm:$0xf]
  %v55 = vld [vmem:[%s0 + $0x1a4] sm:$0xf]
  %v56 = vld [vmem:[%s0 + $0x1a8] sm:$0xf]
  %v57 = vld [vmem:[%s0 + $0x1ac] sm:$0xf]
  %v58 = vld [vmem:[%s0 + $0x1b0] sm:$0xf]
  %v59 = vld [vmem:[%s0 + $0x1b4] sm:$0xf]
  %v60 = vld [vmem:[%s0 + $0x1b8] sm:$0xf]
  %v61 = vld [vmem:[%s0 + $0x1bc] sm:$0xf]
  %v62 = vld [vmem:[%s0 + $0x1c0] sm:$0xf]
  %v63 = vld [vmem:[%s0 + $0x1c4] sm:$0xf]
  %v64 = vld [vmem:[%s0 + $0x1c8] sm:$0xf]
  %v65 = vld [vmem:[%s0 + $0x1cc] sm:$0xf]
  %v66 = vld [vmem:[%s0 + $0x1d0] sm:$0xf]
  %v67 = vld [vmem:[%s0 + $0x1d4] sm:$0xf]
  %v68 = vld [vmem:[%s0 + $0x1d8] sm:$0xf]
  %v69 = vld [vmem:[%s0 + $0x1dc] sm:$0xf]
  %v70 = vld [vmem:[%s0 + $0x1e0] sm:$0xf]
  %v71 = vld [vmem:[%s0 + $0x1e4] sm:$0xf]
  %v72 = vld [vmem:[%s0 + $0x1e8] sm:$0xf]
  %v73 = vld [vmem:[%s0 + $0x1ec] sm:$0xf]
  %v74 = vld [vmem:[%s0 + $0x1f0] sm:$0xf]
  %v75 = vld [vmem:[%s0 + $0x320] sm:$0xf]
  %v76 = vld [vmem:[%s0 + $0x324] sm:$0xf]
  %v77 = vld [vmem:[%s0 + $0x328] sm:$0xf]
  %v78 = vld [vmem:[%s0 + $0x32c] sm:$0xf]
  %v79 = vld [vmem:[%s0 + $0x330] sm:$0xf]
  %v80 = vld [vmem:[%s0 + $0x334] sm:$0xf]
  %v81 = vld [vmem:[%s0 + $0x338] sm:$0xf]
  %v82 = vld [vmem:[%s0 + $0x33c] sm:$0xf]
  %v83 = vld [vmem:[%s0 + $0x340] sm:$0xf]
  %v84 = vld [vmem:[%s0 + $0x344] sm:$0xf]
  %v85 = vld [vmem:[%s0 + $0x348] sm:$0xf]
  %v86 = vld [vmem:[%s0 + $0x34c] sm:$0xf]
  %v87 = vld [vmem:[%s0 + $0x350] sm:$0xf]
  %v88 = vld [vmem:[%s0 + $0x354] sm:$0xf]
  %v89 = vld [vmem:[%s0 + $0x358] sm:$0xf]
  %v90 = vld [vmem:[%s0 + $0x35c] sm:$0xf]
  %v91 = vld [vmem:[%s0 + $0x360] sm:$0xf]
  %v92 = vld [vmem:[%s0 + $0x364] sm:$0xf]
  %v93 = vld [vmem:[%s0 + $0x368] sm:$0xf]
  %v94 = vld [vmem:[%s0 + $0x36c] sm:$0xf]
  %v95 = vld [vmem:[%s0 + $0x370] sm:$0xf]
  %v96 = vld [vmem:[%s0 + $0x374] sm:$0xf]
  %v97 = vld [vmem:[%s0 + $0x378] sm:$0xf]
  %v98 = vld [vmem:[%s0 + $0x37c] sm:$0xf]
  %v99 = vld [vmem:[%s0 + $0x380] sm:$0xf]
  %v100 = vld [vmem:[%s0 + $0x4b0] sm:$0xf]
  %v101 = vld [vmem:[%s0 + $0x4b4] sm:$0xf]
  %v102 = vld [vmem:[%s0 + $0x4b8] sm:$0xf]
  %v103 = vld [vmem:[%s0 + $0x4bc] sm:$0xf]
  %v104 = vld [vmem:[%s0 + $0x4c0] sm:$0xf]
  %v105 = vld [vmem:[%s0 + $0x4c4] sm:$0xf]
  %v106 = vld [vmem:[%s0 + $0x4c8] sm:$0xf]
  %v107 = vld [vmem:[%s0 + $0x4cc] sm:$0xf]
  %v108 = vld [vmem:[%s0 + $0x4d0] sm:$0xf]
  %v109 = vld [vmem:[%s0 + $0x4d4] sm:$0xf]
  %v110 = vld [vmem:[%s0 + $0x4d8] sm:$0xf]
  %v111 = vld [vmem:[%s0 + $0x4dc] sm:$0xf]
  %v112 = vld [vmem:[%s0 + $0x4e0] sm:$0xf]
  %v113 = vld [vmem:[%s0 + $0x4e4] sm:$0xf]
  %v114 = vld [vmem:[%s0 + $0x4e8] sm:$0xf]
  %v115 = vld [vmem:[%s0 + $0x4ec] sm:$0xf]
  %v116 = vld [vmem:[%s0 + $0x4f0] sm:$0xf]
  %v117 = vld [vmem:[%s0 + $0x4f4] sm:$0xf]
  %v118 = vld [vmem:[%s0 + $0x4f8] sm:$0xf]
  %v119 = vld [vmem:[%s0 + $0x4fc] sm:$0xf]
  %v120 = vld [vmem:[%s0 + $0x500] sm:$0xf]
  %v121 = vld [vmem:[%s0 + $0x504] sm:$0xf]
  %v122 = vld [vmem:[%s0 + $0x508] sm:$0xf]
  %v123 = vld [vmem:[%s0 + $0x50c] sm:$0xf]
  %v124 = vld [vmem:[%s0 + $0x510] sm:$0xf]
  %v125 = vld [vmem:[%s0 + $0x640] sm:$0xf]
  %v126 = vld [vmem:[%s0 + $0x644] sm:$0xf]
  %v127 = vld [vmem:[%s0 + $0x648] sm:$0xf]
  %v128 = vld [vmem:[%s0 + $0x64c] sm:$0xf]
  %v129 = vld [vmem:[%s0 + $0x650] sm:$0xf]
  %v130 = vld [vmem:[%s0 + $0x654] sm:$0xf]
  %v131 = vld [vmem:[%s0 + $0x658] sm:$0xf]
  %v132 = vld [vmem:[%s0 + $0x65c] sm:$0xf]
  %v133 = vld [vmem:[%s0 + $0x660] sm:$0xf]
  %v134 = vld [vmem:[%s0 + $0x664] sm:$0xf]
  %v135 = vld [vmem:[%s0 + $0x668] sm:$0xf]
  %v136 = vld [vmem:[%s0 + $0x66c] sm:$0xf]
  %v137 = vld [vmem:[%s0 + $0x670] sm:$0xf]
  %v138 = vld [vmem:[%s0 + $0x674] sm:$0xf]
  %v139 = vld [vmem:[%s0 + $0x678] sm:$0xf]
  %v140 = vld [vmem:[%s0 + $0x67c] sm:$0xf]
  %v141 = vld [vmem:[%s0 + $0x680] sm:$0xf]
  %v142 = vld [vmem:[%s0 + $0x684] sm:$0xf]
  %v143 = vld [vmem:[%s0 + $0x688] sm:$0xf]
  %v144 = vld [vmem:[%s0 + $0x68c] sm:$0xf]
  %v145 = vld [vmem:[%s0 + $0x690] sm:$0xf]
  %v146 = vld [vmem:[%s0 + $0x694] sm:$0xf]
  %v147 = vld [vmem:[%s0 + $0x698] sm:$0xf]
  %v148 = vld [vmem:[%s0 + $0x69c] sm:$0xf]
  %v149 = vld [vmem:[%s0 + $0x6a0] sm:$0xf]
  %v150 = vld [vmem:[%s0 + $0x7d0] sm:$0xf]
  %v151 = vld [vmem:[%s0 + $0x7d4] sm:$0xf]
  %v152 = vld [vmem:[%s0 + $0x7d8] sm:$0xf]
  %v153 = vld [vmem:[%s0 + $0x7dc] sm:$0xf]
  %v154 = vld [vmem:[%s0 + $0x7e0] sm:$0xf]
  %v155 = vld [vmem:[%s0 + $0x7e4] sm:$0xf]
  %v156 = vld [vmem:[%s0 + $0x7e8] sm:$0xf]
  %v157 = vld [vmem:[%s0 + $0x7ec] sm:$0xf]
  %v158 = vld [vmem:[%s0 + $0x7f0] sm:$0xf]
  %v159 = vld [vmem:[%s0 + $0x7f4] sm:$0xf]
  %v160 = vld [vmem:[%s0 + $0x7f8] sm:$0xf]
  %v161 = vld [vmem:[%s0 + $0x7fc] sm:$0xf]
  %v162 = vld [vmem:[%s0 + $0x800] sm:$0xf]
  %v163 = vld [vmem:[%s0 + $0x804] sm:$0xf]
  %v164 = vld [vmem:[%s0 + $0x808] sm:$0xf]
  %v165 = vld [vmem:[%s0 + $0x80c] sm:$0xf]
  %v166 = vld [vmem:[%s0 + $0x810] sm:$0xf]
  %v167 = vld [vmem:[%s0 + $0x814] sm:$0xf]
  %v168 = vld [vmem:[%s0 + $0x818] sm:$0xf]
  %v169 = vld [vmem:[%s0 + $0x81c] sm:$0xf]
  %v170 = vld [vmem:[%s0 + $0x820] sm:$0xf]
  %v171 = vld [vmem:[%s0 + $0x824] sm:$0xf]
  %v172 = vld [vmem:[%s0 + $0x828] sm:$0xf]
  %v173 = vld [vmem:[%s0 + $0x82c] sm:$0xf]
  %v174 = vld [vmem:[%s0 + $0x830] sm:$0xf]
  %v175 = vld [vmem:[%s0 + $0x960] sm:$0xf]
  %v176 = vld [vmem:[%s0 + $0x964] sm:$0xf]
  %v177 = vld [vmem:[%s0 + $0x968] sm:$0xf]
  %v178 = vld [vmem:[%s0 + $0x96c] sm:$0xf]
  %v179 = vld [vmem:[%s0 + $0x970] sm:$0xf]
  %v180 = vld [vmem:[%s0 + $0x974] sm:$0xf]
  %v181 = vld [vmem:[%s0 + $0x978] sm:$0xf]
  %v182 = vld [vmem:[%s0 + $0x97c] sm:$0xf]
  %v183 = vld [vmem:[%s0 + $0x980] sm:$0xf]
  %v184 = vld [vmem:[%s0 + $0x984] sm:$0xf]
  %v185 = vld [vmem:[%s0 + $0x988] sm:$0xf]
  %v186 = vld [vmem:[%s0 + $0x98c] sm:$0xf]
  %v187 = vld [vmem:[%s0 + $0x990] sm:$0xf]
  %v188 = vld [vmem:[%s0 + $0x994] sm:$0xf]
  %v189 = vld [vmem:[%s0 + $0x998] sm:$0xf]
  %v190 = vld [vmem:[%s0 + $0x99c] sm:$0xf]
  %v191 = vld [vmem:[%s0 + $0x9a0] sm:$0xf]
  %v192 = vld [vmem:[%s0 + $0x9a4] sm:$0xf]
  %v193 = vld [vmem:[%s0 + $0x9a8] sm:$0xf]
  %v194 = vld [vmem:[%s0 + $0x9ac] sm:$0xf]
  %v195 = vld [vmem:[%s0 + $0x9b0] sm:$0xf]
  %v196 = vld [vmem:[%s0 + $0x9b4] sm:$0xf]
  %v197 = vld [vmem:[%s0 + $0x9b8] sm:$0xf]
  %v198 = vld [vmem:[%s0 + $0x9bc] sm:$0xf]
  %v199 = vld [vmem:[%s0 + $0x9c0] sm:$0xf]
  %v200 = vld [vmem:[%s0 + $0xaf0] sm:$0xf]
  %v201 = vld [vmem:[%s0 + $0xaf4] sm:$0xf]
  %v202 = vld [vmem:[%s0 + $0xaf8] sm:$0xf]
  %v203 = vld [vmem:[%s0 + $0xafc] sm:$0xf]
  %v204 = vld [vmem:[%s0 + $0xb00] sm:$0xf]
  %v205 = vld [vmem:[%s0 + $0xb04] sm:$0xf]
  %v206 = vld [vmem:[%s0 + $0xb08] sm:$0xf]
  %v207 = vld [vmem:[%s0 + $0xb0c] sm:$0xf]
  %v208 = vld [vmem:[%s0 + $0xb10] sm:$0xf]
  %v209 = vld [vmem:[%s0 + $0xb14] sm:$0xf]
  %v210 = vld [vmem:[%s0 + $0xb18] sm:$0xf]
  %v211 = vld [vmem:[%s0 + $0xb1c] sm:$0xf]
  %v212 = vld [vmem:[%s0 + $0xb20] sm:$0xf]
  %v213 = vld [vmem:[%s0 + $0xb24] sm:$0xf]
  %v214 = vld [vmem:[%s0 + $0xb28] sm:$0xf]
  %v215 = vld [vmem:[%s0 + $0xb2c] sm:$0xf]
  %v216 = vld [vmem:[%s0 + $0xb30] sm:$0xf]
  %v217 = vld [vmem:[%s0 + $0xb34] sm:$0xf]
  %v218 = vld [vmem:[%s0 + $0xb38] sm:$0xf]
  %v219 = vld [vmem:[%s0 + $0xb3c] sm:$0xf]
  %v220 = vld [vmem:[%s0 + $0xb40] sm:$0xf]
  %v221 = vld [vmem:[%s0 + $0xb44] sm:$0xf]
  %v222 = vld [vmem:[%s0 + $0xb48] sm:$0xf]
  %v223 = vld [vmem:[%s0 + $0xb4c] sm:$0xf]
  %v224 = vld [vmem:[%s0 + $0xb50] sm:$0xf]
  %v425 = vunpack.c.l.b16 %v25
  %v426 = vunpack.c.l.b16 %v26
  %v427 = vunpack.c.l.b16 %v27
  %v428 = vunpack.c.l.b16 %v28
  %v429 = vunpack.c.l.b16 %v29
  %v430 = vunpack.c.l.b16 %v30
  %v431 = vunpack.c.l.b16 %v31
  %v432 = vunpack.c.l.b16 %v32
  %v433 = vunpack.c.l.b16 %v33
  %v434 = vunpack.c.l.b16 %v34
  %v435 = vunpack.c.l.b16 %v35
  %v436 = vunpack.c.l.b16 %v36
  %v437 = vunpack.c.l.b16 %v37
  %v438 = vunpack.c.l.b16 %v38
  %v439 = vunpack.c.l.b16 %v39
  %v440 = vunpack.c.l.b16 %v40
  %v441 = vunpack.c.l.b16 %v41
  %v442 = vunpack.c.l.b16 %v42
  %v443 = vunpack.c.l.b16 %v43
  %v444 = vunpack.c.l.b16 %v44
  %v445 = vunpack.c.l.b16 %v45
  %v446 = vunpack.c.l.b16 %v46
  %v447 = vunpack.c.l.b16 %v47
  %v448 = vunpack.c.l.b16 %v48
  %v449 = vunpack.c.l.b16 %v49
  %v450 = vunpack.c.l.b16 %v50
  %v451 = vunpack.c.l.b16 %v51
  %v452 = vunpack.c.l.b16 %v52
  %v453 = vunpack.c.l.b16 %v53
  %v454 = vunpack.c.l.b16 %v54
  %v455 = vunpack.c.l.b16 %v55
  %v456 = vunpack.c.l.b16 %v56
  %v457 = vunpack.c.l.b16 %v57
  %v458 = vunpack.c.l.b16 %v58
  %v459 = vunpack.c.l.b16 %v59
  %v460 = vunpack.c.l.b16 %v60
  %v461 = vunpack.c.l.b16 %v61
  %v462 = vunpack.c.l.b16 %v62
  %v463 = vunpack.c.l.b16 %v63
  %v464 = vunpack.c.l.b16 %v64
  %v465 = vunpack.c.l.b16 %v65
  %v466 = vunpack.c.l.b16 %v66
  %v467 = vunpack.c.l.b16 %v67
  %v468 = vunpack.c.l.b16 %v68
  %v469 = vunpack.c.l.b16 %v69
  %v470 = vunpack.c.l.b16 %v70
  %v471 = vunpack.c.l.b16 %v71
  %v472 = vunpack.c.l.b16 %v72
  %v473 = vunpack.c.l.b16 %v73
  %v474 = vunpack.c.l.b16 %v74
  %v475 = vunpack.c.l.b16 %v75
  %v476 = vunpack.c.l.b16 %v76
  %v477 = vunpack.c.l.b16 %v77
  %v478 = vunpack.c.l.b16 %v78
  %v479 = vunpack.c.l.b16 %v79
  %v480 = vunpack.c.l.b16 %v80
  %v481 = vunpack.c.l.b16 %v81
  %v482 = vunpack.c.l.b16 %v82
  %v483 = vunpack.c.l.b16 %v83
  %v484 = vunpack.c.l.b16 %v84
  %v485 = vunpack.c.l.b16 %v85
  %v486 = vunpack.c.l.b16 %v86
  %v487 = vunpack.c.l.b16 %v87
  %v488 = vunpack.c.l.b16 %v88
  %v489 = vunpack.c.l.b16 %v89
  %v490 = vunpack.c.l.b16 %v90
  %v491 = vunpack.c.l.b16 %v91
  %v492 = vunpack.c.l.b16 %v92
  %v493 = vunpack.c.l.b16 %v93
  %v494 = vunpack.c.l.b16 %v94
  %v495 = vunpack.c.l.b16 %v95
  %v496 = vunpack.c.l.b16 %v96
  %v497 = vunpack.c.l.b16 %v97
  %v498 = vunpack.c.l.b16 %v98
  %v499 = vunpack.c.l.b16 %v99
  %v500 = vunpack.c.l.b16 %v100
  %v501 = vunpack.c.l.b16 %v101
  %v502 = vunpack.c.l.b16 %v102
  %v503 = vunpack.c.l.b16 %v103
  %v504 = vunpack.c.l.b16 %v104
  %v505 = vunpack.c.l.b16 %v105
  %v506 = vunpack.c.l.b16 %v106
  %v507 = vunpack.c.l.b16 %v107
  %v508 = vunpack.c.l.b16 %v108
  %v509 = vunpack.c.l.b16 %v109
  %v510 = vunpack.c.l.b16 %v110
  %v511 = vunpack.c.l.b16 %v111
  %v512 = vunpack.c.l.b16 %v112
  %v513 = vunpack.c.l.b16 %v113
  %v514 = vunpack.c.l.b16 %v114
  %v515 = vunpack.c.l.b16 %v115
  %v516 = vunpack.c.l.b16 %v116
  %v517 = vunpack.c.l.b16 %v117
  %v518 = vunpack.c.l.b16 %v118
  %v519 = vunpack.c.l.b16 %v119
  %v520 = vunpack.c.l.b16 %v120
  %v521 = vunpack.c.l.b16 %v121
  %v522 = vunpack.c.l.b16 %v122
  %v523 = vunpack.c.l.b16 %v123
  %v524 = vunpack.c.l.b16 %v124
  %v525 = vunpack.c.l.b16 %v125
  %v526 = vunpack.c.l.b16 %v126
  %v527 = vunpack.c.l.b16 %v127
  %v528 = vunpack.c.l.b16 %v128
  %v529 = vunpack.c.l.b16 %v129
  %v530 = vunpack.c.l.b16 %v130
  %v531 = vunpack.c.l.b16 %v131
  %v532 = vunpack.c.l.b16 %v132
  %v533 = vunpack.c.l.b16 %v133
  %v534 = vunpack.c.l.b16 %v134
  %v535 = vunpack.c.l.b16 %v135
  %v536 = vunpack.c.l.b16 %v136
  %v537 = vunpack.c.l.b16 %v137
  %v538 = vunpack.c.l.b16 %v138
  %v539 = vunpack.c.l.b16 %v139
  %v540 = vunpack.c.l.b16 %v140
  %v541 = vunpack.c.l.b16 %v141
  %v542 = vunpack.c.l.b16 %v142
  %v543 = vunpack.c.l.b16 %v143
  %v544 = vunpack.c.l.b16 %v144
  %v545 = vunpack.c.l.b16 %v145
  %v546 = vunpack.c.l.b16 %v146
  %v547 = vunpack.c.l.b16 %v147
  %v548 = vunpack.c.l.b16 %v148
  %v549 = vunpack.c.l.b16 %v149
  %v550 = vunpack.c.l.b16 %v150
  %v551 = vunpack.c.l.b16 %v151
  %v552 = vunpack.c.l.b16 %v152
  %v553 = vunpack.c.l.b16 %v153
  %v554 = vunpack.c.l.b16 %v154
  %v555 = vunpack.c.l.b16 %v155
  %v556 = vunpack.c.l.b16 %v156
  %v557 = vunpack.c.l.b16 %v157
  %v558 = vunpack.c.l.b16 %v158
  %v559 = vunpack.c.l.b16 %v159
  %v560 = vunpack.c.l.b16 %v160
  %v561 = vunpack.c.l.b16 %v161
  %v562 = vunpack.c.l.b16 %v162
  %v563 = vunpack.c.l.b16 %v163
  %v564 = vunpack.c.l.b16 %v164
  %v565 = vunpack.c.l.b16 %v165
  %v566 = vunpack.c.l.b16 %v166
  %v567 = vunpack.c.l.b16 %v167
  %v568 = vunpack.c.l.b16 %v168
  %v569 = vunpack.c.l.b16 %v169
  %v570 = vunpack.c.l.b16 %v170
  %v571 = vunpack.c.l.b16 %v171
  %v572 = vunpack.c.l.b16 %v172
  %v573 = vunpack.c.l.b16 %v173
  %v574 = vunpack.c.l.b16 %v174
  %v575 = vunpack.c.l.b16 %v175
  %v576 = vunpack.c.l.b16 %v176
  %v577 = vunpack.c.l.b16 %v177
  %v578 = vunpack.c.l.b16 %v178
  %v579 = vunpack.c.l.b16 %v179
  %v580 = vunpack.c.l.b16 %v180
  %v581 = vunpack.c.l.b16 %v181
  %v582 = vunpack.c.l.b16 %v182
  %v583 = vunpack.c.l.b16 %v183
  %v584 = vunpack.c.l.b16 %v184
  %v585 = vunpack.c.l.b16 %v185
  %v586 = vunpack.c.l.b16 %v186
  %v587 = vunpack.c.l.b16 %v187
  %v588 = vunpack.c.l.b16 %v188
  %v589 = vunpack.c.l.b16 %v189
  %v590 = vunpack.c.l.b16 %v190
  %v591 = vunpack.c.l.b16 %v191
  %v592 = vunpack.c.l.b16 %v192
  %v593 = vunpack.c.l.b16 %v193
  %v594 = vunpack.c.l.b16 %v194
  %v595 = vunpack.c.l.b16 %v195
  %v596 = vunpack.c.l.b16 %v196
  %v597 = vunpack.c.l.b16 %v197
  %v598 = vunpack.c.l.b16 %v198
  %v599 = vunpack.c.l.b16 %v199
  %v600 = vunpack.c.l.b16 %v200
  %v601 = vunpack.c.l.b16 %v201
  %v602 = vunpack.c.l.b16 %v202
  %v603 = vunpack.c.l.b16 %v203
  %v604 = vunpack.c.l.b16 %v204
  %v605 = vunpack.c.l.b16 %v205
  %v606 = vunpack.c.l.b16 %v206
  %v607 = vunpack.c.l.b16 %v207
  %v608 = vunpack.c.l.b16 %v208
  %v609 = vunpack.c.l.b16 %v209
  %v610 = vunpack.c.l.b16 %v210
  %v611 = vunpack.c.l.b16 %v211
  %v612 = vunpack.c.l.b16 %v212
  %v613 = vunpack.c.l.b16 %v213
  %v614 = vunpack.c.l.b16 %v214
  %v615 = vunpack.c.l.b16 %v215
  %v616 = vunpack.c.l.b16 %v216
  %v617 = vunpack.c.l.b16 %v217
  %v618 = vunpack.c.l.b16 %v218
  %v619 = vunpack.c.l.b16 %v219
  %v620 = vunpack.c.l.b16 %v220
  %v621 = vunpack.c.l.b16 %v221
  %v622 = vunpack.c.l.b16 %v222
  %v623 = vunpack.c.l.b16 %v223
  %v624 = vunpack.c.l.b16 %v224
  %v625 = vpack.c.b16 %v426, %v425
  %v626 = vpack.c.b16 %v428, %v427
  %v627 = vpack.c.b16 %v430, %v429
  %v628 = vpack.c.b16 %v432, %v431
  %v629 = vpack.c.b16 %v434, %v433
  %v630 = vpack.c.b16 %v436, %v435
  %v631 = vpack.c.b16 %v438, %v437
  %v632 = vpack.c.b16 %v440, %v439
  %v633 = vpack.c.b16 %v442, %v441
  %v634 = vpack.c.b16 %v444, %v443
  %v635 = vpack.c.b16 %v446, %v445
  %v636 = vpack.c.b16 %v448, %v447
  %v637 = vpack.c.b16 %v450, %v449
  %v638 = vpack.c.b16 %v452, %v451
  %v639 = vpack.c.b16 %v454, %v453
  %v640 = vpack.c.b16 %v456, %v455
  %v641 = vpack.c.b16 %v458, %v457
  %v642 = vpack.c.b16 %v460, %v459
  %v643 = vpack.c.b16 %v462, %v461
  %v644 = vpack.c.b16 %v464, %v463
  %v645 = vpack.c.b16 %v466, %v465
  %v646 = vpack.c.b16 %v468, %v467
  %v647 = vpack.c.b16 %v470, %v469
  %v648 = vpack.c.b16 %v472, %v471
  %v649 = vpack.c.b16 %v474, %v473
  %v650 = vpack.c.b16 %v476, %v475
  %v651 = vpack.c.b16 %v478, %v477
  %v652 = vpack.c.b16 %v480, %v479
  %v653 = vpack.c.b16 %v482, %v481
  %v654 = vpack.c.b16 %v484, %v483
  %v655 = vpack.c.b16 %v486, %v485
  %v656 = vpack.c.b16 %v488, %v487
  %v657 = vpack.c.b16 %v490, %v489
  %v658 = vpack.c.b16 %v492, %v491
  %v659 = vpack.c.b16 %v494, %v493
  %v660 = vpack.c.b16 %v496, %v495
  %v661 = vpack.c.b16 %v498, %v497
  %v662 = vpack.c.b16 %v500, %v499
  %v663 = vpack.c.b16 %v502, %v501
  %v664 = vpack.c.b16 %v504, %v503
  %v665 = vpack.c.b16 %v506, %v505
  %v666 = vpack.c.b16 %v508, %v507
  %v667 = vpack.c.b16 %v510, %v509
  %v668 = vpack.c.b16 %v512, %v511
  %v669 = vpack.c.b16 %v514, %v513
  %v670 = vpack.c.b16 %v516, %v515
  %v671 = vpack.c.b16 %v518, %v517
  %v672 = vpack.c.b16 %v520, %v519
  %v673 = vpack.c.b16 %v522, %v521
  %v674 = vpack.c.b16 %v524, %v523
  %v675 = vpack.c.b16 %v526, %v525
  %v676 = vpack.c.b16 %v528, %v527
  %v677 = vpack.c.b16 %v530, %v529
  %v678 = vpack.c.b16 %v532, %v531
  %v679 = vpack.c.b16 %v534, %v533
  %v680 = vpack.c.b16 %v536, %v535
  %v681 = vpack.c.b16 %v538, %v537
  %v682 = vpack.c.b16 %v540, %v539
  %v683 = vpack.c.b16 %v542, %v541
  %v684 = vpack.c.b16 %v544, %v543
  %v685 = vpack.c.b16 %v546, %v545
  %v686 = vpack.c.b16 %v548, %v547
  %v687 = vpack.c.b16 %v550, %v549
  %v688 = vpack.c.b16 %v552, %v551
  %v689 = vpack.c.b16 %v554, %v553
  %v690 = vpack.c.b16 %v556, %v555
  %v691 = vpack.c.b16 %v558, %v557
  %v692 = vpack.c.b16 %v560, %v559
  %v693 = vpack.c.b16 %v562, %v561
  %v694 = vpack.c.b16 %v564, %v563
  %v695 = vpack.c.b16 %v566, %v565
  %v696 = vpack.c.b16 %v568, %v567
  %v697 = vpack.c.b16 %v570, %v569
  %v698 = vpack.c.b16 %v572, %v571
  %v699 = vpack.c.b16 %v574, %v573
  %v700 = vpack.c.b16 %v576, %v575
  %v701 = vpack.c.b16 %v578, %v577
  %v702 = vpack.c.b16 %v580, %v579
  %v703 = vpack.c.b16 %v582, %v581
  %v704 = vpack.c.b16 %v584, %v583
  %v705 = vpack.c.b16 %v586, %v585
  %v706 = vpack.c.b16 %v588, %v587
  %v707 = vpack.c.b16 %v590, %v589
  %v708 = vpack.c.b16 %v592, %v591
  %v709 = vpack.c.b16 %v594, %v593
  %v710 = vpack.c.b16 %v596, %v595
  %v711 = vpack.c.b16 %v598, %v597
  %v712 = vpack.c.b16 %v600, %v599
  %v713 = vpack.c.b16 %v602, %v601
  %v714 = vpack.c.b16 %v604, %v603
  %v715 = vpack.c.b16 %v606, %v605
  %v716 = vpack.c.b16 %v608, %v607
  %v717 = vpack.c.b16 %v610, %v609
  %v718 = vpack.c.b16 %v612, %v611
  %v719 = vpack.c.b16 %v614, %v613
  %v720 = vpack.c.b16 %v616, %v615
  %v721 = vpack.c.b16 %v618, %v617
  %v722 = vpack.c.b16 %v620, %v619
  %v723 = vpack.c.b16 %v622, %v621
  %v724 = vpack.c.b16 %v624, %v623
  %v735 = vunpack.c.l.b16 %v15
  %v736 = vunpack.c.l.b16 %v16
  %v737 = vunpack.c.l.b16 %v17
  %v738 = vunpack.c.l.b16 %v18
  %v739 = vunpack.c.l.b16 %v19
  %v740 = vunpack.c.l.b16 %v20
  %v741 = vunpack.c.l.b16 %v21
  %v742 = vunpack.c.l.b16 %v22
  %v743 = vunpack.c.l.b16 %v23
  %v744 = vunpack.c.l.b16 %v24
  %v745 = vpack.c.b16 %v736, %v735
  %v746 = vpack.c.b16 %v738, %v737
  %v747 = vpack.c.b16 %v740, %v739
  %v748 = vpack.c.b16 %v742, %v741
  %v749 = vpack.c.b16 %v744, %v743
  %vm755 = vcmask 654336
  %v757 = vsel %vm755, %v625, 0
  %v760 = vsel %vm755, %v626, 0
  %v763 = vsel %vm755, %v627, 0
  %v766 = vsel %vm755, %v628, 0
  %v769 = vsel %vm755, %v629, 0
  %v772 = vsel %vm755, %v630, 0
  %v775 = vsel %vm755, %v631, 0
  %v778 = vsel %vm755, %v632, 0
  %v781 = vsel %vm755, %v633, 0
  %v784 = vsel %vm755, %v634, 0
  %v787 = vsel %vm755, %v635, 0
  %v790 = vsel %vm755, %v636, 0
  %v793 = vsel %vm755, %v637, 0
  %v796 = vsel %vm755, %v638, 0
  %v799 = vsel %vm755, %v639, 0
  %v802 = vsel %vm755, %v640, 0
  %v805 = vsel %vm755, %v641, 0
  %v808 = vsel %vm755, %v642, 0
  %v811 = vsel %vm755, %v643, 0
  %v814 = vsel %vm755, %v644, 0
  %v817 = vsel %vm755, %v645, 0
  %v820 = vsel %vm755, %v646, 0
  %v823 = vsel %vm755, %v647, 0
  %v826 = vsel %vm755, %v648, 0
  %v829 = vsel %vm755, %v649, 0
  %v832 = vsel %vm755, %v650, 0
  %v835 = vsel %vm755, %v651, 0
  %v838 = vsel %vm755, %v652, 0
  %v841 = vsel %vm755, %v653, 0
  %v844 = vsel %vm755, %v654, 0
  %v847 = vsel %vm755, %v655, 0
  %v850 = vsel %vm755, %v656, 0
  %v853 = vsel %vm755, %v657, 0
  %v856 = vsel %vm755, %v658, 0
  %v859 = vsel %vm755, %v659, 0
  %v862 = vsel %vm755, %v660, 0
  %v865 = vsel %vm755, %v661, 0
  %v868 = vsel %vm755, %v662, 0
  %v871 = vsel %vm755, %v663, 0
  %v874 = vsel %vm755, %v664, 0
  %v877 = vsel %vm755, %v665, 0
  %v880 = vsel %vm755, %v666, 0
  %v883 = vsel %vm755, %v667, 0
  %v886 = vsel %vm755, %v668, 0
  %v889 = vsel %vm755, %v669, 0
  %v892 = vsel %vm755, %v670, 0
  %v895 = vsel %vm755, %v671, 0
  %v898 = vsel %vm755, %v672, 0
  %v901 = vsel %vm755, %v673, 0
  %v904 = vsel %vm755, %v674, 0
  %v907 = vsel %vm755, %v675, 0
  %v910 = vsel %vm755, %v676, 0
  %v913 = vsel %vm755, %v677, 0
  %v916 = vsel %vm755, %v678, 0
  %v919 = vsel %vm755, %v679, 0
  %v922 = vsel %vm755, %v680, 0
  %v925 = vsel %vm755, %v681, 0
  %v928 = vsel %vm755, %v682, 0
  %v931 = vsel %vm755, %v683, 0
  %v934 = vsel %vm755, %v684, 0
  %v937 = vsel %vm755, %v685, 0
  %v940 = vsel %vm755, %v686, 0
  %v943 = vsel %vm755, %v687, 0
  %v946 = vsel %vm755, %v688, 0
  %v949 = vsel %vm755, %v689, 0
  %v952 = vsel %vm755, %v690, 0
  %v955 = vsel %vm755, %v691, 0
  %v958 = vsel %vm755, %v692, 0
  %v961 = vsel %vm755, %v693, 0
  %v964 = vsel %vm755, %v694, 0
  %v967 = vsel %vm755, %v695, 0
  %v970 = vsel %vm755, %v696, 0
  %v973 = vsel %vm755, %v697, 0
  %v976 = vsel %vm755, %v698, 0
  %v979 = vsel %vm755, %v699, 0
  %v982 = vsel %vm755, %v700, 0
  %v985 = vsel %vm755, %v701, 0
  %v988 = vsel %vm755, %v702, 0
  %v991 = vsel %vm755, %v703, 0
  %v994 = vsel %vm755, %v704, 0
  %v997 = vsel %vm755, %v705, 0
  %v1000 = vsel %vm755, %v706, 0
  %v1003 = vsel %vm755, %v707, 0
  %v1006 = vsel %vm755, %v708, 0
  %v1009 = vsel %vm755, %v709, 0
  %v1012 = vsel %vm755, %v710, 0
  %v1015 = vsel %vm755, %v711, 0
  %v1018 = vsel %vm755, %v712, 0
  %v1021 = vsel %vm755, %v713, 0
  %v1024 = vsel %vm755, %v714, 0
  %v1027 = vsel %vm755, %v715, 0
  %v1030 = vsel %vm755, %v716, 0
  %v1033 = vsel %vm755, %v717, 0
  %v1036 = vsel %vm755, %v718, 0
  %v1039 = vsel %vm755, %v719, 0
  %v1042 = vsel %vm755, %v720, 0
  %v1045 = vsel %vm755, %v721, 0
  %v1048 = vsel %vm755, %v722, 0
  %v1051 = vsel %vm755, %v723, 0
  %v1054 = vsel %vm755, %v724, 0
  %1056 = vmatprep.subr.bf16.mxu0 0
  %1057 = vmatpush1.bf16.msra.mxu0 0
  %1058 = vmatprep.subr.bf16.mxu0 0
  %1059 = vmatpush1.bf16.msra.mxu0 0
  %1060 = vmatprep.subr.bf16.mxu0 0
  %1061 = vmatpush1.bf16.msra.mxu0 0
  %1062 = vmatprep.subr.bf16.mxu0 0
  %1063 = vmatpush1.bf16.msra.mxu0 %v749
  %1064 = vmatprep.subr.bf16.mxu0 0
  %1065 = vmatpush1.bf16.msra.mxu0 %v748
  %1066 = vmatprep.subr.bf16.mxu0 0
  %1067 = vmatpush1.bf16.msra.mxu0 %v747
  %1068 = vmatprep.subr.bf16.mxu0 0
  %1069 = vmatpush1.bf16.msra.mxu0 %v746
  %1070 = vmatprep.subr.bf16.mxu0 0
  %1071 = vmatpush1.bf16.msra.mxu0 %v745
  %1072 = vmatprep.subr.bf16.mxu0 0
  %1073 = vmatpush2.bf16.msra.mxu0 0
  %1074 = vmatprep.subr.bf16.mxu0 0
  %1075 = vmatpush2.bf16.msra.mxu0 0
  %1076 = vmatprep.subr.bf16.mxu0 0
  %1077 = vmatpush2.bf16.msra.mxu0 0
  %1078 = vmatprep.subr.bf16.mxu0 0
  %1079 = vmatpush2.bf16.msra.mxu0 0
  %1080 = vmatprep.subr.bf16.mxu0 0
  %1081 = vmatpush2.bf16.msra.mxu0 0
  %1082 = vmatprep.subr.bf16.mxu0 0
  %1083 = vmatpush2.bf16.msra.mxu0 0
  %1084 = vmatprep.subr.bf16.mxu0 0
  %1085 = vmatpush2.bf16.msra.mxu0 0
  %1086 = vmatprep.subr.bf16.mxu0 0
  %1087 = vmatpush2.bf16.msra.mxu0 0
  %1088 = vmatprep.mubr.bf16.mxu0 0
  %1089 = vmatmul.mubr.bf16.gmra.mxu0 %v757
  %v1090 = vpop.f32.mrf.mxu0
  %v1091 = vadd.f32 0.0, %v1090
  %v1092 = vpop.f32.mrf.mxu0
  %v1093 = vpop.f32.mrf.mxu0
  %v1094 = vadd.f32 0.0, %v1093
  %v1095 = vpop.f32.mrf.mxu0
  %1096 = vmatprep.mubr.bf16.mxu0 0
  %1097 = vmatmul.mubr.bf16.gmra.mxu0 %v760
  %v1098 = vpop.f32.mrf.mxu0
  %v1099 = vadd.f32 0.0, %v1098
  %v1100 = vpop.f32.mrf.mxu0
  %v1101 = vpop.f32.mrf.mxu0
  %v1102 = vadd.f32 0.0, %v1101
  %v1103 = vpop.f32.mrf.mxu0
  %1104 = vmatprep.mubr.bf16.mxu0 0
  %1105 = vmatmul.mubr.bf16.gmra.mxu0 %v763
  %v1106 = vpop.f32.mrf.mxu0
  %v1107 = vadd.f32 0.0, %v1106
  %v1108 = vpop.f32.mrf.mxu0
  %v1109 = vpop.f32.mrf.mxu0
  %v1110 = vadd.f32 0.0, %v1109
  %v1111 = vpop.f32.mrf.mxu0
  %1112 = vmatprep.mubr.bf16.mxu0 0
  %1113 = vmatmul.mubr.bf16.gmra.mxu0 %v766
  %v1114 = vpop.f32.mrf.mxu0
  %v1115 = vadd.f32 0.0, %v1114
  %v1116 = vpop.f32.mrf.mxu0
  %v1117 = vpop.f32.mrf.mxu0
  %v1118 = vadd.f32 0.0, %v1117
  %v1119 = vpop.f32.mrf.mxu0
  %1120 = vmatprep.mubr.bf16.mxu0 0
  %1121 = vmatmul.mubr.bf16.gmra.mxu0 %v769
  %v1122 = vpop.f32.mrf.mxu0
  %v1123 = vadd.f32 0.0, %v1122
  %v1124 = vpop.f32.mrf.mxu0
  %v1125 = vpop.f32.mrf.mxu0
  %v1126 = vadd.f32 0.0, %v1125
  %v1127 = vpop.f32.mrf.mxu0
  %1128 = vmatprep.mubr.bf16.mxu0 0
  %1129 = vmatmul.mubr.bf16.gmra.mxu0 %v772
  %v1130 = vpop.f32.mrf.mxu0
  %v1131 = vadd.f32 0.0, %v1130
  %v1132 = vpop.f32.mrf.mxu0
  %v1133 = vpop.f32.mrf.mxu0
  %v1134 = vadd.f32 0.0, %v1133
  %v1135 = vpop.f32.mrf.mxu0
  %1136 = vmatprep.mubr.bf16.mxu0 0
  %1137 = vmatmul.mubr.bf16.gmra.mxu0 %v775
  %v1138 = vpop.f32.mrf.mxu0
  %v1139 = vadd.f32 0.0, %v1138
  %v1140 = vpop.f32.mrf.mxu0
  %v1141 = vpop.f32.mrf.mxu0
  %v1142 = vadd.f32 0.0, %v1141
  %v1143 = vpop.f32.mrf.mxu0
  %1144 = vmatprep.mubr.bf16.mxu0 0
  %1145 = vmatmul.mubr.bf16.gmra.mxu0 %v778
  %v1146 = vpop.f32.mrf.mxu0
  %v1147 = vadd.f32 0.0, %v1146
  %v1148 = vpop.f32.mrf.mxu0
  %v1149 = vpop.f32.mrf.mxu0
  %v1150 = vadd.f32 0.0, %v1149
  %v1151 = vpop.f32.mrf.mxu0
  %1152 = vmatprep.mubr.bf16.mxu0 0
  %1153 = vmatmul.mubr.bf16.gmra.mxu0 %v781
  %v1154 = vpop.f32.mrf.mxu0
  %v1155 = vadd.f32 0.0, %v1154
  %v1156 = vpop.f32.mrf.mxu0
  %v1157 = vpop.f32.mrf.mxu0
  %v1158 = vadd.f32 0.0, %v1157
  %v1159 = vpop.f32.mrf.mxu0
  %1160 = vmatprep.mubr.bf16.mxu0 0
  %1161 = vmatmul.mubr.bf16.gmra.mxu0 %v784
  %v1162 = vpop.f32.mrf.mxu0
  %v1163 = vadd.f32 0.0, %v1162
  %v1164 = vpop.f32.mrf.mxu0
  %v1165 = vpop.f32.mrf.mxu0
  %v1166 = vadd.f32 0.0, %v1165
  %v1167 = vpop.f32.mrf.mxu0
  %1168 = vmatprep.mubr.bf16.mxu0 0
  %1169 = vmatmul.mubr.bf16.gmra.mxu0 %v787
  %v1170 = vpop.f32.mrf.mxu0
  %v1171 = vadd.f32 0.0, %v1170
  %v1172 = vpop.f32.mrf.mxu0
  %v1173 = vpop.f32.mrf.mxu0
  %v1174 = vadd.f32 0.0, %v1173
  %v1175 = vpop.f32.mrf.mxu0
  %1176 = vmatprep.mubr.bf16.mxu0 0
  %1177 = vmatmul.mubr.bf16.gmra.mxu0 %v790
  %v1178 = vpop.f32.mrf.mxu0
  %v1179 = vadd.f32 0.0, %v1178
  %v1180 = vpop.f32.mrf.mxu0
  %v1181 = vpop.f32.mrf.mxu0
  %v1182 = vadd.f32 0.0, %v1181
  %v1183 = vpop.f32.mrf.mxu0
  %1184 = vmatprep.mubr.bf16.mxu0 0
  %1185 = vmatmul.mubr.bf16.gmra.mxu0 %v793
  %v1186 = vpop.f32.mrf.mxu0
  %v1187 = vadd.f32 0.0, %v1186
  %v1188 = vpop.f32.mrf.mxu0
  %v1189 = vpop.f32.mrf.mxu0
  %v1190 = vadd.f32 0.0, %v1189
  %v1191 = vpop.f32.mrf.mxu0
  %1192 = vmatprep.mubr.bf16.mxu0 0
  %1193 = vmatmul.mubr.bf16.gmra.mxu0 %v796
  %v1194 = vpop.f32.mrf.mxu0
  %v1195 = vadd.f32 0.0, %v1194
  %v1196 = vpop.f32.mrf.mxu0
  %v1197 = vpop.f32.mrf.mxu0
  %v1198 = vadd.f32 0.0, %v1197
  %v1199 = vpop.f32.mrf.mxu0
  %1200 = vmatprep.mubr.bf16.mxu0 0
  %1201 = vmatmul.mubr.bf16.gmra.mxu0 %v799
  %v1202 = vpop.f32.mrf.mxu0
  %v1203 = vadd.f32 0.0, %v1202
  %v1204 = vpop.f32.mrf.mxu0
  %v1205 = vpop.f32.mrf.mxu0
  %v1206 = vadd.f32 0.0, %v1205
  %v1207 = vpop.f32.mrf.mxu0
  %1208 = vmatprep.mubr.bf16.mxu0 0
  %1209 = vmatmul.mubr.bf16.gmra.mxu0 %v802
  %v1210 = vpop.f32.mrf.mxu0
  %v1211 = vadd.f32 0.0, %v1210
  %v1212 = vpop.f32.mrf.mxu0
  %v1213 = vpop.f32.mrf.mxu0
  %v1214 = vadd.f32 0.0, %v1213
  %v1215 = vpop.f32.mrf.mxu0
  %1216 = vmatprep.mubr.bf16.mxu0 0
  %1217 = vmatmul.mubr.bf16.gmra.mxu0 %v805
  %v1218 = vpop.f32.mrf.mxu0
  %v1219 = vadd.f32 0.0, %v1218
  %v1220 = vpop.f32.mrf.mxu0
  %v1221 = vpop.f32.mrf.mxu0
  %v1222 = vadd.f32 0.0, %v1221
  %v1223 = vpop.f32.mrf.mxu0
  %1224 = vmatprep.mubr.bf16.mxu0 0
  %1225 = vmatmul.mubr.bf16.gmra.mxu0 %v808
  %v1226 = vpop.f32.mrf.mxu0
  %v1227 = vadd.f32 0.0, %v1226
  %v1228 = vpop.f32.mrf.mxu0
  %v1229 = vpop.f32.mrf.mxu0
  %v1230 = vadd.f32 0.0, %v1229
  %v1231 = vpop.f32.mrf.mxu0
  %1232 = vmatprep.mubr.bf16.mxu0 0
  %1233 = vmatmul.mubr.bf16.gmra.mxu0 %v811
  %v1234 = vpop.f32.mrf.mxu0
  %v1235 = vadd.f32 0.0, %v1234
  %v1236 = vpop.f32.mrf.mxu0
  %v1237 = vpop.f32.mrf.mxu0
  %v1238 = vadd.f32 0.0, %v1237
  %v1239 = vpop.f32.mrf.mxu0
  %1240 = vmatprep.mubr.bf16.mxu0 0
  %1241 = vmatmul.mubr.bf16.gmra.mxu0 %v814
  %v1242 = vpop.f32.mrf.mxu0
  %v1243 = vadd.f32 0.0, %v1242
  %v1244 = vpop.f32.mrf.mxu0
  %v1245 = vpop.f32.mrf.mxu0
  %v1246 = vadd.f32 0.0, %v1245
  %v1247 = vpop.f32.mrf.mxu0
  %1248 = vmatprep.mubr.bf16.mxu0 0
  %1249 = vmatmul.mubr.bf16.gmra.mxu0 %v817
  %v1250 = vpop.f32.mrf.mxu0
  %v1251 = vadd.f32 0.0, %v1250
  %v1252 = vpop.f32.mrf.mxu0
  %v1253 = vpop.f32.mrf.mxu0
  %v1254 = vadd.f32 0.0, %v1253
  %v1255 = vpop.f32.mrf.mxu0
  %1256 = vmatprep.mubr.bf16.mxu0 0
  %1257 = vmatmul.mubr.bf16.gmra.mxu0 %v820
  %v1258 = vpop.f32.mrf.mxu0
  %v1259 = vadd.f32 0.0, %v1258
  %v1260 = vpop.f32.mrf.mxu0
  %v1261 = vpop.f32.mrf.mxu0
  %v1262 = vadd.f32 0.0, %v1261
  %v1263 = vpop.f32.mrf.mxu0
  %1264 = vmatprep.mubr.bf16.mxu0 0
  %1265 = vmatmul.mubr.bf16.gmra.mxu0 %v823
  %v1266 = vpop.f32.mrf.mxu0
  %v1267 = vadd.f32 0.0, %v1266
  %v1268 = vpop.f32.mrf.mxu0
  %v1269 = vpop.f32.mrf.mxu0
  %v1270 = vadd.f32 0.0, %v1269
  %v1271 = vpop.f32.mrf.mxu0
  %1272 = vmatprep.mubr.bf16.mxu0 0
  %1273 = vmatmul.mubr.bf16.gmra.mxu0 %v826
  %v1274 = vpop.f32.mrf.mxu0
  %v1275 = vadd.f32 0.0, %v1274
  %v1276 = vpop.f32.mrf.mxu0
  %v1277 = vpop.f32.mrf.mxu0
  %v1278 = vadd.f32 0.0, %v1277
  %v1279 = vpop.f32.mrf.mxu0
  %1280 = vmatprep.mubr.bf16.mxu0 0
  %1281 = vmatmul.mubr.bf16.gmra.mxu0 %v829
  %v1282 = vpop.f32.mrf.mxu0
  %v1283 = vadd.f32 0.0, %v1282
  %v1284 = vpop.f32.mrf.mxu0
  %v1285 = vpop.f32.mrf.mxu0
  %v1286 = vadd.f32 0.0, %v1285
  %v1287 = vpop.f32.mrf.mxu0
  %1288 = vmatprep.mubr.bf16.mxu0 0
  %1289 = vmatmul.mubr.bf16.gmra.mxu0 %v832
  %v1290 = vpop.f32.mrf.mxu0
  %v1291 = vadd.f32 0.0, %v1290
  %v1292 = vpop.f32.mrf.mxu0
  %v1293 = vpop.f32.mrf.mxu0
  %v1294 = vadd.f32 0.0, %v1293
  %v1295 = vpop.f32.mrf.mxu0
  %1296 = vmatprep.mubr.bf16.mxu0 0
  %1297 = vmatmul.mubr.bf16.gmra.mxu0 %v835
  %v1298 = vpop.f32.mrf.mxu0
  %v1299 = vadd.f32 0.0, %v1298
  %v1300 = vpop.f32.mrf.mxu0
  %v1301 = vpop.f32.mrf.mxu0
  %v1302 = vadd.f32 0.0, %v1301
  %v1303 = vpop.f32.mrf.mxu0
  %1304 = vmatprep.mubr.bf16.mxu0 0
  %1305 = vmatmul.mubr.bf16.gmra.mxu0 %v838
  %v1306 = vpop.f32.mrf.mxu0
  %v1307 = vadd.f32 0.0, %v1306
  %v1308 = vpop.f32.mrf.mxu0
  %v1309 = vpop.f32.mrf.mxu0
  %v1310 = vadd.f32 0.0, %v1309
  %v1311 = vpop.f32.mrf.mxu0
  %1312 = vmatprep.mubr.bf16.mxu0 0
  %1313 = vmatmul.mubr.bf16.gmra.mxu0 %v841
  %v1314 = vpop.f32.mrf.mxu0
  %v1315 = vadd.f32 0.0, %v1314
  %v1316 = vpop.f32.mrf.mxu0
  %v1317 = vpop.f32.mrf.mxu0
  %v1318 = vadd.f32 0.0, %v1317
  %v1319 = vpop.f32.mrf.mxu0
  %1320 = vmatprep.mubr.bf16.mxu0 0
  %1321 = vmatmul.mubr.bf16.gmra.mxu0 %v844
  %v1322 = vpop.f32.mrf.mxu0
  %v1323 = vadd.f32 0.0, %v1322
  %v1324 = vpop.f32.mrf.mxu0
  %v1325 = vpop.f32.mrf.mxu0
  %v1326 = vadd.f32 0.0, %v1325
  %v1327 = vpop.f32.mrf.mxu0
  %1328 = vmatprep.mubr.bf16.mxu0 0
  %1329 = vmatmul.mubr.bf16.gmra.mxu0 %v847
  %v1330 = vpop.f32.mrf.mxu0
  %v1331 = vadd.f32 0.0, %v1330
  %v1332 = vpop.f32.mrf.mxu0
  %v1333 = vpop.f32.mrf.mxu0
  %v1334 = vadd.f32 0.0, %v1333
  %v1335 = vpop.f32.mrf.mxu0
  %1336 = vmatprep.mubr.bf16.mxu0 0
  %1337 = vmatmul.mubr.bf16.gmra.mxu0 %v850
  %v1338 = vpop.f32.mrf.mxu0
  %v1339 = vadd.f32 0.0, %v1338
  %v1340 = vpop.f32.mrf.mxu0
  %v1341 = vpop.f32.mrf.mxu0
  %v1342 = vadd.f32 0.0, %v1341
  %v1343 = vpop.f32.mrf.mxu0
  %1344 = vmatprep.mubr.bf16.mxu0 0
  %1345 = vmatmul.mubr.bf16.gmra.mxu0 %v853
  %v1346 = vpop.f32.mrf.mxu0
  %v1347 = vadd.f32 0.0, %v1346
  %v1348 = vpop.f32.mrf.mxu0
  %v1349 = vpop.f32.mrf.mxu0
  %v1350 = vadd.f32 0.0, %v1349
  %v1351 = vpop.f32.mrf.mxu0
  %1352 = vmatprep.mubr.bf16.mxu0 0
  %1353 = vmatmul.mubr.bf16.gmra.mxu0 %v856
  %v1354 = vpop.f32.mrf.mxu0
  %v1355 = vadd.f32 0.0, %v1354
  %v1356 = vpop.f32.mrf.mxu0
  %v1357 = vpop.f32.mrf.mxu0
  %v1358 = vadd.f32 0.0, %v1357
  %v1359 = vpop.f32.mrf.mxu0
  %1360 = vmatprep.mubr.bf16.mxu0 0
  %1361 = vmatmul.mubr.bf16.gmra.mxu0 %v859
  %v1362 = vpop.f32.mrf.mxu0
  %v1363 = vadd.f32 0.0, %v1362
  %v1364 = vpop.f32.mrf.mxu0
  %v1365 = vpop.f32.mrf.mxu0
  %v1366 = vadd.f32 0.0, %v1365
  %v1367 = vpop.f32.mrf.mxu0
  %1368 = vmatprep.mubr.bf16.mxu0 0
  %1369 = vmatmul.mubr.bf16.gmra.mxu0 %v862
  %v1370 = vpop.f32.mrf.mxu0
  %v1371 = vadd.f32 0.0, %v1370
  %v1372 = vpop.f32.mrf.mxu0
  %v1373 = vpop.f32.mrf.mxu0
  %v1374 = vadd.f32 0.0, %v1373
  %v1375 = vpop.f32.mrf.mxu0
  %1376 = vmatprep.mubr.bf16.mxu0 0
  %1377 = vmatmul.mubr.bf16.gmra.mxu0 %v865
  %v1378 = vpop.f32.mrf.mxu0
  %v1379 = vadd.f32 0.0, %v1378
  %v1380 = vpop.f32.mrf.mxu0
  %v1381 = vpop.f32.mrf.mxu0
  %v1382 = vadd.f32 0.0, %v1381
  %v1383 = vpop.f32.mrf.mxu0
  %1384 = vmatprep.mubr.bf16.mxu0 0
  %1385 = vmatmul.mubr.bf16.gmra.mxu0 %v868
  %v1386 = vpop.f32.mrf.mxu0
  %v1387 = vadd.f32 0.0, %v1386
  %v1388 = vpop.f32.mrf.mxu0
  %v1389 = vpop.f32.mrf.mxu0
  %v1390 = vadd.f32 0.0, %v1389
  %v1391 = vpop.f32.mrf.mxu0
  %1392 = vmatprep.mubr.bf16.mxu0 0
  %1393 = vmatmul.mubr.bf16.gmra.mxu0 %v871
  %v1394 = vpop.f32.mrf.mxu0
  %v1395 = vadd.f32 0.0, %v1394
  %v1396 = vpop.f32.mrf.mxu0
  %v1397 = vpop.f32.mrf.mxu0
  %v1398 = vadd.f32 0.0, %v1397
  %v1399 = vpop.f32.mrf.mxu0
  %1400 = vmatprep.mubr.bf16.mxu0 0
  %1401 = vmatmul.mubr.bf16.gmra.mxu0 %v874
  %v1402 = vpop.f32.mrf.mxu0
  %v1403 = vadd.f32 0.0, %v1402
  %v1404 = vpop.f32.mrf.mxu0
  %v1405 = vpop.f32.mrf.mxu0
  %v1406 = vadd.f32 0.0, %v1405
  %v1407 = vpop.f32.mrf.mxu0
  %1408 = vmatprep.mubr.bf16.mxu0 0
  %1409 = vmatmul.mubr.bf16.gmra.mxu0 %v877
  %v1410 = vpop.f32.mrf.mxu0
  %v1411 = vadd.f32 0.0, %v1410
  %v1412 = vpop.f32.mrf.mxu0
  %v1413 = vpop.f32.mrf.mxu0
  %v1414 = vadd.f32 0.0, %v1413
  %v1415 = vpop.f32.mrf.mxu0
  %1416 = vmatprep.mubr.bf16.mxu0 0
  %1417 = vmatmul.mubr.bf16.gmra.mxu0 %v880
  %v1418 = vpop.f32.mrf.mxu0
  %v1419 = vadd.f32 0.0, %v1418
  %v1420 = vpop.f32.mrf.mxu0
  %v1421 = vpop.f32.mrf.mxu0
  %v1422 = vadd.f32 0.0, %v1421
  %v1423 = vpop.f32.mrf.mxu0
  %1424 = vmatprep.mubr.bf16.mxu0 0
  %1425 = vmatmul.mubr.bf16.gmra.mxu0 %v883
  %v1426 = vpop.f32.mrf.mxu0
  %v1427 = vadd.f32 0.0, %v1426
  %v1428 = vpop.f32.mrf.mxu0
  %v1429 = vpop.f32.mrf.mxu0
  %v1430 = vadd.f32 0.0, %v1429
  %v1431 = vpop.f32.mrf.mxu0
  %1432 = vmatprep.mubr.bf16.mxu0 0
  %1433 = vmatmul.mubr.bf16.gmra.mxu0 %v886
  %v1434 = vpop.f32.mrf.mxu0
  %v1435 = vadd.f32 0.0, %v1434
  %v1436 = vpop.f32.mrf.mxu0
  %v1437 = vpop.f32.mrf.mxu0
  %v1438 = vadd.f32 0.0, %v1437
  %v1439 = vpop.f32.mrf.mxu0
  %1440 = vmatprep.mubr.bf16.mxu0 0
  %1441 = vmatmul.mubr.bf16.gmra.mxu0 %v889
  %v1442 = vpop.f32.mrf.mxu0
  %v1443 = vadd.f32 0.0, %v1442
  %v1444 = vpop.f32.mrf.mxu0
  %v1445 = vpop.f32.mrf.mxu0
  %v1446 = vadd.f32 0.0, %v1445
  %v1447 = vpop.f32.mrf.mxu0
  %1448 = vmatprep.mubr.bf16.mxu0 0
  %1449 = vmatmul.mubr.bf16.gmra.mxu0 %v892
  %v1450 = vpop.f32.mrf.mxu0
  %v1451 = vadd.f32 0.0, %v1450
  %v1452 = vpop.f32.mrf.mxu0
  %v1453 = vpop.f32.mrf.mxu0
  %v1454 = vadd.f32 0.0, %v1453
  %v1455 = vpop.f32.mrf.mxu0
  %1456 = vmatprep.mubr.bf16.mxu0 0
  %1457 = vmatmul.mubr.bf16.gmra.mxu0 %v895
  %v1458 = vpop.f32.mrf.mxu0
  %v1459 = vadd.f32 0.0, %v1458
  %v1460 = vpop.f32.mrf.mxu0
  %v1461 = vpop.f32.mrf.mxu0
  %v1462 = vadd.f32 0.0, %v1461
  %v1463 = vpop.f32.mrf.mxu0
  %1464 = vmatprep.mubr.bf16.mxu0 0
  %1465 = vmatmul.mubr.bf16.gmra.mxu0 %v898
  %v1466 = vpop.f32.mrf.mxu0
  %v1467 = vadd.f32 0.0, %v1466
  %v1468 = vpop.f32.mrf.mxu0
  %v1469 = vpop.f32.mrf.mxu0
  %v1470 = vadd.f32 0.0, %v1469
  %v1471 = vpop.f32.mrf.mxu0
  %1472 = vmatprep.mubr.bf16.mxu0 0
  %1473 = vmatmul.mubr.bf16.gmra.mxu0 %v901
  %v1474 = vpop.f32.mrf.mxu0
  %v1475 = vadd.f32 0.0, %v1474
  %v1476 = vpop.f32.mrf.mxu0
  %v1477 = vpop.f32.mrf.mxu0
  %v1478 = vadd.f32 0.0, %v1477
  %v1479 = vpop.f32.mrf.mxu0
  %1480 = vmatprep.mubr.bf16.mxu0 0
  %1481 = vmatmul.mubr.bf16.gmra.mxu0 %v904
  %v1482 = vpop.f32.mrf.mxu0
  %v1483 = vadd.f32 0.0, %v1482
  %v1484 = vpop.f32.mrf.mxu0
  %v1485 = vpop.f32.mrf.mxu0
  %v1486 = vadd.f32 0.0, %v1485
  %v1487 = vpop.f32.mrf.mxu0
  %1488 = vmatprep.mubr.bf16.mxu0 0
  %1489 = vmatmul.mubr.bf16.gmra.mxu0 %v907
  %v1490 = vpop.f32.mrf.mxu0
  %v1491 = vadd.f32 0.0, %v1490
  %v1492 = vpop.f32.mrf.mxu0
  %v1493 = vpop.f32.mrf.mxu0
  %v1494 = vadd.f32 0.0, %v1493
  %v1495 = vpop.f32.mrf.mxu0
  %1496 = vmatprep.mubr.bf16.mxu0 0
  %1497 = vmatmul.mubr.bf16.gmra.mxu0 %v910
  %v1498 = vpop.f32.mrf.mxu0
  %v1499 = vadd.f32 0.0, %v1498
  %v1500 = vpop.f32.mrf.mxu0
  %v1501 = vpop.f32.mrf.mxu0
  %v1502 = vadd.f32 0.0, %v1501
  %v1503 = vpop.f32.mrf.mxu0
  %1504 = vmatprep.mubr.bf16.mxu0 0
  %1505 = vmatmul.mubr.bf16.gmra.mxu0 %v913
  %v1506 = vpop.f32.mrf.mxu0
  %v1507 = vadd.f32 0.0, %v1506
  %v1508 = vpop.f32.mrf.mxu0
  %v1509 = vpop.f32.mrf.mxu0
  %v1510 = vadd.f32 0.0, %v1509
  %v1511 = vpop.f32.mrf.mxu0
  %1512 = vmatprep.mubr.bf16.mxu0 0
  %1513 = vmatmul.mubr.bf16.gmra.mxu0 %v916
  %v1514 = vpop.f32.mrf.mxu0
  %v1515 = vadd.f32 0.0, %v1514
  %v1516 = vpop.f32.mrf.mxu0
  %v1517 = vpop.f32.mrf.mxu0
  %v1518 = vadd.f32 0.0, %v1517
  %v1519 = vpop.f32.mrf.mxu0
  %1520 = vmatprep.mubr.bf16.mxu0 0
  %1521 = vmatmul.mubr.bf16.gmra.mxu0 %v919
  %v1522 = vpop.f32.mrf.mxu0
  %v1523 = vadd.f32 0.0, %v1522
  %v1524 = vpop.f32.mrf.mxu0
  %v1525 = vpop.f32.mrf.mxu0
  %v1526 = vadd.f32 0.0, %v1525
  %v1527 = vpop.f32.mrf.mxu0
  %1528 = vmatprep.mubr.bf16.mxu0 0
  %1529 = vmatmul.mubr.bf16.gmra.mxu0 %v922
  %v1530 = vpop.f32.mrf.mxu0
  %v1531 = vadd.f32 0.0, %v1530
  %v1532 = vpop.f32.mrf.mxu0
  %v1533 = vpop.f32.mrf.mxu0
  %v1534 = vadd.f32 0.0, %v1533
  %v1535 = vpop.f32.mrf.mxu0
  %1536 = vmatprep.mubr.bf16.mxu0 0
  %1537 = vmatmul.mubr.bf16.gmra.mxu0 %v925
  %v1538 = vpop.f32.mrf.mxu0
  %v1539 = vadd.f32 0.0, %v1538
  %v1540 = vpop.f32.mrf.mxu0
  %v1541 = vpop.f32.mrf.mxu0
  %v1542 = vadd.f32 0.0, %v1541
  %v1543 = vpop.f32.mrf.mxu0
  %1544 = vmatprep.mubr.bf16.mxu0 0
  %1545 = vmatmul.mubr.bf16.gmra.mxu0 %v928
  %v1546 = vpop.f32.mrf.mxu0
  %v1547 = vadd.f32 0.0, %v1546
  %v1548 = vpop.f32.mrf.mxu0
  %v1549 = vpop.f32.mrf.mxu0
  %v1550 = vadd.f32 0.0, %v1549
  %v1551 = vpop.f32.mrf.mxu0
  %1552 = vmatprep.mubr.bf16.mxu0 0
  %1553 = vmatmul.mubr.bf16.gmra.mxu0 %v931
  %v1554 = vpop.f32.mrf.mxu0
  %v1555 = vadd.f32 0.0, %v1554
  %v1556 = vpop.f32.mrf.mxu0
  %v1557 = vpop.f32.mrf.mxu0
  %v1558 = vadd.f32 0.0, %v1557
  %v1559 = vpop.f32.mrf.mxu0
  %1560 = vmatprep.mubr.bf16.mxu0 0
  %1561 = vmatmul.mubr.bf16.gmra.mxu0 %v934
  %v1562 = vpop.f32.mrf.mxu0
  %v1563 = vadd.f32 0.0, %v1562
  %v1564 = vpop.f32.mrf.mxu0
  %v1565 = vpop.f32.mrf.mxu0
  %v1566 = vadd.f32 0.0, %v1565
  %v1567 = vpop.f32.mrf.mxu0
  %1568 = vmatprep.mubr.bf16.mxu0 0
  %1569 = vmatmul.mubr.bf16.gmra.mxu0 %v937
  %v1570 = vpop.f32.mrf.mxu0
  %v1571 = vadd.f32 0.0, %v1570
  %v1572 = vpop.f32.mrf.mxu0
  %v1573 = vpop.f32.mrf.mxu0
  %v1574 = vadd.f32 0.0, %v1573
  %v1575 = vpop.f32.mrf.mxu0
  %1576 = vmatprep.mubr.bf16.mxu0 0
  %1577 = vmatmul.mubr.bf16.gmra.mxu0 %v940
  %v1578 = vpop.f32.mrf.mxu0
  %v1579 = vadd.f32 0.0, %v1578
  %v1580 = vpop.f32.mrf.mxu0
  %v1581 = vpop.f32.mrf.mxu0
  %v1582 = vadd.f32 0.0, %v1581
  %v1583 = vpop.f32.mrf.mxu0
  %1584 = vmatprep.mubr.bf16.mxu0 0
  %1585 = vmatmul.mubr.bf16.gmra.mxu0 %v943
  %v1586 = vpop.f32.mrf.mxu0
  %v1587 = vadd.f32 0.0, %v1586
  %v1588 = vpop.f32.mrf.mxu0
  %v1589 = vpop.f32.mrf.mxu0
  %v1590 = vadd.f32 0.0, %v1589
  %v1591 = vpop.f32.mrf.mxu0
  %1592 = vmatprep.mubr.bf16.mxu0 0
  %1593 = vmatmul.mubr.bf16.gmra.mxu0 %v946
  %v1594 = vpop.f32.mrf.mxu0
  %v1595 = vadd.f32 0.0, %v1594
  %v1596 = vpop.f32.mrf.mxu0
  %v1597 = vpop.f32.mrf.mxu0
  %v1598 = vadd.f32 0.0, %v1597
  %v1599 = vpop.f32.mrf.mxu0
  %1600 = vmatprep.mubr.bf16.mxu0 0
  %1601 = vmatmul.mubr.bf16.gmra.mxu0 %v949
  %v1602 = vpop.f32.mrf.mxu0
  %v1603 = vadd.f32 0.0, %v1602
  %v1604 = vpop.f32.mrf.mxu0
  %v1605 = vpop.f32.mrf.mxu0
  %v1606 = vadd.f32 0.0, %v1605
  %v1607 = vpop.f32.mrf.mxu0
  %1608 = vmatprep.mubr.bf16.mxu0 0
  %1609 = vmatmul.mubr.bf16.gmra.mxu0 %v952
  %v1610 = vpop.f32.mrf.mxu0
  %v1611 = vadd.f32 0.0, %v1610
  %v1612 = vpop.f32.mrf.mxu0
  %v1613 = vpop.f32.mrf.mxu0
  %v1614 = vadd.f32 0.0, %v1613
  %v1615 = vpop.f32.mrf.mxu0
  %1616 = vmatprep.mubr.bf16.mxu0 0
  %1617 = vmatmul.mubr.bf16.gmra.mxu0 %v955
  %v1618 = vpop.f32.mrf.mxu0
  %v1619 = vadd.f32 0.0, %v1618
  %v1620 = vpop.f32.mrf.mxu0
  %v1621 = vpop.f32.mrf.mxu0
  %v1622 = vadd.f32 0.0, %v1621
  %v1623 = vpop.f32.mrf.mxu0
  %1624 = vmatprep.mubr.bf16.mxu0 0
  %1625 = vmatmul.mubr.bf16.gmra.mxu0 %v958
  %v1626 = vpop.f32.mrf.mxu0
  %v1627 = vadd.f32 0.0, %v1626
  %v1628 = vpop.f32.mrf.mxu0
  %v1629 = vpop.f32.mrf.mxu0
  %v1630 = vadd.f32 0.0, %v1629
  %v1631 = vpop.f32.mrf.mxu0
  %1632 = vmatprep.mubr.bf16.mxu0 0
  %1633 = vmatmul.mubr.bf16.gmra.mxu0 %v961
  %v1634 = vpop.f32.mrf.mxu0
  %v1635 = vadd.f32 0.0, %v1634
  %v1636 = vpop.f32.mrf.mxu0
  %v1637 = vpop.f32.mrf.mxu0
  %v1638 = vadd.f32 0.0, %v1637
  %v1639 = vpop.f32.mrf.mxu0
  %1640 = vmatprep.mubr.bf16.mxu0 0
  %1641 = vmatmul.mubr.bf16.gmra.mxu0 %v964
  %v1642 = vpop.f32.mrf.mxu0
  %v1643 = vadd.f32 0.0, %v1642
  %v1644 = vpop.f32.mrf.mxu0
  %v1645 = vpop.f32.mrf.mxu0
  %v1646 = vadd.f32 0.0, %v1645
  %v1647 = vpop.f32.mrf.mxu0
  %1648 = vmatprep.mubr.bf16.mxu0 0
  %1649 = vmatmul.mubr.bf16.gmra.mxu0 %v967
  %v1650 = vpop.f32.mrf.mxu0
  %v1651 = vadd.f32 0.0, %v1650
  %v1652 = vpop.f32.mrf.mxu0
  %v1653 = vpop.f32.mrf.mxu0
  %v1654 = vadd.f32 0.0, %v1653
  %v1655 = vpop.f32.mrf.mxu0
  %1656 = vmatprep.mubr.bf16.mxu0 0
  %1657 = vmatmul.mubr.bf16.gmra.mxu0 %v970
  %v1658 = vpop.f32.mrf.mxu0
  %v1659 = vadd.f32 0.0, %v1658
  %v1660 = vpop.f32.mrf.mxu0
  %v1661 = vpop.f32.mrf.mxu0
  %v1662 = vadd.f32 0.0, %v1661
  %v1663 = vpop.f32.mrf.mxu0
  %1664 = vmatprep.mubr.bf16.mxu0 0
  %1665 = vmatmul.mubr.bf16.gmra.mxu0 %v973
  %v1666 = vpop.f32.mrf.mxu0
  %v1667 = vadd.f32 0.0, %v1666
  %v1668 = vpop.f32.mrf.mxu0
  %v1669 = vpop.f32.mrf.mxu0
  %v1670 = vadd.f32 0.0, %v1669
  %v1671 = vpop.f32.mrf.mxu0
  %1672 = vmatprep.mubr.bf16.mxu0 0
  %1673 = vmatmul.mubr.bf16.gmra.mxu0 %v976
  %v1674 = vpop.f32.mrf.mxu0
  %v1675 = vadd.f32 0.0, %v1674
  %v1676 = vpop.f32.mrf.mxu0
  %v1677 = vpop.f32.mrf.mxu0
  %v1678 = vadd.f32 0.0, %v1677
  %v1679 = vpop.f32.mrf.mxu0
  %1680 = vmatprep.mubr.bf16.mxu0 0
  %1681 = vmatmul.mubr.bf16.gmra.mxu0 %v979
  %v1682 = vpop.f32.mrf.mxu0
  %v1683 = vadd.f32 0.0, %v1682
  %v1684 = vpop.f32.mrf.mxu0
  %v1685 = vpop.f32.mrf.mxu0
  %v1686 = vadd.f32 0.0, %v1685
  %v1687 = vpop.f32.mrf.mxu0
  %1688 = vmatprep.mubr.bf16.mxu0 0
  %1689 = vmatmul.mubr.bf16.gmra.mxu0 %v982
  %v1690 = vpop.f32.mrf.mxu0
  %v1691 = vadd.f32 0.0, %v1690
  %v1692 = vpop.f32.mrf.mxu0
  %v1693 = vpop.f32.mrf.mxu0
  %v1694 = vadd.f32 0.0, %v1693
  %v1695 = vpop.f32.mrf.mxu0
  %1696 = vmatprep.mubr.bf16.mxu0 0
  %1697 = vmatmul.mubr.bf16.gmra.mxu0 %v985
  %v1698 = vpop.f32.mrf.mxu0
  %v1699 = vadd.f32 0.0, %v1698
  %v1700 = vpop.f32.mrf.mxu0
  %v1701 = vpop.f32.mrf.mxu0
  %v1702 = vadd.f32 0.0, %v1701
  %v1703 = vpop.f32.mrf.mxu0
  %1704 = vmatprep.mubr.bf16.mxu0 0
  %1705 = vmatmul.mubr.bf16.gmra.mxu0 %v988
  %v1706 = vpop.f32.mrf.mxu0
  %v1707 = vadd.f32 0.0, %v1706
  %v1708 = vpop.f32.mrf.mxu0
  %v1709 = vpop.f32.mrf.mxu0
  %v1710 = vadd.f32 0.0, %v1709
  %v1711 = vpop.f32.mrf.mxu0
  %1712 = vmatprep.mubr.bf16.mxu0 0
  %1713 = vmatmul.mubr.bf16.gmra.mxu0 %v991
  %v1714 = vpop.f32.mrf.mxu0
  %v1715 = vadd.f32 0.0, %v1714
  %v1716 = vpop.f32.mrf.mxu0
  %v1717 = vpop.f32.mrf.mxu0
  %v1718 = vadd.f32 0.0, %v1717
  %v1719 = vpop.f32.mrf.mxu0
  %1720 = vmatprep.mubr.bf16.mxu0 0
  %1721 = vmatmul.mubr.bf16.gmra.mxu0 %v994
  %v1722 = vpop.f32.mrf.mxu0
  %v1723 = vadd.f32 0.0, %v1722
  %v1724 = vpop.f32.mrf.mxu0
  %v1725 = vpop.f32.mrf.mxu0
  %v1726 = vadd.f32 0.0, %v1725
  %v1727 = vpop.f32.mrf.mxu0
  %1728 = vmatprep.mubr.bf16.mxu0 0
  %1729 = vmatmul.mubr.bf16.gmra.mxu0 %v997
  %v1730 = vpop.f32.mrf.mxu0
  %v1731 = vadd.f32 0.0, %v1730
  %v1732 = vpop.f32.mrf.mxu0
  %v1733 = vpop.f32.mrf.mxu0
  %v1734 = vadd.f32 0.0, %v1733
  %v1735 = vpop.f32.mrf.mxu0
  %1736 = vmatprep.mubr.bf16.mxu0 0
  %1737 = vmatmul.mubr.bf16.gmra.mxu0 %v1000
  %v1738 = vpop.f32.mrf.mxu0
  %v1739 = vadd.f32 0.0, %v1738
  %v1740 = vpop.f32.mrf.mxu0
  %v1741 = vpop.f32.mrf.mxu0
  %v1742 = vadd.f32 0.0, %v1741
  %v1743 = vpop.f32.mrf.mxu0
  %1744 = vmatprep.mubr.bf16.mxu0 0
  %1745 = vmatmul.mubr.bf16.gmra.mxu0 %v1003
  %v1746 = vpop.f32.mrf.mxu0
  %v1747 = vadd.f32 0.0, %v1746
  %v1748 = vpop.f32.mrf.mxu0
  %v1749 = vpop.f32.mrf.mxu0
  %v1750 = vadd.f32 0.0, %v1749
  %v1751 = vpop.f32.mrf.mxu0
  %1752 = vmatprep.mubr.bf16.mxu0 0
  %1753 = vmatmul.mubr.bf16.gmra.mxu0 %v1006
  %v1754 = vpop.f32.mrf.mxu0
  %v1755 = vadd.f32 0.0, %v1754
  %v1756 = vpop.f32.mrf.mxu0
  %v1757 = vpop.f32.mrf.mxu0
  %v1758 = vadd.f32 0.0, %v1757
  %v1759 = vpop.f32.mrf.mxu0
  %1760 = vmatprep.mubr.bf16.mxu0 0
  %1761 = vmatmul.mubr.bf16.gmra.mxu0 %v1009
  %v1762 = vpop.f32.mrf.mxu0
  %v1763 = vadd.f32 0.0, %v1762
  %v1764 = vpop.f32.mrf.mxu0
  %v1765 = vpop.f32.mrf.mxu0
  %v1766 = vadd.f32 0.0, %v1765
  %v1767 = vpop.f32.mrf.mxu0
  %1768 = vmatprep.mubr.bf16.mxu0 0
  %1769 = vmatmul.mubr.bf16.gmra.mxu0 %v1012
  %v1770 = vpop.f32.mrf.mxu0
  %v1771 = vadd.f32 0.0, %v1770
  %v1772 = vpop.f32.mrf.mxu0
  %v1773 = vpop.f32.mrf.mxu0
  %v1774 = vadd.f32 0.0, %v1773
  %v1775 = vpop.f32.mrf.mxu0
  %1776 = vmatprep.mubr.bf16.mxu0 0
  %1777 = vmatmul.mubr.bf16.gmra.mxu0 %v1015
  %v1778 = vpop.f32.mrf.mxu0
  %v1779 = vadd.f32 0.0, %v1778
  %v1780 = vpop.f32.mrf.mxu0
  %v1781 = vpop.f32.mrf.mxu0
  %v1782 = vadd.f32 0.0, %v1781
  %v1783 = vpop.f32.mrf.mxu0
  %1784 = vmatprep.mubr.bf16.mxu0 0
  %1785 = vmatmul.mubr.bf16.gmra.mxu0 %v1018
  %v1786 = vpop.f32.mrf.mxu0
  %v1787 = vadd.f32 0.0, %v1786
  %v1788 = vpop.f32.mrf.mxu0
  %v1789 = vpop.f32.mrf.mxu0
  %v1790 = vadd.f32 0.0, %v1789
  %v1791 = vpop.f32.mrf.mxu0
  %1792 = vmatprep.mubr.bf16.mxu0 0
  %1793 = vmatmul.mubr.bf16.gmra.mxu0 %v1021
  %v1794 = vpop.f32.mrf.mxu0
  %v1795 = vadd.f32 0.0, %v1794
  %v1796 = vpop.f32.mrf.mxu0
  %v1797 = vpop.f32.mrf.mxu0
  %v1798 = vadd.f32 0.0, %v1797
  %v1799 = vpop.f32.mrf.mxu0
  %1800 = vmatprep.mubr.bf16.mxu0 0
  %1801 = vmatmul.mubr.bf16.gmra.mxu0 %v1024
  %v1802 = vpop.f32.mrf.mxu0
  %v1803 = vadd.f32 0.0, %v1802
  %v1804 = vpop.f32.mrf.mxu0
  %v1805 = vpop.f32.mrf.mxu0
  %v1806 = vadd.f32 0.0, %v1805
  %v1807 = vpop.f32.mrf.mxu0
  %1808 = vmatprep.mubr.bf16.mxu0 0
  %1809 = vmatmul.mubr.bf16.gmra.mxu0 %v1027
  %v1810 = vpop.f32.mrf.mxu0
  %v1811 = vadd.f32 0.0, %v1810
  %v1812 = vpop.f32.mrf.mxu0
  %v1813 = vpop.f32.mrf.mxu0
  %v1814 = vadd.f32 0.0, %v1813
  %v1815 = vpop.f32.mrf.mxu0
  %1816 = vmatprep.mubr.bf16.mxu0 0
  %1817 = vmatmul.mubr.bf16.gmra.mxu0 %v1030
  %v1818 = vpop.f32.mrf.mxu0
  %v1819 = vadd.f32 0.0, %v1818
  %v1820 = vpop.f32.mrf.mxu0
  %v1821 = vpop.f32.mrf.mxu0
  %v1822 = vadd.f32 0.0, %v1821
  %v1823 = vpop.f32.mrf.mxu0
  %1824 = vmatprep.mubr.bf16.mxu0 0
  %1825 = vmatmul.mubr.bf16.gmra.mxu0 %v1033
  %v1826 = vpop.f32.mrf.mxu0
  %v1827 = vadd.f32 0.0, %v1826
  %v1828 = vpop.f32.mrf.mxu0
  %v1829 = vpop.f32.mrf.mxu0
  %v1830 = vadd.f32 0.0, %v1829
  %v1831 = vpop.f32.mrf.mxu0
  %1832 = vmatprep.mubr.bf16.mxu0 0
  %1833 = vmatmul.mubr.bf16.gmra.mxu0 %v1036
  %v1834 = vpop.f32.mrf.mxu0
  %v1835 = vadd.f32 0.0, %v1834
  %v1836 = vpop.f32.mrf.mxu0
  %v1837 = vpop.f32.mrf.mxu0
  %v1838 = vadd.f32 0.0, %v1837
  %v1839 = vpop.f32.mrf.mxu0
  %1840 = vmatprep.mubr.bf16.mxu0 0
  %1841 = vmatmul.mubr.bf16.gmra.mxu0 %v1039
  %v1842 = vpop.f32.mrf.mxu0
  %v1843 = vadd.f32 0.0, %v1842
  %v1844 = vpop.f32.mrf.mxu0
  %v1845 = vpop.f32.mrf.mxu0
  %v1846 = vadd.f32 0.0, %v1845
  %v1847 = vpop.f32.mrf.mxu0
  %1848 = vmatprep.mubr.bf16.mxu0 0
  %1849 = vmatmul.mubr.bf16.gmra.mxu0 %v1042
  %v1850 = vpop.f32.mrf.mxu0
  %v1851 = vadd.f32 0.0, %v1850
  %v1852 = vpop.f32.mrf.mxu0
  %v1853 = vpop.f32.mrf.mxu0
  %v1854 = vadd.f32 0.0, %v1853
  %v1855 = vpop.f32.mrf.mxu0
  %1856 = vmatprep.mubr.bf16.mxu0 0
  %1857 = vmatmul.mubr.bf16.gmra.mxu0 %v1045
  %v1858 = vpop.f32.mrf.mxu0
  %v1859 = vadd.f32 0.0, %v1858
  %v1860 = vpop.f32.mrf.mxu0
  %v1861 = vpop.f32.mrf.mxu0
  %v1862 = vadd.f32 0.0, %v1861
  %v1863 = vpop.f32.mrf.mxu0
  %1864 = vmatprep.mubr.bf16.mxu0 0
  %1865 = vmatmul.mubr.bf16.gmra.mxu0 %v1048
  %v1866 = vpop.f32.mrf.mxu0
  %v1867 = vadd.f32 0.0, %v1866
  %v1868 = vpop.f32.mrf.mxu0
  %v1869 = vpop.f32.mrf.mxu0
  %v1870 = vadd.f32 0.0, %v1869
  %v1871 = vpop.f32.mrf.mxu0
  %1872 = vmatprep.mubr.bf16.mxu0 0
  %1873 = vmatmul.mubr.bf16.gmra.mxu0 %v1051
  %v1874 = vpop.f32.mrf.mxu0
  %v1875 = vadd.f32 0.0, %v1874
  %v1876 = vpop.f32.mrf.mxu0
  %v1877 = vpop.f32.mrf.mxu0
  %v1878 = vadd.f32 0.0, %v1877
  %v1879 = vpop.f32.mrf.mxu0
  %1880 = vmatprep.mubr.bf16.mxu0 0
  %1881 = vmatmul.mubr.bf16.gmra.mxu0 %v1054
  %v1882 = vpop.f32.mrf.mxu0
  %v1883 = vadd.f32 0.0, %v1882
  %v1884 = vpop.f32.mrf.mxu0
  %v1885 = vpop.f32.mrf.mxu0
  %v1886 = vadd.f32 0.0, %v1885
  %v1887 = vpop.f32.mrf.mxu0
  %1888 = vdwg.mxu0
  %v1889 = vld [vmem:[%s0 + $0x64] sm:$0xf]
  %v1890 = vld [vmem:[%s0 + $0x68] sm:$0xf]
  %v1891 = vld [vmem:[%s0 + $0x6c] sm:$0xf]
  %v1892 = vld [vmem:[%s0 + $0x70] sm:$0xf]
  %v1893 = vld [vmem:[%s0 + $0x74] sm:$0xf]
  %v1894 = vld [vmem:[%s0 + $0x78] sm:$0xf]
  %v1895 = vld [vmem:[%s0 + $0x7c] sm:$0xf]
  %v1896 = vld [vmem:[%s0 + $0x80] sm:$0xf]
  %v1897 = vld [vmem:[%s0 + $0x84] sm:$0xf]
  %v1898 = vld [vmem:[%s0 + $0x88] sm:$0xf]
  %v1899 = vld [vmem:[%s0 + $0x8c] sm:$0xf]
  %v1900 = vld [vmem:[%s0 + $0x90] sm:$0xf]
  %v1901 = vld [vmem:[%s0 + $0x94] sm:$0xf]
  %v1902 = vld [vmem:[%s0 + $0x98] sm:$0xf]
  %v1903 = vld [vmem:[%s0 + $0x9c] sm:$0xf]
  %v1904 = vld [vmem:[%s0 + $0xa0] sm:$0xf]
  %v1905 = vld [vmem:[%s0 + $0xa4] sm:$0xf]
  %v1906 = vld [vmem:[%s0 + $0xa8] sm:$0xf]
  %v1907 = vld [vmem:[%s0 + $0xac] sm:$0xf]
  %v1908 = vld [vmem:[%s0 + $0xb0] sm:$0xf]
  %v1909 = vld [vmem:[%s0 + $0xb4] sm:$0xf]
  %v1910 = vld [vmem:[%s0 + $0xb8] sm:$0xf]
  %v1911 = vld [vmem:[%s0 + $0xbc] sm:$0xf]
  %v1912 = vld [vmem:[%s0 + $0xc0] sm:$0xf]
  %v1913 = vld [vmem:[%s0 + $0xc4] sm:$0xf]
  %v1914 = vld [vmem:[%s0 + $0x1f4] sm:$0xf]
  %v1915 = vld [vmem:[%s0 + $0x1f8] sm:$0xf]
  %v1916 = vld [vmem:[%s0 + $0x1fc] sm:$0xf]
  %v1917 = vld [vmem:[%s0 + $0x200] sm:$0xf]
  %v1918 = vld [vmem:[%s0 + $0x204] sm:$0xf]
  %v1919 = vld [vmem:[%s0 + $0x208] sm:$0xf]
  %v1920 = vld [vmem:[%s0 + $0x20c] sm:$0xf]
  %v1921 = vld [vmem:[%s0 + $0x210] sm:$0xf]
  %v1922 = vld [vmem:[%s0 + $0x214] sm:$0xf]
  %v1923 = vld [vmem:[%s0 + $0x218] sm:$0xf]
  %v1924 = vld [vmem:[%s0 + $0x21c] sm:$0xf]
  %v1925 = vld [vmem:[%s0 + $0x220] sm:$0xf]
  %v1926 = vld [vmem:[%s0 + $0x224] sm:$0xf]
  %v1927 = vld [vmem:[%s0 + $0x228] sm:$0xf]
  %v1928 = vld [vmem:[%s0 + $0x22c] sm:$0xf]
  %v1929 = vld [vmem:[%s0 + $0x230] sm:$0xf]
  %v1930 = vld [vmem:[%s0 + $0x234] sm:$0xf]
  %v1931 = vld [vmem:[%s0 + $0x238] sm:$0xf]
  %v1932 = vld [vmem:[%s0 + $0x23c] sm:$0xf]
  %v1933 = vld [vmem:[%s0 + $0x240] sm:$0xf]
  %v1934 = vld [vmem:[%s0 + $0x244] sm:$0xf]
  %v1935 = vld [vmem:[%s0 + $0x248] sm:$0xf]
  %v1936 = vld [vmem:[%s0 + $0x24c] sm:$0xf]
  %v1937 = vld [vmem:[%s0 + $0x250] sm:$0xf]
  %v1938 = vld [vmem:[%s0 + $0x254] sm:$0xf]
  %v1939 = vld [vmem:[%s0 + $0x384] sm:$0xf]
  %v1940 = vld [vmem:[%s0 + $0x388] sm:$0xf]
  %v1941 = vld [vmem:[%s0 + $0x38c] sm:$0xf]
  %v1942 = vld [vmem:[%s0 + $0x390] sm:$0xf]
  %v1943 = vld [vmem:[%s0 + $0x394] sm:$0xf]
  %v1944 = vld [vmem:[%s0 + $0x398] sm:$0xf]
  %v1945 = vld [vmem:[%s0 + $0x39c] sm:$0xf]
  %v1946 = vld [vmem:[%s0 + $0x3a0] sm:$0xf]
  %v1947 = vld [vmem:[%s0 + $0x3a4] sm:$0xf]
  %v1948 = vld [vmem:[%s0 + $0x3a8] sm:$0xf]
  %v1949 = vld [vmem:[%s0 + $0x3ac] sm:$0xf]
  %v1950 = vld [vmem:[%s0 + $0x3b0] sm:$0xf]
  %v1951 = vld [vmem:[%s0 + $0x3b4] sm:$0xf]
  %v1952 = vld [vmem:[%s0 + $0x3b8] sm:$0xf]
  %v1953 = vld [vmem:[%s0 + $0x3bc] sm:$0xf]
  %v1954 = vld [vmem:[%s0 + $0x3c0] sm:$0xf]
  %v1955 = vld [vmem:[%s0 + $0x3c4] sm:$0xf]
  %v1956 = vld [vmem:[%s0 + $0x3c8] sm:$0xf]
  %v1957 = vld [vmem:[%s0 + $0x3cc] sm:$0xf]
  %v1958 = vld [vmem:[%s0 + $0x3d0] sm:$0xf]
  %v1959 = vld [vmem:[%s0 + $0x3d4] sm:$0xf]
  %v1960 = vld [vmem:[%s0 + $0x3d8] sm:$0xf]
  %v1961 = vld [vmem:[%s0 + $0x3dc] sm:$0xf]
  %v1962 = vld [vmem:[%s0 + $0x3e0] sm:$0xf]
  %v1963 = vld [vmem:[%s0 + $0x3e4] sm:$0xf]
  %v1964 = vld [vmem:[%s0 + $0x514] sm:$0xf]
  %v1965 = vld [vmem:[%s0 + $0x518] sm:$0xf]
  %v1966 = vld [vmem:[%s0 + $0x51c] sm:$0xf]
  %v1967 = vld [vmem:[%s0 + $0x520] sm:$0xf]
  %v1968 = vld [vmem:[%s0 + $0x524] sm:$0xf]
  %v1969 = vld [vmem:[%s0 + $0x528] sm:$0xf]
  %v1970 = vld [vmem:[%s0 + $0x52c] sm:$0xf]
  %v1971 = vld [vmem:[%s0 + $0x530] sm:$0xf]
  %v1972 = vld [vmem:[%s0 + $0x534] sm:$0xf]
  %v1973 = vld [vmem:[%s0 + $0x538] sm:$0xf]
  %v1974 = vld [vmem:[%s0 + $0x53c] sm:$0xf]
  %v1975 = vld [vmem:[%s0 + $0x540] sm:$0xf]
  %v1976 = vld [vmem:[%s0 + $0x544] sm:$0xf]
  %v1977 = vld [vmem:[%s0 + $0x548] sm:$0xf]
  %v1978 = vld [vmem:[%s0 + $0x54c] sm:$0xf]
  %v1979 = vld [vmem:[%s0 + $0x550] sm:$0xf]
  %v1980 = vld [vmem:[%s0 + $0x554] sm:$0xf]
  %v1981 = vld [vmem:[%s0 + $0x558] sm:$0xf]
  %v1982 = vld [vmem:[%s0 + $0x55c] sm:$0xf]
  %v1983 = vld [vmem:[%s0 + $0x560] sm:$0xf]
  %v1984 = vld [vmem:[%s0 + $0x564] sm:$0xf]
  %v1985 = vld [vmem:[%s0 + $0x568] sm:$0xf]
  %v1986 = vld [vmem:[%s0 + $0x56c] sm:$0xf]
  %v1987 = vld [vmem:[%s0 + $0x570] sm:$0xf]
  %v1988 = vld [vmem:[%s0 + $0x574] sm:$0xf]
  %v1989 = vld [vmem:[%s0 + $0x6a4] sm:$0xf]
  %v1990 = vld [vmem:[%s0 + $0x6a8] sm:$0xf]
  %v1991 = vld [vmem:[%s0 + $0x6ac] sm:$0xf]
  %v1992 = vld [vmem:[%s0 + $0x6b0] sm:$0xf]
  %v1993 = vld [vmem:[%s0 + $0x6b4] sm:$0xf]
  %v1994 = vld [vmem:[%s0 + $0x6b8] sm:$0xf]
  %v1995 = vld [vmem:[%s0 + $0x6bc] sm:$0xf]
  %v1996 = vld [vmem:[%s0 + $0x6c0] sm:$0xf]
  %v1997 = vld [vmem:[%s0 + $0x6c4] sm:$0xf]
  %v1998 = vld [vmem:[%s0 + $0x6c8] sm:$0xf]
  %v1999 = vld [vmem:[%s0 + $0x6cc] sm:$0xf]
  %v2000 = vld [vmem:[%s0 + $0x6d0] sm:$0xf]
  %v2001 = vld [vmem:[%s0 + $0x6d4] sm:$0xf]
  %v2002 = vld [vmem:[%s0 + $0x6d8] sm:$0xf]
  %v2003 = vld [vmem:[%s0 + $0x6dc] sm:$0xf]
  %v2004 = vld [vmem:[%s0 + $0x6e0] sm:$0xf]
  %v2005 = vld [vmem:[%s0 + $0x6e4] sm:$0xf]
  %v2006 = vld [vmem:[%s0 + $0x6e8] sm:$0xf]
  %v2007 = vld [vmem:[%s0 + $0x6ec] sm:$0xf]
  %v2008 = vld [vmem:[%s0 + $0x6f0] sm:$0xf]
  %v2009 = vld [vmem:[%s0 + $0x6f4] sm:$0xf]
  %v2010 = vld [vmem:[%s0 + $0x6f8] sm:$0xf]
  %v2011 = vld [vmem:[%s0 + $0x6fc] sm:$0xf]
  %v2012 = vld [vmem:[%s0 + $0x700] sm:$0xf]
  %v2013 = vld [vmem:[%s0 + $0x704] sm:$0xf]
  %v2014 = vld [vmem:[%s0 + $0x834] sm:$0xf]
  %v2015 = vld [vmem:[%s0 + $0x838] sm:$0xf]
  %v2016 = vld [vmem:[%s0 + $0x83c] sm:$0xf]
  %v2017 = vld [vmem:[%s0 + $0x840] sm:$0xf]
  %v2018 = vld [vmem:[%s0 + $0x844] sm:$0xf]
  %v2019 = vld [vmem:[%s0 + $0x848] sm:$0xf]
  %v2020 = vld [vmem:[%s0 + $0x84c] sm:$0xf]
  %v2021 = vld [vmem:[%s0 + $0x850] sm:$0xf]
  %v2022 = vld [vmem:[%s0 + $0x854] sm:$0xf]
  %v2023 = vld [vmem:[%s0 + $0x858] sm:$0xf]
  %v2024 = vld [vmem:[%s0 + $0x85c] sm:$0xf]
  %v2025 = vld [vmem:[%s0 + $0x860] sm:$0xf]
  %v2026 = vld [vmem:[%s0 + $0x864] sm:$0xf]
  %v2027 = vld [vmem:[%s0 + $0x868] sm:$0xf]
  %v2028 = vld [vmem:[%s0 + $0x86c] sm:$0xf]
  %v2029 = vld [vmem:[%s0 + $0x870] sm:$0xf]
  %v2030 = vld [vmem:[%s0 + $0x874] sm:$0xf]
  %v2031 = vld [vmem:[%s0 + $0x878] sm:$0xf]
  %v2032 = vld [vmem:[%s0 + $0x87c] sm:$0xf]
  %v2033 = vld [vmem:[%s0 + $0x880] sm:$0xf]
  %v2034 = vld [vmem:[%s0 + $0x884] sm:$0xf]
  %v2035 = vld [vmem:[%s0 + $0x888] sm:$0xf]
  %v2036 = vld [vmem:[%s0 + $0x88c] sm:$0xf]
  %v2037 = vld [vmem:[%s0 + $0x890] sm:$0xf]
  %v2038 = vld [vmem:[%s0 + $0x894] sm:$0xf]
  %v2039 = vld [vmem:[%s0 + $0x9c4] sm:$0xf]
  %v2040 = vld [vmem:[%s0 + $0x9c8] sm:$0xf]
  %v2041 = vld [vmem:[%s0 + $0x9cc] sm:$0xf]
  %v2042 = vld [vmem:[%s0 + $0x9d0] sm:$0xf]
  %v2043 = vld [vmem:[%s0 + $0x9d4] sm:$0xf]
  %v2044 = vld [vmem:[%s0 + $0x9d8] sm:$0xf]
  %v2045 = vld [vmem:[%s0 + $0x9dc] sm:$0xf]
  %v2046 = vld [vmem:[%s0 + $0x9e0] sm:$0xf]
  %v2047 = vld [vmem:[%s0 + $0x9e4] sm:$0xf]
  %v2048 = vld [vmem:[%s0 + $0x9e8] sm:$0xf]
  %v2049 = vld [vmem:[%s0 + $0x9ec] sm:$0xf]
  %v2050 = vld [vmem:[%s0 + $0x9f0] sm:$0xf]
  %v2051 = vld [vmem:[%s0 + $0x9f4] sm:$0xf]
  %v2052 = vld [vmem:[%s0 + $0x9f8] sm:$0xf]
  %v2053 = vld [vmem:[%s0 + $0x9fc] sm:$0xf]
  %v2054 = vld [vmem:[%s0 + $0xa00] sm:$0xf]
  %v2055 = vld [vmem:[%s0 + $0xa04] sm:$0xf]
  %v2056 = vld [vmem:[%s0 + $0xa08] sm:$0xf]
  %v2057 = vld [vmem:[%s0 + $0xa0c] sm:$0xf]
  %v2058 = vld [vmem:[%s0 + $0xa10] sm:$0xf]
  %v2059 = vld [vmem:[%s0 + $0xa14] sm:$0xf]
  %v2060 = vld [vmem:[%s0 + $0xa18] sm:$0xf]
  %v2061 = vld [vmem:[%s0 + $0xa1c] sm:$0xf]
  %v2062 = vld [vmem:[%s0 + $0xa20] sm:$0xf]
  %v2063 = vld [vmem:[%s0 + $0xa24] sm:$0xf]
  %v2064 = vld [vmem:[%s0 + $0xb54] sm:$0xf]
  %v2065 = vld [vmem:[%s0 + $0xb58] sm:$0xf]
  %v2066 = vld [vmem:[%s0 + $0xb5c] sm:$0xf]
  %v2067 = vld [vmem:[%s0 + $0xb60] sm:$0xf]
  %v2068 = vld [vmem:[%s0 + $0xb64] sm:$0xf]
  %v2069 = vld [vmem:[%s0 + $0xb68] sm:$0xf]
  %v2070 = vld [vmem:[%s0 + $0xb6c] sm:$0xf]
  %v2071 = vld [vmem:[%s0 + $0xb70] sm:$0xf]
  %v2072 = vld [vmem:[%s0 + $0xb74] sm:$0xf]
  %v2073 = vld [vmem:[%s0 + $0xb78] sm:$0xf]
  %v2074 = vld [vmem:[%s0 + $0xb7c] sm:$0xf]
  %v2075 = vld [vmem:[%s0 + $0xb80] sm:$0xf]
  %v2076 = vld [vmem:[%s0 + $0xb84] sm:$0xf]
  %v2077 = vld [vmem:[%s0 + $0xb88] sm:$0xf]
  %v2078 = vld [vmem:[%s0 + $0xb8c] sm:$0xf]
  %v2079 = vld [vmem:[%s0 + $0xb90] sm:$0xf]
  %v2080 = vld [vmem:[%s0 + $0xb94] sm:$0xf]
  %v2081 = vld [vmem:[%s0 + $0xb98] sm:$0xf]
  %v2082 = vld [vmem:[%s0 + $0xb9c] sm:$0xf]
  %v2083 = vld [vmem:[%s0 + $0xba0] sm:$0xf]
  %v2084 = vld [vmem:[%s0 + $0xba4] sm:$0xf]
  %v2085 = vld [vmem:[%s0 + $0xba8] sm:$0xf]
  %v2086 = vld [vmem:[%s0 + $0xbac] sm:$0xf]
  %v2087 = vld [vmem:[%s0 + $0xbb0] sm:$0xf]
  %v2088 = vld [vmem:[%s0 + $0xbb4] sm:$0xf]
  %v2289 = vunpack.c.l.b16 %v1889
  %v2290 = vunpack.c.l.b16 %v1890
  %v2291 = vunpack.c.l.b16 %v1891
  %v2292 = vunpack.c.l.b16 %v1892
  %v2293 = vunpack.c.l.b16 %v1893
  %v2294 = vunpack.c.l.b16 %v1894
  %v2295 = vunpack.c.l.b16 %v1895
  %v2296 = vunpack.c.l.b16 %v1896
  %v2297 = vunpack.c.l.b16 %v1897
  %v2298 = vunpack.c.l.b16 %v1898
  %v2299 = vunpack.c.l.b16 %v1899
  %v2300 = vunpack.c.l.b16 %v1900
  %v2301 = vunpack.c.l.b16 %v1901
  %v2302 = vunpack.c.l.b16 %v1902
  %v2303 = vunpack.c.l.b16 %v1903
  %v2304 = vunpack.c.l.b16 %v1904
  %v2305 = vunpack.c.l.b16 %v1905
  %v2306 = vunpack.c.l.b16 %v1906
  %v2307 = vunpack.c.l.b16 %v1907
  %v2308 = vunpack.c.l.b16 %v1908
  %v2309 = vunpack.c.l.b16 %v1909
  %v2310 = vunpack.c.l.b16 %v1910
  %v2311 = vunpack.c.l.b16 %v1911
  %v2312 = vunpack.c.l.b16 %v1912
  %v2313 = vunpack.c.l.b16 %v1913
  %v2314 = vunpack.c.l.b16 %v1914
  %v2315 = vunpack.c.l.b16 %v1915
  %v2316 = vunpack.c.l.b16 %v1916
  %v2317 = vunpack.c.l.b16 %v1917
  %v2318 = vunpack.c.l.b16 %v1918
  %v2319 = vunpack.c.l.b16 %v1919
  %v2320 = vunpack.c.l.b16 %v1920
  %v2321 = vunpack.c.l.b16 %v1921
  %v2322 = vunpack.c.l.b16 %v1922
  %v2323 = vunpack.c.l.b16 %v1923
  %v2324 = vunpack.c.l.b16 %v1924
  %v2325 = vunpack.c.l.b16 %v1925
  %v2326 = vunpack.c.l.b16 %v1926
  %v2327 = vunpack.c.l.b16 %v1927
  %v2328 = vunpack.c.l.b16 %v1928
  %v2329 = vunpack.c.l.b16 %v1929
  %v2330 = vunpack.c.l.b16 %v1930
  %v2331 = vunpack.c.l.b16 %v1931
  %v2332 = vunpack.c.l.b16 %v1932
  %v2333 = vunpack.c.l.b16 %v1933
  %v2334 = vunpack.c.l.b16 %v1934
  %v2335 = vunpack.c.l.b16 %v1935
  %v2336 = vunpack.c.l.b16 %v1936
  %v2337 = vunpack.c.l.b16 %v1937
  %v2338 = vunpack.c.l.b16 %v1938
  %v2339 = vunpack.c.l.b16 %v1939
  %v2340 = vunpack.c.l.b16 %v1940
  %v2341 = vunpack.c.l.b16 %v1941
  %v2342 = vunpack.c.l.b16 %v1942
  %v2343 = vunpack.c.l.b16 %v1943
  %v2344 = vunpack.c.l.b16 %v1944
  %v2345 = vunpack.c.l.b16 %v1945
  %v2346 = vunpack.c.l.b16 %v1946
  %v2347 = vunpack.c.l.b16 %v1947
  %v2348 = vunpack.c.l.b16 %v1948
  %v2349 = vunpack.c.l.b16 %v1949
  %v2350 = vunpack.c.l.b16 %v1950
  %v2351 = vunpack.c.l.b16 %v1951
  %v2352 = vunpack.c.l.b16 %v1952
  %v2353 = vunpack.c.l.b16 %v1953
  %v2354 = vunpack.c.l.b16 %v1954
  %v2355 = vunpack.c.l.b16 %v1955
  %v2356 = vunpack.c.l.b16 %v1956
  %v2357 = vunpack.c.l.b16 %v1957
  %v2358 = vunpack.c.l.b16 %v1958
  %v2359 = vunpack.c.l.b16 %v1959
  %v2360 = vunpack.c.l.b16 %v1960
  %v2361 = vunpack.c.l.b16 %v1961
  %v2362 = vunpack.c.l.b16 %v1962
  %v2363 = vunpack.c.l.b16 %v1963
  %v2364 = vunpack.c.l.b16 %v1964
  %v2365 = vunpack.c.l.b16 %v1965
  %v2366 = vunpack.c.l.b16 %v1966
  %v2367 = vunpack.c.l.b16 %v1967
  %v2368 = vunpack.c.l.b16 %v1968
  %v2369 = vunpack.c.l.b16 %v1969
  %v2370 = vunpack.c.l.b16 %v1970
  %v2371 = vunpack.c.l.b16 %v1971
  %v2372 = vunpack.c.l.b16 %v1972
  %v2373 = vunpack.c.l.b16 %v1973
  %v2374 = vunpack.c.l.b16 %v1974
  %v2375 = vunpack.c.l.b16 %v1975
  %v2376 = vunpack.c.l.b16 %v1976
  %v2377 = vunpack.c.l.b16 %v1977
  %v2378 = vunpack.c.l.b16 %v1978
  %v2379 = vunpack.c.l.b16 %v1979
  %v2380 = vunpack.c.l.b16 %v1980
  %v2381 = vunpack.c.l.b16 %v1981
  %v2382 = vunpack.c.l.b16 %v1982
  %v2383 = vunpack.c.l.b16 %v1983
  %v2384 = vunpack.c.l.b16 %v1984
  %v2385 = vunpack.c.l.b16 %v1985
  %v2386 = vunpack.c.l.b16 %v1986
  %v2387 = vunpack.c.l.b16 %v1987
  %v2388 = vunpack.c.l.b16 %v1988
  %v2389 = vunpack.c.l.b16 %v1989
  %v2390 = vunpack.c.l.b16 %v1990
  %v2391 = vunpack.c.l.b16 %v1991
  %v2392 = vunpack.c.l.b16 %v1992
  %v2393 = vunpack.c.l.b16 %v1993
  %v2394 = vunpack.c.l.b16 %v1994
  %v2395 = vunpack.c.l.b16 %v1995
  %v2396 = vunpack.c.l.b16 %v1996
  %v2397 = vunpack.c.l.b16 %v1997
  %v2398 = vunpack.c.l.b16 %v1998
  %v2399 = vunpack.c.l.b16 %v1999
  %v2400 = vunpack.c.l.b16 %v2000
  %v2401 = vunpack.c.l.b16 %v2001
  %v2402 = vunpack.c.l.b16 %v2002
  %v2403 = vunpack.c.l.b16 %v2003
  %v2404 = vunpack.c.l.b16 %v2004
  %v2405 = vunpack.c.l.b16 %v2005
  %v2406 = vunpack.c.l.b16 %v2006
  %v2407 = vunpack.c.l.b16 %v2007
  %v2408 = vunpack.c.l.b16 %v2008
  %v2409 = vunpack.c.l.b16 %v2009
  %v2410 = vunpack.c.l.b16 %v2010
  %v2411 = vunpack.c.l.b16 %v2011
  %v2412 = vunpack.c.l.b16 %v2012
  %v2413 = vunpack.c.l.b16 %v2013
  %v2414 = vunpack.c.l.b16 %v2014
  %v2415 = vunpack.c.l.b16 %v2015
  %v2416 = vunpack.c.l.b16 %v2016
  %v2417 = vunpack.c.l.b16 %v2017
  %v2418 = vunpack.c.l.b16 %v2018
  %v2419 = vunpack.c.l.b16 %v2019
  %v2420 = vunpack.c.l.b16 %v2020
  %v2421 = vunpack.c.l.b16 %v2021
  %v2422 = vunpack.c.l.b16 %v2022
  %v2423 = vunpack.c.l.b16 %v2023
  %v2424 = vunpack.c.l.b16 %v2024
  %v2425 = vunpack.c.l.b16 %v2025
  %v2426 = vunpack.c.l.b16 %v2026
  %v2427 = vunpack.c.l.b16 %v2027
  %v2428 = vunpack.c.l.b16 %v2028
  %v2429 = vunpack.c.l.b16 %v2029
  %v2430 = vunpack.c.l.b16 %v2030
  %v2431 = vunpack.c.l.b16 %v2031
  %v2432 = vunpack.c.l.b16 %v2032
  %v2433 = vunpack.c.l.b16 %v2033
  %v2434 = vunpack.c.l.b16 %v2034
  %v2435 = vunpack.c.l.b16 %v2035
  %v2436 = vunpack.c.l.b16 %v2036
  %v2437 = vunpack.c.l.b16 %v2037
  %v2438 = vunpack.c.l.b16 %v2038
  %v2439 = vunpack.c.l.b16 %v2039
  %v2440 = vunpack.c.l.b16 %v2040
  %v2441 = vunpack.c.l.b16 %v2041
  %v2442 = vunpack.c.l.b16 %v2042
  %v2443 = vunpack.c.l.b16 %v2043
  %v2444 = vunpack.c.l.b16 %v2044
  %v2445 = vunpack.c.l.b16 %v2045
  %v2446 = vunpack.c.l.b16 %v2046
  %v2447 = vunpack.c.l.b16 %v2047
  %v2448 = vunpack.c.l.b16 %v2048
  %v2449 = vunpack.c.l.b16 %v2049
  %v2450 = vunpack.c.l.b16 %v2050
  %v2451 = vunpack.c.l.b16 %v2051
  %v2452 = vunpack.c.l.b16 %v2052
  %v2453 = vunpack.c.l.b16 %v2053
  %v2454 = vunpack.c.l.b16 %v2054
  %v2455 = vunpack.c.l.b16 %v2055
  %v2456 = vunpack.c.l.b16 %v2056
  %v2457 = vunpack.c.l.b16 %v2057
  %v2458 = vunpack.c.l.b16 %v2058
  %v2459 = vunpack.c.l.b16 %v2059
  %v2460 = vunpack.c.l.b16 %v2060
  %v2461 = vunpack.c.l.b16 %v2061
  %v2462 = vunpack.c.l.b16 %v2062
  %v2463 = vunpack.c.l.b16 %v2063
  %v2464 = vunpack.c.l.b16 %v2064
  %v2465 = vunpack.c.l.b16 %v2065
  %v2466 = vunpack.c.l.b16 %v2066
  %v2467 = vunpack.c.l.b16 %v2067
  %v2468 = vunpack.c.l.b16 %v2068
  %v2469 = vunpack.c.l.b16 %v2069
  %v2470 = vunpack.c.l.b16 %v2070
  %v2471 = vunpack.c.l.b16 %v2071
  %v2472 = vunpack.c.l.b16 %v2072
  %v2473 = vunpack.c.l.b16 %v2073
  %v2474 = vunpack.c.l.b16 %v2074
  %v2475 = vunpack.c.l.b16 %v2075
  %v2476 = vunpack.c.l.b16 %v2076
  %v2477 = vunpack.c.l.b16 %v2077
  %v2478 = vunpack.c.l.b16 %v2078
  %v2479 = vunpack.c.l.b16 %v2079
  %v2480 = vunpack.c.l.b16 %v2080
  %v2481 = vunpack.c.l.b16 %v2081
  %v2482 = vunpack.c.l.b16 %v2082
  %v2483 = vunpack.c.l.b16 %v2083
  %v2484 = vunpack.c.l.b16 %v2084
  %v2485 = vunpack.c.l.b16 %v2085
  %v2486 = vunpack.c.l.b16 %v2086
  %v2487 = vunpack.c.l.b16 %v2087
  %v2488 = vunpack.c.l.b16 %v2088
  %v2489 = vpack.c.b16 %v2290, %v2289
  %v2490 = vpack.c.b16 %v2292, %v2291
  %v2491 = vpack.c.b16 %v2294, %v2293
  %v2492 = vpack.c.b16 %v2296, %v2295
  %v2493 = vpack.c.b16 %v2298, %v2297
  %v2494 = vpack.c.b16 %v2300, %v2299
  %v2495 = vpack.c.b16 %v2302, %v2301
  %v2496 = vpack.c.b16 %v2304, %v2303
  %v2497 = vpack.c.b16 %v2306, %v2305
  %v2498 = vpack.c.b16 %v2308, %v2307
  %v2499 = vpack.c.b16 %v2310, %v2309
  %v2500 = vpack.c.b16 %v2312, %v2311
  %v2501 = vpack.c.b16 %v2314, %v2313
  %v2502 = vpack.c.b16 %v2316, %v2315
  %v2503 = vpack.c.b16 %v2318, %v2317
  %v2504 = vpack.c.b16 %v2320, %v2319
  %v2505 = vpack.c.b16 %v2322, %v2321
  %v2506 = vpack.c.b16 %v2324, %v2323
  %v2507 = vpack.c.b16 %v2326, %v2325
  %v2508 = vpack.c.b16 %v2328, %v2327
  %v2509 = vpack.c.b16 %v2330, %v2329
  %v2510 = vpack.c.b16 %v2332, %v2331
  %v2511 = vpack.c.b16 %v2334, %v2333
  %v2512 = vpack.c.b16 %v2336, %v2335
  %v2513 = vpack.c.b16 %v2338, %v2337
  %v2514 = vpack.c.b16 %v2340, %v2339
  %v2515 = vpack.c.b16 %v2342, %v2341
  %v2516 = vpack.c.b16 %v2344, %v2343
  %v2517 = vpack.c.b16 %v2346, %v2345
  %v2518 = vpack.c.b16 %v2348, %v2347
  %v2519 = vpack.c.b16 %v2350, %v2349
  %v2520 = vpack.c.b16 %v2352, %v2351
  %v2521 = vpack.c.b16 %v2354, %v2353
  %v2522 = vpack.c.b16 %v2356, %v2355
  %v2523 = vpack.c.b16 %v2358, %v2357
  %v2524 = vpack.c.b16 %v2360, %v2359
  %v2525 = vpack.c.b16 %v2362, %v2361
  %v2526 = vpack.c.b16 %v2364, %v2363
  %v2527 = vpack.c.b16 %v2366, %v2365
  %v2528 = vpack.c.b16 %v2368, %v2367
  %v2529 = vpack.c.b16 %v2370, %v2369
  %v2530 = vpack.c.b16 %v2372, %v2371
  %v2531 = vpack.c.b16 %v2374, %v2373
  %v2532 = vpack.c.b16 %v2376, %v2375
  %v2533 = vpack.c.b16 %v2378, %v2377
  %v2534 = vpack.c.b16 %v2380, %v2379
  %v2535 = vpack.c.b16 %v2382, %v2381
  %v2536 = vpack.c.b16 %v2384, %v2383
  %v2537 = vpack.c.b16 %v2386, %v2385
  %v2538 = vpack.c.b16 %v2388, %v2387
  %v2539 = vpack.c.b16 %v2390, %v2389
  %v2540 = vpack.c.b16 %v2392, %v2391
  %v2541 = vpack.c.b16 %v2394, %v2393
  %v2542 = vpack.c.b16 %v2396, %v2395
  %v2543 = vpack.c.b16 %v2398, %v2397
  %v2544 = vpack.c.b16 %v2400, %v2399
  %v2545 = vpack.c.b16 %v2402, %v2401
  %v2546 = vpack.c.b16 %v2404, %v2403
  %v2547 = vpack.c.b16 %v2406, %v2405
  %v2548 = vpack.c.b16 %v2408, %v2407
  %v2549 = vpack.c.b16 %v2410, %v2409
  %v2550 = vpack.c.b16 %v2412, %v2411
  %v2551 = vpack.c.b16 %v2414, %v2413
  %v2552 = vpack.c.b16 %v2416, %v2415
  %v2553 = vpack.c.b16 %v2418, %v2417
  %v2554 = vpack.c.b16 %v2420, %v2419
  %v2555 = vpack.c.b16 %v2422, %v2421
  %v2556 = vpack.c.b16 %v2424, %v2423
  %v2557 = vpack.c.b16 %v2426, %v2425
  %v2558 = vpack.c.b16 %v2428, %v2427
  %v2559 = vpack.c.b16 %v2430, %v2429
  %v2560 = vpack.c.b16 %v2432, %v2431
  %v2561 = vpack.c.b16 %v2434, %v2433
  %v2562 = vpack.c.b16 %v2436, %v2435
  %v2563 = vpack.c.b16 %v2438, %v2437
  %v2564 = vpack.c.b16 %v2440, %v2439
  %v2565 = vpack.c.b16 %v2442, %v2441
  %v2566 = vpack.c.b16 %v2444, %v2443
  %v2567 = vpack.c.b16 %v2446, %v2445
  %v2568 = vpack.c.b16 %v2448, %v2447
  %v2569 = vpack.c.b16 %v2450, %v2449
  %v2570 = vpack.c.b16 %v2452, %v2451
  %v2571 = vpack.c.b16 %v2454, %v2453
  %v2572 = vpack.c.b16 %v2456, %v2455
  %v2573 = vpack.c.b16 %v2458, %v2457
  %v2574 = vpack.c.b16 %v2460, %v2459
  %v2575 = vpack.c.b16 %v2462, %v2461
  %v2576 = vpack.c.b16 %v2464, %v2463
  %v2577 = vpack.c.b16 %v2466, %v2465
  %v2578 = vpack.c.b16 %v2468, %v2467
  %v2579 = vpack.c.b16 %v2470, %v2469
  %v2580 = vpack.c.b16 %v2472, %v2471
  %v2581 = vpack.c.b16 %v2474, %v2473
  %v2582 = vpack.c.b16 %v2476, %v2475
  %v2583 = vpack.c.b16 %v2478, %v2477
  %v2584 = vpack.c.b16 %v2480, %v2479
  %v2585 = vpack.c.b16 %v2482, %v2481
  %v2586 = vpack.c.b16 %v2484, %v2483
  %v2587 = vpack.c.b16 %v2486, %v2485
  %v2588 = vpack.c.b16 %v2488, %v2487
  %v2590 = vsel %vm755, %v2489, 0
  %v2593 = vsel %vm755, %v2490, 0
  %v2596 = vsel %vm755, %v2491, 0
  %v2599 = vsel %vm755, %v2492, 0
  %v2602 = vsel %vm755, %v2493, 0
  %v2605 = vsel %vm755, %v2494, 0
  %v2608 = vsel %vm755, %v2495, 0
  %v2611 = vsel %vm755, %v2496, 0
  %v2614 = vsel %vm755, %v2497, 0
  %v2617 = vsel %vm755, %v2498, 0
  %v2620 = vsel %vm755, %v2499, 0
  %v2623 = vsel %vm755, %v2500, 0
  %v2626 = vsel %vm755, %v2501, 0
  %v2629 = vsel %vm755, %v2502, 0
  %v2632 = vsel %vm755, %v2503, 0
  %v2635 = vsel %vm755, %v2504, 0
  %v2638 = vsel %vm755, %v2505, 0
  %v2641 = vsel %vm755, %v2506, 0
  %v2644 = vsel %vm755, %v2507, 0
  %v2647 = vsel %vm755, %v2508, 0
  %v2650 = vsel %vm755, %v2509, 0
  %v2653 = vsel %vm755, %v2510, 0
  %v2656 = vsel %vm755, %v2511, 0
  %v2659 = vsel %vm755, %v2512, 0
  %v2662 = vsel %vm755, %v2513, 0
  %v2665 = vsel %vm755, %v2514, 0
  %v2668 = vsel %vm755, %v2515, 0
  %v2671 = vsel %vm755, %v2516, 0
  %v2674 = vsel %vm755, %v2517, 0
  %v2677 = vsel %vm755, %v2518, 0
  %v2680 = vsel %vm755, %v2519, 0
  %v2683 = vsel %vm755, %v2520, 0
  %v2686 = vsel %vm755, %v2521, 0
  %v2689 = vsel %vm755, %v2522, 0
  %v2692 = vsel %vm755, %v2523, 0
  %v2695 = vsel %vm755, %v2524, 0
  %v2698 = vsel %vm755, %v2525, 0
  %v2701 = vsel %vm755, %v2526, 0
  %v2704 = vsel %vm755, %v2527, 0
  %v2707 = vsel %vm755, %v2528, 0
  %v2710 = vsel %vm755, %v2529, 0
  %v2713 = vsel %vm755, %v2530, 0
  %v2716 = vsel %vm755, %v2531, 0
  %v2719 = vsel %vm755, %v2532, 0
  %v2722 = vsel %vm755, %v2533, 0
  %v2725 = vsel %vm755, %v2534, 0
  %v2728 = vsel %vm755, %v2535, 0
  %v2731 = vsel %vm755, %v2536, 0
  %v2734 = vsel %vm755, %v2537, 0
  %v2737 = vsel %vm755, %v2538, 0
  %v2740 = vsel %vm755, %v2539, 0
  %v2743 = vsel %vm755, %v2540, 0
  %v2746 = vsel %vm755, %v2541, 0
  %v2749 = vsel %vm755, %v2542, 0
  %v2752 = vsel %vm755, %v2543, 0
  %v2755 = vsel %vm755, %v2544, 0
  %v2758 = vsel %vm755, %v2545, 0
  %v2761 = vsel %vm755, %v2546, 0
  %v2764 = vsel %vm755, %v2547, 0
  %v2767 = vsel %vm755, %v2548, 0
  %v2770 = vsel %vm755, %v2549, 0
  %v2773 = vsel %vm755, %v2550, 0
  %v2776 = vsel %vm755, %v2551, 0
  %v2779 = vsel %vm755, %v2552, 0
  %v2782 = vsel %vm755, %v2553, 0
  %v2785 = vsel %vm755, %v2554, 0
  %v2788 = vsel %vm755, %v2555, 0
  %v2791 = vsel %vm755, %v2556, 0
  %v2794 = vsel %vm755, %v2557, 0
  %v2797 = vsel %vm755, %v2558, 0
  %v2800 = vsel %vm755, %v2559, 0
  %v2803 = vsel %vm755, %v2560, 0
  %v2806 = vsel %vm755, %v2561, 0
  %v2809 = vsel %vm755, %v2562, 0
  %v2812 = vsel %vm755, %v2563, 0
  %v2815 = vsel %vm755, %v2564, 0
  %v2818 = vsel %vm755, %v2565, 0
  %v2821 = vsel %vm755, %v2566, 0
  %v2824 = vsel %vm755, %v2567, 0
  %v2827 = vsel %vm755, %v2568, 0
  %v2830 = vsel %vm755, %v2569, 0
  %v2833 = vsel %vm755, %v2570, 0
  %v2836 = vsel %vm755, %v2571, 0
  %v2839 = vsel %vm755, %v2572, 0
  %v2842 = vsel %vm755, %v2573, 0
  %v2845 = vsel %vm755, %v2574, 0
  %v2848 = vsel %vm755, %v2575, 0
  %v2851 = vsel %vm755, %v2576, 0
  %v2854 = vsel %vm755, %v2577, 0
  %v2857 = vsel %vm755, %v2578, 0
  %v2860 = vsel %vm755, %v2579, 0
  %v2863 = vsel %vm755, %v2580, 0
  %v2866 = vsel %vm755, %v2581, 0
  %v2869 = vsel %vm755, %v2582, 0
  %v2872 = vsel %vm755, %v2583, 0
  %v2875 = vsel %vm755, %v2584, 0
  %v2878 = vsel %vm755, %v2585, 0
  %v2881 = vsel %vm755, %v2586, 0
  %v2884 = vsel %vm755, %v2587, 0
  %v2887 = vsel %vm755, %v2588, 0
  %2889 = vmatprep.subr.bf16.mxu0 0
  %2890 = vmatpush1.bf16.msra.mxu0 0
  %2891 = vmatprep.subr.bf16.mxu0 0
  %2892 = vmatpush1.bf16.msra.mxu0 0
  %2893 = vmatprep.subr.bf16.mxu0 0
  %2894 = vmatpush1.bf16.msra.mxu0 0
  %2895 = vmatprep.subr.bf16.mxu0 0
  %2896 = vmatpush1.bf16.msra.mxu0 %v749
  %2897 = vmatprep.subr.bf16.mxu0 0
  %2898 = vmatpush1.bf16.msra.mxu0 %v748
  %2899 = vmatprep.subr.bf16.mxu0 0
  %2900 = vmatpush1.bf16.msra.mxu0 %v747
  %2901 = vmatprep.subr.bf16.mxu0 0
  %2902 = vmatpush1.bf16.msra.mxu0 %v746
  %2903 = vmatprep.subr.bf16.mxu0 0
  %2904 = vmatpush1.bf16.msra.mxu0 %v745
  %2905 = vmatprep.subr.bf16.mxu0 0
  %2906 = vmatpush2.bf16.msra.mxu0 0
  %2907 = vmatprep.subr.bf16.mxu0 0
  %2908 = vmatpush2.bf16.msra.mxu0 0
  %2909 = vmatprep.subr.bf16.mxu0 0
  %2910 = vmatpush2.bf16.msra.mxu0 0
  %2911 = vmatprep.subr.bf16.mxu0 0
  %2912 = vmatpush2.bf16.msra.mxu0 0
  %2913 = vmatprep.subr.bf16.mxu0 0
  %2914 = vmatpush2.bf16.msra.mxu0 0
  %2915 = vmatprep.subr.bf16.mxu0 0
  %2916 = vmatpush2.bf16.msra.mxu0 0
  %2917 = vmatprep.subr.bf16.mxu0 0
  %2918 = vmatpush2.bf16.msra.mxu0 0
  %2919 = vmatprep.subr.bf16.mxu0 0
  %2920 = vmatpush2.bf16.msra.mxu0 0
  %2921 = vmatprep.mubr.bf16.mxu0 0
  %2922 = vmatmul.mubr.bf16.gmra.mxu0 %v2590
  %v2923 = vpop.f32.mrf.mxu0
  %v2924 = vadd.f32 0.0, %v2923
  %v2925 = vpop.f32.mrf.mxu0
  %v2926 = vpop.f32.mrf.mxu0
  %v2927 = vadd.f32 0.0, %v2926
  %v2928 = vpop.f32.mrf.mxu0
  %2929 = vmatprep.mubr.bf16.mxu0 0
  %2930 = vmatmul.mubr.bf16.gmra.mxu0 %v2593
  %v2931 = vpop.f32.mrf.mxu0
  %v2932 = vadd.f32 0.0, %v2931
  %v2933 = vpop.f32.mrf.mxu0
  %v2934 = vpop.f32.mrf.mxu0
  %v2935 = vadd.f32 0.0, %v2934
  %v2936 = vpop.f32.mrf.mxu0
  %2937 = vmatprep.mubr.bf16.mxu0 0
  %2938 = vmatmul.mubr.bf16.gmra.mxu0 %v2596
  %v2939 = vpop.f32.mrf.mxu0
  %v2940 = vadd.f32 0.0, %v2939
  %v2941 = vpop.f32.mrf.mxu0
  %v2942 = vpop.f32.mrf.mxu0
  %v2943 = vadd.f32 0.0, %v2942
  %v2944 = vpop.f32.mrf.mxu0
  %2945 = vmatprep.mubr.bf16.mxu0 0
  %2946 = vmatmul.mubr.bf16.gmra.mxu0 %v2599
  %v2947 = vpop.f32.mrf.mxu0
  %v2948 = vadd.f32 0.0, %v2947
  %v2949 = vpop.f32.mrf.mxu0
  %v2950 = vpop.f32.mrf.mxu0
  %v2951 = vadd.f32 0.0, %v2950
  %v2952 = vpop.f32.mrf.mxu0
  %2953 = vmatprep.mubr.bf16.mxu0 0
  %2954 = vmatmul.mubr.bf16.gmra.mxu0 %v2602
  %v2955 = vpop.f32.mrf.mxu0
  %v2956 = vadd.f32 0.0, %v2955
  %v2957 = vpop.f32.mrf.mxu0
  %v2958 = vpop.f32.mrf.mxu0
  %v2959 = vadd.f32 0.0, %v2958
  %v2960 = vpop.f32.mrf.mxu0
  %2961 = vmatprep.mubr.bf16.mxu0 0
  %2962 = vmatmul.mubr.bf16.gmra.mxu0 %v2605
  %v2963 = vpop.f32.mrf.mxu0
  %v2964 = vadd.f32 0.0, %v2963
  %v2965 = vpop.f32.mrf.mxu0
  %v2966 = vpop.f32.mrf.mxu0
  %v2967 = vadd.f32 0.0, %v2966
  %v2968 = vpop.f32.mrf.mxu0
  %2969 = vmatprep.mubr.bf16.mxu0 0
  %2970 = vmatmul.mubr.bf16.gmra.mxu0 %v2608
  %v2971 = vpop.f32.mrf.mxu0
  %v2972 = vadd.f32 0.0, %v2971
  %v2973 = vpop.f32.mrf.mxu0
  %v2974 = vpop.f32.mrf.mxu0
  %v2975 = vadd.f32 0.0, %v2974
  %v2976 = vpop.f32.mrf.mxu0
  %2977 = vmatprep.mubr.bf16.mxu0 0
  %2978 = vmatmul.mubr.bf16.gmra.mxu0 %v2611
  %v2979 = vpop.f32.mrf.mxu0
  %v2980 = vadd.f32 0.0, %v2979
  %v2981 = vpop.f32.mrf.mxu0
  %v2982 = vpop.f32.mrf.mxu0
  %v2983 = vadd.f32 0.0, %v2982
  %v2984 = vpop.f32.mrf.mxu0
  %2985 = vmatprep.mubr.bf16.mxu0 0
  %2986 = vmatmul.mubr.bf16.gmra.mxu0 %v2614
  %v2987 = vpop.f32.mrf.mxu0
  %v2988 = vadd.f32 0.0, %v2987
  %v2989 = vpop.f32.mrf.mxu0
  %v2990 = vpop.f32.mrf.mxu0
  %v2991 = vadd.f32 0.0, %v2990
  %v2992 = vpop.f32.mrf.mxu0
  %2993 = vmatprep.mubr.bf16.mxu0 0
  %2994 = vmatmul.mubr.bf16.gmra.mxu0 %v2617
  %v2995 = vpop.f32.mrf.mxu0
  %v2996 = vadd.f32 0.0, %v2995
  %v2997 = vpop.f32.mrf.mxu0
  %v2998 = vpop.f32.mrf.mxu0
  %v2999 = vadd.f32 0.0, %v2998
  %v3000 = vpop.f32.mrf.mxu0
  %3001 = vmatprep.mubr.bf16.mxu0 0
  %3002 = vmatmul.mubr.bf16.gmra.mxu0 %v2620
  %v3003 = vpop.f32.mrf.mxu0
  %v3004 = vadd.f32 0.0, %v3003
  %v3005 = vpop.f32.mrf.mxu0
  %v3006 = vpop.f32.mrf.mxu0
  %v3007 = vadd.f32 0.0, %v3006
  %v3008 = vpop.f32.mrf.mxu0
  %3009 = vmatprep.mubr.bf16.mxu0 0
  %3010 = vmatmul.mubr.bf16.gmra.mxu0 %v2623
  %v3011 = vpop.f32.mrf.mxu0
  %v3012 = vadd.f32 0.0, %v3011
  %v3013 = vpop.f32.mrf.mxu0
  %v3014 = vpop.f32.mrf.mxu0
  %v3015 = vadd.f32 0.0, %v3014
  %v3016 = vpop.f32.mrf.mxu0
  %3017 = vmatprep.mubr.bf16.mxu0 0
  %3018 = vmatmul.mubr.bf16.gmra.mxu0 %v2626
  %v3019 = vpop.f32.mrf.mxu0
  %v3020 = vadd.f32 0.0, %v3019
  %v3021 = vpop.f32.mrf.mxu0
  %v3022 = vpop.f32.mrf.mxu0
  %v3023 = vadd.f32 0.0, %v3022
  %v3024 = vpop.f32.mrf.mxu0
  %3025 = vmatprep.mubr.bf16.mxu0 0
  %3026 = vmatmul.mubr.bf16.gmra.mxu0 %v2629
  %v3027 = vpop.f32.mrf.mxu0
  %v3028 = vadd.f32 0.0, %v3027
  %v3029 = vpop.f32.mrf.mxu0
  %v3030 = vpop.f32.mrf.mxu0
  %v3031 = vadd.f32 0.0, %v3030
  %v3032 = vpop.f32.mrf.mxu0
  %3033 = vmatprep.mubr.bf16.mxu0 0
  %3034 = vmatmul.mubr.bf16.gmra.mxu0 %v2632
  %v3035 = vpop.f32.mrf.mxu0
  %v3036 = vadd.f32 0.0, %v3035
  %v3037 = vpop.f32.mrf.mxu0
  %v3038 = vpop.f32.mrf.mxu0
  %v3039 = vadd.f32 0.0, %v3038
  %v3040 = vpop.f32.mrf.mxu0
  %3041 = vmatprep.mubr.bf16.mxu0 0
  %3042 = vmatmul.mubr.bf16.gmra.mxu0 %v2635
  %v3043 = vpop.f32.mrf.mxu0
  %v3044 = vadd.f32 0.0, %v3043
  %v3045 = vpop.f32.mrf.mxu0
  %v3046 = vpop.f32.mrf.mxu0
  %v3047 = vadd.f32 0.0, %v3046
  %v3048 = vpop.f32.mrf.mxu0
  %3049 = vmatprep.mubr.bf16.mxu0 0
  %3050 = vmatmul.mubr.bf16.gmra.mxu0 %v2638
  %v3051 = vpop.f32.mrf.mxu0
  %v3052 = vadd.f32 0.0, %v3051
  %v3053 = vpop.f32.mrf.mxu0
  %v3054 = vpop.f32.mrf.mxu0
  %v3055 = vadd.f32 0.0, %v3054
  %v3056 = vpop.f32.mrf.mxu0
  %3057 = vmatprep.mubr.bf16.mxu0 0
  %3058 = vmatmul.mubr.bf16.gmra.mxu0 %v2641
  %v3059 = vpop.f32.mrf.mxu0
  %v3060 = vadd.f32 0.0, %v3059
  %v3061 = vpop.f32.mrf.mxu0
  %v3062 = vpop.f32.mrf.mxu0
  %v3063 = vadd.f32 0.0, %v3062
  %v3064 = vpop.f32.mrf.mxu0
  %3065 = vmatprep.mubr.bf16.mxu0 0
  %3066 = vmatmul.mubr.bf16.gmra.mxu0 %v2644
  %v3067 = vpop.f32.mrf.mxu0
  %v3068 = vadd.f32 0.0, %v3067
  %v3069 = vpop.f32.mrf.mxu0
  %v3070 = vpop.f32.mrf.mxu0
  %v3071 = vadd.f32 0.0, %v3070
  %v3072 = vpop.f32.mrf.mxu0
  %3073 = vmatprep.mubr.bf16.mxu0 0
  %3074 = vmatmul.mubr.bf16.gmra.mxu0 %v2647
  %v3075 = vpop.f32.mrf.mxu0
  %v3076 = vadd.f32 0.0, %v3075
  %v3077 = vpop.f32.mrf.mxu0
  %v3078 = vpop.f32.mrf.mxu0
  %v3079 = vadd.f32 0.0, %v3078
  %v3080 = vpop.f32.mrf.mxu0
  %3081 = vmatprep.mubr.bf16.mxu0 0
  %3082 = vmatmul.mubr.bf16.gmra.mxu0 %v2650
  %v3083 = vpop.f32.mrf.mxu0
  %v3084 = vadd.f32 0.0, %v3083
  %v3085 = vpop.f32.mrf.mxu0
  %v3086 = vpop.f32.mrf.mxu0
  %v3087 = vadd.f32 0.0, %v3086
  %v3088 = vpop.f32.mrf.mxu0
  %3089 = vmatprep.mubr.bf16.mxu0 0
  %3090 = vmatmul.mubr.bf16.gmra.mxu0 %v2653
  %v3091 = vpop.f32.mrf.mxu0
  %v3092 = vadd.f32 0.0, %v3091
  %v3093 = vpop.f32.mrf.mxu0
  %v3094 = vpop.f32.mrf.mxu0
  %v3095 = vadd.f32 0.0, %v3094
  %v3096 = vpop.f32.mrf.mxu0
  %3097 = vmatprep.mubr.bf16.mxu0 0
  %3098 = vmatmul.mubr.bf16.gmra.mxu0 %v2656
  %v3099 = vpop.f32.mrf.mxu0
  %v3100 = vadd.f32 0.0, %v3099
  %v3101 = vpop.f32.mrf.mxu0
  %v3102 = vpop.f32.mrf.mxu0
  %v3103 = vadd.f32 0.0, %v3102
  %v3104 = vpop.f32.mrf.mxu0
  %3105 = vmatprep.mubr.bf16.mxu0 0
  %3106 = vmatmul.mubr.bf16.gmra.mxu0 %v2659
  %v3107 = vpop.f32.mrf.mxu0
  %v3108 = vadd.f32 0.0, %v3107
  %v3109 = vpop.f32.mrf.mxu0
  %v3110 = vpop.f32.mrf.mxu0
  %v3111 = vadd.f32 0.0, %v3110
  %v3112 = vpop.f32.mrf.mxu0
  %3113 = vmatprep.mubr.bf16.mxu0 0
  %3114 = vmatmul.mubr.bf16.gmra.mxu0 %v2662
  %v3115 = vpop.f32.mrf.mxu0
  %v3116 = vadd.f32 0.0, %v3115
  %v3117 = vpop.f32.mrf.mxu0
  %v3118 = vpop.f32.mrf.mxu0
  %v3119 = vadd.f32 0.0, %v3118
  %v3120 = vpop.f32.mrf.mxu0
  %3121 = vmatprep.mubr.bf16.mxu0 0
  %3122 = vmatmul.mubr.bf16.gmra.mxu0 %v2665
  %v3123 = vpop.f32.mrf.mxu0
  %v3124 = vadd.f32 0.0, %v3123
  %v3125 = vpop.f32.mrf.mxu0
  %v3126 = vpop.f32.mrf.mxu0
  %v3127 = vadd.f32 0.0, %v3126
  %v3128 = vpop.f32.mrf.mxu0
  %3129 = vmatprep.mubr.bf16.mxu0 0
  %3130 = vmatmul.mubr.bf16.gmra.mxu0 %v2668
  %v3131 = vpop.f32.mrf.mxu0
  %v3132 = vadd.f32 0.0, %v3131
  %v3133 = vpop.f32.mrf.mxu0
  %v3134 = vpop.f32.mrf.mxu0
  %v3135 = vadd.f32 0.0, %v3134
  %v3136 = vpop.f32.mrf.mxu0
  %3137 = vmatprep.mubr.bf16.mxu0 0
  %3138 = vmatmul.mubr.bf16.gmra.mxu0 %v2671
  %v3139 = vpop.f32.mrf.mxu0
  %v3140 = vadd.f32 0.0, %v3139
  %v3141 = vpop.f32.mrf.mxu0
  %v3142 = vpop.f32.mrf.mxu0
  %v3143 = vadd.f32 0.0, %v3142
  %v3144 = vpop.f32.mrf.mxu0
  %3145 = vmatprep.mubr.bf16.mxu0 0
  %3146 = vmatmul.mubr.bf16.gmra.mxu0 %v2674
  %v3147 = vpop.f32.mrf.mxu0
  %v3148 = vadd.f32 0.0, %v3147
  %v3149 = vpop.f32.mrf.mxu0
  %v3150 = vpop.f32.mrf.mxu0
  %v3151 = vadd.f32 0.0, %v3150
  %v3152 = vpop.f32.mrf.mxu0
  %3153 = vmatprep.mubr.bf16.mxu0 0
  %3154 = vmatmul.mubr.bf16.gmra.mxu0 %v2677
  %v3155 = vpop.f32.mrf.mxu0
  %v3156 = vadd.f32 0.0, %v3155
  %v3157 = vpop.f32.mrf.mxu0
  %v3158 = vpop.f32.mrf.mxu0
  %v3159 = vadd.f32 0.0, %v3158
  %v3160 = vpop.f32.mrf.mxu0
  %3161 = vmatprep.mubr.bf16.mxu0 0
  %3162 = vmatmul.mubr.bf16.gmra.mxu0 %v2680
  %v3163 = vpop.f32.mrf.mxu0
  %v3164 = vadd.f32 0.0, %v3163
  %v3165 = vpop.f32.mrf.mxu0
  %v3166 = vpop.f32.mrf.mxu0
  %v3167 = vadd.f32 0.0, %v3166
  %v3168 = vpop.f32.mrf.mxu0
  %3169 = vmatprep.mubr.bf16.mxu0 0
  %3170 = vmatmul.mubr.bf16.gmra.mxu0 %v2683
  %v3171 = vpop.f32.mrf.mxu0
  %v3172 = vadd.f32 0.0, %v3171
  %v3173 = vpop.f32.mrf.mxu0
  %v3174 = vpop.f32.mrf.mxu0
  %v3175 = vadd.f32 0.0, %v3174
  %v3176 = vpop.f32.mrf.mxu0
  %3177 = vmatprep.mubr.bf16.mxu0 0
  %3178 = vmatmul.mubr.bf16.gmra.mxu0 %v2686
  %v3179 = vpop.f32.mrf.mxu0
  %v3180 = vadd.f32 0.0, %v3179
  %v3181 = vpop.f32.mrf.mxu0
  %v3182 = vpop.f32.mrf.mxu0
  %v3183 = vadd.f32 0.0, %v3182
  %v3184 = vpop.f32.mrf.mxu0
  %3185 = vmatprep.mubr.bf16.mxu0 0
  %3186 = vmatmul.mubr.bf16.gmra.mxu0 %v2689
  %v3187 = vpop.f32.mrf.mxu0
  %v3188 = vadd.f32 0.0, %v3187
  %v3189 = vpop.f32.mrf.mxu0
  %v3190 = vpop.f32.mrf.mxu0
  %v3191 = vadd.f32 0.0, %v3190
  %v3192 = vpop.f32.mrf.mxu0
  %3193 = vmatprep.mubr.bf16.mxu0 0
  %3194 = vmatmul.mubr.bf16.gmra.mxu0 %v2692
  %v3195 = vpop.f32.mrf.mxu0
  %v3196 = vadd.f32 0.0, %v3195
  %v3197 = vpop.f32.mrf.mxu0
  %v3198 = vpop.f32.mrf.mxu0
  %v3199 = vadd.f32 0.0, %v3198
  %v3200 = vpop.f32.mrf.mxu0
  %3201 = vmatprep.mubr.bf16.mxu0 0
  %3202 = vmatmul.mubr.bf16.gmra.mxu0 %v2695
  %v3203 = vpop.f32.mrf.mxu0
  %v3204 = vadd.f32 0.0, %v3203
  %v3205 = vpop.f32.mrf.mxu0
  %v3206 = vpop.f32.mrf.mxu0
  %v3207 = vadd.f32 0.0, %v3206
  %v3208 = vpop.f32.mrf.mxu0
  %3209 = vmatprep.mubr.bf16.mxu0 0
  %3210 = vmatmul.mubr.bf16.gmra.mxu0 %v2698
  %v3211 = vpop.f32.mrf.mxu0
  %v3212 = vadd.f32 0.0, %v3211
  %v3213 = vpop.f32.mrf.mxu0
  %v3214 = vpop.f32.mrf.mxu0
  %v3215 = vadd.f32 0.0, %v3214
  %v3216 = vpop.f32.mrf.mxu0
  %3217 = vmatprep.mubr.bf16.mxu0 0
  %3218 = vmatmul.mubr.bf16.gmra.mxu0 %v2701
  %v3219 = vpop.f32.mrf.mxu0
  %v3220 = vadd.f32 0.0, %v3219
  %v3221 = vpop.f32.mrf.mxu0
  %v3222 = vpop.f32.mrf.mxu0
  %v3223 = vadd.f32 0.0, %v3222
  %v3224 = vpop.f32.mrf.mxu0
  %3225 = vmatprep.mubr.bf16.mxu0 0
  %3226 = vmatmul.mubr.bf16.gmra.mxu0 %v2704
  %v3227 = vpop.f32.mrf.mxu0
  %v3228 = vadd.f32 0.0, %v3227
  %v3229 = vpop.f32.mrf.mxu0
  %v3230 = vpop.f32.mrf.mxu0
  %v3231 = vadd.f32 0.0, %v3230
  %v3232 = vpop.f32.mrf.mxu0
  %3233 = vmatprep.mubr.bf16.mxu0 0
  %3234 = vmatmul.mubr.bf16.gmra.mxu0 %v2707
  %v3235 = vpop.f32.mrf.mxu0
  %v3236 = vadd.f32 0.0, %v3235
  %v3237 = vpop.f32.mrf.mxu0
  %v3238 = vpop.f32.mrf.mxu0
  %v3239 = vadd.f32 0.0, %v3238
  %v3240 = vpop.f32.mrf.mxu0
  %3241 = vmatprep.mubr.bf16.mxu0 0
  %3242 = vmatmul.mubr.bf16.gmra.mxu0 %v2710
  %v3243 = vpop.f32.mrf.mxu0
  %v3244 = vadd.f32 0.0, %v3243
  %v3245 = vpop.f32.mrf.mxu0
  %v3246 = vpop.f32.mrf.mxu0
  %v3247 = vadd.f32 0.0, %v3246
  %v3248 = vpop.f32.mrf.mxu0
  %3249 = vmatprep.mubr.bf16.mxu0 0
  %3250 = vmatmul.mubr.bf16.gmra.mxu0 %v2713
  %v3251 = vpop.f32.mrf.mxu0
  %v3252 = vadd.f32 0.0, %v3251
  %v3253 = vpop.f32.mrf.mxu0
  %v3254 = vpop.f32.mrf.mxu0
  %v3255 = vadd.f32 0.0, %v3254
  %v3256 = vpop.f32.mrf.mxu0
  %3257 = vmatprep.mubr.bf16.mxu0 0
  %3258 = vmatmul.mubr.bf16.gmra.mxu0 %v2716
  %v3259 = vpop.f32.mrf.mxu0
  %v3260 = vadd.f32 0.0, %v3259
  %v3261 = vpop.f32.mrf.mxu0
  %v3262 = vpop.f32.mrf.mxu0
  %v3263 = vadd.f32 0.0, %v3262
  %v3264 = vpop.f32.mrf.mxu0
  %3265 = vmatprep.mubr.bf16.mxu0 0
  %3266 = vmatmul.mubr.bf16.gmra.mxu0 %v2719
  %v3267 = vpop.f32.mrf.mxu0
  %v3268 = vadd.f32 0.0, %v3267
  %v3269 = vpop.f32.mrf.mxu0
  %v3270 = vpop.f32.mrf.mxu0
  %v3271 = vadd.f32 0.0, %v3270
  %v3272 = vpop.f32.mrf.mxu0
  %3273 = vmatprep.mubr.bf16.mxu0 0
  %3274 = vmatmul.mubr.bf16.gmra.mxu0 %v2722
  %v3275 = vpop.f32.mrf.mxu0
  %v3276 = vadd.f32 0.0, %v3275
  %v3277 = vpop.f32.mrf.mxu0
  %v3278 = vpop.f32.mrf.mxu0
  %v3279 = vadd.f32 0.0, %v3278
  %v3280 = vpop.f32.mrf.mxu0
  %3281 = vmatprep.mubr.bf16.mxu0 0
  %3282 = vmatmul.mubr.bf16.gmra.mxu0 %v2725
  %v3283 = vpop.f32.mrf.mxu0
  %v3284 = vadd.f32 0.0, %v3283
  %v3285 = vpop.f32.mrf.mxu0
  %v3286 = vpop.f32.mrf.mxu0
  %v3287 = vadd.f32 0.0, %v3286
  %v3288 = vpop.f32.mrf.mxu0
  %3289 = vmatprep.mubr.bf16.mxu0 0
  %3290 = vmatmul.mubr.bf16.gmra.mxu0 %v2728
  %v3291 = vpop.f32.mrf.mxu0
  %v3292 = vadd.f32 0.0, %v3291
  %v3293 = vpop.f32.mrf.mxu0
  %v3294 = vpop.f32.mrf.mxu0
  %v3295 = vadd.f32 0.0, %v3294
  %v3296 = vpop.f32.mrf.mxu0
  %3297 = vmatprep.mubr.bf16.mxu0 0
  %3298 = vmatmul.mubr.bf16.gmra.mxu0 %v2731
  %v3299 = vpop.f32.mrf.mxu0
  %v3300 = vadd.f32 0.0, %v3299
  %v3301 = vpop.f32.mrf.mxu0
  %v3302 = vpop.f32.mrf.mxu0
  %v3303 = vadd.f32 0.0, %v3302
  %v3304 = vpop.f32.mrf.mxu0
  %3305 = vmatprep.mubr.bf16.mxu0 0
  %3306 = vmatmul.mubr.bf16.gmra.mxu0 %v2734
  %v3307 = vpop.f32.mrf.mxu0
  %v3308 = vadd.f32 0.0, %v3307
  %v3309 = vpop.f32.mrf.mxu0
  %v3310 = vpop.f32.mrf.mxu0
  %v3311 = vadd.f32 0.0, %v3310
  %v3312 = vpop.f32.mrf.mxu0
  %3313 = vmatprep.mubr.bf16.mxu0 0
  %3314 = vmatmul.mubr.bf16.gmra.mxu0 %v2737
  %v3315 = vpop.f32.mrf.mxu0
  %v3316 = vadd.f32 0.0, %v3315
  %v3317 = vpop.f32.mrf.mxu0
  %v3318 = vpop.f32.mrf.mxu0
  %v3319 = vadd.f32 0.0, %v3318
  %v3320 = vpop.f32.mrf.mxu0
  %3321 = vmatprep.mubr.bf16.mxu0 0
  %3322 = vmatmul.mubr.bf16.gmra.mxu0 %v2740
  %v3323 = vpop.f32.mrf.mxu0
  %v3324 = vadd.f32 0.0, %v3323
  %v3325 = vpop.f32.mrf.mxu0
  %v3326 = vpop.f32.mrf.mxu0
  %v3327 = vadd.f32 0.0, %v3326
  %v3328 = vpop.f32.mrf.mxu0
  %3329 = vmatprep.mubr.bf16.mxu0 0
  %3330 = vmatmul.mubr.bf16.gmra.mxu0 %v2743
  %v3331 = vpop.f32.mrf.mxu0
  %v3332 = vadd.f32 0.0, %v3331
  %v3333 = vpop.f32.mrf.mxu0
  %v3334 = vpop.f32.mrf.mxu0
  %v3335 = vadd.f32 0.0, %v3334
  %v3336 = vpop.f32.mrf.mxu0
  %3337 = vmatprep.mubr.bf16.mxu0 0
  %3338 = vmatmul.mubr.bf16.gmra.mxu0 %v2746
  %v3339 = vpop.f32.mrf.mxu0
  %v3340 = vadd.f32 0.0, %v3339
  %v3341 = vpop.f32.mrf.mxu0
  %v3342 = vpop.f32.mrf.mxu0
  %v3343 = vadd.f32 0.0, %v3342
  %v3344 = vpop.f32.mrf.mxu0
  %3345 = vmatprep.mubr.bf16.mxu0 0
  %3346 = vmatmul.mubr.bf16.gmra.mxu0 %v2749
  %v3347 = vpop.f32.mrf.mxu0
  %v3348 = vadd.f32 0.0, %v3347
  %v3349 = vpop.f32.mrf.mxu0
  %v3350 = vpop.f32.mrf.mxu0
  %v3351 = vadd.f32 0.0, %v3350
  %v3352 = vpop.f32.mrf.mxu0
  %3353 = vmatprep.mubr.bf16.mxu0 0
  %3354 = vmatmul.mubr.bf16.gmra.mxu0 %v2752
  %v3355 = vpop.f32.mrf.mxu0
  %v3356 = vadd.f32 0.0, %v3355
  %v3357 = vpop.f32.mrf.mxu0
  %v3358 = vpop.f32.mrf.mxu0
  %v3359 = vadd.f32 0.0, %v3358
  %v3360 = vpop.f32.mrf.mxu0
  %3361 = vmatprep.mubr.bf16.mxu0 0
  %3362 = vmatmul.mubr.bf16.gmra.mxu0 %v2755
  %v3363 = vpop.f32.mrf.mxu0
  %v3364 = vadd.f32 0.0, %v3363
  %v3365 = vpop.f32.mrf.mxu0
  %v3366 = vpop.f32.mrf.mxu0
  %v3367 = vadd.f32 0.0, %v3366
  %v3368 = vpop.f32.mrf.mxu0
  %3369 = vmatprep.mubr.bf16.mxu0 0
  %3370 = vmatmul.mubr.bf16.gmra.mxu0 %v2758
  %v3371 = vpop.f32.mrf.mxu0
  %v3372 = vadd.f32 0.0, %v3371
  %v3373 = vpop.f32.mrf.mxu0
  %v3374 = vpop.f32.mrf.mxu0
  %v3375 = vadd.f32 0.0, %v3374
  %v3376 = vpop.f32.mrf.mxu0
  %3377 = vmatprep.mubr.bf16.mxu0 0
  %3378 = vmatmul.mubr.bf16.gmra.mxu0 %v2761
  %v3379 = vpop.f32.mrf.mxu0
  %v3380 = vadd.f32 0.0, %v3379
  %v3381 = vpop.f32.mrf.mxu0
  %v3382 = vpop.f32.mrf.mxu0
  %v3383 = vadd.f32 0.0, %v3382
  %v3384 = vpop.f32.mrf.mxu0
  %3385 = vmatprep.mubr.bf16.mxu0 0
  %3386 = vmatmul.mubr.bf16.gmra.mxu0 %v2764
  %v3387 = vpop.f32.mrf.mxu0
  %v3388 = vadd.f32 0.0, %v3387
  %v3389 = vpop.f32.mrf.mxu0
  %v3390 = vpop.f32.mrf.mxu0
  %v3391 = vadd.f32 0.0, %v3390
  %v3392 = vpop.f32.mrf.mxu0
  %3393 = vmatprep.mubr.bf16.mxu0 0
  %3394 = vmatmul.mubr.bf16.gmra.mxu0 %v2767
  %v3395 = vpop.f32.mrf.mxu0
  %v3396 = vadd.f32 0.0, %v3395
  %v3397 = vpop.f32.mrf.mxu0
  %v3398 = vpop.f32.mrf.mxu0
  %v3399 = vadd.f32 0.0, %v3398
  %v3400 = vpop.f32.mrf.mxu0
  %3401 = vmatprep.mubr.bf16.mxu0 0
  %3402 = vmatmul.mubr.bf16.gmra.mxu0 %v2770
  %v3403 = vpop.f32.mrf.mxu0
  %v3404 = vadd.f32 0.0, %v3403
  %v3405 = vpop.f32.mrf.mxu0
  %v3406 = vpop.f32.mrf.mxu0
  %v3407 = vadd.f32 0.0, %v3406
  %v3408 = vpop.f32.mrf.mxu0
  %3409 = vmatprep.mubr.bf16.mxu0 0
  %3410 = vmatmul.mubr.bf16.gmra.mxu0 %v2773
  %v3411 = vpop.f32.mrf.mxu0
  %v3412 = vadd.f32 0.0, %v3411
  %v3413 = vpop.f32.mrf.mxu0
  %v3414 = vpop.f32.mrf.mxu0
  %v3415 = vadd.f32 0.0, %v3414
  %v3416 = vpop.f32.mrf.mxu0
  %3417 = vmatprep.mubr.bf16.mxu0 0
  %3418 = vmatmul.mubr.bf16.gmra.mxu0 %v2776
  %v3419 = vpop.f32.mrf.mxu0
  %v3420 = vadd.f32 0.0, %v3419
  %v3421 = vpop.f32.mrf.mxu0
  %v3422 = vpop.f32.mrf.mxu0
  %v3423 = vadd.f32 0.0, %v3422
  %v3424 = vpop.f32.mrf.mxu0
  %3425 = vmatprep.mubr.bf16.mxu0 0
  %3426 = vmatmul.mubr.bf16.gmra.mxu0 %v2779
  %v3427 = vpop.f32.mrf.mxu0
  %v3428 = vadd.f32 0.0, %v3427
  %v3429 = vpop.f32.mrf.mxu0
  %v3430 = vpop.f32.mrf.mxu0
  %v3431 = vadd.f32 0.0, %v3430
  %v3432 = vpop.f32.mrf.mxu0
  %3433 = vmatprep.mubr.bf16.mxu0 0
  %3434 = vmatmul.mubr.bf16.gmra.mxu0 %v2782
  %v3435 = vpop.f32.mrf.mxu0
  %v3436 = vadd.f32 0.0, %v3435
  %v3437 = vpop.f32.mrf.mxu0
  %v3438 = vpop.f32.mrf.mxu0
  %v3439 = vadd.f32 0.0, %v3438
  %v3440 = vpop.f32.mrf.mxu0
  %3441 = vmatprep.mubr.bf16.mxu0 0
  %3442 = vmatmul.mubr.bf16.gmra.mxu0 %v2785
  %v3443 = vpop.f32.mrf.mxu0
  %v3444 = vadd.f32 0.0, %v3443
  %v3445 = vpop.f32.mrf.mxu0
  %v3446 = vpop.f32.mrf.mxu0
  %v3447 = vadd.f32 0.0, %v3446
  %v3448 = vpop.f32.mrf.mxu0
  %3449 = vmatprep.mubr.bf16.mxu0 0
  %3450 = vmatmul.mubr.bf16.gmra.mxu0 %v2788
  %v3451 = vpop.f32.mrf.mxu0
  %v3452 = vadd.f32 0.0, %v3451
  %v3453 = vpop.f32.mrf.mxu0
  %v3454 = vpop.f32.mrf.mxu0
  %v3455 = vadd.f32 0.0, %v3454
  %v3456 = vpop.f32.mrf.mxu0
  %3457 = vmatprep.mubr.bf16.mxu0 0
  %3458 = vmatmul.mubr.bf16.gmra.mxu0 %v2791
  %v3459 = vpop.f32.mrf.mxu0
  %v3460 = vadd.f32 0.0, %v3459
  %v3461 = vpop.f32.mrf.mxu0
  %v3462 = vpop.f32.mrf.mxu0
  %v3463 = vadd.f32 0.0, %v3462
  %v3464 = vpop.f32.mrf.mxu0
  %3465 = vmatprep.mubr.bf16.mxu0 0
  %3466 = vmatmul.mubr.bf16.gmra.mxu0 %v2794
  %v3467 = vpop.f32.mrf.mxu0
  %v3468 = vadd.f32 0.0, %v3467
  %v3469 = vpop.f32.mrf.mxu0
  %v3470 = vpop.f32.mrf.mxu0
  %v3471 = vadd.f32 0.0, %v3470
  %v3472 = vpop.f32.mrf.mxu0
  %3473 = vmatprep.mubr.bf16.mxu0 0
  %3474 = vmatmul.mubr.bf16.gmra.mxu0 %v2797
  %v3475 = vpop.f32.mrf.mxu0
  %v3476 = vadd.f32 0.0, %v3475
  %v3477 = vpop.f32.mrf.mxu0
  %v3478 = vpop.f32.mrf.mxu0
  %v3479 = vadd.f32 0.0, %v3478
  %v3480 = vpop.f32.mrf.mxu0
  %3481 = vmatprep.mubr.bf16.mxu0 0
  %3482 = vmatmul.mubr.bf16.gmra.mxu0 %v2800
  %v3483 = vpop.f32.mrf.mxu0
  %v3484 = vadd.f32 0.0, %v3483
  %v3485 = vpop.f32.mrf.mxu0
  %v3486 = vpop.f32.mrf.mxu0
  %v3487 = vadd.f32 0.0, %v3486
  %v3488 = vpop.f32.mrf.mxu0
  %3489 = vmatprep.mubr.bf16.mxu0 0
  %3490 = vmatmul.mubr.bf16.gmra.mxu0 %v2803
  %v3491 = vpop.f32.mrf.mxu0
  %v3492 = vadd.f32 0.0, %v3491
  %v3493 = vpop.f32.mrf.mxu0
  %v3494 = vpop.f32.mrf.mxu0
  %v3495 = vadd.f32 0.0, %v3494
  %v3496 = vpop.f32.mrf.mxu0
  %3497 = vmatprep.mubr.bf16.mxu0 0
  %3498 = vmatmul.mubr.bf16.gmra.mxu0 %v2806
  %v3499 = vpop.f32.mrf.mxu0
  %v3500 = vadd.f32 0.0, %v3499
  %v3501 = vpop.f32.mrf.mxu0
  %v3502 = vpop.f32.mrf.mxu0
  %v3503 = vadd.f32 0.0, %v3502
  %v3504 = vpop.f32.mrf.mxu0
  %3505 = vmatprep.mubr.bf16.mxu0 0
  %3506 = vmatmul.mubr.bf16.gmra.mxu0 %v2809
  %v3507 = vpop.f32.mrf.mxu0
  %v3508 = vadd.f32 0.0, %v3507
  %v3509 = vpop.f32.mrf.mxu0
  %v3510 = vpop.f32.mrf.mxu0
  %v3511 = vadd.f32 0.0, %v3510
  %v3512 = vpop.f32.mrf.mxu0
  %3513 = vmatprep.mubr.bf16.mxu0 0
  %3514 = vmatmul.mubr.bf16.gmra.mxu0 %v2812
  %v3515 = vpop.f32.mrf.mxu0
  %v3516 = vadd.f32 0.0, %v3515
  %v3517 = vpop.f32.mrf.mxu0
  %v3518 = vpop.f32.mrf.mxu0
  %v3519 = vadd.f32 0.0, %v3518
  %v3520 = vpop.f32.mrf.mxu0
  %3521 = vmatprep.mubr.bf16.mxu0 0
  %3522 = vmatmul.mubr.bf16.gmra.mxu0 %v2815
  %v3523 = vpop.f32.mrf.mxu0
  %v3524 = vadd.f32 0.0, %v3523
  %v3525 = vpop.f32.mrf.mxu0
  %v3526 = vpop.f32.mrf.mxu0
  %v3527 = vadd.f32 0.0, %v3526
  %v3528 = vpop.f32.mrf.mxu0
  %3529 = vmatprep.mubr.bf16.mxu0 0
  %3530 = vmatmul.mubr.bf16.gmra.mxu0 %v2818
  %v3531 = vpop.f32.mrf.mxu0
  %v3532 = vadd.f32 0.0, %v3531
  %v3533 = vpop.f32.mrf.mxu0
  %v3534 = vpop.f32.mrf.mxu0
  %v3535 = vadd.f32 0.0, %v3534
  %v3536 = vpop.f32.mrf.mxu0
  %3537 = vmatprep.mubr.bf16.mxu0 0
  %3538 = vmatmul.mubr.bf16.gmra.mxu0 %v2821
  %v3539 = vpop.f32.mrf.mxu0
  %v3540 = vadd.f32 0.0, %v3539
  %v3541 = vpop.f32.mrf.mxu0
  %v3542 = vpop.f32.mrf.mxu0
  %v3543 = vadd.f32 0.0, %v3542
  %v3544 = vpop.f32.mrf.mxu0
  %3545 = vmatprep.mubr.bf16.mxu0 0
  %3546 = vmatmul.mubr.bf16.gmra.mxu0 %v2824
  %v3547 = vpop.f32.mrf.mxu0
  %v3548 = vadd.f32 0.0, %v3547
  %v3549 = vpop.f32.mrf.mxu0
  %v3550 = vpop.f32.mrf.mxu0
  %v3551 = vadd.f32 0.0, %v3550
  %v3552 = vpop.f32.mrf.mxu0
  %3553 = vmatprep.mubr.bf16.mxu0 0
  %3554 = vmatmul.mubr.bf16.gmra.mxu0 %v2827
  %v3555 = vpop.f32.mrf.mxu0
  %v3556 = vadd.f32 0.0, %v3555
  %v3557 = vpop.f32.mrf.mxu0
  %v3558 = vpop.f32.mrf.mxu0
  %v3559 = vadd.f32 0.0, %v3558
  %v3560 = vpop.f32.mrf.mxu0
  %3561 = vmatprep.mubr.bf16.mxu0 0
  %3562 = vmatmul.mubr.bf16.gmra.mxu0 %v2830
  %v3563 = vpop.f32.mrf.mxu0
  %v3564 = vadd.f32 0.0, %v3563
  %v3565 = vpop.f32.mrf.mxu0
  %v3566 = vpop.f32.mrf.mxu0
  %v3567 = vadd.f32 0.0, %v3566
  %v3568 = vpop.f32.mrf.mxu0
  %3569 = vmatprep.mubr.bf16.mxu0 0
  %3570 = vmatmul.mubr.bf16.gmra.mxu0 %v2833
  %v3571 = vpop.f32.mrf.mxu0
  %v3572 = vadd.f32 0.0, %v3571
  %v3573 = vpop.f32.mrf.mxu0
  %v3574 = vpop.f32.mrf.mxu0
  %v3575 = vadd.f32 0.0, %v3574
  %v3576 = vpop.f32.mrf.mxu0
  %3577 = vmatprep.mubr.bf16.mxu0 0
  %3578 = vmatmul.mubr.bf16.gmra.mxu0 %v2836
  %v3579 = vpop.f32.mrf.mxu0
  %v3580 = vadd.f32 0.0, %v3579
  %v3581 = vpop.f32.mrf.mxu0
  %v3582 = vpop.f32.mrf.mxu0
  %v3583 = vadd.f32 0.0, %v3582
  %v3584 = vpop.f32.mrf.mxu0
  %3585 = vmatprep.mubr.bf16.mxu0 0
  %3586 = vmatmul.mubr.bf16.gmra.mxu0 %v2839
  %v3587 = vpop.f32.mrf.mxu0
  %v3588 = vadd.f32 0.0, %v3587
  %v3589 = vpop.f32.mrf.mxu0
  %v3590 = vpop.f32.mrf.mxu0
  %v3591 = vadd.f32 0.0, %v3590
  %v3592 = vpop.f32.mrf.mxu0
  %3593 = vmatprep.mubr.bf16.mxu0 0
  %3594 = vmatmul.mubr.bf16.gmra.mxu0 %v2842
  %v3595 = vpop.f32.mrf.mxu0
  %v3596 = vadd.f32 0.0, %v3595
  %v3597 = vpop.f32.mrf.mxu0
  %v3598 = vpop.f32.mrf.mxu0
  %v3599 = vadd.f32 0.0, %v3598
  %v3600 = vpop.f32.mrf.mxu0
  %3601 = vmatprep.mubr.bf16.mxu0 0
  %3602 = vmatmul.mubr.bf16.gmra.mxu0 %v2845
  %v3603 = vpop.f32.mrf.mxu0
  %v3604 = vadd.f32 0.0, %v3603
  %v3605 = vpop.f32.mrf.mxu0
  %v3606 = vpop.f32.mrf.mxu0
  %v3607 = vadd.f32 0.0, %v3606
  %v3608 = vpop.f32.mrf.mxu0
  %3609 = vmatprep.mubr.bf16.mxu0 0
  %3610 = vmatmul.mubr.bf16.gmra.mxu0 %v2848
  %v3611 = vpop.f32.mrf.mxu0
  %v3612 = vadd.f32 0.0, %v3611
  %v3613 = vpop.f32.mrf.mxu0
  %v3614 = vpop.f32.mrf.mxu0
  %v3615 = vadd.f32 0.0, %v3614
  %v3616 = vpop.f32.mrf.mxu0
  %3617 = vmatprep.mubr.bf16.mxu0 0
  %3618 = vmatmul.mubr.bf16.gmra.mxu0 %v2851
  %v3619 = vpop.f32.mrf.mxu0
  %v3620 = vadd.f32 0.0, %v3619
  %v3621 = vpop.f32.mrf.mxu0
  %v3622 = vpop.f32.mrf.mxu0
  %v3623 = vadd.f32 0.0, %v3622
  %v3624 = vpop.f32.mrf.mxu0
  %3625 = vmatprep.mubr.bf16.mxu0 0
  %3626 = vmatmul.mubr.bf16.gmra.mxu0 %v2854
  %v3627 = vpop.f32.mrf.mxu0
  %v3628 = vadd.f32 0.0, %v3627
  %v3629 = vpop.f32.mrf.mxu0
  %v3630 = vpop.f32.mrf.mxu0
  %v3631 = vadd.f32 0.0, %v3630
  %v3632 = vpop.f32.mrf.mxu0
  %3633 = vmatprep.mubr.bf16.mxu0 0
  %3634 = vmatmul.mubr.bf16.gmra.mxu0 %v2857
  %v3635 = vpop.f32.mrf.mxu0
  %v3636 = vadd.f32 0.0, %v3635
  %v3637 = vpop.f32.mrf.mxu0
  %v3638 = vpop.f32.mrf.mxu0
  %v3639 = vadd.f32 0.0, %v3638
  %v3640 = vpop.f32.mrf.mxu0
  %3641 = vmatprep.mubr.bf16.mxu0 0
  %3642 = vmatmul.mubr.bf16.gmra.mxu0 %v2860
  %v3643 = vpop.f32.mrf.mxu0
  %v3644 = vadd.f32 0.0, %v3643
  %v3645 = vpop.f32.mrf.mxu0
  %v3646 = vpop.f32.mrf.mxu0
  %v3647 = vadd.f32 0.0, %v3646
  %v3648 = vpop.f32.mrf.mxu0
  %3649 = vmatprep.mubr.bf16.mxu0 0
  %3650 = vmatmul.mubr.bf16.gmra.mxu0 %v2863
  %v3651 = vpop.f32.mrf.mxu0
  %v3652 = vadd.f32 0.0, %v3651
  %v3653 = vpop.f32.mrf.mxu0
  %v3654 = vpop.f32.mrf.mxu0
  %v3655 = vadd.f32 0.0, %v3654
  %v3656 = vpop.f32.mrf.mxu0
  %3657 = vmatprep.mubr.bf16.mxu0 0
  %3658 = vmatmul.mubr.bf16.gmra.mxu0 %v2866
  %v3659 = vpop.f32.mrf.mxu0
  %v3660 = vadd.f32 0.0, %v3659
  %v3661 = vpop.f32.mrf.mxu0
  %v3662 = vpop.f32.mrf.mxu0
  %v3663 = vadd.f32 0.0, %v3662
  %v3664 = vpop.f32.mrf.mxu0
  %3665 = vmatprep.mubr.bf16.mxu0 0
  %3666 = vmatmul.mubr.bf16.gmra.mxu0 %v2869
  %v3667 = vpop.f32.mrf.mxu0
  %v3668 = vadd.f32 0.0, %v3667
  %v3669 = vpop.f32.mrf.mxu0
  %v3670 = vpop.f32.mrf.mxu0
  %v3671 = vadd.f32 0.0, %v3670
  %v3672 = vpop.f32.mrf.mxu0
  %3673 = vmatprep.mubr.bf16.mxu0 0
  %3674 = vmatmul.mubr.bf16.gmra.mxu0 %v2872
  %v3675 = vpop.f32.mrf.mxu0
  %v3676 = vadd.f32 0.0, %v3675
  %v3677 = vpop.f32.mrf.mxu0
  %v3678 = vpop.f32.mrf.mxu0
  %v3679 = vadd.f32 0.0, %v3678
  %v3680 = vpop.f32.mrf.mxu0
  %3681 = vmatprep.mubr.bf16.mxu0 0
  %3682 = vmatmul.mubr.bf16.gmra.mxu0 %v2875
  %v3683 = vpop.f32.mrf.mxu0
  %v3684 = vadd.f32 0.0, %v3683
  %v3685 = vpop.f32.mrf.mxu0
  %v3686 = vpop.f32.mrf.mxu0
  %v3687 = vadd.f32 0.0, %v3686
  %v3688 = vpop.f32.mrf.mxu0
  %3689 = vmatprep.mubr.bf16.mxu0 0
  %3690 = vmatmul.mubr.bf16.gmra.mxu0 %v2878
  %v3691 = vpop.f32.mrf.mxu0
  %v3692 = vadd.f32 0.0, %v3691
  %v3693 = vpop.f32.mrf.mxu0
  %v3694 = vpop.f32.mrf.mxu0
  %v3695 = vadd.f32 0.0, %v3694
  %v3696 = vpop.f32.mrf.mxu0
  %3697 = vmatprep.mubr.bf16.mxu0 0
  %3698 = vmatmul.mubr.bf16.gmra.mxu0 %v2881
  %v3699 = vpop.f32.mrf.mxu0
  %v3700 = vadd.f32 0.0, %v3699
  %v3701 = vpop.f32.mrf.mxu0
  %v3702 = vpop.f32.mrf.mxu0
  %v3703 = vadd.f32 0.0, %v3702
  %v3704 = vpop.f32.mrf.mxu0
  %3705 = vmatprep.mubr.bf16.mxu0 0
  %3706 = vmatmul.mubr.bf16.gmra.mxu0 %v2884
  %v3707 = vpop.f32.mrf.mxu0
  %v3708 = vadd.f32 0.0, %v3707
  %v3709 = vpop.f32.mrf.mxu0
  %v3710 = vpop.f32.mrf.mxu0
  %v3711 = vadd.f32 0.0, %v3710
  %v3712 = vpop.f32.mrf.mxu0
  %3713 = vmatprep.mubr.bf16.mxu0 0
  %3714 = vmatmul.mubr.bf16.gmra.mxu0 %v2887
  %v3715 = vpop.f32.mrf.mxu0
  %v3716 = vadd.f32 0.0, %v3715
  %v3717 = vpop.f32.mrf.mxu0
  %v3718 = vpop.f32.mrf.mxu0
  %v3719 = vadd.f32 0.0, %v3718
  %v3720 = vpop.f32.mrf.mxu0
  %3721 = vdwg.mxu0
  %v3722 = vmax.f32 %v1091, %v2924
  %v3723 = vmax.f32 %v1094, %v2927
  %v3724 = vmax.f32 %v1099, %v2932
  %v3725 = vmax.f32 %v1102, %v2935
  %v3726 = vmax.f32 %v1107, %v2940
  %v3727 = vmax.f32 %v1110, %v2943
  %v3728 = vmax.f32 %v1115, %v2948
  %v3729 = vmax.f32 %v1118, %v2951
  %v3730 = vmax.f32 %v1123, %v2956
  %v3731 = vmax.f32 %v1126, %v2959
  %v3732 = vmax.f32 %v1131, %v2964
  %v3733 = vmax.f32 %v1134, %v2967
  %v3734 = vmax.f32 %v1139, %v2972
  %v3735 = vmax.f32 %v1142, %v2975
  %v3736 = vmax.f32 %v1147, %v2980
  %v3737 = vmax.f32 %v1150, %v2983
  %v3738 = vmax.f32 %v1155, %v2988
  %v3739 = vmax.f32 %v1158, %v2991
  %v3740 = vmax.f32 %v1163, %v2996
  %v3741 = vmax.f32 %v1166, %v2999
  %v3742 = vmax.f32 %v1171, %v3004
  %v3743 = vmax.f32 %v1174, %v3007
  %v3744 = vmax.f32 %v1179, %v3012
  %v3745 = vmax.f32 %v1182, %v3015
  %v3746 = vmax.f32 %v1187, %v3020
  %v3747 = vmax.f32 %v1190, %v3023
  %v3748 = vmax.f32 %v1195, %v3028
  %v3749 = vmax.f32 %v1198, %v3031
  %v3750 = vmax.f32 %v1203, %v3036
  %v3751 = vmax.f32 %v1206, %v3039
  %v3752 = vmax.f32 %v1211, %v3044
  %v3753 = vmax.f32 %v1214, %v3047
  %v3754 = vmax.f32 %v1219, %v3052
  %v3755 = vmax.f32 %v1222, %v3055
  %v3756 = vmax.f32 %v1227, %v3060
  %v3757 = vmax.f32 %v1230, %v3063
  %v3758 = vmax.f32 %v1235, %v3068
  %v3759 = vmax.f32 %v1238, %v3071
  %v3760 = vmax.f32 %v1243, %v3076
  %v3761 = vmax.f32 %v1246, %v3079
  %v3762 = vmax.f32 %v1251, %v3084
  %v3763 = vmax.f32 %v1254, %v3087
  %v3764 = vmax.f32 %v1259, %v3092
  %v3765 = vmax.f32 %v1262, %v3095
  %v3766 = vmax.f32 %v1267, %v3100
  %v3767 = vmax.f32 %v1270, %v3103
  %v3768 = vmax.f32 %v1275, %v3108
  %v3769 = vmax.f32 %v1278, %v3111
  %v3770 = vmax.f32 %v1283, %v3116
  %v3771 = vmax.f32 %v1286, %v3119
  %v3772 = vmax.f32 %v1291, %v3124
  %v3773 = vmax.f32 %v1294, %v3127
  %v3774 = vmax.f32 %v1299, %v3132
  %v3775 = vmax.f32 %v1302, %v3135
  %v3776 = vmax.f32 %v1307, %v3140
  %v3777 = vmax.f32 %v1310, %v3143
  %v3778 = vmax.f32 %v1315, %v3148
  %v3779 = vmax.f32 %v1318, %v3151
  %v3780 = vmax.f32 %v1323, %v3156
  %v3781 = vmax.f32 %v1326, %v3159
  %v3782 = vmax.f32 %v1331, %v3164
  %v3783 = vmax.f32 %v1334, %v3167
  %v3784 = vmax.f32 %v1339, %v3172
  %v3785 = vmax.f32 %v1342, %v3175
  %v3786 = vmax.f32 %v1347, %v3180
  %v3787 = vmax.f32 %v1350, %v3183
  %v3788 = vmax.f32 %v1355, %v3188
  %v3789 = vmax.f32 %v1358, %v3191
  %v3790 = vmax.f32 %v1363, %v3196
  %v3791 = vmax.f32 %v1366, %v3199
  %v3792 = vmax.f32 %v1371, %v3204
  %v3793 = vmax.f32 %v1374, %v3207
  %v3794 = vmax.f32 %v1379, %v3212
  %v3795 = vmax.f32 %v1382, %v3215
  %v3796 = vmax.f32 %v1387, %v3220
  %v3797 = vmax.f32 %v1390, %v3223
  %v3798 = vmax.f32 %v1395, %v3228
  %v3799 = vmax.f32 %v1398, %v3231
  %v3800 = vmax.f32 %v1403, %v3236
  %v3801 = vmax.f32 %v1406, %v3239
  %v3802 = vmax.f32 %v1411, %v3244
  %v3803 = vmax.f32 %v1414, %v3247
  %v3804 = vmax.f32 %v1419, %v3252
  %v3805 = vmax.f32 %v1422, %v3255
  %v3806 = vmax.f32 %v1427, %v3260
  %v3807 = vmax.f32 %v1430, %v3263
  %v3808 = vmax.f32 %v1435, %v3268
  %v3809 = vmax.f32 %v1438, %v3271
  %v3810 = vmax.f32 %v1443, %v3276
  %v3811 = vmax.f32 %v1446, %v3279
  %v3812 = vmax.f32 %v1451, %v3284
  %v3813 = vmax.f32 %v1454, %v3287
  %v3814 = vmax.f32 %v1459, %v3292
  %v3815 = vmax.f32 %v1462, %v3295
  %v3816 = vmax.f32 %v1467, %v3300
  %v3817 = vmax.f32 %v1470, %v3303
  %v3818 = vmax.f32 %v1475, %v3308
  %v3819 = vmax.f32 %v1478, %v3311
  %v3820 = vmax.f32 %v1483, %v3316
  %v3821 = vmax.f32 %v1486, %v3319
  %v3822 = vmax.f32 %v1491, %v3324
  %v3823 = vmax.f32 %v1494, %v3327
  %v3824 = vmax.f32 %v1499, %v3332
  %v3825 = vmax.f32 %v1502, %v3335
  %v3826 = vmax.f32 %v1507, %v3340
  %v3827 = vmax.f32 %v1510, %v3343
  %v3828 = vmax.f32 %v1515, %v3348
  %v3829 = vmax.f32 %v1518, %v3351
  %v3830 = vmax.f32 %v1523, %v3356
  %v3831 = vmax.f32 %v1526, %v3359
  %v3832 = vmax.f32 %v1531, %v3364
  %v3833 = vmax.f32 %v1534, %v3367
  %v3834 = vmax.f32 %v1539, %v3372
  %v3835 = vmax.f32 %v1542, %v3375
  %v3836 = vmax.f32 %v1547, %v3380
  %v3837 = vmax.f32 %v1550, %v3383
  %v3838 = vmax.f32 %v1555, %v3388
  %v3839 = vmax.f32 %v1558, %v3391
  %v3840 = vmax.f32 %v1563, %v3396
  %v3841 = vmax.f32 %v1566, %v3399
  %v3842 = vmax.f32 %v1571, %v3404
  %v3843 = vmax.f32 %v1574, %v3407
  %v3844 = vmax.f32 %v1579, %v3412
  %v3845 = vmax.f32 %v1582, %v3415
  %v3846 = vmax.f32 %v1587, %v3420
  %v3847 = vmax.f32 %v1590, %v3423
  %v3848 = vmax.f32 %v1595, %v3428
  %v3849 = vmax.f32 %v1598, %v3431
  %v3850 = vmax.f32 %v1603, %v3436
  %v3851 = vmax.f32 %v1606, %v3439
  %v3852 = vmax.f32 %v1611, %v3444
  %v3853 = vmax.f32 %v1614, %v3447
  %v3854 = vmax.f32 %v1619, %v3452
  %v3855 = vmax.f32 %v1622, %v3455
  %v3856 = vmax.f32 %v1627, %v3460
  %v3857 = vmax.f32 %v1630, %v3463
  %v3858 = vmax.f32 %v1635, %v3468
  %v3859 = vmax.f32 %v1638, %v3471
  %v3860 = vmax.f32 %v1643, %v3476
  %v3861 = vmax.f32 %v1646, %v3479
  %v3862 = vmax.f32 %v1651, %v3484
  %v3863 = vmax.f32 %v1654, %v3487
  %v3864 = vmax.f32 %v1659, %v3492
  %v3865 = vmax.f32 %v1662, %v3495
  %v3866 = vmax.f32 %v1667, %v3500
  %v3867 = vmax.f32 %v1670, %v3503
  %v3868 = vmax.f32 %v1675, %v3508
  %v3869 = vmax.f32 %v1678, %v3511
  %v3870 = vmax.f32 %v1683, %v3516
  %v3871 = vmax.f32 %v1686, %v3519
  %v3872 = vmax.f32 %v1691, %v3524
  %v3873 = vmax.f32 %v1694, %v3527
  %v3874 = vmax.f32 %v1699, %v3532
  %v3875 = vmax.f32 %v1702, %v3535
  %v3876 = vmax.f32 %v1707, %v3540
  %v3877 = vmax.f32 %v1710, %v3543
  %v3878 = vmax.f32 %v1715, %v3548
  %v3879 = vmax.f32 %v1718, %v3551
  %v3880 = vmax.f32 %v1723, %v3556
  %v3881 = vmax.f32 %v1726, %v3559
  %v3882 = vmax.f32 %v1731, %v3564
  %v3883 = vmax.f32 %v1734, %v3567
  %v3884 = vmax.f32 %v1739, %v3572
  %v3885 = vmax.f32 %v1742, %v3575
  %v3886 = vmax.f32 %v1747, %v3580
  %v3887 = vmax.f32 %v1750, %v3583
  %v3888 = vmax.f32 %v1755, %v3588
  %v3889 = vmax.f32 %v1758, %v3591
  %v3890 = vmax.f32 %v1763, %v3596
  %v3891 = vmax.f32 %v1766, %v3599
  %v3892 = vmax.f32 %v1771, %v3604
  %v3893 = vmax.f32 %v1774, %v3607
  %v3894 = vmax.f32 %v1779, %v3612
  %v3895 = vmax.f32 %v1782, %v3615
  %v3896 = vmax.f32 %v1787, %v3620
  %v3897 = vmax.f32 %v1790, %v3623
  %v3898 = vmax.f32 %v1795, %v3628
  %v3899 = vmax.f32 %v1798, %v3631
  %v3900 = vmax.f32 %v1803, %v3636
  %v3901 = vmax.f32 %v1806, %v3639
  %v3902 = vmax.f32 %v1811, %v3644
  %v3903 = vmax.f32 %v1814, %v3647
  %v3904 = vmax.f32 %v1819, %v3652
  %v3905 = vmax.f32 %v1822, %v3655
  %v3906 = vmax.f32 %v1827, %v3660
  %v3907 = vmax.f32 %v1830, %v3663
  %v3908 = vmax.f32 %v1835, %v3668
  %v3909 = vmax.f32 %v1838, %v3671
  %v3910 = vmax.f32 %v1843, %v3676
  %v3911 = vmax.f32 %v1846, %v3679
  %v3912 = vmax.f32 %v1851, %v3684
  %v3913 = vmax.f32 %v1854, %v3687
  %v3914 = vmax.f32 %v1859, %v3692
  %v3915 = vmax.f32 %v1862, %v3695
  %v3916 = vmax.f32 %v1867, %v3700
  %v3917 = vmax.f32 %v1870, %v3703
  %v3918 = vmax.f32 %v1875, %v3708
  %v3919 = vmax.f32 %v1878, %v3711
  %v3920 = vmax.f32 %v1883, %v3716
  %v3921 = vmax.f32 %v1886, %v3719
  %v3922 = vld [vmem:[%s0 + $0xc8] sm:$0xf]
  %v3923 = vld [vmem:[%s0 + $0xcc] sm:$0xf]
  %v3924 = vld [vmem:[%s0 + $0xd0] sm:$0xf]
  %v3925 = vld [vmem:[%s0 + $0xd4] sm:$0xf]
  %v3926 = vld [vmem:[%s0 + $0xd8] sm:$0xf]
  %v3927 = vld [vmem:[%s0 + $0xdc] sm:$0xf]
  %v3928 = vld [vmem:[%s0 + $0xe0] sm:$0xf]
  %v3929 = vld [vmem:[%s0 + $0xe4] sm:$0xf]
  %v3930 = vld [vmem:[%s0 + $0xe8] sm:$0xf]
  %v3931 = vld [vmem:[%s0 + $0xec] sm:$0xf]
  %v3932 = vld [vmem:[%s0 + $0xf0] sm:$0xf]
  %v3933 = vld [vmem:[%s0 + $0xf4] sm:$0xf]
  %v3934 = vld [vmem:[%s0 + $0xf8] sm:$0xf]
  %v3935 = vld [vmem:[%s0 + $0xfc] sm:$0xf]
  %v3936 = vld [vmem:[%s0 + $0x100] sm:$0xf]
  %v3937 = vld [vmem:[%s0 + $0x104] sm:$0xf]
  %v3938 = vld [vmem:[%s0 + $0x108] sm:$0xf]
  %v3939 = vld [vmem:[%s0 + $0x10c] sm:$0xf]
  %v3940 = vld [vmem:[%s0 + $0x110] sm:$0xf]
  %v3941 = vld [vmem:[%s0 + $0x114] sm:$0xf]
  %v3942 = vld [vmem:[%s0 + $0x118] sm:$0xf]
  %v3943 = vld [vmem:[%s0 + $0x11c] sm:$0xf]
  %v3944 = vld [vmem:[%s0 + $0x120] sm:$0xf]
  %v3945 = vld [vmem:[%s0 + $0x124] sm:$0xf]
  %v3946 = vld [vmem:[%s0 + $0x128] sm:$0xf]
  %v3947 = vld [vmem:[%s0 + $0x258] sm:$0xf]
  %v3948 = vld [vmem:[%s0 + $0x25c] sm:$0xf]
  %v3949 = vld [vmem:[%s0 + $0x260] sm:$0xf]
  %v3950 = vld [vmem:[%s0 + $0x264] sm:$0xf]
  %v3951 = vld [vmem:[%s0 + $0x268] sm:$0xf]
  %v3952 = vld [vmem:[%s0 + $0x26c] sm:$0xf]
  %v3953 = vld [vmem:[%s0 + $0x270] sm:$0xf]
  %v3954 = vld [vmem:[%s0 + $0x274] sm:$0xf]
  %v3955 = vld [vmem:[%s0 + $0x278] sm:$0xf]
  %v3956 = vld [vmem:[%s0 + $0x27c] sm:$0xf]
  %v3957 = vld [vmem:[%s0 + $0x280] sm:$0xf]
  %v3958 = vld [vmem:[%s0 + $0x284] sm:$0xf]
  %v3959 = vld [vmem:[%s0 + $0x288] sm:$0xf]
  %v3960 = vld [vmem:[%s0 + $0x28c] sm:$0xf]
  %v3961 = vld [vmem:[%s0 + $0x290] sm:$0xf]
  %v3962 = vld [vmem:[%s0 + $0x294] sm:$0xf]
  %v3963 = vld [vmem:[%s0 + $0x298] sm:$0xf]
  %v3964 = vld [vmem:[%s0 + $0x29c] sm:$0xf]
  %v3965 = vld [vmem:[%s0 + $0x2a0] sm:$0xf]
  %v3966 = vld [vmem:[%s0 + $0x2a4] sm:$0xf]
  %v3967 = vld [vmem:[%s0 + $0x2a8] sm:$0xf]
  %v3968 = vld [vmem:[%s0 + $0x2ac] sm:$0xf]
  %v3969 = vld [vmem:[%s0 + $0x2b0] sm:$0xf]
  %v3970 = vld [vmem:[%s0 + $0x2b4] sm:$0xf]
  %v3971 = vld [vmem:[%s0 + $0x2b8] sm:$0xf]
  %v3972 = vld [vmem:[%s0 + $0x3e8] sm:$0xf]
  %v3973 = vld [vmem:[%s0 + $0x3ec] sm:$0xf]
  %v3974 = vld [vmem:[%s0 + $0x3f0] sm:$0xf]
  %v3975 = vld [vmem:[%s0 + $0x3f4] sm:$0xf]
  %v3976 = vld [vmem:[%s0 + $0x3f8] sm:$0xf]
  %v3977 = vld [vmem:[%s0 + $0x3fc] sm:$0xf]
  %v3978 = vld [vmem:[%s0 + $0x400] sm:$0xf]
  %v3979 = vld [vmem:[%s0 + $0x404] sm:$0xf]
  %v3980 = vld [vmem:[%s0 + $0x408] sm:$0xf]
  %v3981 = vld [vmem:[%s0 + $0x40c] sm:$0xf]
  %v3982 = vld [vmem:[%s0 + $0x410] sm:$0xf]
  %v3983 = vld [vmem:[%s0 + $0x414] sm:$0xf]
  %v3984 = vld [vmem:[%s0 + $0x418] sm:$0xf]
  %v3985 = vld [vmem:[%s0 + $0x41c] sm:$0xf]
  %v3986 = vld [vmem:[%s0 + $0x420] sm:$0xf]
  %v3987 = vld [vmem:[%s0 + $0x424] sm:$0xf]
  %v3988 = vld [vmem:[%s0 + $0x428] sm:$0xf]
  %v3989 = vld [vmem:[%s0 + $0x42c] sm:$0xf]
  %v3990 = vld [vmem:[%s0 + $0x430] sm:$0xf]
  %v3991 = vld [vmem:[%s0 + $0x434] sm:$0xf]
  %v3992 = vld [vmem:[%s0 + $0x438] sm:$0xf]
  %v3993 = vld [vmem:[%s0 + $0x43c] sm:$0xf]
  %v3994 = vld [vmem:[%s0 + $0x440] sm:$0xf]
  %v3995 = vld [vmem:[%s0 + $0x444] sm:$0xf]
  %v3996 = vld [vmem:[%s0 + $0x448] sm:$0xf]
  %v3997 = vld [vmem:[%s0 + $0x578] sm:$0xf]
  %v3998 = vld [vmem:[%s0 + $0x57c] sm:$0xf]
  %v3999 = vld [vmem:[%s0 + $0x580] sm:$0xf]
  %v4000 = vld [vmem:[%s0 + $0x584] sm:$0xf]
  %v4001 = vld [vmem:[%s0 + $0x588] sm:$0xf]
  %v4002 = vld [vmem:[%s0 + $0x58c] sm:$0xf]
  %v4003 = vld [vmem:[%s0 + $0x590] sm:$0xf]
  %v4004 = vld [vmem:[%s0 + $0x594] sm:$0xf]
  %v4005 = vld [vmem:[%s0 + $0x598] sm:$0xf]
  %v4006 = vld [vmem:[%s0 + $0x59c] sm:$0xf]
  %v4007 = vld [vmem:[%s0 + $0x5a0] sm:$0xf]
  %v4008 = vld [vmem:[%s0 + $0x5a4] sm:$0xf]
  %v4009 = vld [vmem:[%s0 + $0x5a8] sm:$0xf]
  %v4010 = vld [vmem:[%s0 + $0x5ac] sm:$0xf]
  %v4011 = vld [vmem:[%s0 + $0x5b0] sm:$0xf]
  %v4012 = vld [vmem:[%s0 + $0x5b4] sm:$0xf]
  %v4013 = vld [vmem:[%s0 + $0x5b8] sm:$0xf]
  %v4014 = vld [vmem:[%s0 + $0x5bc] sm:$0xf]
  %v4015 = vld [vmem:[%s0 + $0x5c0] sm:$0xf]
  %v4016 = vld [vmem:[%s0 + $0x5c4] sm:$0xf]
  %v4017 = vld [vmem:[%s0 + $0x5c8] sm:$0xf]
  %v4018 = vld [vmem:[%s0 + $0x5cc] sm:$0xf]
  %v4019 = vld [vmem:[%s0 + $0x5d0] sm:$0xf]
  %v4020 = vld [vmem:[%s0 + $0x5d4] sm:$0xf]
  %v4021 = vld [vmem:[%s0 + $0x5d8] sm:$0xf]
  %v4022 = vld [vmem:[%s0 + $0x708] sm:$0xf]
  %v4023 = vld [vmem:[%s0 + $0x70c] sm:$0xf]
  %v4024 = vld [vmem:[%s0 + $0x710] sm:$0xf]
  %v4025 = vld [vmem:[%s0 + $0x714] sm:$0xf]
  %v4026 = vld [vmem:[%s0 + $0x718] sm:$0xf]
  %v4027 = vld [vmem:[%s0 + $0x71c] sm:$0xf]
  %v4028 = vld [vmem:[%s0 + $0x720] sm:$0xf]
  %v4029 = vld [vmem:[%s0 + $0x724] sm:$0xf]
  %v4030 = vld [vmem:[%s0 + $0x728] sm:$0xf]
  %v4031 = vld [vmem:[%s0 + $0x72c] sm:$0xf]
  %v4032 = vld [vmem:[%s0 + $0x730] sm:$0xf]
  %v4033 = vld [vmem:[%s0 + $0x734] sm:$0xf]
  %v4034 = vld [vmem:[%s0 + $0x738] sm:$0xf]
  %v4035 = vld [vmem:[%s0 + $0x73c] sm:$0xf]
  %v4036 = vld [vmem:[%s0 + $0x740] sm:$0xf]
  %v4037 = vld [vmem:[%s0 + $0x744] sm:$0xf]
  %v4038 = vld [vmem:[%s0 + $0x748] sm:$0xf]
  %v4039 = vld [vmem:[%s0 + $0x74c] sm:$0xf]
  %v4040 = vld [vmem:[%s0 + $0x750] sm:$0xf]
  %v4041 = vld [vmem:[%s0 + $0x754] sm:$0xf]
  %v4042 = vld [vmem:[%s0 + $0x758] sm:$0xf]
  %v4043 = vld [vmem:[%s0 + $0x75c] sm:$0xf]
  %v4044 = vld [vmem:[%s0 + $0x760] sm:$0xf]
  %v4045 = vld [vmem:[%s0 + $0x764] sm:$0xf]
  %v4046 = vld [vmem:[%s0 + $0x768] sm:$0xf]
  %v4047 = vld [vmem:[%s0 + $0x898] sm:$0xf]
  %v4048 = vld [vmem:[%s0 + $0x89c] sm:$0xf]
  %v4049 = vld [vmem:[%s0 + $0x8a0] sm:$0xf]
  %v4050 = vld [vmem:[%s0 + $0x8a4] sm:$0xf]
  %v4051 = vld [vmem:[%s0 + $0x8a8] sm:$0xf]
  %v4052 = vld [vmem:[%s0 + $0x8ac] sm:$0xf]
  %v4053 = vld [vmem:[%s0 + $0x8b0] sm:$0xf]
  %v4054 = vld [vmem:[%s0 + $0x8b4] sm:$0xf]
  %v4055 = vld [vmem:[%s0 + $0x8b8] sm:$0xf]
  %v4056 = vld [vmem:[%s0 + $0x8bc] sm:$0xf]
  %v4057 = vld [vmem:[%s0 + $0x8c0] sm:$0xf]
  %v4058 = vld [vmem:[%s0 + $0x8c4] sm:$0xf]
  %v4059 = vld [vmem:[%s0 + $0x8c8] sm:$0xf]
  %v4060 = vld [vmem:[%s0 + $0x8cc] sm:$0xf]
  %v4061 = vld [vmem:[%s0 + $0x8d0] sm:$0xf]
  %v4062 = vld [vmem:[%s0 + $0x8d4] sm:$0xf]
  %v4063 = vld [vmem:[%s0 + $0x8d8] sm:$0xf]
  %v4064 = vld [vmem:[%s0 + $0x8dc] sm:$0xf]
  %v4065 = vld [vmem:[%s0 + $0x8e0] sm:$0xf]
  %v4066 = vld [vmem:[%s0 + $0x8e4] sm:$0xf]
  %v4067 = vld [vmem:[%s0 + $0x8e8] sm:$0xf]
  %v4068 = vld [vmem:[%s0 + $0x8ec] sm:$0xf]
  %v4069 = vld [vmem:[%s0 + $0x8f0] sm:$0xf]
  %v4070 = vld [vmem:[%s0 + $0x8f4] sm:$0xf]
  %v4071 = vld [vmem:[%s0 + $0x8f8] sm:$0xf]
  %v4072 = vld [vmem:[%s0 + $0xa28] sm:$0xf]
  %v4073 = vld [vmem:[%s0 + $0xa2c] sm:$0xf]
  %v4074 = vld [vmem:[%s0 + $0xa30] sm:$0xf]
  %v4075 = vld [vmem:[%s0 + $0xa34] sm:$0xf]
  %v4076 = vld [vmem:[%s0 + $0xa38] sm:$0xf]
  %v4077 = vld [vmem:[%s0 + $0xa3c] sm:$0xf]
  %v4078 = vld [vmem:[%s0 + $0xa40] sm:$0xf]
  %v4079 = vld [vmem:[%s0 + $0xa44] sm:$0xf]
  %v4080 = vld [vmem:[%s0 + $0xa48] sm:$0xf]
  %v4081 = vld [vmem:[%s0 + $0xa4c] sm:$0xf]
  %v4082 = vld [vmem:[%s0 + $0xa50] sm:$0xf]
  %v4083 = vld [vmem:[%s0 + $0xa54] sm:$0xf]
  %v4084 = vld [vmem:[%s0 + $0xa58] sm:$0xf]
  %v4085 = vld [vmem:[%s0 + $0xa5c] sm:$0xf]
  %v4086 = vld [vmem:[%s0 + $0xa60] sm:$0xf]
  %v4087 = vld [vmem:[%s0 + $0xa64] sm:$0xf]
  %v4088 = vld [vmem:[%s0 + $0xa68] sm:$0xf]
  %v4089 = vld [vmem:[%s0 + $0xa6c] sm:$0xf]
  %v4090 = vld [vmem:[%s0 + $0xa70] sm:$0xf]
  %v4091 = vld [vmem:[%s0 + $0xa74] sm:$0xf]
  %v4092 = vld [vmem:[%s0 + $0xa78] sm:$0xf]
  %v4093 = vld [vmem:[%s0 + $0xa7c] sm:$0xf]
  %v4094 = vld [vmem:[%s0 + $0xa80] sm:$0xf]
  %v4095 = vld [vmem:[%s0 + $0xa84] sm:$0xf]
  %v4096 = vld [vmem:[%s0 + $0xa88] sm:$0xf]
  %v4097 = vld [vmem:[%s0 + $0xbb8] sm:$0xf]
  %v4098 = vld [vmem:[%s0 + $0xbbc] sm:$0xf]
  %v4099 = vld [vmem:[%s0 + $0xbc0] sm:$0xf]
  %v4100 = vld [vmem:[%s0 + $0xbc4] sm:$0xf]
  %v4101 = vld [vmem:[%s0 + $0xbc8] sm:$0xf]
  %v4102 = vld [vmem:[%s0 + $0xbcc] sm:$0xf]
  %v4103 = vld [vmem:[%s0 + $0xbd0] sm:$0xf]
  %v4104 = vld [vmem:[%s0 + $0xbd4] sm:$0xf]
  %v4105 = vld [vmem:[%s0 + $0xbd8] sm:$0xf]
  %v4106 = vld [vmem:[%s0 + $0xbdc] sm:$0xf]
  %v4107 = vld [vmem:[%s0 + $0xbe0] sm:$0xf]
  %v4108 = vld [vmem:[%s0 + $0xbe4] sm:$0xf]
  %v4109 = vld [vmem:[%s0 + $0xbe8] sm:$0xf]
  %v4110 = vld [vmem:[%s0 + $0xbec] sm:$0xf]
  %v4111 = vld [vmem:[%s0 + $0xbf0] sm:$0xf]
  %v4112 = vld [vmem:[%s0 + $0xbf4] sm:$0xf]
  %v4113 = vld [vmem:[%s0 + $0xbf8] sm:$0xf]
  %v4114 = vld [vmem:[%s0 + $0xbfc] sm:$0xf]
  %v4115 = vld [vmem:[%s0 + $0xc00] sm:$0xf]
  %v4116 = vld [vmem:[%s0 + $0xc04] sm:$0xf]
  %v4117 = vld [vmem:[%s0 + $0xc08] sm:$0xf]
  %v4118 = vld [vmem:[%s0 + $0xc0c] sm:$0xf]
  %v4119 = vld [vmem:[%s0 + $0xc10] sm:$0xf]
  %v4120 = vld [vmem:[%s0 + $0xc14] sm:$0xf]
  %v4121 = vld [vmem:[%s0 + $0xc18] sm:$0xf]
  %v4322 = vunpack.c.l.b16 %v3922
  %v4323 = vunpack.c.l.b16 %v3923
  %v4324 = vunpack.c.l.b16 %v3924
  %v4325 = vunpack.c.l.b16 %v3925
  %v4326 = vunpack.c.l.b16 %v3926
  %v4327 = vunpack.c.l.b16 %v3927
  %v4328 = vunpack.c.l.b16 %v3928
  %v4329 = vunpack.c.l.b16 %v3929
  %v4330 = vunpack.c.l.b16 %v3930
  %v4331 = vunpack.c.l.b16 %v3931
  %v4332 = vunpack.c.l.b16 %v3932
  %v4333 = vunpack.c.l.b16 %v3933
  %v4334 = vunpack.c.l.b16 %v3934
  %v4335 = vunpack.c.l.b16 %v3935
  %v4336 = vunpack.c.l.b16 %v3936
  %v4337 = vunpack.c.l.b16 %v3937
  %v4338 = vunpack.c.l.b16 %v3938
  %v4339 = vunpack.c.l.b16 %v3939
  %v4340 = vunpack.c.l.b16 %v3940
  %v4341 = vunpack.c.l.b16 %v3941
  %v4342 = vunpack.c.l.b16 %v3942
  %v4343 = vunpack.c.l.b16 %v3943
  %v4344 = vunpack.c.l.b16 %v3944
  %v4345 = vunpack.c.l.b16 %v3945
  %v4346 = vunpack.c.l.b16 %v3946
  %v4347 = vunpack.c.l.b16 %v3947
  %v4348 = vunpack.c.l.b16 %v3948
  %v4349 = vunpack.c.l.b16 %v3949
  %v4350 = vunpack.c.l.b16 %v3950
  %v4351 = vunpack.c.l.b16 %v3951
  %v4352 = vunpack.c.l.b16 %v3952
  %v4353 = vunpack.c.l.b16 %v3953
  %v4354 = vunpack.c.l.b16 %v3954
  %v4355 = vunpack.c.l.b16 %v3955
  %v4356 = vunpack.c.l.b16 %v3956
  %v4357 = vunpack.c.l.b16 %v3957
  %v4358 = vunpack.c.l.b16 %v3958
  %v4359 = vunpack.c.l.b16 %v3959
  %v4360 = vunpack.c.l.b16 %v3960
  %v4361 = vunpack.c.l.b16 %v3961
  %v4362 = vunpack.c.l.b16 %v3962
  %v4363 = vunpack.c.l.b16 %v3963
  %v4364 = vunpack.c.l.b16 %v3964
  %v4365 = vunpack.c.l.b16 %v3965
  %v4366 = vunpack.c.l.b16 %v3966
  %v4367 = vunpack.c.l.b16 %v3967
  %v4368 = vunpack.c.l.b16 %v3968
  %v4369 = vunpack.c.l.b16 %v3969
  %v4370 = vunpack.c.l.b16 %v3970
  %v4371 = vunpack.c.l.b16 %v3971
  %v4372 = vunpack.c.l.b16 %v3972
  %v4373 = vunpack.c.l.b16 %v3973
  %v4374 = vunpack.c.l.b16 %v3974
  %v4375 = vunpack.c.l.b16 %v3975
  %v4376 = vunpack.c.l.b16 %v3976
  %v4377 = vunpack.c.l.b16 %v3977
  %v4378 = vunpack.c.l.b16 %v3978
  %v4379 = vunpack.c.l.b16 %v3979
  %v4380 = vunpack.c.l.b16 %v3980
  %v4381 = vunpack.c.l.b16 %v3981
  %v4382 = vunpack.c.l.b16 %v3982
  %v4383 = vunpack.c.l.b16 %v3983
  %v4384 = vunpack.c.l.b16 %v3984
  %v4385 = vunpack.c.l.b16 %v3985
  %v4386 = vunpack.c.l.b16 %v3986
  %v4387 = vunpack.c.l.b16 %v3987
  %v4388 = vunpack.c.l.b16 %v3988
  %v4389 = vunpack.c.l.b16 %v3989
  %v4390 = vunpack.c.l.b16 %v3990
  %v4391 = vunpack.c.l.b16 %v3991
  %v4392 = vunpack.c.l.b16 %v3992
  %v4393 = vunpack.c.l.b16 %v3993
  %v4394 = vunpack.c.l.b16 %v3994
  %v4395 = vunpack.c.l.b16 %v3995
  %v4396 = vunpack.c.l.b16 %v3996
  %v4397 = vunpack.c.l.b16 %v3997
  %v4398 = vunpack.c.l.b16 %v3998
  %v4399 = vunpack.c.l.b16 %v3999
  %v4400 = vunpack.c.l.b16 %v4000
  %v4401 = vunpack.c.l.b16 %v4001
  %v4402 = vunpack.c.l.b16 %v4002
  %v4403 = vunpack.c.l.b16 %v4003
  %v4404 = vunpack.c.l.b16 %v4004
  %v4405 = vunpack.c.l.b16 %v4005
  %v4406 = vunpack.c.l.b16 %v4006
  %v4407 = vunpack.c.l.b16 %v4007
  %v4408 = vunpack.c.l.b16 %v4008
  %v4409 = vunpack.c.l.b16 %v4009
  %v4410 = vunpack.c.l.b16 %v4010
  %v4411 = vunpack.c.l.b16 %v4011
  %v4412 = vunpack.c.l.b16 %v4012
  %v4413 = vunpack.c.l.b16 %v4013
  %v4414 = vunpack.c.l.b16 %v4014
  %v4415 = vunpack.c.l.b16 %v4015
  %v4416 = vunpack.c.l.b16 %v4016
  %v4417 = vunpack.c.l.b16 %v4017
  %v4418 = vunpack.c.l.b16 %v4018
  %v4419 = vunpack.c.l.b16 %v4019
  %v4420 = vunpack.c.l.b16 %v4020
  %v4421 = vunpack.c.l.b16 %v4021
  %v4422 = vunpack.c.l.b16 %v4022
  %v4423 = vunpack.c.l.b16 %v4023
  %v4424 = vunpack.c.l.b16 %v4024
  %v4425 = vunpack.c.l.b16 %v4025
  %v4426 = vunpack.c.l.b16 %v4026
  %v4427 = vunpack.c.l.b16 %v4027
  %v4428 = vunpack.c.l.b16 %v4028
  %v4429 = vunpack.c.l.b16 %v4029
  %v4430 = vunpack.c.l.b16 %v4030
  %v4431 = vunpack.c.l.b16 %v4031
  %v4432 = vunpack.c.l.b16 %v4032
  %v4433 = vunpack.c.l.b16 %v4033
  %v4434 = vunpack.c.l.b16 %v4034
  %v4435 = vunpack.c.l.b16 %v4035
  %v4436 = vunpack.c.l.b16 %v4036
  %v4437 = vunpack.c.l.b16 %v4037
  %v4438 = vunpack.c.l.b16 %v4038
  %v4439 = vunpack.c.l.b16 %v4039
  %v4440 = vunpack.c.l.b16 %v4040
  %v4441 = vunpack.c.l.b16 %v4041
  %v4442 = vunpack.c.l.b16 %v4042
  %v4443 = vunpack.c.l.b16 %v4043
  %v4444 = vunpack.c.l.b16 %v4044
  %v4445 = vunpack.c.l.b16 %v4045
  %v4446 = vunpack.c.l.b16 %v4046
  %v4447 = vunpack.c.l.b16 %v4047
  %v4448 = vunpack.c.l.b16 %v4048
  %v4449 = vunpack.c.l.b16 %v4049
  %v4450 = vunpack.c.l.b16 %v4050
  %v4451 = vunpack.c.l.b16 %v4051
  %v4452 = vunpack.c.l.b16 %v4052
  %v4453 = vunpack.c.l.b16 %v4053
  %v4454 = vunpack.c.l.b16 %v4054
  %v4455 = vunpack.c.l.b16 %v4055
  %v4456 = vunpack.c.l.b16 %v4056
  %v4457 = vunpack.c.l.b16 %v4057
  %v4458 = vunpack.c.l.b16 %v4058
  %v4459 = vunpack.c.l.b16 %v4059
  %v4460 = vunpack.c.l.b16 %v4060
  %v4461 = vunpack.c.l.b16 %v4061
  %v4462 = vunpack.c.l.b16 %v4062
  %v4463 = vunpack.c.l.b16 %v4063
  %v4464 = vunpack.c.l.b16 %v4064
  %v4465 = vunpack.c.l.b16 %v4065
  %v4466 = vunpack.c.l.b16 %v4066
  %v4467 = vunpack.c.l.b16 %v4067
  %v4468 = vunpack.c.l.b16 %v4068
  %v4469 = vunpack.c.l.b16 %v4069
  %v4470 = vunpack.c.l.b16 %v4070
  %v4471 = vunpack.c.l.b16 %v4071
  %v4472 = vunpack.c.l.b16 %v4072
  %v4473 = vunpack.c.l.b16 %v4073
  %v4474 = vunpack.c.l.b16 %v4074
  %v4475 = vunpack.c.l.b16 %v4075
  %v4476 = vunpack.c.l.b16 %v4076
  %v4477 = vunpack.c.l.b16 %v4077
  %v4478 = vunpack.c.l.b16 %v4078
  %v4479 = vunpack.c.l.b16 %v4079
  %v4480 = vunpack.c.l.b16 %v4080
  %v4481 = vunpack.c.l.b16 %v4081
  %v4482 = vunpack.c.l.b16 %v4082
  %v4483 = vunpack.c.l.b16 %v4083
  %v4484 = vunpack.c.l.b16 %v4084
  %v4485 = vunpack.c.l.b16 %v4085
  %v4486 = vunpack.c.l.b16 %v4086
  %v4487 = vunpack.c.l.b16 %v4087
  %v4488 = vunpack.c.l.b16 %v4088
  %v4489 = vunpack.c.l.b16 %v4089
  %v4490 = vunpack.c.l.b16 %v4090
  %v4491 = vunpack.c.l.b16 %v4091
  %v4492 = vunpack.c.l.b16 %v4092
  %v4493 = vunpack.c.l.b16 %v4093
  %v4494 = vunpack.c.l.b16 %v4094
  %v4495 = vunpack.c.l.b16 %v4095
  %v4496 = vunpack.c.l.b16 %v4096
  %v4497 = vunpack.c.l.b16 %v4097
  %v4498 = vunpack.c.l.b16 %v4098
  %v4499 = vunpack.c.l.b16 %v4099
  %v4500 = vunpack.c.l.b16 %v4100
  %v4501 = vunpack.c.l.b16 %v4101
  %v4502 = vunpack.c.l.b16 %v4102
  %v4503 = vunpack.c.l.b16 %v4103
  %v4504 = vunpack.c.l.b16 %v4104
  %v4505 = vunpack.c.l.b16 %v4105
  %v4506 = vunpack.c.l.b16 %v4106
  %v4507 = vunpack.c.l.b16 %v4107
  %v4508 = vunpack.c.l.b16 %v4108
  %v4509 = vunpack.c.l.b16 %v4109
  %v4510 = vunpack.c.l.b16 %v4110
  %v4511 = vunpack.c.l.b16 %v4111
  %v4512 = vunpack.c.l.b16 %v4112
  %v4513 = vunpack.c.l.b16 %v4113
  %v4514 = vunpack.c.l.b16 %v4114
  %v4515 = vunpack.c.l.b16 %v4115
  %v4516 = vunpack.c.l.b16 %v4116
  %v4517 = vunpack.c.l.b16 %v4117
  %v4518 = vunpack.c.l.b16 %v4118
  %v4519 = vunpack.c.l.b16 %v4119
  %v4520 = vunpack.c.l.b16 %v4120
  %v4521 = vunpack.c.l.b16 %v4121
  %v4522 = vpack.c.b16 %v4323, %v4322
  %v4523 = vpack.c.b16 %v4325, %v4324
  %v4524 = vpack.c.b16 %v4327, %v4326
  %v4525 = vpack.c.b16 %v4329, %v4328
  %v4526 = vpack.c.b16 %v4331, %v4330
  %v4527 = vpack.c.b16 %v4333, %v4332
  %v4528 = vpack.c.b16 %v4335, %v4334
  %v4529 = vpack.c.b16 %v4337, %v4336
  %v4530 = vpack.c.b16 %v4339, %v4338
  %v4531 = vpack.c.b16 %v4341, %v4340
  %v4532 = vpack.c.b16 %v4343, %v4342
  %v4533 = vpack.c.b16 %v4345, %v4344
  %v4534 = vpack.c.b16 %v4347, %v4346
  %v4535 = vpack.c.b16 %v4349, %v4348
  %v4536 = vpack.c.b16 %v4351, %v4350
  %v4537 = vpack.c.b16 %v4353, %v4352
  %v4538 = vpack.c.b16 %v4355, %v4354
  %v4539 = vpack.c.b16 %v4357, %v4356
  %v4540 = vpack.c.b16 %v4359, %v4358
  %v4541 = vpack.c.b16 %v4361, %v4360
  %v4542 = vpack.c.b16 %v4363, %v4362
  %v4543 = vpack.c.b16 %v4365, %v4364
  %v4544 = vpack.c.b16 %v4367, %v4366
  %v4545 = vpack.c.b16 %v4369, %v4368
  %v4546 = vpack.c.b16 %v4371, %v4370
  %v4547 = vpack.c.b16 %v4373, %v4372
  %v4548 = vpack.c.b16 %v4375, %v4374
  %v4549 = vpack.c.b16 %v4377, %v4376
  %v4550 = vpack.c.b16 %v4379, %v4378
  %v4551 = vpack.c.b16 %v4381, %v4380
  %v4552 = vpack.c.b16 %v4383, %v4382
  %v4553 = vpack.c.b16 %v4385, %v4384
  %v4554 = vpack.c.b16 %v4387, %v4386
  %v4555 = vpack.c.b16 %v4389, %v4388
  %v4556 = vpack.c.b16 %v4391, %v4390
  %v4557 = vpack.c.b16 %v4393, %v4392
  %v4558 = vpack.c.b16 %v4395, %v4394
  %v4559 = vpack.c.b16 %v4397, %v4396
  %v4560 = vpack.c.b16 %v4399, %v4398
  %v4561 = vpack.c.b16 %v4401, %v4400
  %v4562 = vpack.c.b16 %v4403, %v4402
  %v4563 = vpack.c.b16 %v4405, %v4404
  %v4564 = vpack.c.b16 %v4407, %v4406
  %v4565 = vpack.c.b16 %v4409, %v4408
  %v4566 = vpack.c.b16 %v4411, %v4410
  %v4567 = vpack.c.b16 %v4413, %v4412
  %v4568 = vpack.c.b16 %v4415, %v4414
  %v4569 = vpack.c.b16 %v4417, %v4416
  %v4570 = vpack.c.b16 %v4419, %v4418
  %v4571 = vpack.c.b16 %v4421, %v4420
  %v4572 = vpack.c.b16 %v4423, %v4422
  %v4573 = vpack.c.b16 %v4425, %v4424
  %v4574 = vpack.c.b16 %v4427, %v4426
  %v4575 = vpack.c.b16 %v4429, %v4428
  %v4576 = vpack.c.b16 %v4431, %v4430
  %v4577 = vpack.c.b16 %v4433, %v4432
  %v4578 = vpack.c.b16 %v4435, %v4434
  %v4579 = vpack.c.b16 %v4437, %v4436
  %v4580 = vpack.c.b16 %v4439, %v4438
  %v4581 = vpack.c.b16 %v4441, %v4440
  %v4582 = vpack.c.b16 %v4443, %v4442
  %v4583 = vpack.c.b16 %v4445, %v4444
  %v4584 = vpack.c.b16 %v4447, %v4446
  %v4585 = vpack.c.b16 %v4449, %v4448
  %v4586 = vpack.c.b16 %v4451, %v4450
  %v4587 = vpack.c.b16 %v4453, %v4452
  %v4588 = vpack.c.b16 %v4455, %v4454
  %v4589 = vpack.c.b16 %v4457, %v4456
  %v4590 = vpack.c.b16 %v4459, %v4458
  %v4591 = vpack.c.b16 %v4461, %v4460
  %v4592 = vpack.c.b16 %v4463, %v4462
  %v4593 = vpack.c.b16 %v4465, %v4464
  %v4594 = vpack.c.b16 %v4467, %v4466
  %v4595 = vpack.c.b16 %v4469, %v4468
  %v4596 = vpack.c.b16 %v4471, %v4470
  %v4597 = vpack.c.b16 %v4473, %v4472
  %v4598 = vpack.c.b16 %v4475, %v4474
  %v4599 = vpack.c.b16 %v4477, %v4476
  %v4600 = vpack.c.b16 %v4479, %v4478
  %v4601 = vpack.c.b16 %v4481, %v4480
  %v4602 = vpack.c.b16 %v4483, %v4482
  %v4603 = vpack.c.b16 %v4485, %v4484
  %v4604 = vpack.c.b16 %v4487, %v4486
  %v4605 = vpack.c.b16 %v4489, %v4488
  %v4606 = vpack.c.b16 %v4491, %v4490
  %v4607 = vpack.c.b16 %v4493, %v4492
  %v4608 = vpack.c.b16 %v4495, %v4494
  %v4609 = vpack.c.b16 %v4497, %v4496
  %v4610 = vpack.c.b16 %v4499, %v4498
  %v4611 = vpack.c.b16 %v4501, %v4500
  %v4612 = vpack.c.b16 %v4503, %v4502
  %v4613 = vpack.c.b16 %v4505, %v4504
  %v4614 = vpack.c.b16 %v4507, %v4506
  %v4615 = vpack.c.b16 %v4509, %v4508
  %v4616 = vpack.c.b16 %v4511, %v4510
  %v4617 = vpack.c.b16 %v4513, %v4512
  %v4618 = vpack.c.b16 %v4515, %v4514
  %v4619 = vpack.c.b16 %v4517, %v4516
  %v4620 = vpack.c.b16 %v4519, %v4518
  %v4621 = vpack.c.b16 %v4521, %v4520
  %v4623 = vsel %vm755, %v4522, 0
  %v4626 = vsel %vm755, %v4523, 0
  %v4629 = vsel %vm755, %v4524, 0
  %v4632 = vsel %vm755, %v4525, 0
  %v4635 = vsel %vm755, %v4526, 0
  %v4638 = vsel %vm755, %v4527, 0
  %v4641 = vsel %vm755, %v4528, 0
  %v4644 = vsel %vm755, %v4529, 0
  %v4647 = vsel %vm755, %v4530, 0
  %v4650 = vsel %vm755, %v4531, 0
  %v4653 = vsel %vm755, %v4532, 0
  %v4656 = vsel %vm755, %v4533, 0
  %v4659 = vsel %vm755, %v4534, 0
  %v4662 = vsel %vm755, %v4535, 0
  %v4665 = vsel %vm755, %v4536, 0
  %v4668 = vsel %vm755, %v4537, 0
  %v4671 = vsel %vm755, %v4538, 0
  %v4674 = vsel %vm755, %v4539, 0
  %v4677 = vsel %vm755, %v4540, 0
  %v4680 = vsel %vm755, %v4541, 0
  %v4683 = vsel %vm755, %v4542, 0
  %v4686 = vsel %vm755, %v4543, 0
  %v4689 = vsel %vm755, %v4544, 0
  %v4692 = vsel %vm755, %v4545, 0
  %v4695 = vsel %vm755, %v4546, 0
  %v4698 = vsel %vm755, %v4547, 0
  %v4701 = vsel %vm755, %v4548, 0
  %v4704 = vsel %vm755, %v4549, 0
  %v4707 = vsel %vm755, %v4550, 0
  %v4710 = vsel %vm755, %v4551, 0
  %v4713 = vsel %vm755, %v4552, 0
  %v4716 = vsel %vm755, %v4553, 0
  %v4719 = vsel %vm755, %v4554, 0
  %v4722 = vsel %vm755, %v4555, 0
  %v4725 = vsel %vm755, %v4556, 0
  %v4728 = vsel %vm755, %v4557, 0
  %v4731 = vsel %vm755, %v4558, 0
  %v4734 = vsel %vm755, %v4559, 0
  %v4737 = vsel %vm755, %v4560, 0
  %v4740 = vsel %vm755, %v4561, 0
  %v4743 = vsel %vm755, %v4562, 0
  %v4746 = vsel %vm755, %v4563, 0
  %v4749 = vsel %vm755, %v4564, 0
  %v4752 = vsel %vm755, %v4565, 0
  %v4755 = vsel %vm755, %v4566, 0
  %v4758 = vsel %vm755, %v4567, 0
  %v4761 = vsel %vm755, %v4568, 0
  %v4764 = vsel %vm755, %v4569, 0
  %v4767 = vsel %vm755, %v4570, 0
  %v4770 = vsel %vm755, %v4571, 0
  %v4773 = vsel %vm755, %v4572, 0
  %v4776 = vsel %vm755, %v4573, 0
  %v4779 = vsel %vm755, %v4574, 0
  %v4782 = vsel %vm755, %v4575, 0
  %v4785 = vsel %vm755, %v4576, 0
  %v4788 = vsel %vm755, %v4577, 0
  %v4791 = vsel %vm755, %v4578, 0
  %v4794 = vsel %vm755, %v4579, 0
  %v4797 = vsel %vm755, %v4580, 0
  %v4800 = vsel %vm755, %v4581, 0
  %v4803 = vsel %vm755, %v4582, 0
  %v4806 = vsel %vm755, %v4583, 0
  %v4809 = vsel %vm755, %v4584, 0
  %v4812 = vsel %vm755, %v4585, 0
  %v4815 = vsel %vm755, %v4586, 0
  %v4818 = vsel %vm755, %v4587, 0
  %v4821 = vsel %vm755, %v4588, 0
  %v4824 = vsel %vm755, %v4589, 0
  %v4827 = vsel %vm755, %v4590, 0
  %v4830 = vsel %vm755, %v4591, 0
  %v4833 = vsel %vm755, %v4592, 0
  %v4836 = vsel %vm755, %v4593, 0
  %v4839 = vsel %vm755, %v4594, 0
  %v4842 = vsel %vm755, %v4595, 0
  %v4845 = vsel %vm755, %v4596, 0
  %v4848 = vsel %vm755, %v4597, 0
  %v4851 = vsel %vm755, %v4598, 0
  %v4854 = vsel %vm755, %v4599, 0
  %v4857 = vsel %vm755, %v4600, 0
  %v4860 = vsel %vm755, %v4601, 0
  %v4863 = vsel %vm755, %v4602, 0
  %v4866 = vsel %vm755, %v4603, 0
  %v4869 = vsel %vm755, %v4604, 0
  %v4872 = vsel %vm755, %v4605, 0
  %v4875 = vsel %vm755, %v4606, 0
  %v4878 = vsel %vm755, %v4607, 0
  %v4881 = vsel %vm755, %v4608, 0
  %v4884 = vsel %vm755, %v4609, 0
  %v4887 = vsel %vm755, %v4610, 0
  %v4890 = vsel %vm755, %v4611, 0
  %v4893 = vsel %vm755, %v4612, 0
  %v4896 = vsel %vm755, %v4613, 0
  %v4899 = vsel %vm755, %v4614, 0
  %v4902 = vsel %vm755, %v4615, 0
  %v4905 = vsel %vm755, %v4616, 0
  %v4908 = vsel %vm755, %v4617, 0
  %v4911 = vsel %vm755, %v4618, 0
  %v4914 = vsel %vm755, %v4619, 0
  %v4917 = vsel %vm755, %v4620, 0
  %v4920 = vsel %vm755, %v4621, 0
  %4922 = vmatprep.subr.bf16.mxu0 0
  %4923 = vmatpush1.bf16.msra.mxu0 0
  %4924 = vmatprep.subr.bf16.mxu0 0
  %4925 = vmatpush1.bf16.msra.mxu0 0
  %4926 = vmatprep.subr.bf16.mxu0 0
  %4927 = vmatpush1.bf16.msra.mxu0 0
  %4928 = vmatprep.subr.bf16.mxu0 0
  %4929 = vmatpush1.bf16.msra.mxu0 %v749
  %4930 = vmatprep.subr.bf16.mxu0 0
  %4931 = vmatpush1.bf16.msra.mxu0 %v748
  %4932 = vmatprep.subr.bf16.mxu0 0
  %4933 = vmatpush1.bf16.msra.mxu0 %v747
  %4934 = vmatprep.subr.bf16.mxu0 0
  %4935 = vmatpush1.bf16.msra.mxu0 %v746
  %4936 = vmatprep.subr.bf16.mxu0 0
  %4937 = vmatpush1.bf16.msra.mxu0 %v745
  %4938 = vmatprep.subr.bf16.mxu0 0
  %4939 = vmatpush2.bf16.msra.mxu0 0
  %4940 = vmatprep.subr.bf16.mxu0 0
  %4941 = vmatpush2.bf16.msra.mxu0 0
  %4942 = vmatprep.subr.bf16.mxu0 0
  %4943 = vmatpush2.bf16.msra.mxu0 0
  %4944 = vmatprep.subr.bf16.mxu0 0
  %4945 = vmatpush2.bf16.msra.mxu0 0
  %4946 = vmatprep.subr.bf16.mxu0 0
  %4947 = vmatpush2.bf16.msra.mxu0 0
  %4948 = vmatprep.subr.bf16.mxu0 0
  %4949 = vmatpush2.bf16.msra.mxu0 0
  %4950 = vmatprep.subr.bf16.mxu0 0
  %4951 = vmatpush2.bf16.msra.mxu0 0
  %4952 = vmatprep.subr.bf16.mxu0 0
  %4953 = vmatpush2.bf16.msra.mxu0 0
  %4954 = vmatprep.mubr.bf16.mxu0 0
  %4955 = vmatmul.mubr.bf16.gmra.mxu0 %v4623
  %v4956 = vpop.f32.mrf.mxu0
  %v4957 = vadd.f32 0.0, %v4956
  %v4958 = vpop.f32.mrf.mxu0
  %v4959 = vpop.f32.mrf.mxu0
  %v4960 = vadd.f32 0.0, %v4959
  %v4961 = vpop.f32.mrf.mxu0
  %4962 = vmatprep.mubr.bf16.mxu0 0
  %4963 = vmatmul.mubr.bf16.gmra.mxu0 %v4626
  %v4964 = vpop.f32.mrf.mxu0
  %v4965 = vadd.f32 0.0, %v4964
  %v4966 = vpop.f32.mrf.mxu0
  %v4967 = vpop.f32.mrf.mxu0
  %v4968 = vadd.f32 0.0, %v4967
  %v4969 = vpop.f32.mrf.mxu0
  %4970 = vmatprep.mubr.bf16.mxu0 0
  %4971 = vmatmul.mubr.bf16.gmra.mxu0 %v4629
  %v4972 = vpop.f32.mrf.mxu0
  %v4973 = vadd.f32 0.0, %v4972
  %v4974 = vpop.f32.mrf.mxu0
  %v4975 = vpop.f32.mrf.mxu0
  %v4976 = vadd.f32 0.0, %v4975
  %v4977 = vpop.f32.mrf.mxu0
  %4978 = vmatprep.mubr.bf16.mxu0 0
  %4979 = vmatmul.mubr.bf16.gmra.mxu0 %v4632
  %v4980 = vpop.f32.mrf.mxu0
  %v4981 = vadd.f32 0.0, %v4980
  %v4982 = vpop.f32.mrf.mxu0
  %v4983 = vpop.f32.mrf.mxu0
  %v4984 = vadd.f32 0.0, %v4983
  %v4985 = vpop.f32.mrf.mxu0
  %4986 = vmatprep.mubr.bf16.mxu0 0
  %4987 = vmatmul.mubr.bf16.gmra.mxu0 %v4635
  %v4988 = vpop.f32.mrf.mxu0
  %v4989 = vadd.f32 0.0, %v4988
  %v4990 = vpop.f32.mrf.mxu0
  %v4991 = vpop.f32.mrf.mxu0
  %v4992 = vadd.f32 0.0, %v4991
  %v4993 = vpop.f32.mrf.mxu0
  %4994 = vmatprep.mubr.bf16.mxu0 0
  %4995 = vmatmul.mubr.bf16.gmra.mxu0 %v4638
  %v4996 = vpop.f32.mrf.mxu0
  %v4997 = vadd.f32 0.0, %v4996
  %v4998 = vpop.f32.mrf.mxu0
  %v4999 = vpop.f32.mrf.mxu0
  %v5000 = vadd.f32 0.0, %v4999
  %v5001 = vpop.f32.mrf.mxu0
  %5002 = vmatprep.mubr.bf16.mxu0 0
  %5003 = vmatmul.mubr.bf16.gmra.mxu0 %v4641
  %v5004 = vpop.f32.mrf.mxu0
  %v5005 = vadd.f32 0.0, %v5004
  %v5006 = vpop.f32.mrf.mxu0
  %v5007 = vpop.f32.mrf.mxu0
  %v5008 = vadd.f32 0.0, %v5007
  %v5009 = vpop.f32.mrf.mxu0
  %5010 = vmatprep.mubr.bf16.mxu0 0
  %5011 = vmatmul.mubr.bf16.gmra.mxu0 %v4644
  %v5012 = vpop.f32.mrf.mxu0
  %v5013 = vadd.f32 0.0, %v5012
  %v5014 = vpop.f32.mrf.mxu0
  %v5015 = vpop.f32.mrf.mxu0
  %v5016 = vadd.f32 0.0, %v5015
  %v5017 = vpop.f32.mrf.mxu0
  %5018 = vmatprep.mubr.bf16.mxu0 0
  %5019 = vmatmul.mubr.bf16.gmra.mxu0 %v4647
  %v5020 = vpop.f32.mrf.mxu0
  %v5021 = vadd.f32 0.0, %v5020
  %v5022 = vpop.f32.mrf.mxu0
  %v5023 = vpop.f32.mrf.mxu0
  %v5024 = vadd.f32 0.0, %v5023
  %v5025 = vpop.f32.mrf.mxu0
  %5026 = vmatprep.mubr.bf16.mxu0 0
  %5027 = vmatmul.mubr.bf16.gmra.mxu0 %v4650
  %v5028 = vpop.f32.mrf.mxu0
  %v5029 = vadd.f32 0.0, %v5028
  %v5030 = vpop.f32.mrf.mxu0
  %v5031 = vpop.f32.mrf.mxu0
  %v5032 = vadd.f32 0.0, %v5031
  %v5033 = vpop.f32.mrf.mxu0
  %5034 = vmatprep.mubr.bf16.mxu0 0
  %5035 = vmatmul.mubr.bf16.gmra.mxu0 %v4653
  %v5036 = vpop.f32.mrf.mxu0
  %v5037 = vadd.f32 0.0, %v5036
  %v5038 = vpop.f32.mrf.mxu0
  %v5039 = vpop.f32.mrf.mxu0
  %v5040 = vadd.f32 0.0, %v5039
  %v5041 = vpop.f32.mrf.mxu0
  %5042 = vmatprep.mubr.bf16.mxu0 0
  %5043 = vmatmul.mubr.bf16.gmra.mxu0 %v4656
  %v5044 = vpop.f32.mrf.mxu0
  %v5045 = vadd.f32 0.0, %v5044
  %v5046 = vpop.f32.mrf.mxu0
  %v5047 = vpop.f32.mrf.mxu0
  %v5048 = vadd.f32 0.0, %v5047
  %v5049 = vpop.f32.mrf.mxu0
  %5050 = vmatprep.mubr.bf16.mxu0 0
  %5051 = vmatmul.mubr.bf16.gmra.mxu0 %v4659
  %v5052 = vpop.f32.mrf.mxu0
  %v5053 = vadd.f32 0.0, %v5052
  %v5054 = vpop.f32.mrf.mxu0
  %v5055 = vpop.f32.mrf.mxu0
  %v5056 = vadd.f32 0.0, %v5055
  %v5057 = vpop.f32.mrf.mxu0
  %5058 = vmatprep.mubr.bf16.mxu0 0
  %5059 = vmatmul.mubr.bf16.gmra.mxu0 %v4662
  %v5060 = vpop.f32.mrf.mxu0
  %v5061 = vadd.f32 0.0, %v5060
  %v5062 = vpop.f32.mrf.mxu0
  %v5063 = vpop.f32.mrf.mxu0
  %v5064 = vadd.f32 0.0, %v5063
  %v5065 = vpop.f32.mrf.mxu0
  %5066 = vmatprep.mubr.bf16.mxu0 0
  %5067 = vmatmul.mubr.bf16.gmra.mxu0 %v4665
  %v5068 = vpop.f32.mrf.mxu0
  %v5069 = vadd.f32 0.0, %v5068
  %v5070 = vpop.f32.mrf.mxu0
  %v5071 = vpop.f32.mrf.mxu0
  %v5072 = vadd.f32 0.0, %v5071
  %v5073 = vpop.f32.mrf.mxu0
  %5074 = vmatprep.mubr.bf16.mxu0 0
  %5075 = vmatmul.mubr.bf16.gmra.mxu0 %v4668
  %v5076 = vpop.f32.mrf.mxu0
  %v5077 = vadd.f32 0.0, %v5076
  %v5078 = vpop.f32.mrf.mxu0
  %v5079 = vpop.f32.mrf.mxu0
  %v5080 = vadd.f32 0.0, %v5079
  %v5081 = vpop.f32.mrf.mxu0
  %5082 = vmatprep.mubr.bf16.mxu0 0
  %5083 = vmatmul.mubr.bf16.gmra.mxu0 %v4671
  %v5084 = vpop.f32.mrf.mxu0
  %v5085 = vadd.f32 0.0, %v5084
  %v5086 = vpop.f32.mrf.mxu0
  %v5087 = vpop.f32.mrf.mxu0
  %v5088 = vadd.f32 0.0, %v5087
  %v5089 = vpop.f32.mrf.mxu0
  %5090 = vmatprep.mubr.bf16.mxu0 0
  %5091 = vmatmul.mubr.bf16.gmra.mxu0 %v4674
  %v5092 = vpop.f32.mrf.mxu0
  %v5093 = vadd.f32 0.0, %v5092
  %v5094 = vpop.f32.mrf.mxu0
  %v5095 = vpop.f32.mrf.mxu0
  %v5096 = vadd.f32 0.0, %v5095
  %v5097 = vpop.f32.mrf.mxu0
  %5098 = vmatprep.mubr.bf16.mxu0 0
  %5099 = vmatmul.mubr.bf16.gmra.mxu0 %v4677
  %v5100 = vpop.f32.mrf.mxu0
  %v5101 = vadd.f32 0.0, %v5100
  %v5102 = vpop.f32.mrf.mxu0
  %v5103 = vpop.f32.mrf.mxu0
  %v5104 = vadd.f32 0.0, %v5103
  %v5105 = vpop.f32.mrf.mxu0
  %5106 = vmatprep.mubr.bf16.mxu0 0
  %5107 = vmatmul.mubr.bf16.gmra.mxu0 %v4680
  %v5108 = vpop.f32.mrf.mxu0
  %v5109 = vadd.f32 0.0, %v5108
  %v5110 = vpop.f32.mrf.mxu0
  %v5111 = vpop.f32.mrf.mxu0
  %v5112 = vadd.f32 0.0, %v5111
  %v5113 = vpop.f32.mrf.mxu0
  %5114 = vmatprep.mubr.bf16.mxu0 0
  %5115 = vmatmul.mubr.bf16.gmra.mxu0 %v4683
  %v5116 = vpop.f32.mrf.mxu0
  %v5117 = vadd.f32 0.0, %v5116
  %v5118 = vpop.f32.mrf.mxu0
  %v5119 = vpop.f32.mrf.mxu0
  %v5120 = vadd.f32 0.0, %v5119
  %v5121 = vpop.f32.mrf.mxu0
  %5122 = vmatprep.mubr.bf16.mxu0 0
  %5123 = vmatmul.mubr.bf16.gmra.mxu0 %v4686
  %v5124 = vpop.f32.mrf.mxu0
  %v5125 = vadd.f32 0.0, %v5124
  %v5126 = vpop.f32.mrf.mxu0
  %v5127 = vpop.f32.mrf.mxu0
  %v5128 = vadd.f32 0.0, %v5127
  %v5129 = vpop.f32.mrf.mxu0
  %5130 = vmatprep.mubr.bf16.mxu0 0
  %5131 = vmatmul.mubr.bf16.gmra.mxu0 %v4689
  %v5132 = vpop.f32.mrf.mxu0
  %v5133 = vadd.f32 0.0, %v5132
  %v5134 = vpop.f32.mrf.mxu0
  %v5135 = vpop.f32.mrf.mxu0
  %v5136 = vadd.f32 0.0, %v5135
  %v5137 = vpop.f32.mrf.mxu0
  %5138 = vmatprep.mubr.bf16.mxu0 0
  %5139 = vmatmul.mubr.bf16.gmra.mxu0 %v4692
  %v5140 = vpop.f32.mrf.mxu0
  %v5141 = vadd.f32 0.0, %v5140
  %v5142 = vpop.f32.mrf.mxu0
  %v5143 = vpop.f32.mrf.mxu0
  %v5144 = vadd.f32 0.0, %v5143
  %v5145 = vpop.f32.mrf.mxu0
  %5146 = vmatprep.mubr.bf16.mxu0 0
  %5147 = vmatmul.mubr.bf16.gmra.mxu0 %v4695
  %v5148 = vpop.f32.mrf.mxu0
  %v5149 = vadd.f32 0.0, %v5148
  %v5150 = vpop.f32.mrf.mxu0
  %v5151 = vpop.f32.mrf.mxu0
  %v5152 = vadd.f32 0.0, %v5151
  %v5153 = vpop.f32.mrf.mxu0
  %5154 = vmatprep.mubr.bf16.mxu0 0
  %5155 = vmatmul.mubr.bf16.gmra.mxu0 %v4698
  %v5156 = vpop.f32.mrf.mxu0
  %v5157 = vadd.f32 0.0, %v5156
  %v5158 = vpop.f32.mrf.mxu0
  %v5159 = vpop.f32.mrf.mxu0
  %v5160 = vadd.f32 0.0, %v5159
  %v5161 = vpop.f32.mrf.mxu0
  %5162 = vmatprep.mubr.bf16.mxu0 0
  %5163 = vmatmul.mubr.bf16.gmra.mxu0 %v4701
  %v5164 = vpop.f32.mrf.mxu0
  %v5165 = vadd.f32 0.0, %v5164
  %v5166 = vpop.f32.mrf.mxu0
  %v5167 = vpop.f32.mrf.mxu0
  %v5168 = vadd.f32 0.0, %v5167
  %v5169 = vpop.f32.mrf.mxu0
  %5170 = vmatprep.mubr.bf16.mxu0 0
  %5171 = vmatmul.mubr.bf16.gmra.mxu0 %v4704
  %v5172 = vpop.f32.mrf.mxu0
  %v5173 = vadd.f32 0.0, %v5172
  %v5174 = vpop.f32.mrf.mxu0
  %v5175 = vpop.f32.mrf.mxu0
  %v5176 = vadd.f32 0.0, %v5175
  %v5177 = vpop.f32.mrf.mxu0
  %5178 = vmatprep.mubr.bf16.mxu0 0
  %5179 = vmatmul.mubr.bf16.gmra.mxu0 %v4707
  %v5180 = vpop.f32.mrf.mxu0
  %v5181 = vadd.f32 0.0, %v5180
  %v5182 = vpop.f32.mrf.mxu0
  %v5183 = vpop.f32.mrf.mxu0
  %v5184 = vadd.f32 0.0, %v5183
  %v5185 = vpop.f32.mrf.mxu0
  %5186 = vmatprep.mubr.bf16.mxu0 0
  %5187 = vmatmul.mubr.bf16.gmra.mxu0 %v4710
  %v5188 = vpop.f32.mrf.mxu0
  %v5189 = vadd.f32 0.0, %v5188
  %v5190 = vpop.f32.mrf.mxu0
  %v5191 = vpop.f32.mrf.mxu0
  %v5192 = vadd.f32 0.0, %v5191
  %v5193 = vpop.f32.mrf.mxu0
  %5194 = vmatprep.mubr.bf16.mxu0 0
  %5195 = vmatmul.mubr.bf16.gmra.mxu0 %v4713
  %v5196 = vpop.f32.mrf.mxu0
  %v5197 = vadd.f32 0.0, %v5196
  %v5198 = vpop.f32.mrf.mxu0
  %v5199 = vpop.f32.mrf.mxu0
  %v5200 = vadd.f32 0.0, %v5199
  %v5201 = vpop.f32.mrf.mxu0
  %5202 = vmatprep.mubr.bf16.mxu0 0
  %5203 = vmatmul.mubr.bf16.gmra.mxu0 %v4716
  %v5204 = vpop.f32.mrf.mxu0
  %v5205 = vadd.f32 0.0, %v5204
  %v5206 = vpop.f32.mrf.mxu0
  %v5207 = vpop.f32.mrf.mxu0
  %v5208 = vadd.f32 0.0, %v5207
  %v5209 = vpop.f32.mrf.mxu0
  %5210 = vmatprep.mubr.bf16.mxu0 0
  %5211 = vmatmul.mubr.bf16.gmra.mxu0 %v4719
  %v5212 = vpop.f32.mrf.mxu0
  %v5213 = vadd.f32 0.0, %v5212
  %v5214 = vpop.f32.mrf.mxu0
  %v5215 = vpop.f32.mrf.mxu0
  %v5216 = vadd.f32 0.0, %v5215
  %v5217 = vpop.f32.mrf.mxu0
  %5218 = vmatprep.mubr.bf16.mxu0 0
  %5219 = vmatmul.mubr.bf16.gmra.mxu0 %v4722
  %v5220 = vpop.f32.mrf.mxu0
  %v5221 = vadd.f32 0.0, %v5220
  %v5222 = vpop.f32.mrf.mxu0
  %v5223 = vpop.f32.mrf.mxu0
  %v5224 = vadd.f32 0.0, %v5223
  %v5225 = vpop.f32.mrf.mxu0
  %5226 = vmatprep.mubr.bf16.mxu0 0
  %5227 = vmatmul.mubr.bf16.gmra.mxu0 %v4725
  %v5228 = vpop.f32.mrf.mxu0
  %v5229 = vadd.f32 0.0, %v5228
  %v5230 = vpop.f32.mrf.mxu0
  %v5231 = vpop.f32.mrf.mxu0
  %v5232 = vadd.f32 0.0, %v5231
  %v5233 = vpop.f32.mrf.mxu0
  %5234 = vmatprep.mubr.bf16.mxu0 0
  %5235 = vmatmul.mubr.bf16.gmra.mxu0 %v4728
  %v5236 = vpop.f32.mrf.mxu0
  %v5237 = vadd.f32 0.0, %v5236
  %v5238 = vpop.f32.mrf.mxu0
  %v5239 = vpop.f32.mrf.mxu0
  %v5240 = vadd.f32 0.0, %v5239
  %v5241 = vpop.f32.mrf.mxu0
  %5242 = vmatprep.mubr.bf16.mxu0 0
  %5243 = vmatmul.mubr.bf16.gmra.mxu0 %v4731
  %v5244 = vpop.f32.mrf.mxu0
  %v5245 = vadd.f32 0.0, %v5244
  %v5246 = vpop.f32.mrf.mxu0
  %v5247 = vpop.f32.mrf.mxu0
  %v5248 = vadd.f32 0.0, %v5247
  %v5249 = vpop.f32.mrf.mxu0
  %5250 = vmatprep.mubr.bf16.mxu0 0
  %5251 = vmatmul.mubr.bf16.gmra.mxu0 %v4734
  %v5252 = vpop.f32.mrf.mxu0
  %v5253 = vadd.f32 0.0, %v5252
  %v5254 = vpop.f32.mrf.mxu0
  %v5255 = vpop.f32.mrf.mxu0
  %v5256 = vadd.f32 0.0, %v5255
  %v5257 = vpop.f32.mrf.mxu0
  %5258 = vmatprep.mubr.bf16.mxu0 0
  %5259 = vmatmul.mubr.bf16.gmra.mxu0 %v4737
  %v5260 = vpop.f32.mrf.mxu0
  %v5261 = vadd.f32 0.0, %v5260
  %v5262 = vpop.f32.mrf.mxu0
  %v5263 = vpop.f32.mrf.mxu0
  %v5264 = vadd.f32 0.0, %v5263
  %v5265 = vpop.f32.mrf.mxu0
  %5266 = vmatprep.mubr.bf16.mxu0 0
  %5267 = vmatmul.mubr.bf16.gmra.mxu0 %v4740
  %v5268 = vpop.f32.mrf.mxu0
  %v5269 = vadd.f32 0.0, %v5268
  %v5270 = vpop.f32.mrf.mxu0
  %v5271 = vpop.f32.mrf.mxu0
  %v5272 = vadd.f32 0.0, %v5271
  %v5273 = vpop.f32.mrf.mxu0
  %5274 = vmatprep.mubr.bf16.mxu0 0
  %5275 = vmatmul.mubr.bf16.gmra.mxu0 %v4743
  %v5276 = vpop.f32.mrf.mxu0
  %v5277 = vadd.f32 0.0, %v5276
  %v5278 = vpop.f32.mrf.mxu0
  %v5279 = vpop.f32.mrf.mxu0
  %v5280 = vadd.f32 0.0, %v5279
  %v5281 = vpop.f32.mrf.mxu0
  %5282 = vmatprep.mubr.bf16.mxu0 0
  %5283 = vmatmul.mubr.bf16.gmra.mxu0 %v4746
  %v5284 = vpop.f32.mrf.mxu0
  %v5285 = vadd.f32 0.0, %v5284
  %v5286 = vpop.f32.mrf.mxu0
  %v5287 = vpop.f32.mrf.mxu0
  %v5288 = vadd.f32 0.0, %v5287
  %v5289 = vpop.f32.mrf.mxu0
  %5290 = vmatprep.mubr.bf16.mxu0 0
  %5291 = vmatmul.mubr.bf16.gmra.mxu0 %v4749
  %v5292 = vpop.f32.mrf.mxu0
  %v5293 = vadd.f32 0.0, %v5292
  %v5294 = vpop.f32.mrf.mxu0
  %v5295 = vpop.f32.mrf.mxu0
  %v5296 = vadd.f32 0.0, %v5295
  %v5297 = vpop.f32.mrf.mxu0
  %5298 = vmatprep.mubr.bf16.mxu0 0
  %5299 = vmatmul.mubr.bf16.gmra.mxu0 %v4752
  %v5300 = vpop.f32.mrf.mxu0
  %v5301 = vadd.f32 0.0, %v5300
  %v5302 = vpop.f32.mrf.mxu0
  %v5303 = vpop.f32.mrf.mxu0
  %v5304 = vadd.f32 0.0, %v5303
  %v5305 = vpop.f32.mrf.mxu0
  %5306 = vmatprep.mubr.bf16.mxu0 0
  %5307 = vmatmul.mubr.bf16.gmra.mxu0 %v4755
  %v5308 = vpop.f32.mrf.mxu0
  %v5309 = vadd.f32 0.0, %v5308
  %v5310 = vpop.f32.mrf.mxu0
  %v5311 = vpop.f32.mrf.mxu0
  %v5312 = vadd.f32 0.0, %v5311
  %v5313 = vpop.f32.mrf.mxu0
  %5314 = vmatprep.mubr.bf16.mxu0 0
  %5315 = vmatmul.mubr.bf16.gmra.mxu0 %v4758
  %v5316 = vpop.f32.mrf.mxu0
  %v5317 = vadd.f32 0.0, %v5316
  %v5318 = vpop.f32.mrf.mxu0
  %v5319 = vpop.f32.mrf.mxu0
  %v5320 = vadd.f32 0.0, %v5319
  %v5321 = vpop.f32.mrf.mxu0
  %5322 = vmatprep.mubr.bf16.mxu0 0
  %5323 = vmatmul.mubr.bf16.gmra.mxu0 %v4761
  %v5324 = vpop.f32.mrf.mxu0
  %v5325 = vadd.f32 0.0, %v5324
  %v5326 = vpop.f32.mrf.mxu0
  %v5327 = vpop.f32.mrf.mxu0
  %v5328 = vadd.f32 0.0, %v5327
  %v5329 = vpop.f32.mrf.mxu0
  %5330 = vmatprep.mubr.bf16.mxu0 0
  %5331 = vmatmul.mubr.bf16.gmra.mxu0 %v4764
  %v5332 = vpop.f32.mrf.mxu0
  %v5333 = vadd.f32 0.0, %v5332
  %v5334 = vpop.f32.mrf.mxu0
  %v5335 = vpop.f32.mrf.mxu0
  %v5336 = vadd.f32 0.0, %v5335
  %v5337 = vpop.f32.mrf.mxu0
  %5338 = vmatprep.mubr.bf16.mxu0 0
  %5339 = vmatmul.mubr.bf16.gmra.mxu0 %v4767
  %v5340 = vpop.f32.mrf.mxu0
  %v5341 = vadd.f32 0.0, %v5340
  %v5342 = vpop.f32.mrf.mxu0
  %v5343 = vpop.f32.mrf.mxu0
  %v5344 = vadd.f32 0.0, %v5343
  %v5345 = vpop.f32.mrf.mxu0
  %5346 = vmatprep.mubr.bf16.mxu0 0
  %5347 = vmatmul.mubr.bf16.gmra.mxu0 %v4770
  %v5348 = vpop.f32.mrf.mxu0
  %v5349 = vadd.f32 0.0, %v5348
  %v5350 = vpop.f32.mrf.mxu0
  %v5351 = vpop.f32.mrf.mxu0
  %v5352 = vadd.f32 0.0, %v5351
  %v5353 = vpop.f32.mrf.mxu0
  %5354 = vmatprep.mubr.bf16.mxu0 0
  %5355 = vmatmul.mubr.bf16.gmra.mxu0 %v4773
  %v5356 = vpop.f32.mrf.mxu0
  %v5357 = vadd.f32 0.0, %v5356
  %v5358 = vpop.f32.mrf.mxu0
  %v5359 = vpop.f32.mrf.mxu0
  %v5360 = vadd.f32 0.0, %v5359
  %v5361 = vpop.f32.mrf.mxu0
  %5362 = vmatprep.mubr.bf16.mxu0 0
  %5363 = vmatmul.mubr.bf16.gmra.mxu0 %v4776
  %v5364 = vpop.f32.mrf.mxu0
  %v5365 = vadd.f32 0.0, %v5364
  %v5366 = vpop.f32.mrf.mxu0
  %v5367 = vpop.f32.mrf.mxu0
  %v5368 = vadd.f32 0.0, %v5367
  %v5369 = vpop.f32.mrf.mxu0
  %5370 = vmatprep.mubr.bf16.mxu0 0
  %5371 = vmatmul.mubr.bf16.gmra.mxu0 %v4779
  %v5372 = vpop.f32.mrf.mxu0
  %v5373 = vadd.f32 0.0, %v5372
  %v5374 = vpop.f32.mrf.mxu0
  %v5375 = vpop.f32.mrf.mxu0
  %v5376 = vadd.f32 0.0, %v5375
  %v5377 = vpop.f32.mrf.mxu0
  %5378 = vmatprep.mubr.bf16.mxu0 0
  %5379 = vmatmul.mubr.bf16.gmra.mxu0 %v4782
  %v5380 = vpop.f32.mrf.mxu0
  %v5381 = vadd.f32 0.0, %v5380
  %v5382 = vpop.f32.mrf.mxu0
  %v5383 = vpop.f32.mrf.mxu0
  %v5384 = vadd.f32 0.0, %v5383
  %v5385 = vpop.f32.mrf.mxu0
  %5386 = vmatprep.mubr.bf16.mxu0 0
  %5387 = vmatmul.mubr.bf16.gmra.mxu0 %v4785
  %v5388 = vpop.f32.mrf.mxu0
  %v5389 = vadd.f32 0.0, %v5388
  %v5390 = vpop.f32.mrf.mxu0
  %v5391 = vpop.f32.mrf.mxu0
  %v5392 = vadd.f32 0.0, %v5391
  %v5393 = vpop.f32.mrf.mxu0
  %5394 = vmatprep.mubr.bf16.mxu0 0
  %5395 = vmatmul.mubr.bf16.gmra.mxu0 %v4788
  %v5396 = vpop.f32.mrf.mxu0
  %v5397 = vadd.f32 0.0, %v5396
  %v5398 = vpop.f32.mrf.mxu0
  %v5399 = vpop.f32.mrf.mxu0
  %v5400 = vadd.f32 0.0, %v5399
  %v5401 = vpop.f32.mrf.mxu0
  %5402 = vmatprep.mubr.bf16.mxu0 0
  %5403 = vmatmul.mubr.bf16.gmra.mxu0 %v4791
  %v5404 = vpop.f32.mrf.mxu0
  %v5405 = vadd.f32 0.0, %v5404
  %v5406 = vpop.f32.mrf.mxu0
  %v5407 = vpop.f32.mrf.mxu0
  %v5408 = vadd.f32 0.0, %v5407
  %v5409 = vpop.f32.mrf.mxu0
  %5410 = vmatprep.mubr.bf16.mxu0 0
  %5411 = vmatmul.mubr.bf16.gmra.mxu0 %v4794
  %v5412 = vpop.f32.mrf.mxu0
  %v5413 = vadd.f32 0.0, %v5412
  %v5414 = vpop.f32.mrf.mxu0
  %v5415 = vpop.f32.mrf.mxu0
  %v5416 = vadd.f32 0.0, %v5415
  %v5417 = vpop.f32.mrf.mxu0
  %5418 = vmatprep.mubr.bf16.mxu0 0
  %5419 = vmatmul.mubr.bf16.gmra.mxu0 %v4797
  %v5420 = vpop.f32.mrf.mxu0
  %v5421 = vadd.f32 0.0, %v5420
  %v5422 = vpop.f32.mrf.mxu0
  %v5423 = vpop.f32.mrf.mxu0
  %v5424 = vadd.f32 0.0, %v5423
  %v5425 = vpop.f32.mrf.mxu0
  %5426 = vmatprep.mubr.bf16.mxu0 0
  %5427 = vmatmul.mubr.bf16.gmra.mxu0 %v4800
  %v5428 = vpop.f32.mrf.mxu0
  %v5429 = vadd.f32 0.0, %v5428
  %v5430 = vpop.f32.mrf.mxu0
  %v5431 = vpop.f32.mrf.mxu0
  %v5432 = vadd.f32 0.0, %v5431
  %v5433 = vpop.f32.mrf.mxu0
  %5434 = vmatprep.mubr.bf16.mxu0 0
  %5435 = vmatmul.mubr.bf16.gmra.mxu0 %v4803
  %v5436 = vpop.f32.mrf.mxu0
  %v5437 = vadd.f32 0.0, %v5436
  %v5438 = vpop.f32.mrf.mxu0
  %v5439 = vpop.f32.mrf.mxu0
  %v5440 = vadd.f32 0.0, %v5439
  %v5441 = vpop.f32.mrf.mxu0
  %5442 = vmatprep.mubr.bf16.mxu0 0
  %5443 = vmatmul.mubr.bf16.gmra.mxu0 %v4806
  %v5444 = vpop.f32.mrf.mxu0
  %v5445 = vadd.f32 0.0, %v5444
  %v5446 = vpop.f32.mrf.mxu0
  %v5447 = vpop.f32.mrf.mxu0
  %v5448 = vadd.f32 0.0, %v5447
  %v5449 = vpop.f32.mrf.mxu0
  %5450 = vmatprep.mubr.bf16.mxu0 0
  %5451 = vmatmul.mubr.bf16.gmra.mxu0 %v4809
  %v5452 = vpop.f32.mrf.mxu0
  %v5453 = vadd.f32 0.0, %v5452
  %v5454 = vpop.f32.mrf.mxu0
  %v5455 = vpop.f32.mrf.mxu0
  %v5456 = vadd.f32 0.0, %v5455
  %v5457 = vpop.f32.mrf.mxu0
  %5458 = vmatprep.mubr.bf16.mxu0 0
  %5459 = vmatmul.mubr.bf16.gmra.mxu0 %v4812
  %v5460 = vpop.f32.mrf.mxu0
  %v5461 = vadd.f32 0.0, %v5460
  %v5462 = vpop.f32.mrf.mxu0
  %v5463 = vpop.f32.mrf.mxu0
  %v5464 = vadd.f32 0.0, %v5463
  %v5465 = vpop.f32.mrf.mxu0
  %5466 = vmatprep.mubr.bf16.mxu0 0
  %5467 = vmatmul.mubr.bf16.gmra.mxu0 %v4815
  %v5468 = vpop.f32.mrf.mxu0
  %v5469 = vadd.f32 0.0, %v5468
  %v5470 = vpop.f32.mrf.mxu0
  %v5471 = vpop.f32.mrf.mxu0
  %v5472 = vadd.f32 0.0, %v5471
  %v5473 = vpop.f32.mrf.mxu0
  %5474 = vmatprep.mubr.bf16.mxu0 0
  %5475 = vmatmul.mubr.bf16.gmra.mxu0 %v4818
  %v5476 = vpop.f32.mrf.mxu0
  %v5477 = vadd.f32 0.0, %v5476
  %v5478 = vpop.f32.mrf.mxu0
  %v5479 = vpop.f32.mrf.mxu0
  %v5480 = vadd.f32 0.0, %v5479
  %v5481 = vpop.f32.mrf.mxu0
  %5482 = vmatprep.mubr.bf16.mxu0 0
  %5483 = vmatmul.mubr.bf16.gmra.mxu0 %v4821
  %v5484 = vpop.f32.mrf.mxu0
  %v5485 = vadd.f32 0.0, %v5484
  %v5486 = vpop.f32.mrf.mxu0
  %v5487 = vpop.f32.mrf.mxu0
  %v5488 = vadd.f32 0.0, %v5487
  %v5489 = vpop.f32.mrf.mxu0
  %5490 = vmatprep.mubr.bf16.mxu0 0
  %5491 = vmatmul.mubr.bf16.gmra.mxu0 %v4824
  %v5492 = vpop.f32.mrf.mxu0
  %v5493 = vadd.f32 0.0, %v5492
  %v5494 = vpop.f32.mrf.mxu0
  %v5495 = vpop.f32.mrf.mxu0
  %v5496 = vadd.f32 0.0, %v5495
  %v5497 = vpop.f32.mrf.mxu0
  %5498 = vmatprep.mubr.bf16.mxu0 0
  %5499 = vmatmul.mubr.bf16.gmra.mxu0 %v4827
  %v5500 = vpop.f32.mrf.mxu0
  %v5501 = vadd.f32 0.0, %v5500
  %v5502 = vpop.f32.mrf.mxu0
  %v5503 = vpop.f32.mrf.mxu0
  %v5504 = vadd.f32 0.0, %v5503
  %v5505 = vpop.f32.mrf.mxu0
  %5506 = vmatprep.mubr.bf16.mxu0 0
  %5507 = vmatmul.mubr.bf16.gmra.mxu0 %v4830
  %v5508 = vpop.f32.mrf.mxu0
  %v5509 = vadd.f32 0.0, %v5508
  %v5510 = vpop.f32.mrf.mxu0
  %v5511 = vpop.f32.mrf.mxu0
  %v5512 = vadd.f32 0.0, %v5511
  %v5513 = vpop.f32.mrf.mxu0
  %5514 = vmatprep.mubr.bf16.mxu0 0
  %5515 = vmatmul.mubr.bf16.gmra.mxu0 %v4833
  %v5516 = vpop.f32.mrf.mxu0
  %v5517 = vadd.f32 0.0, %v5516
  %v5518 = vpop.f32.mrf.mxu0
  %v5519 = vpop.f32.mrf.mxu0
  %v5520 = vadd.f32 0.0, %v5519
  %v5521 = vpop.f32.mrf.mxu0
  %5522 = vmatprep.mubr.bf16.mxu0 0
  %5523 = vmatmul.mubr.bf16.gmra.mxu0 %v4836
  %v5524 = vpop.f32.mrf.mxu0
  %v5525 = vadd.f32 0.0, %v5524
  %v5526 = vpop.f32.mrf.mxu0
  %v5527 = vpop.f32.mrf.mxu0
  %v5528 = vadd.f32 0.0, %v5527
  %v5529 = vpop.f32.mrf.mxu0
  %5530 = vmatprep.mubr.bf16.mxu0 0
  %5531 = vmatmul.mubr.bf16.gmra.mxu0 %v4839
  %v5532 = vpop.f32.mrf.mxu0
  %v5533 = vadd.f32 0.0, %v5532
  %v5534 = vpop.f32.mrf.mxu0
  %v5535 = vpop.f32.mrf.mxu0
  %v5536 = vadd.f32 0.0, %v5535
  %v5537 = vpop.f32.mrf.mxu0
  %5538 = vmatprep.mubr.bf16.mxu0 0
  %5539 = vmatmul.mubr.bf16.gmra.mxu0 %v4842
  %v5540 = vpop.f32.mrf.mxu0
  %v5541 = vadd.f32 0.0, %v5540
  %v5542 = vpop.f32.mrf.mxu0
  %v5543 = vpop.f32.mrf.mxu0
  %v5544 = vadd.f32 0.0, %v5543
  %v5545 = vpop.f32.mrf.mxu0
  %5546 = vmatprep.mubr.bf16.mxu0 0
  %5547 = vmatmul.mubr.bf16.gmra.mxu0 %v4845
  %v5548 = vpop.f32.mrf.mxu0
  %v5549 = vadd.f32 0.0, %v5548
  %v5550 = vpop.f32.mrf.mxu0
  %v5551 = vpop.f32.mrf.mxu0
  %v5552 = vadd.f32 0.0, %v5551
  %v5553 = vpop.f32.mrf.mxu0
  %5554 = vmatprep.mubr.bf16.mxu0 0
  %5555 = vmatmul.mubr.bf16.gmra.mxu0 %v4848
  %v5556 = vpop.f32.mrf.mxu0
  %v5557 = vadd.f32 0.0, %v5556
  %v5558 = vpop.f32.mrf.mxu0
  %v5559 = vpop.f32.mrf.mxu0
  %v5560 = vadd.f32 0.0, %v5559
  %v5561 = vpop.f32.mrf.mxu0
  %5562 = vmatprep.mubr.bf16.mxu0 0
  %5563 = vmatmul.mubr.bf16.gmra.mxu0 %v4851
  %v5564 = vpop.f32.mrf.mxu0
  %v5565 = vadd.f32 0.0, %v5564
  %v5566 = vpop.f32.mrf.mxu0
  %v5567 = vpop.f32.mrf.mxu0
  %v5568 = vadd.f32 0.0, %v5567
  %v5569 = vpop.f32.mrf.mxu0
  %5570 = vmatprep.mubr.bf16.mxu0 0
  %5571 = vmatmul.mubr.bf16.gmra.mxu0 %v4854
  %v5572 = vpop.f32.mrf.mxu0
  %v5573 = vadd.f32 0.0, %v5572
  %v5574 = vpop.f32.mrf.mxu0
  %v5575 = vpop.f32.mrf.mxu0
  %v5576 = vadd.f32 0.0, %v5575
  %v5577 = vpop.f32.mrf.mxu0
  %5578 = vmatprep.mubr.bf16.mxu0 0
  %5579 = vmatmul.mubr.bf16.gmra.mxu0 %v4857
  %v5580 = vpop.f32.mrf.mxu0
  %v5581 = vadd.f32 0.0, %v5580
  %v5582 = vpop.f32.mrf.mxu0
  %v5583 = vpop.f32.mrf.mxu0
  %v5584 = vadd.f32 0.0, %v5583
  %v5585 = vpop.f32.mrf.mxu0
  %5586 = vmatprep.mubr.bf16.mxu0 0
  %5587 = vmatmul.mubr.bf16.gmra.mxu0 %v4860
  %v5588 = vpop.f32.mrf.mxu0
  %v5589 = vadd.f32 0.0, %v5588
  %v5590 = vpop.f32.mrf.mxu0
  %v5591 = vpop.f32.mrf.mxu0
  %v5592 = vadd.f32 0.0, %v5591
  %v5593 = vpop.f32.mrf.mxu0
  %5594 = vmatprep.mubr.bf16.mxu0 0
  %5595 = vmatmul.mubr.bf16.gmra.mxu0 %v4863
  %v5596 = vpop.f32.mrf.mxu0
  %v5597 = vadd.f32 0.0, %v5596
  %v5598 = vpop.f32.mrf.mxu0
  %v5599 = vpop.f32.mrf.mxu0
  %v5600 = vadd.f32 0.0, %v5599
  %v5601 = vpop.f32.mrf.mxu0
  %5602 = vmatprep.mubr.bf16.mxu0 0
  %5603 = vmatmul.mubr.bf16.gmra.mxu0 %v4866
  %v5604 = vpop.f32.mrf.mxu0
  %v5605 = vadd.f32 0.0, %v5604
  %v5606 = vpop.f32.mrf.mxu0
  %v5607 = vpop.f32.mrf.mxu0
  %v5608 = vadd.f32 0.0, %v5607
  %v5609 = vpop.f32.mrf.mxu0
  %5610 = vmatprep.mubr.bf16.mxu0 0
  %5611 = vmatmul.mubr.bf16.gmra.mxu0 %v4869
  %v5612 = vpop.f32.mrf.mxu0
  %v5613 = vadd.f32 0.0, %v5612
  %v5614 = vpop.f32.mrf.mxu0
  %v5615 = vpop.f32.mrf.mxu0
  %v5616 = vadd.f32 0.0, %v5615
  %v5617 = vpop.f32.mrf.mxu0
  %5618 = vmatprep.mubr.bf16.mxu0 0
  %5619 = vmatmul.mubr.bf16.gmra.mxu0 %v4872
  %v5620 = vpop.f32.mrf.mxu0
  %v5621 = vadd.f32 0.0, %v5620
  %v5622 = vpop.f32.mrf.mxu0
  %v5623 = vpop.f32.mrf.mxu0
  %v5624 = vadd.f32 0.0, %v5623
  %v5625 = vpop.f32.mrf.mxu0
  %5626 = vmatprep.mubr.bf16.mxu0 0
  %5627 = vmatmul.mubr.bf16.gmra.mxu0 %v4875
  %v5628 = vpop.f32.mrf.mxu0
  %v5629 = vadd.f32 0.0, %v5628
  %v5630 = vpop.f32.mrf.mxu0
  %v5631 = vpop.f32.mrf.mxu0
  %v5632 = vadd.f32 0.0, %v5631
  %v5633 = vpop.f32.mrf.mxu0
  %5634 = vmatprep.mubr.bf16.mxu0 0
  %5635 = vmatmul.mubr.bf16.gmra.mxu0 %v4878
  %v5636 = vpop.f32.mrf.mxu0
  %v5637 = vadd.f32 0.0, %v5636
  %v5638 = vpop.f32.mrf.mxu0
  %v5639 = vpop.f32.mrf.mxu0
  %v5640 = vadd.f32 0.0, %v5639
  %v5641 = vpop.f32.mrf.mxu0
  %5642 = vmatprep.mubr.bf16.mxu0 0
  %5643 = vmatmul.mubr.bf16.gmra.mxu0 %v4881
  %v5644 = vpop.f32.mrf.mxu0
  %v5645 = vadd.f32 0.0, %v5644
  %v5646 = vpop.f32.mrf.mxu0
  %v5647 = vpop.f32.mrf.mxu0
  %v5648 = vadd.f32 0.0, %v5647
  %v5649 = vpop.f32.mrf.mxu0
  %5650 = vmatprep.mubr.bf16.mxu0 0
  %5651 = vmatmul.mubr.bf16.gmra.mxu0 %v4884
  %v5652 = vpop.f32.mrf.mxu0
  %v5653 = vadd.f32 0.0, %v5652
  %v5654 = vpop.f32.mrf.mxu0
  %v5655 = vpop.f32.mrf.mxu0
  %v5656 = vadd.f32 0.0, %v5655
  %v5657 = vpop.f32.mrf.mxu0
  %5658 = vmatprep.mubr.bf16.mxu0 0
  %5659 = vmatmul.mubr.bf16.gmra.mxu0 %v4887
  %v5660 = vpop.f32.mrf.mxu0
  %v5661 = vadd.f32 0.0, %v5660
  %v5662 = vpop.f32.mrf.mxu0
  %v5663 = vpop.f32.mrf.mxu0
  %v5664 = vadd.f32 0.0, %v5663
  %v5665 = vpop.f32.mrf.mxu0
  %5666 = vmatprep.mubr.bf16.mxu0 0
  %5667 = vmatmul.mubr.bf16.gmra.mxu0 %v4890
  %v5668 = vpop.f32.mrf.mxu0
  %v5669 = vadd.f32 0.0, %v5668
  %v5670 = vpop.f32.mrf.mxu0
  %v5671 = vpop.f32.mrf.mxu0
  %v5672 = vadd.f32 0.0, %v5671
  %v5673 = vpop.f32.mrf.mxu0
  %5674 = vmatprep.mubr.bf16.mxu0 0
  %5675 = vmatmul.mubr.bf16.gmra.mxu0 %v4893
  %v5676 = vpop.f32.mrf.mxu0
  %v5677 = vadd.f32 0.0, %v5676
  %v5678 = vpop.f32.mrf.mxu0
  %v5679 = vpop.f32.mrf.mxu0
  %v5680 = vadd.f32 0.0, %v5679
  %v5681 = vpop.f32.mrf.mxu0
  %5682 = vmatprep.mubr.bf16.mxu0 0
  %5683 = vmatmul.mubr.bf16.gmra.mxu0 %v4896
  %v5684 = vpop.f32.mrf.mxu0
  %v5685 = vadd.f32 0.0, %v5684
  %v5686 = vpop.f32.mrf.mxu0
  %v5687 = vpop.f32.mrf.mxu0
  %v5688 = vadd.f32 0.0, %v5687
  %v5689 = vpop.f32.mrf.mxu0
  %5690 = vmatprep.mubr.bf16.mxu0 0
  %5691 = vmatmul.mubr.bf16.gmra.mxu0 %v4899
  %v5692 = vpop.f32.mrf.mxu0
  %v5693 = vadd.f32 0.0, %v5692
  %v5694 = vpop.f32.mrf.mxu0
  %v5695 = vpop.f32.mrf.mxu0
  %v5696 = vadd.f32 0.0, %v5695
  %v5697 = vpop.f32.mrf.mxu0
  %5698 = vmatprep.mubr.bf16.mxu0 0
  %5699 = vmatmul.mubr.bf16.gmra.mxu0 %v4902
  %v5700 = vpop.f32.mrf.mxu0
  %v5701 = vadd.f32 0.0, %v5700
  %v5702 = vpop.f32.mrf.mxu0
  %v5703 = vpop.f32.mrf.mxu0
  %v5704 = vadd.f32 0.0, %v5703
  %v5705 = vpop.f32.mrf.mxu0
  %5706 = vmatprep.mubr.bf16.mxu0 0
  %5707 = vmatmul.mubr.bf16.gmra.mxu0 %v4905
  %v5708 = vpop.f32.mrf.mxu0
  %v5709 = vadd.f32 0.0, %v5708
  %v5710 = vpop.f32.mrf.mxu0
  %v5711 = vpop.f32.mrf.mxu0
  %v5712 = vadd.f32 0.0, %v5711
  %v5713 = vpop.f32.mrf.mxu0
  %5714 = vmatprep.mubr.bf16.mxu0 0
  %5715 = vmatmul.mubr.bf16.gmra.mxu0 %v4908
  %v5716 = vpop.f32.mrf.mxu0
  %v5717 = vadd.f32 0.0, %v5716
  %v5718 = vpop.f32.mrf.mxu0
  %v5719 = vpop.f32.mrf.mxu0
  %v5720 = vadd.f32 0.0, %v5719
  %v5721 = vpop.f32.mrf.mxu0
  %5722 = vmatprep.mubr.bf16.mxu0 0
  %5723 = vmatmul.mubr.bf16.gmra.mxu0 %v4911
  %v5724 = vpop.f32.mrf.mxu0
  %v5725 = vadd.f32 0.0, %v5724
  %v5726 = vpop.f32.mrf.mxu0
  %v5727 = vpop.f32.mrf.mxu0
  %v5728 = vadd.f32 0.0, %v5727
  %v5729 = vpop.f32.mrf.mxu0
  %5730 = vmatprep.mubr.bf16.mxu0 0
  %5731 = vmatmul.mubr.bf16.gmra.mxu0 %v4914
  %v5732 = vpop.f32.mrf.mxu0
  %v5733 = vadd.f32 0.0, %v5732
  %v5734 = vpop.f32.mrf.mxu0
  %v5735 = vpop.f32.mrf.mxu0
  %v5736 = vadd.f32 0.0, %v5735
  %v5737 = vpop.f32.mrf.mxu0
  %5738 = vmatprep.mubr.bf16.mxu0 0
  %5739 = vmatmul.mubr.bf16.gmra.mxu0 %v4917
  %v5740 = vpop.f32.mrf.mxu0
  %v5741 = vadd.f32 0.0, %v5740
  %v5742 = vpop.f32.mrf.mxu0
  %v5743 = vpop.f32.mrf.mxu0
  %v5744 = vadd.f32 0.0, %v5743
  %v5745 = vpop.f32.mrf.mxu0
  %5746 = vmatprep.mubr.bf16.mxu0 0
  %5747 = vmatmul.mubr.bf16.gmra.mxu0 %v4920
  %v5748 = vpop.f32.mrf.mxu0
  %v5749 = vadd.f32 0.0, %v5748
  %v5750 = vpop.f32.mrf.mxu0
  %v5751 = vpop.f32.mrf.mxu0
  %v5752 = vadd.f32 0.0, %v5751
  %v5753 = vpop.f32.mrf.mxu0
  %5754 = vdwg.mxu0
  %v5755 = vmax.f32 %v3722, %v4957
  %v5756 = vmax.f32 %v3723, %v4960
  %v5757 = vmax.f32 %v3724, %v4965
  %v5758 = vmax.f32 %v3725, %v4968
  %v5759 = vmax.f32 %v3726, %v4973
  %v5760 = vmax.f32 %v3727, %v4976
  %v5761 = vmax.f32 %v3728, %v4981
  %v5762 = vmax.f32 %v3729, %v4984
  %v5763 = vmax.f32 %v3730, %v4989
  %v5764 = vmax.f32 %v3731, %v4992
  %v5765 = vmax.f32 %v3732, %v4997
  %v5766 = vmax.f32 %v3733, %v5000
  %v5767 = vmax.f32 %v3734, %v5005
  %v5768 = vmax.f32 %v3735, %v5008
  %v5769 = vmax.f32 %v3736, %v5013
  %v5770 = vmax.f32 %v3737, %v5016
  %v5771 = vmax.f32 %v3738, %v5021
  %v5772 = vmax.f32 %v3739, %v5024
  %v5773 = vmax.f32 %v3740, %v5029
  %v5774 = vmax.f32 %v3741, %v5032
  %v5775 = vmax.f32 %v3742, %v5037
  %v5776 = vmax.f32 %v3743, %v5040
  %v5777 = vmax.f32 %v3744, %v5045
  %v5778 = vmax.f32 %v3745, %v5048
  %v5779 = vmax.f32 %v3746, %v5053
  %v5780 = vmax.f32 %v3747, %v5056
  %v5781 = vmax.f32 %v3748, %v5061
  %v5782 = vmax.f32 %v3749, %v5064
  %v5783 = vmax.f32 %v3750, %v5069
  %v5784 = vmax.f32 %v3751, %v5072
  %v5785 = vmax.f32 %v3752, %v5077
  %v5786 = vmax.f32 %v3753, %v5080
  %v5787 = vmax.f32 %v3754, %v5085
  %v5788 = vmax.f32 %v3755, %v5088
  %v5789 = vmax.f32 %v3756, %v5093
  %v5790 = vmax.f32 %v3757, %v5096
  %v5791 = vmax.f32 %v3758, %v5101
  %v5792 = vmax.f32 %v3759, %v5104
  %v5793 = vmax.f32 %v3760, %v5109
  %v5794 = vmax.f32 %v3761, %v5112
  %v5795 = vmax.f32 %v3762, %v5117
  %v5796 = vmax.f32 %v3763, %v5120
  %v5797 = vmax.f32 %v3764, %v5125
  %v5798 = vmax.f32 %v3765, %v5128
  %v5799 = vmax.f32 %v3766, %v5133
  %v5800 = vmax.f32 %v3767, %v5136
  %v5801 = vmax.f32 %v3768, %v5141
  %v5802 = vmax.f32 %v3769, %v5144
  %v5803 = vmax.f32 %v3770, %v5149
  %v5804 = vmax.f32 %v3771, %v5152
  %v5805 = vmax.f32 %v3772, %v5157
  %v5806 = vmax.f32 %v3773, %v5160
  %v5807 = vmax.f32 %v3774, %v5165
  %v5808 = vmax.f32 %v3775, %v5168
  %v5809 = vmax.f32 %v3776, %v5173
  %v5810 = vmax.f32 %v3777, %v5176
  %v5811 = vmax.f32 %v3778, %v5181
  %v5812 = vmax.f32 %v3779, %v5184
  %v5813 = vmax.f32 %v3780, %v5189
  %v5814 = vmax.f32 %v3781, %v5192
  %v5815 = vmax.f32 %v3782, %v5197
  %v5816 = vmax.f32 %v3783, %v5200
  %v5817 = vmax.f32 %v3784, %v5205
  %v5818 = vmax.f32 %v3785, %v5208
  %v5819 = vmax.f32 %v3786, %v5213
  %v5820 = vmax.f32 %v3787, %v5216
  %v5821 = vmax.f32 %v3788, %v5221
  %v5822 = vmax.f32 %v3789, %v5224
  %v5823 = vmax.f32 %v3790, %v5229
  %v5824 = vmax.f32 %v3791, %v5232
  %v5825 = vmax.f32 %v3792, %v5237
  %v5826 = vmax.f32 %v3793, %v5240
  %v5827 = vmax.f32 %v3794, %v5245
  %v5828 = vmax.f32 %v3795, %v5248
  %v5829 = vmax.f32 %v3796, %v5253
  %v5830 = vmax.f32 %v3797, %v5256
  %v5831 = vmax.f32 %v3798, %v5261
  %v5832 = vmax.f32 %v3799, %v5264
  %v5833 = vmax.f32 %v3800, %v5269
  %v5834 = vmax.f32 %v3801, %v5272
  %v5835 = vmax.f32 %v3802, %v5277
  %v5836 = vmax.f32 %v3803, %v5280
  %v5837 = vmax.f32 %v3804, %v5285
  %v5838 = vmax.f32 %v3805, %v5288
  %v5839 = vmax.f32 %v3806, %v5293
  %v5840 = vmax.f32 %v3807, %v5296
  %v5841 = vmax.f32 %v3808, %v5301
  %v5842 = vmax.f32 %v3809, %v5304
  %v5843 = vmax.f32 %v3810, %v5309
  %v5844 = vmax.f32 %v3811, %v5312
  %v5845 = vmax.f32 %v3812, %v5317
  %v5846 = vmax.f32 %v3813, %v5320
  %v5847 = vmax.f32 %v3814, %v5325
  %v5848 = vmax.f32 %v3815, %v5328
  %v5849 = vmax.f32 %v3816, %v5333
  %v5850 = vmax.f32 %v3817, %v5336
  %v5851 = vmax.f32 %v3818, %v5341
  %v5852 = vmax.f32 %v3819, %v5344
  %v5853 = vmax.f32 %v3820, %v5349
  %v5854 = vmax.f32 %v3821, %v5352
  %v5855 = vmax.f32 %v3822, %v5357
  %v5856 = vmax.f32 %v3823, %v5360
  %v5857 = vmax.f32 %v3824, %v5365
  %v5858 = vmax.f32 %v3825, %v5368
  %v5859 = vmax.f32 %v3826, %v5373
  %v5860 = vmax.f32 %v3827, %v5376
  %v5861 = vmax.f32 %v3828, %v5381
  %v5862 = vmax.f32 %v3829, %v5384
  %v5863 = vmax.f32 %v3830, %v5389
  %v5864 = vmax.f32 %v3831, %v5392
  %v5865 = vmax.f32 %v3832, %v5397
  %v5866 = vmax.f32 %v3833, %v5400
  %v5867 = vmax.f32 %v3834, %v5405
  %v5868 = vmax.f32 %v3835, %v5408
  %v5869 = vmax.f32 %v3836, %v5413
  %v5870 = vmax.f32 %v3837, %v5416
  %v5871 = vmax.f32 %v3838, %v5421
  %v5872 = vmax.f32 %v3839, %v5424
  %v5873 = vmax.f32 %v3840, %v5429
  %v5874 = vmax.f32 %v3841, %v5432
  %v5875 = vmax.f32 %v3842, %v5437
  %v5876 = vmax.f32 %v3843, %v5440
  %v5877 = vmax.f32 %v3844, %v5445
  %v5878 = vmax.f32 %v3845, %v5448
  %v5879 = vmax.f32 %v3846, %v5453
  %v5880 = vmax.f32 %v3847, %v5456
  %v5881 = vmax.f32 %v3848, %v5461
  %v5882 = vmax.f32 %v3849, %v5464
  %v5883 = vmax.f32 %v3850, %v5469
  %v5884 = vmax.f32 %v3851, %v5472
  %v5885 = vmax.f32 %v3852, %v5477
  %v5886 = vmax.f32 %v3853, %v5480
  %v5887 = vmax.f32 %v3854, %v5485
  %v5888 = vmax.f32 %v3855, %v5488
  %v5889 = vmax.f32 %v3856, %v5493
  %v5890 = vmax.f32 %v3857, %v5496
  %v5891 = vmax.f32 %v3858, %v5501
  %v5892 = vmax.f32 %v3859, %v5504
  %v5893 = vmax.f32 %v3860, %v5509
  %v5894 = vmax.f32 %v3861, %v5512
  %v5895 = vmax.f32 %v3862, %v5517
  %v5896 = vmax.f32 %v3863, %v5520
  %v5897 = vmax.f32 %v3864, %v5525
  %v5898 = vmax.f32 %v3865, %v5528
  %v5899 = vmax.f32 %v3866, %v5533
  %v5900 = vmax.f32 %v3867, %v5536
  %v5901 = vmax.f32 %v3868, %v5541
  %v5902 = vmax.f32 %v3869, %v5544
  %v5903 = vmax.f32 %v3870, %v5549
  %v5904 = vmax.f32 %v3871, %v5552
  %v5905 = vmax.f32 %v3872, %v5557
  %v5906 = vmax.f32 %v3873, %v5560
  %v5907 = vmax.f32 %v3874, %v5565
  %v5908 = vmax.f32 %v3875, %v5568
  %v5909 = vmax.f32 %v3876, %v5573
  %v5910 = vmax.f32 %v3877, %v5576
  %v5911 = vmax.f32 %v3878, %v5581
  %v5912 = vmax.f32 %v3879, %v5584
  %v5913 = vmax.f32 %v3880, %v5589
  %v5914 = vmax.f32 %v3881, %v5592
  %v5915 = vmax.f32 %v3882, %v5597
  %v5916 = vmax.f32 %v3883, %v5600
  %v5917 = vmax.f32 %v3884, %v5605
  %v5918 = vmax.f32 %v3885, %v5608
  %v5919 = vmax.f32 %v3886, %v5613
  %v5920 = vmax.f32 %v3887, %v5616
  %v5921 = vmax.f32 %v3888, %v5621
  %v5922 = vmax.f32 %v3889, %v5624
  %v5923 = vmax.f32 %v3890, %v5629
  %v5924 = vmax.f32 %v3891, %v5632
  %v5925 = vmax.f32 %v3892, %v5637
  %v5926 = vmax.f32 %v3893, %v5640
  %v5927 = vmax.f32 %v3894, %v5645
  %v5928 = vmax.f32 %v3895, %v5648
  %v5929 = vmax.f32 %v3896, %v5653
  %v5930 = vmax.f32 %v3897, %v5656
  %v5931 = vmax.f32 %v3898, %v5661
  %v5932 = vmax.f32 %v3899, %v5664
  %v5933 = vmax.f32 %v3900, %v5669
  %v5934 = vmax.f32 %v3901, %v5672
  %v5935 = vmax.f32 %v3902, %v5677
  %v5936 = vmax.f32 %v3903, %v5680
  %v5937 = vmax.f32 %v3904, %v5685
  %v5938 = vmax.f32 %v3905, %v5688
  %v5939 = vmax.f32 %v3906, %v5693
  %v5940 = vmax.f32 %v3907, %v5696
  %v5941 = vmax.f32 %v3908, %v5701
  %v5942 = vmax.f32 %v3909, %v5704
  %v5943 = vmax.f32 %v3910, %v5709
  %v5944 = vmax.f32 %v3911, %v5712
  %v5945 = vmax.f32 %v3912, %v5717
  %v5946 = vmax.f32 %v3913, %v5720
  %v5947 = vmax.f32 %v3914, %v5725
  %v5948 = vmax.f32 %v3915, %v5728
  %v5949 = vmax.f32 %v3916, %v5733
  %v5950 = vmax.f32 %v3917, %v5736
  %v5951 = vmax.f32 %v3918, %v5741
  %v5952 = vmax.f32 %v3919, %v5744
  %v5953 = vmax.f32 %v3920, %v5749
  %v5954 = vmax.f32 %v3921, %v5752
  %v5955 = vld [vmem:[%s0 + $0x12c] sm:$0xf]
  %v5956 = vld [vmem:[%s0 + $0x130] sm:$0xf]
  %v5957 = vld [vmem:[%s0 + $0x134] sm:$0xf]
  %v5958 = vld [vmem:[%s0 + $0x138] sm:$0xf]
  %v5959 = vld [vmem:[%s0 + $0x13c] sm:$0xf]
  %v5960 = vld [vmem:[%s0 + $0x140] sm:$0xf]
  %v5961 = vld [vmem:[%s0 + $0x144] sm:$0xf]
  %v5962 = vld [vmem:[%s0 + $0x148] sm:$0xf]
  %v5963 = vld [vmem:[%s0 + $0x14c] sm:$0xf]
  %v5964 = vld [vmem:[%s0 + $0x150] sm:$0xf]
  %v5965 = vld [vmem:[%s0 + $0x154] sm:$0xf]
  %v5966 = vld [vmem:[%s0 + $0x158] sm:$0xf]
  %v5967 = vld [vmem:[%s0 + $0x15c] sm:$0xf]
  %v5968 = vld [vmem:[%s0 + $0x160] sm:$0xf]
  %v5969 = vld [vmem:[%s0 + $0x164] sm:$0xf]
  %v5970 = vld [vmem:[%s0 + $0x168] sm:$0xf]
  %v5971 = vld [vmem:[%s0 + $0x16c] sm:$0xf]
  %v5972 = vld [vmem:[%s0 + $0x170] sm:$0xf]
  %v5973 = vld [vmem:[%s0 + $0x174] sm:$0xf]
  %v5974 = vld [vmem:[%s0 + $0x178] sm:$0xf]
  %v5975 = vld [vmem:[%s0 + $0x17c] sm:$0xf]
  %v5976 = vld [vmem:[%s0 + $0x180] sm:$0xf]
  %v5977 = vld [vmem:[%s0 + $0x184] sm:$0xf]
  %v5978 = vld [vmem:[%s0 + $0x188] sm:$0xf]
  %v5979 = vld [vmem:[%s0 + $0x18c] sm:$0xf]
  %v5980 = vld [vmem:[%s0 + $0x2bc] sm:$0xf]
  %v5981 = vld [vmem:[%s0 + $0x2c0] sm:$0xf]
  %v5982 = vld [vmem:[%s0 + $0x2c4] sm:$0xf]
  %v5983 = vld [vmem:[%s0 + $0x2c8] sm:$0xf]
  %v5984 = vld [vmem:[%s0 + $0x2cc] sm:$0xf]
  %v5985 = vld [vmem:[%s0 + $0x2d0] sm:$0xf]
  %v5986 = vld [vmem:[%s0 + $0x2d4] sm:$0xf]
  %v5987 = vld [vmem:[%s0 + $0x2d8] sm:$0xf]
  %v5988 = vld [vmem:[%s0 + $0x2dc] sm:$0xf]
  %v5989 = vld [vmem:[%s0 + $0x2e0] sm:$0xf]
  %v5990 = vld [vmem:[%s0 + $0x2e4] sm:$0xf]
  %v5991 = vld [vmem:[%s0 + $0x2e8] sm:$0xf]
  %v5992 = vld [vmem:[%s0 + $0x2ec] sm:$0xf]
  %v5993 = vld [vmem:[%s0 + $0x2f0] sm:$0xf]
  %v5994 = vld [vmem:[%s0 + $0x2f4] sm:$0xf]
  %v5995 = vld [vmem:[%s0 + $0x2f8] sm:$0xf]
  %v5996 = vld [vmem:[%s0 + $0x2fc] sm:$0xf]
  %v5997 = vld [vmem:[%s0 + $0x300] sm:$0xf]
  %v5998 = vld [vmem:[%s0 + $0x304] sm:$0xf]
  %v5999 = vld [vmem:[%s0 + $0x308] sm:$0xf]
  %v6000 = vld [vmem:[%s0 + $0x30c] sm:$0xf]
  %v6001 = vld [vmem:[%s0 + $0x310] sm:$0xf]
  %v6002 = vld [vmem:[%s0 + $0x314] sm:$0xf]
  %v6003 = vld [vmem:[%s0 + $0x318] sm:$0xf]
  %v6004 = vld [vmem:[%s0 + $0x31c] sm:$0xf]
  %v6005 = vld [vmem:[%s0 + $0x44c] sm:$0xf]
  %v6006 = vld [vmem:[%s0 + $0x450] sm:$0xf]
  %v6007 = vld [vmem:[%s0 + $0x454] sm:$0xf]
  %v6008 = vld [vmem:[%s0 + $0x458] sm:$0xf]
  %v6009 = vld [vmem:[%s0 + $0x45c] sm:$0xf]
  %v6010 = vld [vmem:[%s0 + $0x460] sm:$0xf]
  %v6011 = vld [vmem:[%s0 + $0x464] sm:$0xf]
  %v6012 = vld [vmem:[%s0 + $0x468] sm:$0xf]
  %v6013 = vld [vmem:[%s0 + $0x46c] sm:$0xf]
  %v6014 = vld [vmem:[%s0 + $0x470] sm:$0xf]
  %v6015 = vld [vmem:[%s0 + $0x474] sm:$0xf]
  %v6016 = vld [vmem:[%s0 + $0x478] sm:$0xf]
  %v6017 = vld [vmem:[%s0 + $0x47c] sm:$0xf]
  %v6018 = vld [vmem:[%s0 + $0x480] sm:$0xf]
  %v6019 = vld [vmem:[%s0 + $0x484] sm:$0xf]
  %v6020 = vld [vmem:[%s0 + $0x488] sm:$0xf]
  %v6021 = vld [vmem:[%s0 + $0x48c] sm:$0xf]
  %v6022 = vld [vmem:[%s0 + $0x490] sm:$0xf]
  %v6023 = vld [vmem:[%s0 + $0x494] sm:$0xf]
  %v6024 = vld [vmem:[%s0 + $0x498] sm:$0xf]
  %v6025 = vld [vmem:[%s0 + $0x49c] sm:$0xf]
  %v6026 = vld [vmem:[%s0 + $0x4a0] sm:$0xf]
  %v6027 = vld [vmem:[%s0 + $0x4a4] sm:$0xf]
  %v6028 = vld [vmem:[%s0 + $0x4a8] sm:$0xf]
  %v6029 = vld [vmem:[%s0 + $0x4ac] sm:$0xf]
  %v6030 = vld [vmem:[%s0 + $0x5dc] sm:$0xf]
  %v6031 = vld [vmem:[%s0 + $0x5e0] sm:$0xf]
  %v6032 = vld [vmem:[%s0 + $0x5e4] sm:$0xf]
  %v6033 = vld [vmem:[%s0 + $0x5e8] sm:$0xf]
  %v6034 = vld [vmem:[%s0 + $0x5ec] sm:$0xf]
  %v6035 = vld [vmem:[%s0 + $0x5f0] sm:$0xf]
  %v6036 = vld [vmem:[%s0 + $0x5f4] sm:$0xf]
  %v6037 = vld [vmem:[%s0 + $0x5f8] sm:$0xf]
  %v6038 = vld [vmem:[%s0 + $0x5fc] sm:$0xf]
  %v6039 = vld [vmem:[%s0 + $0x600] sm:$0xf]
  %v6040 = vld [vmem:[%s0 + $0x604] sm:$0xf]
  %v6041 = vld [vmem:[%s0 + $0x608] sm:$0xf]
  %v6042 = vld [vmem:[%s0 + $0x60c] sm:$0xf]
  %v6043 = vld [vmem:[%s0 + $0x610] sm:$0xf]
  %v6044 = vld [vmem:[%s0 + $0x614] sm:$0xf]
  %v6045 = vld [vmem:[%s0 + $0x618] sm:$0xf]
  %v6046 = vld [vmem:[%s0 + $0x61c] sm:$0xf]
  %v6047 = vld [vmem:[%s0 + $0x620] sm:$0xf]
  %v6048 = vld [vmem:[%s0 + $0x624] sm:$0xf]
  %v6049 = vld [vmem:[%s0 + $0x628] sm:$0xf]
  %v6050 = vld [vmem:[%s0 + $0x62c] sm:$0xf]
  %v6051 = vld [vmem:[%s0 + $0x630] sm:$0xf]
  %v6052 = vld [vmem:[%s0 + $0x634] sm:$0xf]
  %v6053 = vld [vmem:[%s0 + $0x638] sm:$0xf]
  %v6054 = vld [vmem:[%s0 + $0x63c] sm:$0xf]
  %v6055 = vld [vmem:[%s0 + $0x76c] sm:$0xf]
  %v6056 = vld [vmem:[%s0 + $0x770] sm:$0xf]
  %v6057 = vld [vmem:[%s0 + $0x774] sm:$0xf]
  %v6058 = vld [vmem:[%s0 + $0x778] sm:$0xf]
  %v6059 = vld [vmem:[%s0 + $0x77c] sm:$0xf]
  %v6060 = vld [vmem:[%s0 + $0x780] sm:$0xf]
  %v6061 = vld [vmem:[%s0 + $0x784] sm:$0xf]
  %v6062 = vld [vmem:[%s0 + $0x788] sm:$0xf]
  %v6063 = vld [vmem:[%s0 + $0x78c] sm:$0xf]
  %v6064 = vld [vmem:[%s0 + $0x790] sm:$0xf]
  %v6065 = vld [vmem:[%s0 + $0x794] sm:$0xf]
  %v6066 = vld [vmem:[%s0 + $0x798] sm:$0xf]
  %v6067 = vld [vmem:[%s0 + $0x79c] sm:$0xf]
  %v6068 = vld [vmem:[%s0 + $0x7a0] sm:$0xf]
  %v6069 = vld [vmem:[%s0 + $0x7a4] sm:$0xf]
  %v6070 = vld [vmem:[%s0 + $0x7a8] sm:$0xf]
  %v6071 = vld [vmem:[%s0 + $0x7ac] sm:$0xf]
  %v6072 = vld [vmem:[%s0 + $0x7b0] sm:$0xf]
  %v6073 = vld [vmem:[%s0 + $0x7b4] sm:$0xf]
  %v6074 = vld [vmem:[%s0 + $0x7b8] sm:$0xf]
  %v6075 = vld [vmem:[%s0 + $0x7bc] sm:$0xf]
  %v6076 = vld [vmem:[%s0 + $0x7c0] sm:$0xf]
  %v6077 = vld [vmem:[%s0 + $0x7c4] sm:$0xf]
  %v6078 = vld [vmem:[%s0 + $0x7c8] sm:$0xf]
  %v6079 = vld [vmem:[%s0 + $0x7cc] sm:$0xf]
  %v6080 = vld [vmem:[%s0 + $0x8fc] sm:$0xf]
  %v6081 = vld [vmem:[%s0 + $0x900] sm:$0xf]
  %v6082 = vld [vmem:[%s0 + $0x904] sm:$0xf]
  %v6083 = vld [vmem:[%s0 + $0x908] sm:$0xf]
  %v6084 = vld [vmem:[%s0 + $0x90c] sm:$0xf]
  %v6085 = vld [vmem:[%s0 + $0x910] sm:$0xf]
  %v6086 = vld [vmem:[%s0 + $0x914] sm:$0xf]
  %v6087 = vld [vmem:[%s0 + $0x918] sm:$0xf]
  %v6088 = vld [vmem:[%s0 + $0x91c] sm:$0xf]
  %v6089 = vld [vmem:[%s0 + $0x920] sm:$0xf]
  %v6090 = vld [vmem:[%s0 + $0x924] sm:$0xf]
  %v6091 = vld [vmem:[%s0 + $0x928] sm:$0xf]
  %v6092 = vld [vmem:[%s0 + $0x92c] sm:$0xf]
  %v6093 = vld [vmem:[%s0 + $0x930] sm:$0xf]
  %v6094 = vld [vmem:[%s0 + $0x934] sm:$0xf]
  %v6095 = vld [vmem:[%s0 + $0x938] sm:$0xf]
  %v6096 = vld [vmem:[%s0 + $0x93c] sm:$0xf]
  %v6097 = vld [vmem:[%s0 + $0x940] sm:$0xf]
  %v6098 = vld [vmem:[%s0 + $0x944] sm:$0xf]
  %v6099 = vld [vmem:[%s0 + $0x948] sm:$0xf]
  %v6100 = vld [vmem:[%s0 + $0x94c] sm:$0xf]
  %v6101 = vld [vmem:[%s0 + $0x950] sm:$0xf]
  %v6102 = vld [vmem:[%s0 + $0x954] sm:$0xf]
  %v6103 = vld [vmem:[%s0 + $0x958] sm:$0xf]
  %v6104 = vld [vmem:[%s0 + $0x95c] sm:$0xf]
  %v6105 = vld [vmem:[%s0 + $0xa8c] sm:$0xf]
  %v6106 = vld [vmem:[%s0 + $0xa90] sm:$0xf]
  %v6107 = vld [vmem:[%s0 + $0xa94] sm:$0xf]
  %v6108 = vld [vmem:[%s0 + $0xa98] sm:$0xf]
  %v6109 = vld [vmem:[%s0 + $0xa9c] sm:$0xf]
  %v6110 = vld [vmem:[%s0 + $0xaa0] sm:$0xf]
  %v6111 = vld [vmem:[%s0 + $0xaa4] sm:$0xf]
  %v6112 = vld [vmem:[%s0 + $0xaa8] sm:$0xf]
  %v6113 = vld [vmem:[%s0 + $0xaac] sm:$0xf]
  %v6114 = vld [vmem:[%s0 + $0xab0] sm:$0xf]
  %v6115 = vld [vmem:[%s0 + $0xab4] sm:$0xf]
  %v6116 = vld [vmem:[%s0 + $0xab8] sm:$0xf]
  %v6117 = vld [vmem:[%s0 + $0xabc] sm:$0xf]
  %v6118 = vld [vmem:[%s0 + $0xac0] sm:$0xf]
  %v6119 = vld [vmem:[%s0 + $0xac4] sm:$0xf]
  %v6120 = vld [vmem:[%s0 + $0xac8] sm:$0xf]
  %v6121 = vld [vmem:[%s0 + $0xacc] sm:$0xf]
  %v6122 = vld [vmem:[%s0 + $0xad0] sm:$0xf]
  %v6123 = vld [vmem:[%s0 + $0xad4] sm:$0xf]
  %v6124 = vld [vmem:[%s0 + $0xad8] sm:$0xf]
  %v6125 = vld [vmem:[%s0 + $0xadc] sm:$0xf]
  %v6126 = vld [vmem:[%s0 + $0xae0] sm:$0xf]
  %v6127 = vld [vmem:[%s0 + $0xae4] sm:$0xf]
  %v6128 = vld [vmem:[%s0 + $0xae8] sm:$0xf]
  %v6129 = vld [vmem:[%s0 + $0xaec] sm:$0xf]
  %v6130 = vld [vmem:[%s0 + $0xc1c] sm:$0xf]
  %v6131 = vld [vmem:[%s0 + $0xc20] sm:$0xf]
  %v6132 = vld [vmem:[%s0 + $0xc24] sm:$0xf]
  %v6133 = vld [vmem:[%s0 + $0xc28] sm:$0xf]
  %v6134 = vld [vmem:[%s0 + $0xc2c] sm:$0xf]
  %v6135 = vld [vmem:[%s0 + $0xc30] sm:$0xf]
  %v6136 = vld [vmem:[%s0 + $0xc34] sm:$0xf]
  %v6137 = vld [vmem:[%s0 + $0xc38] sm:$0xf]
  %v6138 = vld [vmem:[%s0 + $0xc3c] sm:$0xf]
  %v6139 = vld [vmem:[%s0 + $0xc40] sm:$0xf]
  %v6140 = vld [vmem:[%s0 + $0xc44] sm:$0xf]
  %v6141 = vld [vmem:[%s0 + $0xc48] sm:$0xf]
  %v6142 = vld [vmem:[%s0 + $0xc4c] sm:$0xf]
  %v6143 = vld [vmem:[%s0 + $0xc50] sm:$0xf]
  %v6144 = vld [vmem:[%s0 + $0xc54] sm:$0xf]
  %v6145 = vld [vmem:[%s0 + $0xc58] sm:$0xf]
  %v6146 = vld [vmem:[%s0 + $0xc5c] sm:$0xf]
  %v6147 = vld [vmem:[%s0 + $0xc60] sm:$0xf]
  %v6148 = vld [vmem:[%s0 + $0xc64] sm:$0xf]
  %v6149 = vld [vmem:[%s0 + $0xc68] sm:$0xf]
  %v6150 = vld [vmem:[%s0 + $0xc6c] sm:$0xf]
  %v6151 = vld [vmem:[%s0 + $0xc70] sm:$0xf]
  %v6152 = vld [vmem:[%s0 + $0xc74] sm:$0xf]
  %v6153 = vld [vmem:[%s0 + $0xc78] sm:$0xf]
  %v6154 = vld [vmem:[%s0 + $0xc7c] sm:$0xf]
  %v6355 = vunpack.c.l.b16 %v5955
  %v6356 = vunpack.c.l.b16 %v5956
  %v6357 = vunpack.c.l.b16 %v5957
  %v6358 = vunpack.c.l.b16 %v5958
  %v6359 = vunpack.c.l.b16 %v5959
  %v6360 = vunpack.c.l.b16 %v5960
  %v6361 = vunpack.c.l.b16 %v5961
  %v6362 = vunpack.c.l.b16 %v5962
  %v6363 = vunpack.c.l.b16 %v5963
  %v6364 = vunpack.c.l.b16 %v5964
  %v6365 = vunpack.c.l.b16 %v5965
  %v6366 = vunpack.c.l.b16 %v5966
  %v6367 = vunpack.c.l.b16 %v5967
  %v6368 = vunpack.c.l.b16 %v5968
  %v6369 = vunpack.c.l.b16 %v5969
  %v6370 = vunpack.c.l.b16 %v5970
  %v6371 = vunpack.c.l.b16 %v5971
  %v6372 = vunpack.c.l.b16 %v5972
  %v6373 = vunpack.c.l.b16 %v5973
  %v6374 = vunpack.c.l.b16 %v5974
  %v6375 = vunpack.c.l.b16 %v5975
  %v6376 = vunpack.c.l.b16 %v5976
  %v6377 = vunpack.c.l.b16 %v5977
  %v6378 = vunpack.c.l.b16 %v5978
  %v6379 = vunpack.c.l.b16 %v5979
  %v6380 = vunpack.c.l.b16 %v5980
  %v6381 = vunpack.c.l.b16 %v5981
  %v6382 = vunpack.c.l.b16 %v5982
  %v6383 = vunpack.c.l.b16 %v5983
  %v6384 = vunpack.c.l.b16 %v5984
  %v6385 = vunpack.c.l.b16 %v5985
  %v6386 = vunpack.c.l.b16 %v5986
  %v6387 = vunpack.c.l.b16 %v5987
  %v6388 = vunpack.c.l.b16 %v5988
  %v6389 = vunpack.c.l.b16 %v5989
  %v6390 = vunpack.c.l.b16 %v5990
  %v6391 = vunpack.c.l.b16 %v5991
  %v6392 = vunpack.c.l.b16 %v5992
  %v6393 = vunpack.c.l.b16 %v5993
  %v6394 = vunpack.c.l.b16 %v5994
  %v6395 = vunpack.c.l.b16 %v5995
  %v6396 = vunpack.c.l.b16 %v5996
  %v6397 = vunpack.c.l.b16 %v5997
  %v6398 = vunpack.c.l.b16 %v5998
  %v6399 = vunpack.c.l.b16 %v5999
  %v6400 = vunpack.c.l.b16 %v6000
  %v6401 = vunpack.c.l.b16 %v6001
  %v6402 = vunpack.c.l.b16 %v6002
  %v6403 = vunpack.c.l.b16 %v6003
  %v6404 = vunpack.c.l.b16 %v6004
  %v6405 = vunpack.c.l.b16 %v6005
  %v6406 = vunpack.c.l.b16 %v6006
  %v6407 = vunpack.c.l.b16 %v6007
  %v6408 = vunpack.c.l.b16 %v6008
  %v6409 = vunpack.c.l.b16 %v6009
  %v6410 = vunpack.c.l.b16 %v6010
  %v6411 = vunpack.c.l.b16 %v6011
  %v6412 = vunpack.c.l.b16 %v6012
  %v6413 = vunpack.c.l.b16 %v6013
  %v6414 = vunpack.c.l.b16 %v6014
  %v6415 = vunpack.c.l.b16 %v6015
  %v6416 = vunpack.c.l.b16 %v6016
  %v6417 = vunpack.c.l.b16 %v6017
  %v6418 = vunpack.c.l.b16 %v6018
  %v6419 = vunpack.c.l.b16 %v6019
  %v6420 = vunpack.c.l.b16 %v6020
  %v6421 = vunpack.c.l.b16 %v6021
  %v6422 = vunpack.c.l.b16 %v6022
  %v6423 = vunpack.c.l.b16 %v6023
  %v6424 = vunpack.c.l.b16 %v6024
  %v6425 = vunpack.c.l.b16 %v6025
  %v6426 = vunpack.c.l.b16 %v6026
  %v6427 = vunpack.c.l.b16 %v6027
  %v6428 = vunpack.c.l.b16 %v6028
  %v6429 = vunpack.c.l.b16 %v6029
  %v6430 = vunpack.c.l.b16 %v6030
  %v6431 = vunpack.c.l.b16 %v6031
  %v6432 = vunpack.c.l.b16 %v6032
  %v6433 = vunpack.c.l.b16 %v6033
  %v6434 = vunpack.c.l.b16 %v6034
  %v6435 = vunpack.c.l.b16 %v6035
  %v6436 = vunpack.c.l.b16 %v6036
  %v6437 = vunpack.c.l.b16 %v6037
  %v6438 = vunpack.c.l.b16 %v6038
  %v6439 = vunpack.c.l.b16 %v6039
  %v6440 = vunpack.c.l.b16 %v6040
  %v6441 = vunpack.c.l.b16 %v6041
  %v6442 = vunpack.c.l.b16 %v6042
  %v6443 = vunpack.c.l.b16 %v6043
  %v6444 = vunpack.c.l.b16 %v6044
  %v6445 = vunpack.c.l.b16 %v6045
  %v6446 = vunpack.c.l.b16 %v6046
  %v6447 = vunpack.c.l.b16 %v6047
  %v6448 = vunpack.c.l.b16 %v6048
  %v6449 = vunpack.c.l.b16 %v6049
  %v6450 = vunpack.c.l.b16 %v6050
  %v6451 = vunpack.c.l.b16 %v6051
  %v6452 = vunpack.c.l.b16 %v6052
  %v6453 = vunpack.c.l.b16 %v6053
  %v6454 = vunpack.c.l.b16 %v6054
  %v6455 = vunpack.c.l.b16 %v6055
  %v6456 = vunpack.c.l.b16 %v6056
  %v6457 = vunpack.c.l.b16 %v6057
  %v6458 = vunpack.c.l.b16 %v6058
  %v6459 = vunpack.c.l.b16 %v6059
  %v6460 = vunpack.c.l.b16 %v6060
  %v6461 = vunpack.c.l.b16 %v6061
  %v6462 = vunpack.c.l.b16 %v6062
  %v6463 = vunpack.c.l.b16 %v6063
  %v6464 = vunpack.c.l.b16 %v6064
  %v6465 = vunpack.c.l.b16 %v6065
  %v6466 = vunpack.c.l.b16 %v6066
  %v6467 = vunpack.c.l.b16 %v6067
  %v6468 = vunpack.c.l.b16 %v6068
  %v6469 = vunpack.c.l.b16 %v6069
  %v6470 = vunpack.c.l.b16 %v6070
  %v6471 = vunpack.c.l.b16 %v6071
  %v6472 = vunpack.c.l.b16 %v6072
  %v6473 = vunpack.c.l.b16 %v6073
  %v6474 = vunpack.c.l.b16 %v6074
  %v6475 = vunpack.c.l.b16 %v6075
  %v6476 = vunpack.c.l.b16 %v6076
  %v6477 = vunpack.c.l.b16 %v6077
  %v6478 = vunpack.c.l.b16 %v6078
  %v6479 = vunpack.c.l.b16 %v6079
  %v6480 = vunpack.c.l.b16 %v6080
  %v6481 = vunpack.c.l.b16 %v6081
  %v6482 = vunpack.c.l.b16 %v6082
  %v6483 = vunpack.c.l.b16 %v6083
  %v6484 = vunpack.c.l.b16 %v6084
  %v6485 = vunpack.c.l.b16 %v6085
  %v6486 = vunpack.c.l.b16 %v6086
  %v6487 = vunpack.c.l.b16 %v6087
  %v6488 = vunpack.c.l.b16 %v6088
  %v6489 = vunpack.c.l.b16 %v6089
  %v6490 = vunpack.c.l.b16 %v6090
  %v6491 = vunpack.c.l.b16 %v6091
  %v6492 = vunpack.c.l.b16 %v6092
  %v6493 = vunpack.c.l.b16 %v6093
  %v6494 = vunpack.c.l.b16 %v6094
  %v6495 = vunpack.c.l.b16 %v6095
  %v6496 = vunpack.c.l.b16 %v6096
  %v6497 = vunpack.c.l.b16 %v6097
  %v6498 = vunpack.c.l.b16 %v6098
  %v6499 = vunpack.c.l.b16 %v6099
  %v6500 = vunpack.c.l.b16 %v6100
  %v6501 = vunpack.c.l.b16 %v6101
  %v6502 = vunpack.c.l.b16 %v6102
  %v6503 = vunpack.c.l.b16 %v6103
  %v6504 = vunpack.c.l.b16 %v6104
  %v6505 = vunpack.c.l.b16 %v6105
  %v6506 = vunpack.c.l.b16 %v6106
  %v6507 = vunpack.c.l.b16 %v6107
  %v6508 = vunpack.c.l.b16 %v6108
  %v6509 = vunpack.c.l.b16 %v6109
  %v6510 = vunpack.c.l.b16 %v6110
  %v6511 = vunpack.c.l.b16 %v6111
  %v6512 = vunpack.c.l.b16 %v6112
  %v6513 = vunpack.c.l.b16 %v6113
  %v6514 = vunpack.c.l.b16 %v6114
  %v6515 = vunpack.c.l.b16 %v6115
  %v6516 = vunpack.c.l.b16 %v6116
  %v6517 = vunpack.c.l.b16 %v6117
  %v6518 = vunpack.c.l.b16 %v6118
  %v6519 = vunpack.c.l.b16 %v6119
  %v6520 = vunpack.c.l.b16 %v6120
  %v6521 = vunpack.c.l.b16 %v6121
  %v6522 = vunpack.c.l.b16 %v6122
  %v6523 = vunpack.c.l.b16 %v6123
  %v6524 = vunpack.c.l.b16 %v6124
  %v6525 = vunpack.c.l.b16 %v6125
  %v6526 = vunpack.c.l.b16 %v6126
  %v6527 = vunpack.c.l.b16 %v6127
  %v6528 = vunpack.c.l.b16 %v6128
  %v6529 = vunpack.c.l.b16 %v6129
  %v6530 = vunpack.c.l.b16 %v6130
  %v6531 = vunpack.c.l.b16 %v6131
  %v6532 = vunpack.c.l.b16 %v6132
  %v6533 = vunpack.c.l.b16 %v6133
  %v6534 = vunpack.c.l.b16 %v6134
  %v6535 = vunpack.c.l.b16 %v6135
  %v6536 = vunpack.c.l.b16 %v6136
  %v6537 = vunpack.c.l.b16 %v6137
  %v6538 = vunpack.c.l.b16 %v6138
  %v6539 = vunpack.c.l.b16 %v6139
  %v6540 = vunpack.c.l.b16 %v6140
  %v6541 = vunpack.c.l.b16 %v6141
  %v6542 = vunpack.c.l.b16 %v6142
  %v6543 = vunpack.c.l.b16 %v6143
  %v6544 = vunpack.c.l.b16 %v6144
  %v6545 = vunpack.c.l.b16 %v6145
  %v6546 = vunpack.c.l.b16 %v6146
  %v6547 = vunpack.c.l.b16 %v6147
  %v6548 = vunpack.c.l.b16 %v6148
  %v6549 = vunpack.c.l.b16 %v6149
  %v6550 = vunpack.c.l.b16 %v6150
  %v6551 = vunpack.c.l.b16 %v6151
  %v6552 = vunpack.c.l.b16 %v6152
  %v6553 = vunpack.c.l.b16 %v6153
  %v6554 = vunpack.c.l.b16 %v6154
  %v6555 = vpack.c.b16 %v6356, %v6355
  %v6556 = vpack.c.b16 %v6358, %v6357
  %v6557 = vpack.c.b16 %v6360, %v6359
  %v6558 = vpack.c.b16 %v6362, %v6361
  %v6559 = vpack.c.b16 %v6364, %v6363
  %v6560 = vpack.c.b16 %v6366, %v6365
  %v6561 = vpack.c.b16 %v6368, %v6367
  %v6562 = vpack.c.b16 %v6370, %v6369
  %v6563 = vpack.c.b16 %v6372, %v6371
  %v6564 = vpack.c.b16 %v6374, %v6373
  %v6565 = vpack.c.b16 %v6376, %v6375
  %v6566 = vpack.c.b16 %v6378, %v6377
  %v6567 = vpack.c.b16 %v6380, %v6379
  %v6568 = vpack.c.b16 %v6382, %v6381
  %v6569 = vpack.c.b16 %v6384, %v6383
  %v6570 = vpack.c.b16 %v6386, %v6385
  %v6571 = vpack.c.b16 %v6388, %v6387
  %v6572 = vpack.c.b16 %v6390, %v6389
  %v6573 = vpack.c.b16 %v6392, %v6391
  %v6574 = vpack.c.b16 %v6394, %v6393
  %v6575 = vpack.c.b16 %v6396, %v6395
  %v6576 = vpack.c.b16 %v6398, %v6397
  %v6577 = vpack.c.b16 %v6400, %v6399
  %v6578 = vpack.c.b16 %v6402, %v6401
  %v6579 = vpack.c.b16 %v6404, %v6403
  %v6580 = vpack.c.b16 %v6406, %v6405
  %v6581 = vpack.c.b16 %v6408, %v6407
  %v6582 = vpack.c.b16 %v6410, %v6409
  %v6583 = vpack.c.b16 %v6412, %v6411
  %v6584 = vpack.c.b16 %v6414, %v6413
  %v6585 = vpack.c.b16 %v6416, %v6415
  %v6586 = vpack.c.b16 %v6418, %v6417
  %v6587 = vpack.c.b16 %v6420, %v6419
  %v6588 = vpack.c.b16 %v6422, %v6421
  %v6589 = vpack.c.b16 %v6424, %v6423
  %v6590 = vpack.c.b16 %v6426, %v6425
  %v6591 = vpack.c.b16 %v6428, %v6427
  %v6592 = vpack.c.b16 %v6430, %v6429
  %v6593 = vpack.c.b16 %v6432, %v6431
  %v6594 = vpack.c.b16 %v6434, %v6433
  %v6595 = vpack.c.b16 %v6436, %v6435
  %v6596 = vpack.c.b16 %v6438, %v6437
  %v6597 = vpack.c.b16 %v6440, %v6439
  %v6598 = vpack.c.b16 %v6442, %v6441
  %v6599 = vpack.c.b16 %v6444, %v6443
  %v6600 = vpack.c.b16 %v6446, %v6445
  %v6601 = vpack.c.b16 %v6448, %v6447
  %v6602 = vpack.c.b16 %v6450, %v6449
  %v6603 = vpack.c.b16 %v6452, %v6451
  %v6604 = vpack.c.b16 %v6454, %v6453
  %v6605 = vpack.c.b16 %v6456, %v6455
  %v6606 = vpack.c.b16 %v6458, %v6457
  %v6607 = vpack.c.b16 %v6460, %v6459
  %v6608 = vpack.c.b16 %v6462, %v6461
  %v6609 = vpack.c.b16 %v6464, %v6463
  %v6610 = vpack.c.b16 %v6466, %v6465
  %v6611 = vpack.c.b16 %v6468, %v6467
  %v6612 = vpack.c.b16 %v6470, %v6469
  %v6613 = vpack.c.b16 %v6472, %v6471
  %v6614 = vpack.c.b16 %v6474, %v6473
  %v6615 = vpack.c.b16 %v6476, %v6475
  %v6616 = vpack.c.b16 %v6478, %v6477
  %v6617 = vpack.c.b16 %v6480, %v6479
  %v6618 = vpack.c.b16 %v6482, %v6481
  %v6619 = vpack.c.b16 %v6484, %v6483
  %v6620 = vpack.c.b16 %v6486, %v6485
  %v6621 = vpack.c.b16 %v6488, %v6487
  %v6622 = vpack.c.b16 %v6490, %v6489
  %v6623 = vpack.c.b16 %v6492, %v6491
  %v6624 = vpack.c.b16 %v6494, %v6493
  %v6625 = vpack.c.b16 %v6496, %v6495
  %v6626 = vpack.c.b16 %v6498, %v6497
  %v6627 = vpack.c.b16 %v6500, %v6499
  %v6628 = vpack.c.b16 %v6502, %v6501
  %v6629 = vpack.c.b16 %v6504, %v6503
  %v6630 = vpack.c.b16 %v6506, %v6505
  %v6631 = vpack.c.b16 %v6508, %v6507
  %v6632 = vpack.c.b16 %v6510, %v6509
  %v6633 = vpack.c.b16 %v6512, %v6511
  %v6634 = vpack.c.b16 %v6514, %v6513
  %v6635 = vpack.c.b16 %v6516, %v6515
  %v6636 = vpack.c.b16 %v6518, %v6517
  %v6637 = vpack.c.b16 %v6520, %v6519
  %v6638 = vpack.c.b16 %v6522, %v6521
  %v6639 = vpack.c.b16 %v6524, %v6523
  %v6640 = vpack.c.b16 %v6526, %v6525
  %v6641 = vpack.c.b16 %v6528, %v6527
  %v6642 = vpack.c.b16 %v6530, %v6529
  %v6643 = vpack.c.b16 %v6532, %v6531
  %v6644 = vpack.c.b16 %v6534, %v6533
  %v6645 = vpack.c.b16 %v6536, %v6535
  %v6646 = vpack.c.b16 %v6538, %v6537
  %v6647 = vpack.c.b16 %v6540, %v6539
  %v6648 = vpack.c.b16 %v6542, %v6541
  %v6649 = vpack.c.b16 %v6544, %v6543
  %v6650 = vpack.c.b16 %v6546, %v6545
  %v6651 = vpack.c.b16 %v6548, %v6547
  %v6652 = vpack.c.b16 %v6550, %v6549
  %v6653 = vpack.c.b16 %v6552, %v6551
  %v6654 = vpack.c.b16 %v6554, %v6553
  %v6656 = vsel %vm755, %v6555, 0
  %v6659 = vsel %vm755, %v6556, 0
  %v6662 = vsel %vm755, %v6557, 0
  %v6665 = vsel %vm755, %v6558, 0
  %v6668 = vsel %vm755, %v6559, 0
  %v6671 = vsel %vm755, %v6560, 0
  %v6674 = vsel %vm755, %v6561, 0
  %v6677 = vsel %vm755, %v6562, 0
  %v6680 = vsel %vm755, %v6563, 0
  %v6683 = vsel %vm755, %v6564, 0
  %v6686 = vsel %vm755, %v6565, 0
  %v6689 = vsel %vm755, %v6566, 0
  %v6692 = vsel %vm755, %v6567, 0
  %v6695 = vsel %vm755, %v6568, 0
  %v6698 = vsel %vm755, %v6569, 0
  %v6701 = vsel %vm755, %v6570, 0
  %v6704 = vsel %vm755, %v6571, 0
  %v6707 = vsel %vm755, %v6572, 0
  %v6710 = vsel %vm755, %v6573, 0
  %v6713 = vsel %vm755, %v6574, 0
  %v6716 = vsel %vm755, %v6575, 0
  %v6719 = vsel %vm755, %v6576, 0
  %v6722 = vsel %vm755, %v6577, 0
  %v6725 = vsel %vm755, %v6578, 0
  %v6728 = vsel %vm755, %v6579, 0
  %v6731 = vsel %vm755, %v6580, 0
  %v6734 = vsel %vm755, %v6581, 0
  %v6737 = vsel %vm755, %v6582, 0
  %v6740 = vsel %vm755, %v6583, 0
  %v6743 = vsel %vm755, %v6584, 0
  %v6746 = vsel %vm755, %v6585, 0
  %v6749 = vsel %vm755, %v6586, 0
  %v6752 = vsel %vm755, %v6587, 0
  %v6755 = vsel %vm755, %v6588, 0
  %v6758 = vsel %vm755, %v6589, 0
  %v6761 = vsel %vm755, %v6590, 0
  %v6764 = vsel %vm755, %v6591, 0
  %v6767 = vsel %vm755, %v6592, 0
  %v6770 = vsel %vm755, %v6593, 0
  %v6773 = vsel %vm755, %v6594, 0
  %v6776 = vsel %vm755, %v6595, 0
  %v6779 = vsel %vm755, %v6596, 0
  %v6782 = vsel %vm755, %v6597, 0
  %v6785 = vsel %vm755, %v6598, 0
  %v6788 = vsel %vm755, %v6599, 0
  %v6791 = vsel %vm755, %v6600, 0
  %v6794 = vsel %vm755, %v6601, 0
  %v6797 = vsel %vm755, %v6602, 0
  %v6800 = vsel %vm755, %v6603, 0
  %v6803 = vsel %vm755, %v6604, 0
  %v6806 = vsel %vm755, %v6605, 0
  %v6809 = vsel %vm755, %v6606, 0
  %v6812 = vsel %vm755, %v6607, 0
  %v6815 = vsel %vm755, %v6608, 0
  %v6818 = vsel %vm755, %v6609, 0
  %v6821 = vsel %vm755, %v6610, 0
  %v6824 = vsel %vm755, %v6611, 0
  %v6827 = vsel %vm755, %v6612, 0
  %v6830 = vsel %vm755, %v6613, 0
  %v6833 = vsel %vm755, %v6614, 0
  %v6836 = vsel %vm755, %v6615, 0
  %v6839 = vsel %vm755, %v6616, 0
  %v6842 = vsel %vm755, %v6617, 0
  %v6845 = vsel %vm755, %v6618, 0
  %v6848 = vsel %vm755, %v6619, 0
  %v6851 = vsel %vm755, %v6620, 0
  %v6854 = vsel %vm755, %v6621, 0
  %v6857 = vsel %vm755, %v6622, 0
  %v6860 = vsel %vm755, %v6623, 0
  %v6863 = vsel %vm755, %v6624, 0
  %v6866 = vsel %vm755, %v6625, 0
  %v6869 = vsel %vm755, %v6626, 0
  %v6872 = vsel %vm755, %v6627, 0
  %v6875 = vsel %vm755, %v6628, 0
  %v6878 = vsel %vm755, %v6629, 0
  %v6881 = vsel %vm755, %v6630, 0
  %v6884 = vsel %vm755, %v6631, 0
  %v6887 = vsel %vm755, %v6632, 0
  %v6890 = vsel %vm755, %v6633, 0
  %v6893 = vsel %vm755, %v6634, 0
  %v6896 = vsel %vm755, %v6635, 0
  %v6899 = vsel %vm755, %v6636, 0
  %v6902 = vsel %vm755, %v6637, 0
  %v6905 = vsel %vm755, %v6638, 0
  %v6908 = vsel %vm755, %v6639, 0
  %v6911 = vsel %vm755, %v6640, 0
  %v6914 = vsel %vm755, %v6641, 0
  %v6917 = vsel %vm755, %v6642, 0
  %v6920 = vsel %vm755, %v6643, 0
  %v6923 = vsel %vm755, %v6644, 0
  %v6926 = vsel %vm755, %v6645, 0
  %v6929 = vsel %vm755, %v6646, 0
  %v6932 = vsel %vm755, %v6647, 0
  %v6935 = vsel %vm755, %v6648, 0
  %v6938 = vsel %vm755, %v6649, 0
  %v6941 = vsel %vm755, %v6650, 0
  %v6944 = vsel %vm755, %v6651, 0
  %v6947 = vsel %vm755, %v6652, 0
  %v6950 = vsel %vm755, %v6653, 0
  %v6953 = vsel %vm755, %v6654, 0
  %6955 = vmatprep.subr.bf16.mxu0 0
  %6956 = vmatpush1.bf16.msra.mxu0 0
  %6957 = vmatprep.subr.bf16.mxu0 0
  %6958 = vmatpush1.bf16.msra.mxu0 0
  %6959 = vmatprep.subr.bf16.mxu0 0
  %6960 = vmatpush1.bf16.msra.mxu0 0
  %6961 = vmatprep.subr.bf16.mxu0 0
  %6962 = vmatpush1.bf16.msra.mxu0 %v749
  %6963 = vmatprep.subr.bf16.mxu0 0
  %6964 = vmatpush1.bf16.msra.mxu0 %v748
  %6965 = vmatprep.subr.bf16.mxu0 0
  %6966 = vmatpush1.bf16.msra.mxu0 %v747
  %6967 = vmatprep.subr.bf16.mxu0 0
  %6968 = vmatpush1.bf16.msra.mxu0 %v746
  %6969 = vmatprep.subr.bf16.mxu0 0
  %6970 = vmatpush1.bf16.msra.mxu0 %v745
  %6971 = vmatprep.subr.bf16.mxu0 0
  %6972 = vmatpush2.bf16.msra.mxu0 0
  %6973 = vmatprep.subr.bf16.mxu0 0
  %6974 = vmatpush2.bf16.msra.mxu0 0
  %6975 = vmatprep.subr.bf16.mxu0 0
  %6976 = vmatpush2.bf16.msra.mxu0 0
  %6977 = vmatprep.subr.bf16.mxu0 0
  %6978 = vmatpush2.bf16.msra.mxu0 0
  %6979 = vmatprep.subr.bf16.mxu0 0
  %6980 = vmatpush2.bf16.msra.mxu0 0
  %6981 = vmatprep.subr.bf16.mxu0 0
  %6982 = vmatpush2.bf16.msra.mxu0 0
  %6983 = vmatprep.subr.bf16.mxu0 0
  %6984 = vmatpush2.bf16.msra.mxu0 0
  %6985 = vmatprep.subr.bf16.mxu0 0
  %6986 = vmatpush2.bf16.msra.mxu0 0
  %6987 = vmatprep.mubr.bf16.mxu0 0
  %6988 = vmatmul.mubr.bf16.gmra.mxu0 %v6656
  %v6989 = vpop.f32.mrf.mxu0
  %v6990 = vadd.f32 0.0, %v6989
  %v6991 = vpop.f32.mrf.mxu0
  %v6992 = vpop.f32.mrf.mxu0
  %v6993 = vadd.f32 0.0, %v6992
  %v6994 = vpop.f32.mrf.mxu0
  %6995 = vmatprep.mubr.bf16.mxu0 0
  %6996 = vmatmul.mubr.bf16.gmra.mxu0 %v6659
  %v6997 = vpop.f32.mrf.mxu0
  %v6998 = vadd.f32 0.0, %v6997
  %v6999 = vpop.f32.mrf.mxu0
  %v7000 = vpop.f32.mrf.mxu0
  %v7001 = vadd.f32 0.0, %v7000
  %v7002 = vpop.f32.mrf.mxu0
  %7003 = vmatprep.mubr.bf16.mxu0 0
  %7004 = vmatmul.mubr.bf16.gmra.mxu0 %v6662
  %v7005 = vpop.f32.mrf.mxu0
  %v7006 = vadd.f32 0.0, %v7005
  %v7007 = vpop.f32.mrf.mxu0
  %v7008 = vpop.f32.mrf.mxu0
  %v7009 = vadd.f32 0.0, %v7008
  %v7010 = vpop.f32.mrf.mxu0
  %7011 = vmatprep.mubr.bf16.mxu0 0
  %7012 = vmatmul.mubr.bf16.gmra.mxu0 %v6665
  %v7013 = vpop.f32.mrf.mxu0
  %v7014 = vadd.f32 0.0, %v7013
  %v7015 = vpop.f32.mrf.mxu0
  %v7016 = vpop.f32.mrf.mxu0
  %v7017 = vadd.f32 0.0, %v7016
  %v7018 = vpop.f32.mrf.mxu0
  %7019 = vmatprep.mubr.bf16.mxu0 0
  %7020 = vmatmul.mubr.bf16.gmra.mxu0 %v6668
  %v7021 = vpop.f32.mrf.mxu0
  %v7022 = vadd.f32 0.0, %v7021
  %v7023 = vpop.f32.mrf.mxu0
  %v7024 = vpop.f32.mrf.mxu0
  %v7025 = vadd.f32 0.0, %v7024
  %v7026 = vpop.f32.mrf.mxu0
  %7027 = vmatprep.mubr.bf16.mxu0 0
  %7028 = vmatmul.mubr.bf16.gmra.mxu0 %v6671
  %v7029 = vpop.f32.mrf.mxu0
  %v7030 = vadd.f32 0.0, %v7029
  %v7031 = vpop.f32.mrf.mxu0
  %v7032 = vpop.f32.mrf.mxu0
  %v7033 = vadd.f32 0.0, %v7032
  %v7034 = vpop.f32.mrf.mxu0
  %7035 = vmatprep.mubr.bf16.mxu0 0
  %7036 = vmatmul.mubr.bf16.gmra.mxu0 %v6674
  %v7037 = vpop.f32.mrf.mxu0
  %v7038 = vadd.f32 0.0, %v7037
  %v7039 = vpop.f32.mrf.mxu0
  %v7040 = vpop.f32.mrf.mxu0
  %v7041 = vadd.f32 0.0, %v7040
  %v7042 = vpop.f32.mrf.mxu0
  %7043 = vmatprep.mubr.bf16.mxu0 0
  %7044 = vmatmul.mubr.bf16.gmra.mxu0 %v6677
  %v7045 = vpop.f32.mrf.mxu0
  %v7046 = vadd.f32 0.0, %v7045
  %v7047 = vpop.f32.mrf.mxu0
  %v7048 = vpop.f32.mrf.mxu0
  %v7049 = vadd.f32 0.0, %v7048
  %v7050 = vpop.f32.mrf.mxu0
  %7051 = vmatprep.mubr.bf16.mxu0 0
  %7052 = vmatmul.mubr.bf16.gmra.mxu0 %v6680
  %v7053 = vpop.f32.mrf.mxu0
  %v7054 = vadd.f32 0.0, %v7053
  %v7055 = vpop.f32.mrf.mxu0
  %v7056 = vpop.f32.mrf.mxu0
  %v7057 = vadd.f32 0.0, %v7056
  %v7058 = vpop.f32.mrf.mxu0
  %7059 = vmatprep.mubr.bf16.mxu0 0
  %7060 = vmatmul.mubr.bf16.gmra.mxu0 %v6683
  %v7061 = vpop.f32.mrf.mxu0
  %v7062 = vadd.f32 0.0, %v7061
  %v7063 = vpop.f32.mrf.mxu0
  %v7064 = vpop.f32.mrf.mxu0
  %v7065 = vadd.f32 0.0, %v7064
  %v7066 = vpop.f32.mrf.mxu0
  %7067 = vmatprep.mubr.bf16.mxu0 0
  %7068 = vmatmul.mubr.bf16.gmra.mxu0 %v6686
  %v7069 = vpop.f32.mrf.mxu0
  %v7070 = vadd.f32 0.0, %v7069
  %v7071 = vpop.f32.mrf.mxu0
  %v7072 = vpop.f32.mrf.mxu0
  %v7073 = vadd.f32 0.0, %v7072
  %v7074 = vpop.f32.mrf.mxu0
  %7075 = vmatprep.mubr.bf16.mxu0 0
  %7076 = vmatmul.mubr.bf16.gmra.mxu0 %v6689
  %v7077 = vpop.f32.mrf.mxu0
  %v7078 = vadd.f32 0.0, %v7077
  %v7079 = vpop.f32.mrf.mxu0
  %v7080 = vpop.f32.mrf.mxu0
  %v7081 = vadd.f32 0.0, %v7080
  %v7082 = vpop.f32.mrf.mxu0
  %7083 = vmatprep.mubr.bf16.mxu0 0
  %7084 = vmatmul.mubr.bf16.gmra.mxu0 %v6692
  %v7085 = vpop.f32.mrf.mxu0
  %v7086 = vadd.f32 0.0, %v7085
  %v7087 = vpop.f32.mrf.mxu0
  %v7088 = vpop.f32.mrf.mxu0
  %v7089 = vadd.f32 0.0, %v7088
  %v7090 = vpop.f32.mrf.mxu0
  %7091 = vmatprep.mubr.bf16.mxu0 0
  %7092 = vmatmul.mubr.bf16.gmra.mxu0 %v6695
  %v7093 = vpop.f32.mrf.mxu0
  %v7094 = vadd.f32 0.0, %v7093
  %v7095 = vpop.f32.mrf.mxu0
  %v7096 = vpop.f32.mrf.mxu0
  %v7097 = vadd.f32 0.0, %v7096
  %v7098 = vpop.f32.mrf.mxu0
  %7099 = vmatprep.mubr.bf16.mxu0 0
  %7100 = vmatmul.mubr.bf16.gmra.mxu0 %v6698
  %v7101 = vpop.f32.mrf.mxu0
  %v7102 = vadd.f32 0.0, %v7101
  %v7103 = vpop.f32.mrf.mxu0
  %v7104 = vpop.f32.mrf.mxu0
  %v7105 = vadd.f32 0.0, %v7104
  %v7106 = vpop.f32.mrf.mxu0
  %7107 = vmatprep.mubr.bf16.mxu0 0
  %7108 = vmatmul.mubr.bf16.gmra.mxu0 %v6701
  %v7109 = vpop.f32.mrf.mxu0
  %v7110 = vadd.f32 0.0, %v7109
  %v7111 = vpop.f32.mrf.mxu0
  %v7112 = vpop.f32.mrf.mxu0
  %v7113 = vadd.f32 0.0, %v7112
  %v7114 = vpop.f32.mrf.mxu0
  %7115 = vmatprep.mubr.bf16.mxu0 0
  %7116 = vmatmul.mubr.bf16.gmra.mxu0 %v6704
  %v7117 = vpop.f32.mrf.mxu0
  %v7118 = vadd.f32 0.0, %v7117
  %v7119 = vpop.f32.mrf.mxu0
  %v7120 = vpop.f32.mrf.mxu0
  %v7121 = vadd.f32 0.0, %v7120
  %v7122 = vpop.f32.mrf.mxu0
  %7123 = vmatprep.mubr.bf16.mxu0 0
  %7124 = vmatmul.mubr.bf16.gmra.mxu0 %v6707
  %v7125 = vpop.f32.mrf.mxu0
  %v7126 = vadd.f32 0.0, %v7125
  %v7127 = vpop.f32.mrf.mxu0
  %v7128 = vpop.f32.mrf.mxu0
  %v7129 = vadd.f32 0.0, %v7128
  %v7130 = vpop.f32.mrf.mxu0
  %7131 = vmatprep.mubr.bf16.mxu0 0
  %7132 = vmatmul.mubr.bf16.gmra.mxu0 %v6710
  %v7133 = vpop.f32.mrf.mxu0
  %v7134 = vadd.f32 0.0, %v7133
  %v7135 = vpop.f32.mrf.mxu0
  %v7136 = vpop.f32.mrf.mxu0
  %v7137 = vadd.f32 0.0, %v7136
  %v7138 = vpop.f32.mrf.mxu0
  %7139 = vmatprep.mubr.bf16.mxu0 0
  %7140 = vmatmul.mubr.bf16.gmra.mxu0 %v6713
  %v7141 = vpop.f32.mrf.mxu0
  %v7142 = vadd.f32 0.0, %v7141
  %v7143 = vpop.f32.mrf.mxu0
  %v7144 = vpop.f32.mrf.mxu0
  %v7145 = vadd.f32 0.0, %v7144
  %v7146 = vpop.f32.mrf.mxu0
  %7147 = vmatprep.mubr.bf16.mxu0 0
  %7148 = vmatmul.mubr.bf16.gmra.mxu0 %v6716
  %v7149 = vpop.f32.mrf.mxu0
  %v7150 = vadd.f32 0.0, %v7149
  %v7151 = vpop.f32.mrf.mxu0
  %v7152 = vpop.f32.mrf.mxu0
  %v7153 = vadd.f32 0.0, %v7152
  %v7154 = vpop.f32.mrf.mxu0
  %7155 = vmatprep.mubr.bf16.mxu0 0
  %7156 = vmatmul.mubr.bf16.gmra.mxu0 %v6719
  %v7157 = vpop.f32.mrf.mxu0
  %v7158 = vadd.f32 0.0, %v7157
  %v7159 = vpop.f32.mrf.mxu0
  %v7160 = vpop.f32.mrf.mxu0
  %v7161 = vadd.f32 0.0, %v7160
  %v7162 = vpop.f32.mrf.mxu0
  %7163 = vmatprep.mubr.bf16.mxu0 0
  %7164 = vmatmul.mubr.bf16.gmra.mxu0 %v6722
  %v7165 = vpop.f32.mrf.mxu0
  %v7166 = vadd.f32 0.0, %v7165
  %v7167 = vpop.f32.mrf.mxu0
  %v7168 = vpop.f32.mrf.mxu0
  %v7169 = vadd.f32 0.0, %v7168
  %v7170 = vpop.f32.mrf.mxu0
  %7171 = vmatprep.mubr.bf16.mxu0 0
  %7172 = vmatmul.mubr.bf16.gmra.mxu0 %v6725
  %v7173 = vpop.f32.mrf.mxu0
  %v7174 = vadd.f32 0.0, %v7173
  %v7175 = vpop.f32.mrf.mxu0
  %v7176 = vpop.f32.mrf.mxu0
  %v7177 = vadd.f32 0.0, %v7176
  %v7178 = vpop.f32.mrf.mxu0
  %7179 = vmatprep.mubr.bf16.mxu0 0
  %7180 = vmatmul.mubr.bf16.gmra.mxu0 %v6728
  %v7181 = vpop.f32.mrf.mxu0
  %v7182 = vadd.f32 0.0, %v7181
  %v7183 = vpop.f32.mrf.mxu0
  %v7184 = vpop.f32.mrf.mxu0
  %v7185 = vadd.f32 0.0, %v7184
  %v7186 = vpop.f32.mrf.mxu0
  %7187 = vmatprep.mubr.bf16.mxu0 0
  %7188 = vmatmul.mubr.bf16.gmra.mxu0 %v6731
  %v7189 = vpop.f32.mrf.mxu0
  %v7190 = vadd.f32 0.0, %v7189
  %v7191 = vpop.f32.mrf.mxu0
  %v7192 = vpop.f32.mrf.mxu0
  %v7193 = vadd.f32 0.0, %v7192
  %v7194 = vpop.f32.mrf.mxu0
  %7195 = vmatprep.mubr.bf16.mxu0 0
  %7196 = vmatmul.mubr.bf16.gmra.mxu0 %v6734
  %v7197 = vpop.f32.mrf.mxu0
  %v7198 = vadd.f32 0.0, %v7197
  %v7199 = vpop.f32.mrf.mxu0
  %v7200 = vpop.f32.mrf.mxu0
  %v7201 = vadd.f32 0.0, %v7200
  %v7202 = vpop.f32.mrf.mxu0
  %7203 = vmatprep.mubr.bf16.mxu0 0
  %7204 = vmatmul.mubr.bf16.gmra.mxu0 %v6737
  %v7205 = vpop.f32.mrf.mxu0
  %v7206 = vadd.f32 0.0, %v7205
  %v7207 = vpop.f32.mrf.mxu0
  %v7208 = vpop.f32.mrf.mxu0
  %v7209 = vadd.f32 0.0, %v7208
  %v7210 = vpop.f32.mrf.mxu0
  %7211 = vmatprep.mubr.bf16.mxu0 0
  %7212 = vmatmul.mubr.bf16.gmra.mxu0 %v6740
  %v7213 = vpop.f32.mrf.mxu0
  %v7214 = vadd.f32 0.0, %v7213
  %v7215 = vpop.f32.mrf.mxu0
  %v7216 = vpop.f32.mrf.mxu0
  %v7217 = vadd.f32 0.0, %v7216
  %v7218 = vpop.f32.mrf.mxu0
  %7219 = vmatprep.mubr.bf16.mxu0 0
  %7220 = vmatmul.mubr.bf16.gmra.mxu0 %v6743
  %v7221 = vpop.f32.mrf.mxu0
  %v7222 = vadd.f32 0.0, %v7221
  %v7223 = vpop.f32.mrf.mxu0
  %v7224 = vpop.f32.mrf.mxu0
  %v7225 = vadd.f32 0.0, %v7224
  %v7226 = vpop.f32.mrf.mxu0
  %7227 = vmatprep.mubr.bf16.mxu0 0
  %7228 = vmatmul.mubr.bf16.gmra.mxu0 %v6746
  %v7229 = vpop.f32.mrf.mxu0
  %v7230 = vadd.f32 0.0, %v7229
  %v7231 = vpop.f32.mrf.mxu0
  %v7232 = vpop.f32.mrf.mxu0
  %v7233 = vadd.f32 0.0, %v7232
  %v7234 = vpop.f32.mrf.mxu0
  %7235 = vmatprep.mubr.bf16.mxu0 0
  %7236 = vmatmul.mubr.bf16.gmra.mxu0 %v6749
  %v7237 = vpop.f32.mrf.mxu0
  %v7238 = vadd.f32 0.0, %v7237
  %v7239 = vpop.f32.mrf.mxu0
  %v7240 = vpop.f32.mrf.mxu0
  %v7241 = vadd.f32 0.0, %v7240
  %v7242 = vpop.f32.mrf.mxu0
  %7243 = vmatprep.mubr.bf16.mxu0 0
  %7244 = vmatmul.mubr.bf16.gmra.mxu0 %v6752
  %v7245 = vpop.f32.mrf.mxu0
  %v7246 = vadd.f32 0.0, %v7245
  %v7247 = vpop.f32.mrf.mxu0
  %v7248 = vpop.f32.mrf.mxu0
  %v7249 = vadd.f32 0.0, %v7248
  %v7250 = vpop.f32.mrf.mxu0
  %7251 = vmatprep.mubr.bf16.mxu0 0
  %7252 = vmatmul.mubr.bf16.gmra.mxu0 %v6755
  %v7253 = vpop.f32.mrf.mxu0
  %v7254 = vadd.f32 0.0, %v7253
  %v7255 = vpop.f32.mrf.mxu0
  %v7256 = vpop.f32.mrf.mxu0
  %v7257 = vadd.f32 0.0, %v7256
  %v7258 = vpop.f32.mrf.mxu0
  %7259 = vmatprep.mubr.bf16.mxu0 0
  %7260 = vmatmul.mubr.bf16.gmra.mxu0 %v6758
  %v7261 = vpop.f32.mrf.mxu0
  %v7262 = vadd.f32 0.0, %v7261
  %v7263 = vpop.f32.mrf.mxu0
  %v7264 = vpop.f32.mrf.mxu0
  %v7265 = vadd.f32 0.0, %v7264
  %v7266 = vpop.f32.mrf.mxu0
  %7267 = vmatprep.mubr.bf16.mxu0 0
  %7268 = vmatmul.mubr.bf16.gmra.mxu0 %v6761
  %v7269 = vpop.f32.mrf.mxu0
  %v7270 = vadd.f32 0.0, %v7269
  %v7271 = vpop.f32.mrf.mxu0
  %v7272 = vpop.f32.mrf.mxu0
  %v7273 = vadd.f32 0.0, %v7272
  %v7274 = vpop.f32.mrf.mxu0
  %7275 = vmatprep.mubr.bf16.mxu0 0
  %7276 = vmatmul.mubr.bf16.gmra.mxu0 %v6764
  %v7277 = vpop.f32.mrf.mxu0
  %v7278 = vadd.f32 0.0, %v7277
  %v7279 = vpop.f32.mrf.mxu0
  %v7280 = vpop.f32.mrf.mxu0
  %v7281 = vadd.f32 0.0, %v7280
  %v7282 = vpop.f32.mrf.mxu0
  %7283 = vmatprep.mubr.bf16.mxu0 0
  %7284 = vmatmul.mubr.bf16.gmra.mxu0 %v6767
  %v7285 = vpop.f32.mrf.mxu0
  %v7286 = vadd.f32 0.0, %v7285
  %v7287 = vpop.f32.mrf.mxu0
  %v7288 = vpop.f32.mrf.mxu0
  %v7289 = vadd.f32 0.0, %v7288
  %v7290 = vpop.f32.mrf.mxu0
  %7291 = vmatprep.mubr.bf16.mxu0 0
  %7292 = vmatmul.mubr.bf16.gmra.mxu0 %v6770
  %v7293 = vpop.f32.mrf.mxu0
  %v7294 = vadd.f32 0.0, %v7293
  %v7295 = vpop.f32.mrf.mxu0
  %v7296 = vpop.f32.mrf.mxu0
  %v7297 = vadd.f32 0.0, %v7296
  %v7298 = vpop.f32.mrf.mxu0
  %7299 = vmatprep.mubr.bf16.mxu0 0
  %7300 = vmatmul.mubr.bf16.gmra.mxu0 %v6773
  %v7301 = vpop.f32.mrf.mxu0
  %v7302 = vadd.f32 0.0, %v7301
  %v7303 = vpop.f32.mrf.mxu0
  %v7304 = vpop.f32.mrf.mxu0
  %v7305 = vadd.f32 0.0, %v7304
  %v7306 = vpop.f32.mrf.mxu0
  %7307 = vmatprep.mubr.bf16.mxu0 0
  %7308 = vmatmul.mubr.bf16.gmra.mxu0 %v6776
  %v7309 = vpop.f32.mrf.mxu0
  %v7310 = vadd.f32 0.0, %v7309
  %v7311 = vpop.f32.mrf.mxu0
  %v7312 = vpop.f32.mrf.mxu0
  %v7313 = vadd.f32 0.0, %v7312
  %v7314 = vpop.f32.mrf.mxu0
  %7315 = vmatprep.mubr.bf16.mxu0 0
  %7316 = vmatmul.mubr.bf16.gmra.mxu0 %v6779
  %v7317 = vpop.f32.mrf.mxu0
  %v7318 = vadd.f32 0.0, %v7317
  %v7319 = vpop.f32.mrf.mxu0
  %v7320 = vpop.f32.mrf.mxu0
  %v7321 = vadd.f32 0.0, %v7320
  %v7322 = vpop.f32.mrf.mxu0
  %7323 = vmatprep.mubr.bf16.mxu0 0
  %7324 = vmatmul.mubr.bf16.gmra.mxu0 %v6782
  %v7325 = vpop.f32.mrf.mxu0
  %v7326 = vadd.f32 0.0, %v7325
  %v7327 = vpop.f32.mrf.mxu0
  %v7328 = vpop.f32.mrf.mxu0
  %v7329 = vadd.f32 0.0, %v7328
  %v7330 = vpop.f32.mrf.mxu0
  %7331 = vmatprep.mubr.bf16.mxu0 0
  %7332 = vmatmul.mubr.bf16.gmra.mxu0 %v6785
  %v7333 = vpop.f32.mrf.mxu0
  %v7334 = vadd.f32 0.0, %v7333
  %v7335 = vpop.f32.mrf.mxu0
  %v7336 = vpop.f32.mrf.mxu0
  %v7337 = vadd.f32 0.0, %v7336
  %v7338 = vpop.f32.mrf.mxu0
  %7339 = vmatprep.mubr.bf16.mxu0 0
  %7340 = vmatmul.mubr.bf16.gmra.mxu0 %v6788
  %v7341 = vpop.f32.mrf.mxu0
  %v7342 = vadd.f32 0.0, %v7341
  %v7343 = vpop.f32.mrf.mxu0
  %v7344 = vpop.f32.mrf.mxu0
  %v7345 = vadd.f32 0.0, %v7344
  %v7346 = vpop.f32.mrf.mxu0
  %7347 = vmatprep.mubr.bf16.mxu0 0
  %7348 = vmatmul.mubr.bf16.gmra.mxu0 %v6791
  %v7349 = vpop.f32.mrf.mxu0
  %v7350 = vadd.f32 0.0, %v7349
  %v7351 = vpop.f32.mrf.mxu0
  %v7352 = vpop.f32.mrf.mxu0
  %v7353 = vadd.f32 0.0, %v7352
  %v7354 = vpop.f32.mrf.mxu0
  %7355 = vmatprep.mubr.bf16.mxu0 0
  %7356 = vmatmul.mubr.bf16.gmra.mxu0 %v6794
  %v7357 = vpop.f32.mrf.mxu0
  %v7358 = vadd.f32 0.0, %v7357
  %v7359 = vpop.f32.mrf.mxu0
  %v7360 = vpop.f32.mrf.mxu0
  %v7361 = vadd.f32 0.0, %v7360
  %v7362 = vpop.f32.mrf.mxu0
  %7363 = vmatprep.mubr.bf16.mxu0 0
  %7364 = vmatmul.mubr.bf16.gmra.mxu0 %v6797
  %v7365 = vpop.f32.mrf.mxu0
  %v7366 = vadd.f32 0.0, %v7365
  %v7367 = vpop.f32.mrf.mxu0
  %v7368 = vpop.f32.mrf.mxu0
  %v7369 = vadd.f32 0.0, %v7368
  %v7370 = vpop.f32.mrf.mxu0
  %7371 = vmatprep.mubr.bf16.mxu0 0
  %7372 = vmatmul.mubr.bf16.gmra.mxu0 %v6800
  %v7373 = vpop.f32.mrf.mxu0
  %v7374 = vadd.f32 0.0, %v7373
  %v7375 = vpop.f32.mrf.mxu0
  %v7376 = vpop.f32.mrf.mxu0
  %v7377 = vadd.f32 0.0, %v7376
  %v7378 = vpop.f32.mrf.mxu0
  %7379 = vmatprep.mubr.bf16.mxu0 0
  %7380 = vmatmul.mubr.bf16.gmra.mxu0 %v6803
  %v7381 = vpop.f32.mrf.mxu0
  %v7382 = vadd.f32 0.0, %v7381
  %v7383 = vpop.f32.mrf.mxu0
  %v7384 = vpop.f32.mrf.mxu0
  %v7385 = vadd.f32 0.0, %v7384
  %v7386 = vpop.f32.mrf.mxu0
  %7387 = vmatprep.mubr.bf16.mxu0 0
  %7388 = vmatmul.mubr.bf16.gmra.mxu0 %v6806
  %v7389 = vpop.f32.mrf.mxu0
  %v7390 = vadd.f32 0.0, %v7389
  %v7391 = vpop.f32.mrf.mxu0
  %v7392 = vpop.f32.mrf.mxu0
  %v7393 = vadd.f32 0.0, %v7392
  %v7394 = vpop.f32.mrf.mxu0
  %7395 = vmatprep.mubr.bf16.mxu0 0
  %7396 = vmatmul.mubr.bf16.gmra.mxu0 %v6809
  %v7397 = vpop.f32.mrf.mxu0
  %v7398 = vadd.f32 0.0, %v7397
  %v7399 = vpop.f32.mrf.mxu0
  %v7400 = vpop.f32.mrf.mxu0
  %v7401 = vadd.f32 0.0, %v7400
  %v7402 = vpop.f32.mrf.mxu0
  %7403 = vmatprep.mubr.bf16.mxu0 0
  %7404 = vmatmul.mubr.bf16.gmra.mxu0 %v6812
  %v7405 = vpop.f32.mrf.mxu0
  %v7406 = vadd.f32 0.0, %v7405
  %v7407 = vpop.f32.mrf.mxu0
  %v7408 = vpop.f32.mrf.mxu0
  %v7409 = vadd.f32 0.0, %v7408
  %v7410 = vpop.f32.mrf.mxu0
  %7411 = vmatprep.mubr.bf16.mxu0 0
  %7412 = vmatmul.mubr.bf16.gmra.mxu0 %v6815
  %v7413 = vpop.f32.mrf.mxu0
  %v7414 = vadd.f32 0.0, %v7413
  %v7415 = vpop.f32.mrf.mxu0
  %v7416 = vpop.f32.mrf.mxu0
  %v7417 = vadd.f32 0.0, %v7416
  %v7418 = vpop.f32.mrf.mxu0
  %7419 = vmatprep.mubr.bf16.mxu0 0
  %7420 = vmatmul.mubr.bf16.gmra.mxu0 %v6818
  %v7421 = vpop.f32.mrf.mxu0
  %v7422 = vadd.f32 0.0, %v7421
  %v7423 = vpop.f32.mrf.mxu0
  %v7424 = vpop.f32.mrf.mxu0
  %v7425 = vadd.f32 0.0, %v7424
  %v7426 = vpop.f32.mrf.mxu0
  %7427 = vmatprep.mubr.bf16.mxu0 0
  %7428 = vmatmul.mubr.bf16.gmra.mxu0 %v6821
  %v7429 = vpop.f32.mrf.mxu0
  %v7430 = vadd.f32 0.0, %v7429
  %v7431 = vpop.f32.mrf.mxu0
  %v7432 = vpop.f32.mrf.mxu0
  %v7433 = vadd.f32 0.0, %v7432
  %v7434 = vpop.f32.mrf.mxu0
  %7435 = vmatprep.mubr.bf16.mxu0 0
  %7436 = vmatmul.mubr.bf16.gmra.mxu0 %v6824
  %v7437 = vpop.f32.mrf.mxu0
  %v7438 = vadd.f32 0.0, %v7437
  %v7439 = vpop.f32.mrf.mxu0
  %v7440 = vpop.f32.mrf.mxu0
  %v7441 = vadd.f32 0.0, %v7440
  %v7442 = vpop.f32.mrf.mxu0
  %7443 = vmatprep.mubr.bf16.mxu0 0
  %7444 = vmatmul.mubr.bf16.gmra.mxu0 %v6827
  %v7445 = vpop.f32.mrf.mxu0
  %v7446 = vadd.f32 0.0, %v7445
  %v7447 = vpop.f32.mrf.mxu0
  %v7448 = vpop.f32.mrf.mxu0
  %v7449 = vadd.f32 0.0, %v7448
  %v7450 = vpop.f32.mrf.mxu0
  %7451 = vmatprep.mubr.bf16.mxu0 0
  %7452 = vmatmul.mubr.bf16.gmra.mxu0 %v6830
  %v7453 = vpop.f32.mrf.mxu0
  %v7454 = vadd.f32 0.0, %v7453
  %v7455 = vpop.f32.mrf.mxu0
  %v7456 = vpop.f32.mrf.mxu0
  %v7457 = vadd.f32 0.0, %v7456
  %v7458 = vpop.f32.mrf.mxu0
  %7459 = vmatprep.mubr.bf16.mxu0 0
  %7460 = vmatmul.mubr.bf16.gmra.mxu0 %v6833
  %v7461 = vpop.f32.mrf.mxu0
  %v7462 = vadd.f32 0.0, %v7461
  %v7463 = vpop.f32.mrf.mxu0
  %v7464 = vpop.f32.mrf.mxu0
  %v7465 = vadd.f32 0.0, %v7464
  %v7466 = vpop.f32.mrf.mxu0
  %7467 = vmatprep.mubr.bf16.mxu0 0
  %7468 = vmatmul.mubr.bf16.gmra.mxu0 %v6836
  %v7469 = vpop.f32.mrf.mxu0
  %v7470 = vadd.f32 0.0, %v7469
  %v7471 = vpop.f32.mrf.mxu0
  %v7472 = vpop.f32.mrf.mxu0
  %v7473 = vadd.f32 0.0, %v7472
  %v7474 = vpop.f32.mrf.mxu0
  %7475 = vmatprep.mubr.bf16.mxu0 0
  %7476 = vmatmul.mubr.bf16.gmra.mxu0 %v6839
  %v7477 = vpop.f32.mrf.mxu0
  %v7478 = vadd.f32 0.0, %v7477
  %v7479 = vpop.f32.mrf.mxu0
  %v7480 = vpop.f32.mrf.mxu0
  %v7481 = vadd.f32 0.0, %v7480
  %v7482 = vpop.f32.mrf.mxu0
  %7483 = vmatprep.mubr.bf16.mxu0 0
  %7484 = vmatmul.mubr.bf16.gmra.mxu0 %v6842
  %v7485 = vpop.f32.mrf.mxu0
  %v7486 = vadd.f32 0.0, %v7485
  %v7487 = vpop.f32.mrf.mxu0
  %v7488 = vpop.f32.mrf.mxu0
  %v7489 = vadd.f32 0.0, %v7488
  %v7490 = vpop.f32.mrf.mxu0
  %7491 = vmatprep.mubr.bf16.mxu0 0
  %7492 = vmatmul.mubr.bf16.gmra.mxu0 %v6845
  %v7493 = vpop.f32.mrf.mxu0
  %v7494 = vadd.f32 0.0, %v7493
  %v7495 = vpop.f32.mrf.mxu0
  %v7496 = vpop.f32.mrf.mxu0
  %v7497 = vadd.f32 0.0, %v7496
  %v7498 = vpop.f32.mrf.mxu0
  %7499 = vmatprep.mubr.bf16.mxu0 0
  %7500 = vmatmul.mubr.bf16.gmra.mxu0 %v6848
  %v7501 = vpop.f32.mrf.mxu0
  %v7502 = vadd.f32 0.0, %v7501
  %v7503 = vpop.f32.mrf.mxu0
  %v7504 = vpop.f32.mrf.mxu0
  %v7505 = vadd.f32 0.0, %v7504
  %v7506 = vpop.f32.mrf.mxu0
  %7507 = vmatprep.mubr.bf16.mxu0 0
  %7508 = vmatmul.mubr.bf16.gmra.mxu0 %v6851
  %v7509 = vpop.f32.mrf.mxu0
  %v7510 = vadd.f32 0.0, %v7509
  %v7511 = vpop.f32.mrf.mxu0
  %v7512 = vpop.f32.mrf.mxu0
  %v7513 = vadd.f32 0.0, %v7512
  %v7514 = vpop.f32.mrf.mxu0
  %7515 = vmatprep.mubr.bf16.mxu0 0
  %7516 = vmatmul.mubr.bf16.gmra.mxu0 %v6854
  %v7517 = vpop.f32.mrf.mxu0
  %v7518 = vadd.f32 0.0, %v7517
  %v7519 = vpop.f32.mrf.mxu0
  %v7520 = vpop.f32.mrf.mxu0
  %v7521 = vadd.f32 0.0, %v7520
  %v7522 = vpop.f32.mrf.mxu0
  %7523 = vmatprep.mubr.bf16.mxu0 0
  %7524 = vmatmul.mubr.bf16.gmra.mxu0 %v6857
  %v7525 = vpop.f32.mrf.mxu0
  %v7526 = vadd.f32 0.0, %v7525
  %v7527 = vpop.f32.mrf.mxu0
  %v7528 = vpop.f32.mrf.mxu0
  %v7529 = vadd.f32 0.0, %v7528
  %v7530 = vpop.f32.mrf.mxu0
  %7531 = vmatprep.mubr.bf16.mxu0 0
  %7532 = vmatmul.mubr.bf16.gmra.mxu0 %v6860
  %v7533 = vpop.f32.mrf.mxu0
  %v7534 = vadd.f32 0.0, %v7533
  %v7535 = vpop.f32.mrf.mxu0
  %v7536 = vpop.f32.mrf.mxu0
  %v7537 = vadd.f32 0.0, %v7536
  %v7538 = vpop.f32.mrf.mxu0
  %7539 = vmatprep.mubr.bf16.mxu0 0
  %7540 = vmatmul.mubr.bf16.gmra.mxu0 %v6863
  %v7541 = vpop.f32.mrf.mxu0
  %v7542 = vadd.f32 0.0, %v7541
  %v7543 = vpop.f32.mrf.mxu0
  %v7544 = vpop.f32.mrf.mxu0
  %v7545 = vadd.f32 0.0, %v7544
  %v7546 = vpop.f32.mrf.mxu0
  %7547 = vmatprep.mubr.bf16.mxu0 0
  %7548 = vmatmul.mubr.bf16.gmra.mxu0 %v6866
  %v7549 = vpop.f32.mrf.mxu0
  %v7550 = vadd.f32 0.0, %v7549
  %v7551 = vpop.f32.mrf.mxu0
  %v7552 = vpop.f32.mrf.mxu0
  %v7553 = vadd.f32 0.0, %v7552
  %v7554 = vpop.f32.mrf.mxu0
  %7555 = vmatprep.mubr.bf16.mxu0 0
  %7556 = vmatmul.mubr.bf16.gmra.mxu0 %v6869
  %v7557 = vpop.f32.mrf.mxu0
  %v7558 = vadd.f32 0.0, %v7557
  %v7559 = vpop.f32.mrf.mxu0
  %v7560 = vpop.f32.mrf.mxu0
  %v7561 = vadd.f32 0.0, %v7560
  %v7562 = vpop.f32.mrf.mxu0
  %7563 = vmatprep.mubr.bf16.mxu0 0
  %7564 = vmatmul.mubr.bf16.gmra.mxu0 %v6872
  %v7565 = vpop.f32.mrf.mxu0
  %v7566 = vadd.f32 0.0, %v7565
  %v7567 = vpop.f32.mrf.mxu0
  %v7568 = vpop.f32.mrf.mxu0
  %v7569 = vadd.f32 0.0, %v7568
  %v7570 = vpop.f32.mrf.mxu0
  %7571 = vmatprep.mubr.bf16.mxu0 0
  %7572 = vmatmul.mubr.bf16.gmra.mxu0 %v6875
  %v7573 = vpop.f32.mrf.mxu0
  %v7574 = vadd.f32 0.0, %v7573
  %v7575 = vpop.f32.mrf.mxu0
  %v7576 = vpop.f32.mrf.mxu0
  %v7577 = vadd.f32 0.0, %v7576
  %v7578 = vpop.f32.mrf.mxu0
  %7579 = vmatprep.mubr.bf16.mxu0 0
  %7580 = vmatmul.mubr.bf16.gmra.mxu0 %v6878
  %v7581 = vpop.f32.mrf.mxu0
  %v7582 = vadd.f32 0.0, %v7581
  %v7583 = vpop.f32.mrf.mxu0
  %v7584 = vpop.f32.mrf.mxu0
  %v7585 = vadd.f32 0.0, %v7584
  %v7586 = vpop.f32.mrf.mxu0
  %7587 = vmatprep.mubr.bf16.mxu0 0
  %7588 = vmatmul.mubr.bf16.gmra.mxu0 %v6881
  %v7589 = vpop.f32.mrf.mxu0
  %v7590 = vadd.f32 0.0, %v7589
  %v7591 = vpop.f32.mrf.mxu0
  %v7592 = vpop.f32.mrf.mxu0
  %v7593 = vadd.f32 0.0, %v7592
  %v7594 = vpop.f32.mrf.mxu0
  %7595 = vmatprep.mubr.bf16.mxu0 0
  %7596 = vmatmul.mubr.bf16.gmra.mxu0 %v6884
  %v7597 = vpop.f32.mrf.mxu0
  %v7598 = vadd.f32 0.0, %v7597
  %v7599 = vpop.f32.mrf.mxu0
  %v7600 = vpop.f32.mrf.mxu0
  %v7601 = vadd.f32 0.0, %v7600
  %v7602 = vpop.f32.mrf.mxu0
  %7603 = vmatprep.mubr.bf16.mxu0 0
  %7604 = vmatmul.mubr.bf16.gmra.mxu0 %v6887
  %v7605 = vpop.f32.mrf.mxu0
  %v7606 = vadd.f32 0.0, %v7605
  %v7607 = vpop.f32.mrf.mxu0
  %v7608 = vpop.f32.mrf.mxu0
  %v7609 = vadd.f32 0.0, %v7608
  %v7610 = vpop.f32.mrf.mxu0
  %7611 = vmatprep.mubr.bf16.mxu0 0
  %7612 = vmatmul.mubr.bf16.gmra.mxu0 %v6890
  %v7613 = vpop.f32.mrf.mxu0
  %v7614 = vadd.f32 0.0, %v7613
  %v7615 = vpop.f32.mrf.mxu0
  %v7616 = vpop.f32.mrf.mxu0
  %v7617 = vadd.f32 0.0, %v7616
  %v7618 = vpop.f32.mrf.mxu0
  %7619 = vmatprep.mubr.bf16.mxu0 0
  %7620 = vmatmul.mubr.bf16.gmra.mxu0 %v6893
  %v7621 = vpop.f32.mrf.mxu0
  %v7622 = vadd.f32 0.0, %v7621
  %v7623 = vpop.f32.mrf.mxu0
  %v7624 = vpop.f32.mrf.mxu0
  %v7625 = vadd.f32 0.0, %v7624
  %v7626 = vpop.f32.mrf.mxu0
  %7627 = vmatprep.mubr.bf16.mxu0 0
  %7628 = vmatmul.mubr.bf16.gmra.mxu0 %v6896
  %v7629 = vpop.f32.mrf.mxu0
  %v7630 = vadd.f32 0.0, %v7629
  %v7631 = vpop.f32.mrf.mxu0
  %v7632 = vpop.f32.mrf.mxu0
  %v7633 = vadd.f32 0.0, %v7632
  %v7634 = vpop.f32.mrf.mxu0
  %7635 = vmatprep.mubr.bf16.mxu0 0
  %7636 = vmatmul.mubr.bf16.gmra.mxu0 %v6899
  %v7637 = vpop.f32.mrf.mxu0
  %v7638 = vadd.f32 0.0, %v7637
  %v7639 = vpop.f32.mrf.mxu0
  %v7640 = vpop.f32.mrf.mxu0
  %v7641 = vadd.f32 0.0, %v7640
  %v7642 = vpop.f32.mrf.mxu0
  %7643 = vmatprep.mubr.bf16.mxu0 0
  %7644 = vmatmul.mubr.bf16.gmra.mxu0 %v6902
  %v7645 = vpop.f32.mrf.mxu0
  %v7646 = vadd.f32 0.0, %v7645
  %v7647 = vpop.f32.mrf.mxu0
  %v7648 = vpop.f32.mrf.mxu0
  %v7649 = vadd.f32 0.0, %v7648
  %v7650 = vpop.f32.mrf.mxu0
  %7651 = vmatprep.mubr.bf16.mxu0 0
  %7652 = vmatmul.mubr.bf16.gmra.mxu0 %v6905
  %v7653 = vpop.f32.mrf.mxu0
  %v7654 = vadd.f32 0.0, %v7653
  %v7655 = vpop.f32.mrf.mxu0
  %v7656 = vpop.f32.mrf.mxu0
  %v7657 = vadd.f32 0.0, %v7656
  %v7658 = vpop.f32.mrf.mxu0
  %7659 = vmatprep.mubr.bf16.mxu0 0
  %7660 = vmatmul.mubr.bf16.gmra.mxu0 %v6908
  %v7661 = vpop.f32.mrf.mxu0
  %v7662 = vadd.f32 0.0, %v7661
  %v7663 = vpop.f32.mrf.mxu0
  %v7664 = vpop.f32.mrf.mxu0
  %v7665 = vadd.f32 0.0, %v7664
  %v7666 = vpop.f32.mrf.mxu0
  %7667 = vmatprep.mubr.bf16.mxu0 0
  %7668 = vmatmul.mubr.bf16.gmra.mxu0 %v6911
  %v7669 = vpop.f32.mrf.mxu0
  %v7670 = vadd.f32 0.0, %v7669
  %v7671 = vpop.f32.mrf.mxu0
  %v7672 = vpop.f32.mrf.mxu0
  %v7673 = vadd.f32 0.0, %v7672
  %v7674 = vpop.f32.mrf.mxu0
  %7675 = vmatprep.mubr.bf16.mxu0 0
  %7676 = vmatmul.mubr.bf16.gmra.mxu0 %v6914
  %v7677 = vpop.f32.mrf.mxu0
  %v7678 = vadd.f32 0.0, %v7677
  %v7679 = vpop.f32.mrf.mxu0
  %v7680 = vpop.f32.mrf.mxu0
  %v7681 = vadd.f32 0.0, %v7680
  %v7682 = vpop.f32.mrf.mxu0
  %7683 = vmatprep.mubr.bf16.mxu0 0
  %7684 = vmatmul.mubr.bf16.gmra.mxu0 %v6917
  %v7685 = vpop.f32.mrf.mxu0
  %v7686 = vadd.f32 0.0, %v7685
  %v7687 = vpop.f32.mrf.mxu0
  %v7688 = vpop.f32.mrf.mxu0
  %v7689 = vadd.f32 0.0, %v7688
  %v7690 = vpop.f32.mrf.mxu0
  %7691 = vmatprep.mubr.bf16.mxu0 0
  %7692 = vmatmul.mubr.bf16.gmra.mxu0 %v6920
  %v7693 = vpop.f32.mrf.mxu0
  %v7694 = vadd.f32 0.0, %v7693
  %v7695 = vpop.f32.mrf.mxu0
  %v7696 = vpop.f32.mrf.mxu0
  %v7697 = vadd.f32 0.0, %v7696
  %v7698 = vpop.f32.mrf.mxu0
  %7699 = vmatprep.mubr.bf16.mxu0 0
  %7700 = vmatmul.mubr.bf16.gmra.mxu0 %v6923
  %v7701 = vpop.f32.mrf.mxu0
  %v7702 = vadd.f32 0.0, %v7701
  %v7703 = vpop.f32.mrf.mxu0
  %v7704 = vpop.f32.mrf.mxu0
  %v7705 = vadd.f32 0.0, %v7704
  %v7706 = vpop.f32.mrf.mxu0
  %7707 = vmatprep.mubr.bf16.mxu0 0
  %7708 = vmatmul.mubr.bf16.gmra.mxu0 %v6926
  %v7709 = vpop.f32.mrf.mxu0
  %v7710 = vadd.f32 0.0, %v7709
  %v7711 = vpop.f32.mrf.mxu0
  %v7712 = vpop.f32.mrf.mxu0
  %v7713 = vadd.f32 0.0, %v7712
  %v7714 = vpop.f32.mrf.mxu0
  %7715 = vmatprep.mubr.bf16.mxu0 0
  %7716 = vmatmul.mubr.bf16.gmra.mxu0 %v6929
  %v7717 = vpop.f32.mrf.mxu0
  %v7718 = vadd.f32 0.0, %v7717
  %v7719 = vpop.f32.mrf.mxu0
  %v7720 = vpop.f32.mrf.mxu0
  %v7721 = vadd.f32 0.0, %v7720
  %v7722 = vpop.f32.mrf.mxu0
  %7723 = vmatprep.mubr.bf16.mxu0 0
  %7724 = vmatmul.mubr.bf16.gmra.mxu0 %v6932
  %v7725 = vpop.f32.mrf.mxu0
  %v7726 = vadd.f32 0.0, %v7725
  %v7727 = vpop.f32.mrf.mxu0
  %v7728 = vpop.f32.mrf.mxu0
  %v7729 = vadd.f32 0.0, %v7728
  %v7730 = vpop.f32.mrf.mxu0
  %7731 = vmatprep.mubr.bf16.mxu0 0
  %7732 = vmatmul.mubr.bf16.gmra.mxu0 %v6935
  %v7733 = vpop.f32.mrf.mxu0
  %v7734 = vadd.f32 0.0, %v7733
  %v7735 = vpop.f32.mrf.mxu0
  %v7736 = vpop.f32.mrf.mxu0
  %v7737 = vadd.f32 0.0, %v7736
  %v7738 = vpop.f32.mrf.mxu0
  %7739 = vmatprep.mubr.bf16.mxu0 0
  %7740 = vmatmul.mubr.bf16.gmra.mxu0 %v6938
  %v7741 = vpop.f32.mrf.mxu0
  %v7742 = vadd.f32 0.0, %v7741
  %v7743 = vpop.f32.mrf.mxu0
  %v7744 = vpop.f32.mrf.mxu0
  %v7745 = vadd.f32 0.0, %v7744
  %v7746 = vpop.f32.mrf.mxu0
  %7747 = vmatprep.mubr.bf16.mxu0 0
  %7748 = vmatmul.mubr.bf16.gmra.mxu0 %v6941
  %v7749 = vpop.f32.mrf.mxu0
  %v7750 = vadd.f32 0.0, %v7749
  %v7751 = vpop.f32.mrf.mxu0
  %v7752 = vpop.f32.mrf.mxu0
  %v7753 = vadd.f32 0.0, %v7752
  %v7754 = vpop.f32.mrf.mxu0
  %7755 = vmatprep.mubr.bf16.mxu0 0
  %7756 = vmatmul.mubr.bf16.gmra.mxu0 %v6944
  %v7757 = vpop.f32.mrf.mxu0
  %v7758 = vadd.f32 0.0, %v7757
  %v7759 = vpop.f32.mrf.mxu0
  %v7760 = vpop.f32.mrf.mxu0
  %v7761 = vadd.f32 0.0, %v7760
  %v7762 = vpop.f32.mrf.mxu0
  %7763 = vmatprep.mubr.bf16.mxu0 0
  %7764 = vmatmul.mubr.bf16.gmra.mxu0 %v6947
  %v7765 = vpop.f32.mrf.mxu0
  %v7766 = vadd.f32 0.0, %v7765
  %v7767 = vpop.f32.mrf.mxu0
  %v7768 = vpop.f32.mrf.mxu0
  %v7769 = vadd.f32 0.0, %v7768
  %v7770 = vpop.f32.mrf.mxu0
  %7771 = vmatprep.mubr.bf16.mxu0 0
  %7772 = vmatmul.mubr.bf16.gmra.mxu0 %v6950
  %v7773 = vpop.f32.mrf.mxu0
  %v7774 = vadd.f32 0.0, %v7773
  %v7775 = vpop.f32.mrf.mxu0
  %v7776 = vpop.f32.mrf.mxu0
  %v7777 = vadd.f32 0.0, %v7776
  %v7778 = vpop.f32.mrf.mxu0
  %7779 = vmatprep.mubr.bf16.mxu0 0
  %7780 = vmatmul.mubr.bf16.gmra.mxu0 %v6953
  %v7781 = vpop.f32.mrf.mxu0
  %v7782 = vadd.f32 0.0, %v7781
  %v7783 = vpop.f32.mrf.mxu0
  %v7784 = vpop.f32.mrf.mxu0
  %v7785 = vadd.f32 0.0, %v7784
  %v7786 = vpop.f32.mrf.mxu0
  %7787 = vdwg.mxu0
  %v7788 = vmax.f32 %v5755, %v6990
  %v7789 = vmax.f32 %v5756, %v6993
  %v7790 = vmax.f32 %v5757, %v6998
  %v7791 = vmax.f32 %v5758, %v7001
  %v7792 = vmax.f32 %v5759, %v7006
  %v7793 = vmax.f32 %v5760, %v7009
  %v7794 = vmax.f32 %v5761, %v7014
  %v7795 = vmax.f32 %v5762, %v7017
  %v7796 = vmax.f32 %v5763, %v7022
  %v7797 = vmax.f32 %v5764, %v7025
  %v7798 = vmax.f32 %v5765, %v7030
  %v7799 = vmax.f32 %v5766, %v7033
  %v7800 = vmax.f32 %v5767, %v7038
  %v7801 = vmax.f32 %v5768, %v7041
  %v7802 = vmax.f32 %v5769, %v7046
  %v7803 = vmax.f32 %v5770, %v7049
  %v7804 = vmax.f32 %v5771, %v7054
  %v7805 = vmax.f32 %v5772, %v7057
  %v7806 = vmax.f32 %v5773, %v7062
  %v7807 = vmax.f32 %v5774, %v7065
  %v7808 = vmax.f32 %v5775, %v7070
  %v7809 = vmax.f32 %v5776, %v7073
  %v7810 = vmax.f32 %v5777, %v7078
  %v7811 = vmax.f32 %v5778, %v7081
  %v7812 = vmax.f32 %v5779, %v7086
  %v7813 = vmax.f32 %v5780, %v7089
  %v7814 = vmax.f32 %v5781, %v7094
  %v7815 = vmax.f32 %v5782, %v7097
  %v7816 = vmax.f32 %v5783, %v7102
  %v7817 = vmax.f32 %v5784, %v7105
  %v7818 = vmax.f32 %v5785, %v7110
  %v7819 = vmax.f32 %v5786, %v7113
  %v7820 = vmax.f32 %v5787, %v7118
  %v7821 = vmax.f32 %v5788, %v7121
  %v7822 = vmax.f32 %v5789, %v7126
  %v7823 = vmax.f32 %v5790, %v7129
  %v7824 = vmax.f32 %v5791, %v7134
  %v7825 = vmax.f32 %v5792, %v7137
  %v7826 = vmax.f32 %v5793, %v7142
  %v7827 = vmax.f32 %v5794, %v7145
  %v7828 = vmax.f32 %v5795, %v7150
  %v7829 = vmax.f32 %v5796, %v7153
  %v7830 = vmax.f32 %v5797, %v7158
  %v7831 = vmax.f32 %v5798, %v7161
  %v7832 = vmax.f32 %v5799, %v7166
  %v7833 = vmax.f32 %v5800, %v7169
  %v7834 = vmax.f32 %v5801, %v7174
  %v7835 = vmax.f32 %v5802, %v7177
  %v7836 = vmax.f32 %v5803, %v7182
  %v7837 = vmax.f32 %v5804, %v7185
  %v7838 = vmax.f32 %v5805, %v7190
  %v7839 = vmax.f32 %v5806, %v7193
  %v7840 = vmax.f32 %v5807, %v7198
  %v7841 = vmax.f32 %v5808, %v7201
  %v7842 = vmax.f32 %v5809, %v7206
  %v7843 = vmax.f32 %v5810, %v7209
  %v7844 = vmax.f32 %v5811, %v7214
  %v7845 = vmax.f32 %v5812, %v7217
  %v7846 = vmax.f32 %v5813, %v7222
  %v7847 = vmax.f32 %v5814, %v7225
  %v7848 = vmax.f32 %v5815, %v7230
  %v7849 = vmax.f32 %v5816, %v7233
  %v7850 = vmax.f32 %v5817, %v7238
  %v7851 = vmax.f32 %v5818, %v7241
  %v7852 = vmax.f32 %v5819, %v7246
  %v7853 = vmax.f32 %v5820, %v7249
  %v7854 = vmax.f32 %v5821, %v7254
  %v7855 = vmax.f32 %v5822, %v7257
  %v7856 = vmax.f32 %v5823, %v7262
  %v7857 = vmax.f32 %v5824, %v7265
  %v7858 = vmax.f32 %v5825, %v7270
  %v7859 = vmax.f32 %v5826, %v7273
  %v7860 = vmax.f32 %v5827, %v7278
  %v7861 = vmax.f32 %v5828, %v7281
  %v7862 = vmax.f32 %v5829, %v7286
  %v7863 = vmax.f32 %v5830, %v7289
  %v7864 = vmax.f32 %v5831, %v7294
  %v7865 = vmax.f32 %v5832, %v7297
  %v7866 = vmax.f32 %v5833, %v7302
  %v7867 = vmax.f32 %v5834, %v7305
  %v7868 = vmax.f32 %v5835, %v7310
  %v7869 = vmax.f32 %v5836, %v7313
  %v7870 = vmax.f32 %v5837, %v7318
  %v7871 = vmax.f32 %v5838, %v7321
  %v7872 = vmax.f32 %v5839, %v7326
  %v7873 = vmax.f32 %v5840, %v7329
  %v7874 = vmax.f32 %v5841, %v7334
  %v7875 = vmax.f32 %v5842, %v7337
  %v7876 = vmax.f32 %v5843, %v7342
  %v7877 = vmax.f32 %v5844, %v7345
  %v7878 = vmax.f32 %v5845, %v7350
  %v7879 = vmax.f32 %v5846, %v7353
  %v7880 = vmax.f32 %v5847, %v7358
  %v7881 = vmax.f32 %v5848, %v7361
  %v7882 = vmax.f32 %v5849, %v7366
  %v7883 = vmax.f32 %v5850, %v7369
  %v7884 = vmax.f32 %v5851, %v7374
  %v7885 = vmax.f32 %v5852, %v7377
  %v7886 = vmax.f32 %v5853, %v7382
  %v7887 = vmax.f32 %v5854, %v7385
  %v7888 = vmax.f32 %v5855, %v7390
  %v7889 = vmax.f32 %v5856, %v7393
  %v7890 = vmax.f32 %v5857, %v7398
  %v7891 = vmax.f32 %v5858, %v7401
  %v7892 = vmax.f32 %v5859, %v7406
  %v7893 = vmax.f32 %v5860, %v7409
  %v7894 = vmax.f32 %v5861, %v7414
  %v7895 = vmax.f32 %v5862, %v7417
  %v7896 = vmax.f32 %v5863, %v7422
  %v7897 = vmax.f32 %v5864, %v7425
  %v7898 = vmax.f32 %v5865, %v7430
  %v7899 = vmax.f32 %v5866, %v7433
  %v7900 = vmax.f32 %v5867, %v7438
  %v7901 = vmax.f32 %v5868, %v7441
  %v7902 = vmax.f32 %v5869, %v7446
  %v7903 = vmax.f32 %v5870, %v7449
  %v7904 = vmax.f32 %v5871, %v7454
  %v7905 = vmax.f32 %v5872, %v7457
  %v7906 = vmax.f32 %v5873, %v7462
  %v7907 = vmax.f32 %v5874, %v7465
  %v7908 = vmax.f32 %v5875, %v7470
  %v7909 = vmax.f32 %v5876, %v7473
  %v7910 = vmax.f32 %v5877, %v7478
  %v7911 = vmax.f32 %v5878, %v7481
  %v7912 = vmax.f32 %v5879, %v7486
  %v7913 = vmax.f32 %v5880, %v7489
  %v7914 = vmax.f32 %v5881, %v7494
  %v7915 = vmax.f32 %v5882, %v7497
  %v7916 = vmax.f32 %v5883, %v7502
  %v7917 = vmax.f32 %v5884, %v7505
  %v7918 = vmax.f32 %v5885, %v7510
  %v7919 = vmax.f32 %v5886, %v7513
  %v7920 = vmax.f32 %v5887, %v7518
  %v7921 = vmax.f32 %v5888, %v7521
  %v7922 = vmax.f32 %v5889, %v7526
  %v7923 = vmax.f32 %v5890, %v7529
  %v7924 = vmax.f32 %v5891, %v7534
  %v7925 = vmax.f32 %v5892, %v7537
  %v7926 = vmax.f32 %v5893, %v7542
  %v7927 = vmax.f32 %v5894, %v7545
  %v7928 = vmax.f32 %v5895, %v7550
  %v7929 = vmax.f32 %v5896, %v7553
  %v7930 = vmax.f32 %v5897, %v7558
  %v7931 = vmax.f32 %v5898, %v7561
  %v7932 = vmax.f32 %v5899, %v7566
  %v7933 = vmax.f32 %v5900, %v7569
  %v7934 = vmax.f32 %v5901, %v7574
  %v7935 = vmax.f32 %v5902, %v7577
  %v7936 = vmax.f32 %v5903, %v7582
  %v7937 = vmax.f32 %v5904, %v7585
  %v7938 = vmax.f32 %v5905, %v7590
  %v7939 = vmax.f32 %v5906, %v7593
  %v7940 = vmax.f32 %v5907, %v7598
  %v7941 = vmax.f32 %v5908, %v7601
  %v7942 = vmax.f32 %v5909, %v7606
  %v7943 = vmax.f32 %v5910, %v7609
  %v7944 = vmax.f32 %v5911, %v7614
  %v7945 = vmax.f32 %v5912, %v7617
  %v7946 = vmax.f32 %v5913, %v7622
  %v7947 = vmax.f32 %v5914, %v7625
  %v7948 = vmax.f32 %v5915, %v7630
  %v7949 = vmax.f32 %v5916, %v7633
  %v7950 = vmax.f32 %v5917, %v7638
  %v7951 = vmax.f32 %v5918, %v7641
  %v7952 = vmax.f32 %v5919, %v7646
  %v7953 = vmax.f32 %v5920, %v7649
  %v7954 = vmax.f32 %v5921, %v7654
  %v7955 = vmax.f32 %v5922, %v7657
  %v7956 = vmax.f32 %v5923, %v7662
  %v7957 = vmax.f32 %v5924, %v7665
  %v7958 = vmax.f32 %v5925, %v7670
  %v7959 = vmax.f32 %v5926, %v7673
  %v7960 = vmax.f32 %v5927, %v7678
  %v7961 = vmax.f32 %v5928, %v7681
  %v7962 = vmax.f32 %v5929, %v7686
  %v7963 = vmax.f32 %v5930, %v7689
  %v7964 = vmax.f32 %v5931, %v7694
  %v7965 = vmax.f32 %v5932, %v7697
  %v7966 = vmax.f32 %v5933, %v7702
  %v7967 = vmax.f32 %v5934, %v7705
  %v7968 = vmax.f32 %v5935, %v7710
  %v7969 = vmax.f32 %v5936, %v7713
  %v7970 = vmax.f32 %v5937, %v7718
  %v7971 = vmax.f32 %v5938, %v7721
  %v7972 = vmax.f32 %v5939, %v7726
  %v7973 = vmax.f32 %v5940, %v7729
  %v7974 = vmax.f32 %v5941, %v7734
  %v7975 = vmax.f32 %v5942, %v7737
  %v7976 = vmax.f32 %v5943, %v7742
  %v7977 = vmax.f32 %v5944, %v7745
  %v7978 = vmax.f32 %v5945, %v7750
  %v7979 = vmax.f32 %v5946, %v7753
  %v7980 = vmax.f32 %v5947, %v7758
  %v7981 = vmax.f32 %v5948, %v7761
  %v7982 = vmax.f32 %v5949, %v7766
  %v7983 = vmax.f32 %v5950, %v7769
  %v7984 = vmax.f32 %v5951, %v7774
  %v7985 = vmax.f32 %v5952, %v7777
  %v7986 = vmax.f32 %v5953, %v7782
  %v7987 = vmax.f32 %v5954, %v7785
  %v7988 = vld [vmem:[%s2] sm:$0x1]
  %v7990 = vlaneseq
  %v7991 = vshrl.u32 %v7990, 7
  %v7992 = vsub.s32 0, %v7991
  %v7993 = vrot.slane %v7988, %v7992
  %v7995 = vadd.f32 %v7788, %v7993
  %v7996 = vadd.f32 %v7789, %v7993
  %v7997 = vadd.f32 %v7790, %v7993
  %v7998 = vadd.f32 %v7791, %v7993
  %v7999 = vadd.f32 %v7792, %v7993
  %v8000 = vadd.f32 %v7793, %v7993
  %v8001 = vadd.f32 %v7794, %v7993
  %v8002 = vadd.f32 %v7795, %v7993
  %v8003 = vadd.f32 %v7796, %v7993
  %v8004 = vadd.f32 %v7797, %v7993
  %v8005 = vadd.f32 %v7798, %v7993
  %v8006 = vadd.f32 %v7799, %v7993
  %v8007 = vadd.f32 %v7800, %v7993
  %v8008 = vadd.f32 %v7801, %v7993
  %v8009 = vadd.f32 %v7802, %v7993
  %v8010 = vadd.f32 %v7803, %v7993
  %v8011 = vadd.f32 %v7804, %v7993
  %v8012 = vadd.f32 %v7805, %v7993
  %v8013 = vadd.f32 %v7806, %v7993
  %v8014 = vadd.f32 %v7807, %v7993
  %v8015 = vadd.f32 %v7808, %v7993
  %v8016 = vadd.f32 %v7809, %v7993
  %v8017 = vadd.f32 %v7810, %v7993
  %v8018 = vadd.f32 %v7811, %v7993
  %v8019 = vadd.f32 %v7812, %v7993
  %v8020 = vadd.f32 %v7813, %v7993
  %v8021 = vadd.f32 %v7814, %v7993
  %v8022 = vadd.f32 %v7815, %v7993
  %v8023 = vadd.f32 %v7816, %v7993
  %v8024 = vadd.f32 %v7817, %v7993
  %v8025 = vadd.f32 %v7818, %v7993
  %v8026 = vadd.f32 %v7819, %v7993
  %v8027 = vadd.f32 %v7820, %v7993
  %v8028 = vadd.f32 %v7821, %v7993
  %v8029 = vadd.f32 %v7822, %v7993
  %v8030 = vadd.f32 %v7823, %v7993
  %v8031 = vadd.f32 %v7824, %v7993
  %v8032 = vadd.f32 %v7825, %v7993
  %v8033 = vadd.f32 %v7826, %v7993
  %v8034 = vadd.f32 %v7827, %v7993
  %v8035 = vadd.f32 %v7828, %v7993
  %v8036 = vadd.f32 %v7829, %v7993
  %v8037 = vadd.f32 %v7830, %v7993
  %v8038 = vadd.f32 %v7831, %v7993
  %v8039 = vadd.f32 %v7832, %v7993
  %v8040 = vadd.f32 %v7833, %v7993
  %v8041 = vadd.f32 %v7834, %v7993
  %v8042 = vadd.f32 %v7835, %v7993
  %v8043 = vadd.f32 %v7836, %v7993
  %v8044 = vadd.f32 %v7837, %v7993
  %v8045 = vadd.f32 %v7838, %v7993
  %v8046 = vadd.f32 %v7839, %v7993
  %v8047 = vadd.f32 %v7840, %v7993
  %v8048 = vadd.f32 %v7841, %v7993
  %v8049 = vadd.f32 %v7842, %v7993
  %v8050 = vadd.f32 %v7843, %v7993
  %v8051 = vadd.f32 %v7844, %v7993
  %v8052 = vadd.f32 %v7845, %v7993
  %v8053 = vadd.f32 %v7846, %v7993
  %v8054 = vadd.f32 %v7847, %v7993
  %v8055 = vadd.f32 %v7848, %v7993
  %v8056 = vadd.f32 %v7849, %v7993
  %v8057 = vadd.f32 %v7850, %v7993
  %v8058 = vadd.f32 %v7851, %v7993
  %v8059 = vadd.f32 %v7852, %v7993
  %v8060 = vadd.f32 %v7853, %v7993
  %v8061 = vadd.f32 %v7854, %v7993
  %v8062 = vadd.f32 %v7855, %v7993
  %v8063 = vadd.f32 %v7856, %v7993
  %v8064 = vadd.f32 %v7857, %v7993
  %v8065 = vadd.f32 %v7858, %v7993
  %v8066 = vadd.f32 %v7859, %v7993
  %v8067 = vadd.f32 %v7860, %v7993
  %v8068 = vadd.f32 %v7861, %v7993
  %v8069 = vadd.f32 %v7862, %v7993
  %v8070 = vadd.f32 %v7863, %v7993
  %v8071 = vadd.f32 %v7864, %v7993
  %v8072 = vadd.f32 %v7865, %v7993
  %v8073 = vadd.f32 %v7866, %v7993
  %v8074 = vadd.f32 %v7867, %v7993
  %v8075 = vadd.f32 %v7868, %v7993
  %v8076 = vadd.f32 %v7869, %v7993
  %v8077 = vadd.f32 %v7870, %v7993
  %v8078 = vadd.f32 %v7871, %v7993
  %v8079 = vadd.f32 %v7872, %v7993
  %v8080 = vadd.f32 %v7873, %v7993
  %v8081 = vadd.f32 %v7874, %v7993
  %v8082 = vadd.f32 %v7875, %v7993
  %v8083 = vadd.f32 %v7876, %v7993
  %v8084 = vadd.f32 %v7877, %v7993
  %v8085 = vadd.f32 %v7878, %v7993
  %v8086 = vadd.f32 %v7879, %v7993
  %v8087 = vadd.f32 %v7880, %v7993
  %v8088 = vadd.f32 %v7881, %v7993
  %v8089 = vadd.f32 %v7882, %v7993
  %v8090 = vadd.f32 %v7883, %v7993
  %v8091 = vadd.f32 %v7884, %v7993
  %v8092 = vadd.f32 %v7885, %v7993
  %v8093 = vadd.f32 %v7886, %v7993
  %v8094 = vadd.f32 %v7887, %v7993
  %v8095 = vadd.f32 %v7888, %v7993
  %v8096 = vadd.f32 %v7889, %v7993
  %v8097 = vadd.f32 %v7890, %v7993
  %v8098 = vadd.f32 %v7891, %v7993
  %v8099 = vadd.f32 %v7892, %v7993
  %v8100 = vadd.f32 %v7893, %v7993
  %v8101 = vadd.f32 %v7894, %v7993
  %v8102 = vadd.f32 %v7895, %v7993
  %v8103 = vadd.f32 %v7896, %v7993
  %v8104 = vadd.f32 %v7897, %v7993
  %v8105 = vadd.f32 %v7898, %v7993
  %v8106 = vadd.f32 %v7899, %v7993
  %v8107 = vadd.f32 %v7900, %v7993
  %v8108 = vadd.f32 %v7901, %v7993
  %v8109 = vadd.f32 %v7902, %v7993
  %v8110 = vadd.f32 %v7903, %v7993
  %v8111 = vadd.f32 %v7904, %v7993
  %v8112 = vadd.f32 %v7905, %v7993
  %v8113 = vadd.f32 %v7906, %v7993
  %v8114 = vadd.f32 %v7907, %v7993
  %v8115 = vadd.f32 %v7908, %v7993
  %v8116 = vadd.f32 %v7909, %v7993
  %v8117 = vadd.f32 %v7910, %v7993
  %v8118 = vadd.f32 %v7911, %v7993
  %v8119 = vadd.f32 %v7912, %v7993
  %v8120 = vadd.f32 %v7913, %v7993
  %v8121 = vadd.f32 %v7914, %v7993
  %v8122 = vadd.f32 %v7915, %v7993
  %v8123 = vadd.f32 %v7916, %v7993
  %v8124 = vadd.f32 %v7917, %v7993
  %v8125 = vadd.f32 %v7918, %v7993
  %v8126 = vadd.f32 %v7919, %v7993
  %v8127 = vadd.f32 %v7920, %v7993
  %v8128 = vadd.f32 %v7921, %v7993
  %v8129 = vadd.f32 %v7922, %v7993
  %v8130 = vadd.f32 %v7923, %v7993
  %v8131 = vadd.f32 %v7924, %v7993
  %v8132 = vadd.f32 %v7925, %v7993
  %v8133 = vadd.f32 %v7926, %v7993
  %v8134 = vadd.f32 %v7927, %v7993
  %v8135 = vadd.f32 %v7928, %v7993
  %v8136 = vadd.f32 %v7929, %v7993
  %v8137 = vadd.f32 %v7930, %v7993
  %v8138 = vadd.f32 %v7931, %v7993
  %v8139 = vadd.f32 %v7932, %v7993
  %v8140 = vadd.f32 %v7933, %v7993
  %v8141 = vadd.f32 %v7934, %v7993
  %v8142 = vadd.f32 %v7935, %v7993
  %v8143 = vadd.f32 %v7936, %v7993
  %v8144 = vadd.f32 %v7937, %v7993
  %v8145 = vadd.f32 %v7938, %v7993
  %v8146 = vadd.f32 %v7939, %v7993
  %v8147 = vadd.f32 %v7940, %v7993
  %v8148 = vadd.f32 %v7941, %v7993
  %v8149 = vadd.f32 %v7942, %v7993
  %v8150 = vadd.f32 %v7943, %v7993
  %v8151 = vadd.f32 %v7944, %v7993
  %v8152 = vadd.f32 %v7945, %v7993
  %v8153 = vadd.f32 %v7946, %v7993
  %v8154 = vadd.f32 %v7947, %v7993
  %v8155 = vadd.f32 %v7948, %v7993
  %v8156 = vadd.f32 %v7949, %v7993
  %v8157 = vadd.f32 %v7950, %v7993
  %v8158 = vadd.f32 %v7951, %v7993
  %v8159 = vadd.f32 %v7952, %v7993
  %v8160 = vadd.f32 %v7953, %v7993
  %v8161 = vadd.f32 %v7954, %v7993
  %v8162 = vadd.f32 %v7955, %v7993
  %v8163 = vadd.f32 %v7956, %v7993
  %v8164 = vadd.f32 %v7957, %v7993
  %v8165 = vadd.f32 %v7958, %v7993
  %v8166 = vadd.f32 %v7959, %v7993
  %v8167 = vadd.f32 %v7960, %v7993
  %v8168 = vadd.f32 %v7961, %v7993
  %v8169 = vadd.f32 %v7962, %v7993
  %v8170 = vadd.f32 %v7963, %v7993
  %v8171 = vadd.f32 %v7964, %v7993
  %v8172 = vadd.f32 %v7965, %v7993
  %v8173 = vadd.f32 %v7966, %v7993
  %v8174 = vadd.f32 %v7967, %v7993
  %v8175 = vadd.f32 %v7968, %v7993
  %v8176 = vadd.f32 %v7969, %v7993
  %v8177 = vadd.f32 %v7970, %v7993
  %v8178 = vadd.f32 %v7971, %v7993
  %v8179 = vadd.f32 %v7972, %v7993
  %v8180 = vadd.f32 %v7973, %v7993
  %v8181 = vadd.f32 %v7974, %v7993
  %v8182 = vadd.f32 %v7975, %v7993
  %v8183 = vadd.f32 %v7976, %v7993
  %v8184 = vadd.f32 %v7977, %v7993
  %v8185 = vadd.f32 %v7978, %v7993
  %v8186 = vadd.f32 %v7979, %v7993
  %v8187 = vadd.f32 %v7980, %v7993
  %v8188 = vadd.f32 %v7981, %v7993
  %v8189 = vadd.f32 %v7982, %v7993
  %v8190 = vadd.f32 %v7983, %v7993
  %v8191 = vadd.f32 %v7984, %v7993
  %v8192 = vadd.f32 %v7985, %v7993
  %v8193 = vadd.f32 %v7986, %v7993
  %v8194 = vadd.f32 %v7987, %v7993
  %v8195 = vmax.f32 %v7995, 0.0
  %v8196 = vmax.f32 %v7996, 0.0
  %v8197 = vmax.f32 %v7997, 0.0
  %v8198 = vmax.f32 %v7998, 0.0
  %v8199 = vmax.f32 %v7999, 0.0
  %v8200 = vmax.f32 %v8000, 0.0
  %v8201 = vmax.f32 %v8001, 0.0
  %v8202 = vmax.f32 %v8002, 0.0
  %v8203 = vmax.f32 %v8003, 0.0
  %v8204 = vmax.f32 %v8004, 0.0
  %v8205 = vmax.f32 %v8005, 0.0
  %v8206 = vmax.f32 %v8006, 0.0
  %v8207 = vmax.f32 %v8007, 0.0
  %v8208 = vmax.f32 %v8008, 0.0
  %v8209 = vmax.f32 %v8009, 0.0
  %v8210 = vmax.f32 %v8010, 0.0
  %v8211 = vmax.f32 %v8011, 0.0
  %v8212 = vmax.f32 %v8012, 0.0
  %v8213 = vmax.f32 %v8013, 0.0
  %v8214 = vmax.f32 %v8014, 0.0
  %v8215 = vmax.f32 %v8015, 0.0
  %v8216 = vmax.f32 %v8016, 0.0
  %v8217 = vmax.f32 %v8017, 0.0
  %v8218 = vmax.f32 %v8018, 0.0
  %v8219 = vmax.f32 %v8019, 0.0
  %v8220 = vmax.f32 %v8020, 0.0
  %v8221 = vmax.f32 %v8021, 0.0
  %v8222 = vmax.f32 %v8022, 0.0
  %v8223 = vmax.f32 %v8023, 0.0
  %v8224 = vmax.f32 %v8024, 0.0
  %v8225 = vmax.f32 %v8025, 0.0
  %v8226 = vmax.f32 %v8026, 0.0
  %v8227 = vmax.f32 %v8027, 0.0
  %v8228 = vmax.f32 %v8028, 0.0
  %v8229 = vmax.f32 %v8029, 0.0
  %v8230 = vmax.f32 %v8030, 0.0
  %v8231 = vmax.f32 %v8031, 0.0
  %v8232 = vmax.f32 %v8032, 0.0
  %v8233 = vmax.f32 %v8033, 0.0
  %v8234 = vmax.f32 %v8034, 0.0
  %v8235 = vmax.f32 %v8035, 0.0
  %v8236 = vmax.f32 %v8036, 0.0
  %v8237 = vmax.f32 %v8037, 0.0
  %v8238 = vmax.f32 %v8038, 0.0
  %v8239 = vmax.f32 %v8039, 0.0
  %v8240 = vmax.f32 %v8040, 0.0
  %v8241 = vmax.f32 %v8041, 0.0
  %v8242 = vmax.f32 %v8042, 0.0
  %v8243 = vmax.f32 %v8043, 0.0
  %v8244 = vmax.f32 %v8044, 0.0
  %v8245 = vmax.f32 %v8045, 0.0
  %v8246 = vmax.f32 %v8046, 0.0
  %v8247 = vmax.f32 %v8047, 0.0
  %v8248 = vmax.f32 %v8048, 0.0
  %v8249 = vmax.f32 %v8049, 0.0
  %v8250 = vmax.f32 %v8050, 0.0
  %v8251 = vmax.f32 %v8051, 0.0
  %v8252 = vmax.f32 %v8052, 0.0
  %v8253 = vmax.f32 %v8053, 0.0
  %v8254 = vmax.f32 %v8054, 0.0
  %v8255 = vmax.f32 %v8055, 0.0
  %v8256 = vmax.f32 %v8056, 0.0
  %v8257 = vmax.f32 %v8057, 0.0
  %v8258 = vmax.f32 %v8058, 0.0
  %v8259 = vmax.f32 %v8059, 0.0
  %v8260 = vmax.f32 %v8060, 0.0
  %v8261 = vmax.f32 %v8061, 0.0
  %v8262 = vmax.f32 %v8062, 0.0
  %v8263 = vmax.f32 %v8063, 0.0
  %v8264 = vmax.f32 %v8064, 0.0
  %v8265 = vmax.f32 %v8065, 0.0
  %v8266 = vmax.f32 %v8066, 0.0
  %v8267 = vmax.f32 %v8067, 0.0
  %v8268 = vmax.f32 %v8068, 0.0
  %v8269 = vmax.f32 %v8069, 0.0
  %v8270 = vmax.f32 %v8070, 0.0
  %v8271 = vmax.f32 %v8071, 0.0
  %v8272 = vmax.f32 %v8072, 0.0
  %v8273 = vmax.f32 %v8073, 0.0
  %v8274 = vmax.f32 %v8074, 0.0
  %v8275 = vmax.f32 %v8075, 0.0
  %v8276 = vmax.f32 %v8076, 0.0
  %v8277 = vmax.f32 %v8077, 0.0
  %v8278 = vmax.f32 %v8078, 0.0
  %v8279 = vmax.f32 %v8079, 0.0
  %v8280 = vmax.f32 %v8080, 0.0
  %v8281 = vmax.f32 %v8081, 0.0
  %v8282 = vmax.f32 %v8082, 0.0
  %v8283 = vmax.f32 %v8083, 0.0
  %v8284 = vmax.f32 %v8084, 0.0
  %v8285 = vmax.f32 %v8085, 0.0
  %v8286 = vmax.f32 %v8086, 0.0
  %v8287 = vmax.f32 %v8087, 0.0
  %v8288 = vmax.f32 %v8088, 0.0
  %v8289 = vmax.f32 %v8089, 0.0
  %v8290 = vmax.f32 %v8090, 0.0
  %v8291 = vmax.f32 %v8091, 0.0
  %v8292 = vmax.f32 %v8092, 0.0
  %v8293 = vmax.f32 %v8093, 0.0
  %v8294 = vmax.f32 %v8094, 0.0
  %v8295 = vmax.f32 %v8095, 0.0
  %v8296 = vmax.f32 %v8096, 0.0
  %v8297 = vmax.f32 %v8097, 0.0
  %v8298 = vmax.f32 %v8098, 0.0
  %v8299 = vmax.f32 %v8099, 0.0
  %v8300 = vmax.f32 %v8100, 0.0
  %v8301 = vmax.f32 %v8101, 0.0
  %v8302 = vmax.f32 %v8102, 0.0
  %v8303 = vmax.f32 %v8103, 0.0
  %v8304 = vmax.f32 %v8104, 0.0
  %v8305 = vmax.f32 %v8105, 0.0
  %v8306 = vmax.f32 %v8106, 0.0
  %v8307 = vmax.f32 %v8107, 0.0
  %v8308 = vmax.f32 %v8108, 0.0
  %v8309 = vmax.f32 %v8109, 0.0
  %v8310 = vmax.f32 %v8110, 0.0
  %v8311 = vmax.f32 %v8111, 0.0
  %v8312 = vmax.f32 %v8112, 0.0
  %v8313 = vmax.f32 %v8113, 0.0
  %v8314 = vmax.f32 %v8114, 0.0
  %v8315 = vmax.f32 %v8115, 0.0
  %v8316 = vmax.f32 %v8116, 0.0
  %v8317 = vmax.f32 %v8117, 0.0
  %v8318 = vmax.f32 %v8118, 0.0
  %v8319 = vmax.f32 %v8119, 0.0
  %v8320 = vmax.f32 %v8120, 0.0
  %v8321 = vmax.f32 %v8121, 0.0
  %v8322 = vmax.f32 %v8122, 0.0
  %v8323 = vmax.f32 %v8123, 0.0
  %v8324 = vmax.f32 %v8124, 0.0
  %v8325 = vmax.f32 %v8125, 0.0
  %v8326 = vmax.f32 %v8126, 0.0
  %v8327 = vmax.f32 %v8127, 0.0
  %v8328 = vmax.f32 %v8128, 0.0
  %v8329 = vmax.f32 %v8129, 0.0
  %v8330 = vmax.f32 %v8130, 0.0
  %v8331 = vmax.f32 %v8131, 0.0
  %v8332 = vmax.f32 %v8132, 0.0
  %v8333 = vmax.f32 %v8133, 0.0
  %v8334 = vmax.f32 %v8134, 0.0
  %v8335 = vmax.f32 %v8135, 0.0
  %v8336 = vmax.f32 %v8136, 0.0
  %v8337 = vmax.f32 %v8137, 0.0
  %v8338 = vmax.f32 %v8138, 0.0
  %v8339 = vmax.f32 %v8139, 0.0
  %v8340 = vmax.f32 %v8140, 0.0
  %v8341 = vmax.f32 %v8141, 0.0
  %v8342 = vmax.f32 %v8142, 0.0
  %v8343 = vmax.f32 %v8143, 0.0
  %v8344 = vmax.f32 %v8144, 0.0
  %v8345 = vmax.f32 %v8145, 0.0
  %v8346 = vmax.f32 %v8146, 0.0
  %v8347 = vmax.f32 %v8147, 0.0
  %v8348 = vmax.f32 %v8148, 0.0
  %v8349 = vmax.f32 %v8149, 0.0
  %v8350 = vmax.f32 %v8150, 0.0
  %v8351 = vmax.f32 %v8151, 0.0
  %v8352 = vmax.f32 %v8152, 0.0
  %v8353 = vmax.f32 %v8153, 0.0
  %v8354 = vmax.f32 %v8154, 0.0
  %v8355 = vmax.f32 %v8155, 0.0
  %v8356 = vmax.f32 %v8156, 0.0
  %v8357 = vmax.f32 %v8157, 0.0
  %v8358 = vmax.f32 %v8158, 0.0
  %v8359 = vmax.f32 %v8159, 0.0
  %v8360 = vmax.f32 %v8160, 0.0
  %v8361 = vmax.f32 %v8161, 0.0
  %v8362 = vmax.f32 %v8162, 0.0
  %v8363 = vmax.f32 %v8163, 0.0
  %v8364 = vmax.f32 %v8164, 0.0
  %v8365 = vmax.f32 %v8165, 0.0
  %v8366 = vmax.f32 %v8166, 0.0
  %v8367 = vmax.f32 %v8167, 0.0
  %v8368 = vmax.f32 %v8168, 0.0
  %v8369 = vmax.f32 %v8169, 0.0
  %v8370 = vmax.f32 %v8170, 0.0
  %v8371 = vmax.f32 %v8171, 0.0
  %v8372 = vmax.f32 %v8172, 0.0
  %v8373 = vmax.f32 %v8173, 0.0
  %v8374 = vmax.f32 %v8174, 0.0
  %v8375 = vmax.f32 %v8175, 0.0
  %v8376 = vmax.f32 %v8176, 0.0
  %v8377 = vmax.f32 %v8177, 0.0
  %v8378 = vmax.f32 %v8178, 0.0
  %v8379 = vmax.f32 %v8179, 0.0
  %v8380 = vmax.f32 %v8180, 0.0
  %v8381 = vmax.f32 %v8181, 0.0
  %v8382 = vmax.f32 %v8182, 0.0
  %v8383 = vmax.f32 %v8183, 0.0
  %v8384 = vmax.f32 %v8184, 0.0
  %v8385 = vmax.f32 %v8185, 0.0
  %v8386 = vmax.f32 %v8186, 0.0
  %v8387 = vmax.f32 %v8187, 0.0
  %v8388 = vmax.f32 %v8188, 0.0
  %v8389 = vmax.f32 %v8189, 0.0
  %v8390 = vmax.f32 %v8190, 0.0
  %v8391 = vmax.f32 %v8191, 0.0
  %v8392 = vmax.f32 %v8192, 0.0
  %v8393 = vmax.f32 %v8193, 0.0
  %v8394 = vmax.f32 %v8194, 0.0
  %v8395 = vpack.c.bf16 %v8196, %v8195
  %v8396 = vpack.c.bf16 %v8198, %v8197
  %v8397 = vpack.c.bf16 %v8200, %v8199
  %v8398 = vpack.c.bf16 %v8202, %v8201
  %v8399 = vpack.c.bf16 %v8204, %v8203
  %v8400 = vpack.c.bf16 %v8206, %v8205
  %v8401 = vpack.c.bf16 %v8208, %v8207
  %v8402 = vpack.c.bf16 %v8210, %v8209
  %v8403 = vpack.c.bf16 %v8212, %v8211
  %v8404 = vpack.c.bf16 %v8214, %v8213
  %v8405 = vpack.c.bf16 %v8216, %v8215
  %v8406 = vpack.c.bf16 %v8218, %v8217
  %v8407 = vpack.c.bf16 %v8219, %v8219
  %v8408 = vpack.c.bf16 %v8221, %v8220
  %v8409 = vpack.c.bf16 %v8223, %v8222
  %v8410 = vpack.c.bf16 %v8225, %v8224
  %v8411 = vpack.c.bf16 %v8227, %v8226
  %v8412 = vpack.c.bf16 %v8229, %v8228
  %v8413 = vpack.c.bf16 %v8231, %v8230
  %v8414 = vpack.c.bf16 %v8233, %v8232
  %v8415 = vpack.c.bf16 %v8235, %v8234
  %v8416 = vpack.c.bf16 %v8237, %v8236
  %v8417 = vpack.c.bf16 %v8239, %v8238
  %v8418 = vpack.c.bf16 %v8241, %v8240
  %v8419 = vpack.c.bf16 %v8243, %v8242
  %v8420 = vpack.c.bf16 %v8244, %v8244
  %v8421 = vpack.c.bf16 %v8246, %v8245
  %v8422 = vpack.c.bf16 %v8248, %v8247
  %v8423 = vpack.c.bf16 %v8250, %v8249
  %v8424 = vpack.c.bf16 %v8252, %v8251
  %v8425 = vpack.c.bf16 %v8254, %v8253
  %v8426 = vpack.c.bf16 %v8256, %v8255
  %v8427 = vpack.c.bf16 %v8258, %v8257
  %v8428 = vpack.c.bf16 %v8260, %v8259
  %v8429 = vpack.c.bf16 %v8262, %v8261
  %v8430 = vpack.c.bf16 %v8264, %v8263
  %v8431 = vpack.c.bf16 %v8266, %v8265
  %v8432 = vpack.c.bf16 %v8268, %v8267
  %v8433 = vpack.c.bf16 %v8269, %v8269
  %v8434 = vpack.c.bf16 %v8271, %v8270
  %v8435 = vpack.c.bf16 %v8273, %v8272
  %v8436 = vpack.c.bf16 %v8275, %v8274
  %v8437 = vpack.c.bf16 %v8277, %v8276
  %v8438 = vpack.c.bf16 %v8279, %v8278
  %v8439 = vpack.c.bf16 %v8281, %v8280
  %v8440 = vpack.c.bf16 %v8283, %v8282
  %v8441 = vpack.c.bf16 %v8285, %v8284
  %v8442 = vpack.c.bf16 %v8287, %v8286
  %v8443 = vpack.c.bf16 %v8289, %v8288
  %v8444 = vpack.c.bf16 %v8291, %v8290
  %v8445 = vpack.c.bf16 %v8293, %v8292
  %v8446 = vpack.c.bf16 %v8294, %v8294
  %v8447 = vpack.c.bf16 %v8296, %v8295
  %v8448 = vpack.c.bf16 %v8298, %v8297
  %v8449 = vpack.c.bf16 %v8300, %v8299
  %v8450 = vpack.c.bf16 %v8302, %v8301
  %v8451 = vpack.c.bf16 %v8304, %v8303
  %v8452 = vpack.c.bf16 %v8306, %v8305
  %v8453 = vpack.c.bf16 %v8308, %v8307
  %v8454 = vpack.c.bf16 %v8310, %v8309
  %v8455 = vpack.c.bf16 %v8312, %v8311
  %v8456 = vpack.c.bf16 %v8314, %v8313
  %v8457 = vpack.c.bf16 %v8316, %v8315
  %v8458 = vpack.c.bf16 %v8318, %v8317
  %v8459 = vpack.c.bf16 %v8319, %v8319
  %v8460 = vpack.c.bf16 %v8321, %v8320
  %v8461 = vpack.c.bf16 %v8323, %v8322
  %v8462 = vpack.c.bf16 %v8325, %v8324
  %v8463 = vpack.c.bf16 %v8327, %v8326
  %v8464 = vpack.c.bf16 %v8329, %v8328
  %v8465 = vpack.c.bf16 %v8331, %v8330
  %v8466 = vpack.c.bf16 %v8333, %v8332
  %v8467 = vpack.c.bf16 %v8335, %v8334
  %v8468 = vpack.c.bf16 %v8337, %v8336
  %v8469 = vpack.c.bf16 %v8339, %v8338
  %v8470 = vpack.c.bf16 %v8341, %v8340
  %v8471 = vpack.c.bf16 %v8343, %v8342
  %v8472 = vpack.c.bf16 %v8344, %v8344
  %v8473 = vpack.c.bf16 %v8346, %v8345
  %v8474 = vpack.c.bf16 %v8348, %v8347
  %v8475 = vpack.c.bf16 %v8350, %v8349
  %v8476 = vpack.c.bf16 %v8352, %v8351
  %v8477 = vpack.c.bf16 %v8354, %v8353
  %v8478 = vpack.c.bf16 %v8356, %v8355
  %v8479 = vpack.c.bf16 %v8358, %v8357
  %v8480 = vpack.c.bf16 %v8360, %v8359
  %v8481 = vpack.c.bf16 %v8362, %v8361
  %v8482 = vpack.c.bf16 %v8364, %v8363
  %v8483 = vpack.c.bf16 %v8366, %v8365
  %v8484 = vpack.c.bf16 %v8368, %v8367
  %v8485 = vpack.c.bf16 %v8369, %v8369
  %v8486 = vpack.c.bf16 %v8371, %v8370
  %v8487 = vpack.c.bf16 %v8373, %v8372
  %v8488 = vpack.c.bf16 %v8375, %v8374
  %v8489 = vpack.c.bf16 %v8377, %v8376
  %v8490 = vpack.c.bf16 %v8379, %v8378
  %v8491 = vpack.c.bf16 %v8381, %v8380
  %v8492 = vpack.c.bf16 %v8383, %v8382
  %v8493 = vpack.c.bf16 %v8385, %v8384
  %v8494 = vpack.c.bf16 %v8387, %v8386
  %v8495 = vpack.c.bf16 %v8389, %v8388
  %v8496 = vpack.c.bf16 %v8391, %v8390
  %v8497 = vpack.c.bf16 %v8393, %v8392
  %v8498 = vpack.c.bf16 %v8394, %v8394
  %v8603 = vunpack.c.l.b16 %v8395
  %v8604 = vunpack.c.h.b16 %v8395
  %v8605 = vunpack.c.l.b16 %v8396
  %v8606 = vunpack.c.h.b16 %v8396
  %v8607 = vunpack.c.l.b16 %v8397
  %v8608 = vunpack.c.h.b16 %v8397
  %v8609 = vunpack.c.l.b16 %v8398
  %v8610 = vunpack.c.h.b16 %v8398
  %v8611 = vunpack.c.l.b16 %v8399
  %v8612 = vunpack.c.h.b16 %v8399
  %v8613 = vunpack.c.l.b16 %v8400
  %v8614 = vunpack.c.h.b16 %v8400
  %v8615 = vunpack.c.l.b16 %v8401
  %v8616 = vunpack.c.h.b16 %v8401
  %v8617 = vunpack.c.l.b16 %v8402
  %v8618 = vunpack.c.h.b16 %v8402
  %v8619 = vunpack.c.l.b16 %v8403
  %v8620 = vunpack.c.h.b16 %v8403
  %v8621 = vunpack.c.l.b16 %v8404
  %v8622 = vunpack.c.h.b16 %v8404
  %v8623 = vunpack.c.l.b16 %v8405
  %v8624 = vunpack.c.h.b16 %v8405
  %v8625 = vunpack.c.l.b16 %v8406
  %v8626 = vunpack.c.h.b16 %v8406
  %v8627 = vunpack.c.l.b16 %v8407
  %v8628 = vunpack.c.l.b16 %v8408
  %v8629 = vunpack.c.h.b16 %v8408
  %v8630 = vunpack.c.l.b16 %v8409
  %v8631 = vunpack.c.h.b16 %v8409
  %v8632 = vunpack.c.l.b16 %v8410
  %v8633 = vunpack.c.h.b16 %v8410
  %v8634 = vunpack.c.l.b16 %v8411
  %v8635 = vunpack.c.h.b16 %v8411
  %v8636 = vunpack.c.l.b16 %v8412
  %v8637 = vunpack.c.h.b16 %v8412
  %v8638 = vunpack.c.l.b16 %v8413
  %v8639 = vunpack.c.h.b16 %v8413
  %v8640 = vunpack.c.l.b16 %v8414
  %v8641 = vunpack.c.h.b16 %v8414
  %v8642 = vunpack.c.l.b16 %v8415
  %v8643 = vunpack.c.h.b16 %v8415
  %v8644 = vunpack.c.l.b16 %v8416
  %v8645 = vunpack.c.h.b16 %v8416
  %v8646 = vunpack.c.l.b16 %v8417
  %v8647 = vunpack.c.h.b16 %v8417
  %v8648 = vunpack.c.l.b16 %v8418
  %v8649 = vunpack.c.h.b16 %v8418
  %v8650 = vunpack.c.l.b16 %v8419
  %v8651 = vunpack.c.h.b16 %v8419
  %v8652 = vunpack.c.l.b16 %v8420
  %v8653 = vunpack.c.l.b16 %v8421
  %v8654 = vunpack.c.h.b16 %v8421
  %v8655 = vunpack.c.l.b16 %v8422
  %v8656 = vunpack.c.h.b16 %v8422
  %v8657 = vunpack.c.l.b16 %v8423
  %v8658 = vunpack.c.h.b16 %v8423
  %v8659 = vunpack.c.l.b16 %v8424
  %v8660 = vunpack.c.h.b16 %v8424
  %v8661 = vunpack.c.l.b16 %v8425
  %v8662 = vunpack.c.h.b16 %v8425
  %v8663 = vunpack.c.l.b16 %v8426
  %v8664 = vunpack.c.h.b16 %v8426
  %v8665 = vunpack.c.l.b16 %v8427
  %v8666 = vunpack.c.h.b16 %v8427
  %v8667 = vunpack.c.l.b16 %v8428
  %v8668 = vunpack.c.h.b16 %v8428
  %v8669 = vunpack.c.l.b16 %v8429
  %v8670 = vunpack.c.h.b16 %v8429
  %v8671 = vunpack.c.l.b16 %v8430
  %v8672 = vunpack.c.h.b16 %v8430
  %v8673 = vunpack.c.l.b16 %v8431
  %v8674 = vunpack.c.h.b16 %v8431
  %v8675 = vunpack.c.l.b16 %v8432
  %v8676 = vunpack.c.h.b16 %v8432
  %v8677 = vunpack.c.l.b16 %v8433
  %v8678 = vunpack.c.l.b16 %v8434
  %v8679 = vunpack.c.h.b16 %v8434
  %v8680 = vunpack.c.l.b16 %v8435
  %v8681 = vunpack.c.h.b16 %v8435
  %v8682 = vunpack.c.l.b16 %v8436
  %v8683 = vunpack.c.h.b16 %v8436
  %v8684 = vunpack.c.l.b16 %v8437
  %v8685 = vunpack.c.h.b16 %v8437
  %v8686 = vunpack.c.l.b16 %v8438
  %v8687 = vunpack.c.h.b16 %v8438
  %v8688 = vunpack.c.l.b16 %v8439
  %v8689 = vunpack.c.h.b16 %v8439
  %v8690 = vunpack.c.l.b16 %v8440
  %v8691 = vunpack.c.h.b16 %v8440
  %v8692 = vunpack.c.l.b16 %v8441
  %v8693 = vunpack.c.h.b16 %v8441
  %v8694 = vunpack.c.l.b16 %v8442
  %v8695 = vunpack.c.h.b16 %v8442
  %v8696 = vunpack.c.l.b16 %v8443
  %v8697 = vunpack.c.h.b16 %v8443
  %v8698 = vunpack.c.l.b16 %v8444
  %v8699 = vunpack.c.h.b16 %v8444
  %v8700 = vunpack.c.l.b16 %v8445
  %v8701 = vunpack.c.h.b16 %v8445
  %v8702 = vunpack.c.l.b16 %v8446
  %v8703 = vunpack.c.l.b16 %v8447
  %v8704 = vunpack.c.h.b16 %v8447
  %v8705 = vunpack.c.l.b16 %v8448
  %v8706 = vunpack.c.h.b16 %v8448
  %v8707 = vunpack.c.l.b16 %v8449
  %v8708 = vunpack.c.h.b16 %v8449
  %v8709 = vunpack.c.l.b16 %v8450
  %v8710 = vunpack.c.h.b16 %v8450
  %v8711 = vunpack.c.l.b16 %v8451
  %v8712 = vunpack.c.h.b16 %v8451
  %v8713 = vunpack.c.l.b16 %v8452
  %v8714 = vunpack.c.h.b16 %v8452
  %v8715 = vunpack.c.l.b16 %v8453
  %v8716 = vunpack.c.h.b16 %v8453
  %v8717 = vunpack.c.l.b16 %v8454
  %v8718 = vunpack.c.h.b16 %v8454
  %v8719 = vunpack.c.l.b16 %v8455
  %v8720 = vunpack.c.h.b16 %v8455
  %v8721 = vunpack.c.l.b16 %v8456
  %v8722 = vunpack.c.h.b16 %v8456
  %v8723 = vunpack.c.l.b16 %v8457
  %v8724 = vunpack.c.h.b16 %v8457
  %v8725 = vunpack.c.l.b16 %v8458
  %v8726 = vunpack.c.h.b16 %v8458
  %v8727 = vunpack.c.l.b16 %v8459
  %v8728 = vunpack.c.l.b16 %v8460
  %v8729 = vunpack.c.h.b16 %v8460
  %v8730 = vunpack.c.l.b16 %v8461
  %v8731 = vunpack.c.h.b16 %v8461
  %v8732 = vunpack.c.l.b16 %v8462
  %v8733 = vunpack.c.h.b16 %v8462
  %v8734 = vunpack.c.l.b16 %v8463
  %v8735 = vunpack.c.h.b16 %v8463
  %v8736 = vunpack.c.l.b16 %v8464
  %v8737 = vunpack.c.h.b16 %v8464
  %v8738 = vunpack.c.l.b16 %v8465
  %v8739 = vunpack.c.h.b16 %v8465
  %v8740 = vunpack.c.l.b16 %v8466
  %v8741 = vunpack.c.h.b16 %v8466
  %v8742 = vunpack.c.l.b16 %v8467
  %v8743 = vunpack.c.h.b16 %v8467
  %v8744 = vunpack.c.l.b16 %v8468
  %v8745 = vunpack.c.h.b16 %v8468
  %v8746 = vunpack.c.l.b16 %v8469
  %v8747 = vunpack.c.h.b16 %v8469
  %v8748 = vunpack.c.l.b16 %v8470
  %v8749 = vunpack.c.h.b16 %v8470
  %v8750 = vunpack.c.l.b16 %v8471
  %v8751 = vunpack.c.h.b16 %v8471
  %v8752 = vunpack.c.l.b16 %v8472
  %v8753 = vunpack.c.l.b16 %v8473
  %v8754 = vunpack.c.h.b16 %v8473
  %v8755 = vunpack.c.l.b16 %v8474
  %v8756 = vunpack.c.h.b16 %v8474
  %v8757 = vunpack.c.l.b16 %v8475
  %v8758 = vunpack.c.h.b16 %v8475
  %v8759 = vunpack.c.l.b16 %v8476
  %v8760 = vunpack.c.h.b16 %v8476
  %v8761 = vunpack.c.l.b16 %v8477
  %v8762 = vunpack.c.h.b16 %v8477
  %v8763 = vunpack.c.l.b16 %v8478
  %v8764 = vunpack.c.h.b16 %v8478
  %v8765 = vunpack.c.l.b16 %v8479
  %v8766 = vunpack.c.h.b16 %v8479
  %v8767 = vunpack.c.l.b16 %v8480
  %v8768 = vunpack.c.h.b16 %v8480
  %v8769 = vunpack.c.l.b16 %v8481
  %v8770 = vunpack.c.h.b16 %v8481
  %v8771 = vunpack.c.l.b16 %v8482
  %v8772 = vunpack.c.h.b16 %v8482
  %v8773 = vunpack.c.l.b16 %v8483
  %v8774 = vunpack.c.h.b16 %v8483
  %v8775 = vunpack.c.l.b16 %v8484
  %v8776 = vunpack.c.h.b16 %v8484
  %v8777 = vunpack.c.l.b16 %v8485
  %v8778 = vunpack.c.l.b16 %v8486
  %v8779 = vunpack.c.h.b16 %v8486
  %v8780 = vunpack.c.l.b16 %v8487
  %v8781 = vunpack.c.h.b16 %v8487
  %v8782 = vunpack.c.l.b16 %v8488
  %v8783 = vunpack.c.h.b16 %v8488
  %v8784 = vunpack.c.l.b16 %v8489
  %v8785 = vunpack.c.h.b16 %v8489
  %v8786 = vunpack.c.l.b16 %v8490
  %v8787 = vunpack.c.h.b16 %v8490
  %v8788 = vunpack.c.l.b16 %v8491
  %v8789 = vunpack.c.h.b16 %v8491
  %v8790 = vunpack.c.l.b16 %v8492
  %v8791 = vunpack.c.h.b16 %v8492
  %v8792 = vunpack.c.l.b16 %v8493
  %v8793 = vunpack.c.h.b16 %v8493
  %v8794 = vunpack.c.l.b16 %v8494
  %v8795 = vunpack.c.h.b16 %v8494
  %v8796 = vunpack.c.l.b16 %v8495
  %v8797 = vunpack.c.h.b16 %v8495
  %v8798 = vunpack.c.l.b16 %v8496
  %v8799 = vunpack.c.h.b16 %v8496
  %v8800 = vunpack.c.l.b16 %v8497
  %v8801 = vunpack.c.h.b16 %v8497
  %v8802 = vunpack.c.l.b16 %v8498
  %v8803 = vpack.c.b16 %v8603, %v8603
  %v8804 = vpack.c.b16 %v8604, %v8604
  %v8805 = vpack.c.b16 %v8605, %v8605
  %v8806 = vpack.c.b16 %v8606, %v8606
  %v8807 = vpack.c.b16 %v8607, %v8607
  %v8808 = vpack.c.b16 %v8608, %v8608
  %v8809 = vpack.c.b16 %v8609, %v8609
  %v8810 = vpack.c.b16 %v8610, %v8610
  %v8811 = vpack.c.b16 %v8611, %v8611
  %v8812 = vpack.c.b16 %v8612, %v8612
  %v8813 = vpack.c.b16 %v8613, %v8613
  %v8814 = vpack.c.b16 %v8614, %v8614
  %v8815 = vpack.c.b16 %v8615, %v8615
  %v8816 = vpack.c.b16 %v8616, %v8616
  %v8817 = vpack.c.b16 %v8617, %v8617
  %v8818 = vpack.c.b16 %v8618, %v8618
  %v8819 = vpack.c.b16 %v8619, %v8619
  %v8820 = vpack.c.b16 %v8620, %v8620
  %v8821 = vpack.c.b16 %v8621, %v8621
  %v8822 = vpack.c.b16 %v8622, %v8622
  %v8823 = vpack.c.b16 %v8623, %v8623
  %v8824 = vpack.c.b16 %v8624, %v8624
  %v8825 = vpack.c.b16 %v8625, %v8625
  %v8826 = vpack.c.b16 %v8626, %v8626
  %v8827 = vpack.c.b16 %v8627, %v8627
  %v8828 = vpack.c.b16 %v8628, %v8628
  %v8829 = vpack.c.b16 %v8629, %v8629
  %v8830 = vpack.c.b16 %v8630, %v8630
  %v8831 = vpack.c.b16 %v8631, %v8631
  %v8832 = vpack.c.b16 %v8632, %v8632
  %v8833 = vpack.c.b16 %v8633, %v8633
  %v8834 = vpack.c.b16 %v8634, %v8634
  %v8835 = vpack.c.b16 %v8635, %v8635
  %v8836 = vpack.c.b16 %v8636, %v8636
  %v8837 = vpack.c.b16 %v8637, %v8637
  %v8838 = vpack.c.b16 %v8638, %v8638
  %v8839 = vpack.c.b16 %v8639, %v8639
  %v8840 = vpack.c.b16 %v8640, %v8640
  %v8841 = vpack.c.b16 %v8641, %v8641
  %v8842 = vpack.c.b16 %v8642, %v8642
  %v8843 = vpack.c.b16 %v8643, %v8643
  %v8844 = vpack.c.b16 %v8644, %v8644
  %v8845 = vpack.c.b16 %v8645, %v8645
  %v8846 = vpack.c.b16 %v8646, %v8646
  %v8847 = vpack.c.b16 %v8647, %v8647
  %v8848 = vpack.c.b16 %v8648, %v8648
  %v8849 = vpack.c.b16 %v8649, %v8649
  %v8850 = vpack.c.b16 %v8650, %v8650
  %v8851 = vpack.c.b16 %v8651, %v8651
  %v8852 = vpack.c.b16 %v8652, %v8652
  %v8853 = vpack.c.b16 %v8653, %v8653
  %v8854 = vpack.c.b16 %v8654, %v8654
  %v8855 = vpack.c.b16 %v8655, %v8655
  %v8856 = vpack.c.b16 %v8656, %v8656
  %v8857 = vpack.c.b16 %v8657, %v8657
  %v8858 = vpack.c.b16 %v8658, %v8658
  %v8859 = vpack.c.b16 %v8659, %v8659
  %v8860 = vpack.c.b16 %v8660, %v8660
  %v8861 = vpack.c.b16 %v8661, %v8661
  %v8862 = vpack.c.b16 %v8662, %v8662
  %v8863 = vpack.c.b16 %v8663, %v8663
  %v8864 = vpack.c.b16 %v8664, %v8664
  %v8865 = vpack.c.b16 %v8665, %v8665
  %v8866 = vpack.c.b16 %v8666, %v8666
  %v8867 = vpack.c.b16 %v8667, %v8667
  %v8868 = vpack.c.b16 %v8668, %v8668
  %v8869 = vpack.c.b16 %v8669, %v8669
  %v8870 = vpack.c.b16 %v8670, %v8670
  %v8871 = vpack.c.b16 %v8671, %v8671
  %v8872 = vpack.c.b16 %v8672, %v8672
  %v8873 = vpack.c.b16 %v8673, %v8673
  %v8874 = vpack.c.b16 %v8674, %v8674
  %v8875 = vpack.c.b16 %v8675, %v8675
  %v8876 = vpack.c.b16 %v8676, %v8676
  %v8877 = vpack.c.b16 %v8677, %v8677
  %v8878 = vpack.c.b16 %v8678, %v8678
  %v8879 = vpack.c.b16 %v8679, %v8679
  %v8880 = vpack.c.b16 %v8680, %v8680
  %v8881 = vpack.c.b16 %v8681, %v8681
  %v8882 = vpack.c.b16 %v8682, %v8682
  %v8883 = vpack.c.b16 %v8683, %v8683
  %v8884 = vpack.c.b16 %v8684, %v8684
  %v8885 = vpack.c.b16 %v8685, %v8685
  %v8886 = vpack.c.b16 %v8686, %v8686
  %v8887 = vpack.c.b16 %v8687, %v8687
  %v8888 = vpack.c.b16 %v8688, %v8688
  %v8889 = vpack.c.b16 %v8689, %v8689
  %v8890 = vpack.c.b16 %v8690, %v8690
  %v8891 = vpack.c.b16 %v8691, %v8691
  %v8892 = vpack.c.b16 %v8692, %v8692
  %v8893 = vpack.c.b16 %v8693, %v8693
  %v8894 = vpack.c.b16 %v8694, %v8694
  %v8895 = vpack.c.b16 %v8695, %v8695
  %v8896 = vpack.c.b16 %v8696, %v8696
  %v8897 = vpack.c.b16 %v8697, %v8697
  %v8898 = vpack.c.b16 %v8698, %v8698
  %v8899 = vpack.c.b16 %v8699, %v8699
  %v8900 = vpack.c.b16 %v8700, %v8700
  %v8901 = vpack.c.b16 %v8701, %v8701
  %v8902 = vpack.c.b16 %v8702, %v8702
  %v8903 = vpack.c.b16 %v8703, %v8703
  %v8904 = vpack.c.b16 %v8704, %v8704
  %v8905 = vpack.c.b16 %v8705, %v8705
  %v8906 = vpack.c.b16 %v8706, %v8706
  %v8907 = vpack.c.b16 %v8707, %v8707
  %v8908 = vpack.c.b16 %v8708, %v8708
  %v8909 = vpack.c.b16 %v8709, %v8709
  %v8910 = vpack.c.b16 %v8710, %v8710
  %v8911 = vpack.c.b16 %v8711, %v8711
  %v8912 = vpack.c.b16 %v8712, %v8712
  %v8913 = vpack.c.b16 %v8713, %v8713
  %v8914 = vpack.c.b16 %v8714, %v8714
  %v8915 = vpack.c.b16 %v8715, %v8715
  %v8916 = vpack.c.b16 %v8716, %v8716
  %v8917 = vpack.c.b16 %v8717, %v8717
  %v8918 = vpack.c.b16 %v8718, %v8718
  %v8919 = vpack.c.b16 %v8719, %v8719
  %v8920 = vpack.c.b16 %v8720, %v8720
  %v8921 = vpack.c.b16 %v8721, %v8721
  %v8922 = vpack.c.b16 %v8722, %v8722
  %v8923 = vpack.c.b16 %v8723, %v8723
  %v8924 = vpack.c.b16 %v8724, %v8724
  %v8925 = vpack.c.b16 %v8725, %v8725
  %v8926 = vpack.c.b16 %v8726, %v8726
  %v8927 = vpack.c.b16 %v8727, %v8727
  %v8928 = vpack.c.b16 %v8728, %v8728
  %v8929 = vpack.c.b16 %v8729, %v8729
  %v8930 = vpack.c.b16 %v8730, %v8730
  %v8931 = vpack.c.b16 %v8731, %v8731
  %v8932 = vpack.c.b16 %v8732, %v8732
  %v8933 = vpack.c.b16 %v8733, %v8733
  %v8934 = vpack.c.b16 %v8734, %v8734
  %v8935 = vpack.c.b16 %v8735, %v8735
  %v8936 = vpack.c.b16 %v8736, %v8736
  %v8937 = vpack.c.b16 %v8737, %v8737
  %v8938 = vpack.c.b16 %v8738, %v8738
  %v8939 = vpack.c.b16 %v8739, %v8739
  %v8940 = vpack.c.b16 %v8740, %v8740
  %v8941 = vpack.c.b16 %v8741, %v8741
  %v8942 = vpack.c.b16 %v8742, %v8742
  %v8943 = vpack.c.b16 %v8743, %v8743
  %v8944 = vpack.c.b16 %v8744, %v8744
  %v8945 = vpack.c.b16 %v8745, %v8745
  %v8946 = vpack.c.b16 %v8746, %v8746
  %v8947 = vpack.c.b16 %v8747, %v8747
  %v8948 = vpack.c.b16 %v8748, %v8748
  %v8949 = vpack.c.b16 %v8749, %v8749
  %v8950 = vpack.c.b16 %v8750, %v8750
  %v8951 = vpack.c.b16 %v8751, %v8751
  %v8952 = vpack.c.b16 %v8752, %v8752
  %v8953 = vpack.c.b16 %v8753, %v8753
  %v8954 = vpack.c.b16 %v8754, %v8754
  %v8955 = vpack.c.b16 %v8755, %v8755
  %v8956 = vpack.c.b16 %v8756, %v8756
  %v8957 = vpack.c.b16 %v8757, %v8757
  %v8958 = vpack.c.b16 %v8758, %v8758
  %v8959 = vpack.c.b16 %v8759, %v8759
  %v8960 = vpack.c.b16 %v8760, %v8760
  %v8961 = vpack.c.b16 %v8761, %v8761
  %v8962 = vpack.c.b16 %v8762, %v8762
  %v8963 = vpack.c.b16 %v8763, %v8763
  %v8964 = vpack.c.b16 %v8764, %v8764
  %v8965 = vpack.c.b16 %v8765, %v8765
  %v8966 = vpack.c.b16 %v8766, %v8766
  %v8967 = vpack.c.b16 %v8767, %v8767
  %v8968 = vpack.c.b16 %v8768, %v8768
  %v8969 = vpack.c.b16 %v8769, %v8769
  %v8970 = vpack.c.b16 %v8770, %v8770
  %v8971 = vpack.c.b16 %v8771, %v8771
  %v8972 = vpack.c.b16 %v8772, %v8772
  %v8973 = vpack.c.b16 %v8773, %v8773
  %v8974 = vpack.c.b16 %v8774, %v8774
  %v8975 = vpack.c.b16 %v8775, %v8775
  %v8976 = vpack.c.b16 %v8776, %v8776
  %v8977 = vpack.c.b16 %v8777, %v8777
  %v8978 = vpack.c.b16 %v8778, %v8778
  %v8979 = vpack.c.b16 %v8779, %v8779
  %v8980 = vpack.c.b16 %v8780, %v8780
  %v8981 = vpack.c.b16 %v8781, %v8781
  %v8982 = vpack.c.b16 %v8782, %v8782
  %v8983 = vpack.c.b16 %v8783, %v8783
  %v8984 = vpack.c.b16 %v8784, %v8784
  %v8985 = vpack.c.b16 %v8785, %v8785
  %v8986 = vpack.c.b16 %v8786, %v8786
  %v8987 = vpack.c.b16 %v8787, %v8787
  %v8988 = vpack.c.b16 %v8788, %v8788
  %v8989 = vpack.c.b16 %v8789, %v8789
  %v8990 = vpack.c.b16 %v8790, %v8790
  %v8991 = vpack.c.b16 %v8791, %v8791
  %v8992 = vpack.c.b16 %v8792, %v8792
  %v8993 = vpack.c.b16 %v8793, %v8793
  %v8994 = vpack.c.b16 %v8794, %v8794
  %v8995 = vpack.c.b16 %v8795, %v8795
  %v8996 = vpack.c.b16 %v8796, %v8796
  %v8997 = vpack.c.b16 %v8797, %v8797
  %v8998 = vpack.c.b16 %v8798, %v8798
  %v8999 = vpack.c.b16 %v8799, %v8799
  %v9000 = vpack.c.b16 %v8800, %v8800
  %v9001 = vpack.c.b16 %v8801, %v8801
  %v9002 = vpack.c.b16 %v8802, %v8802
  %vm9203 = vcmask 60416
  %9204 = vst.msk [vmem:[%s3] sm:$0xf] %vm9203, %v8803
  %9205 = vst.msk [vmem:[%s3 + $0x4] sm:$0xf] %vm9203, %v8804
  %9206 = vst.msk [vmem:[%s3 + $0x8] sm:$0xf] %vm9203, %v8805
  %9207 = vst.msk [vmem:[%s3 + $0xc] sm:$0xf] %vm9203, %v8806
  %9208 = vst.msk [vmem:[%s3 + $0x10] sm:$0xf] %vm9203, %v8807
  %9209 = vst.msk [vmem:[%s3 + $0x14] sm:$0xf] %vm9203, %v8808
  %9210 = vst.msk [vmem:[%s3 + $0x18] sm:$0xf] %vm9203, %v8809
  %9211 = vst.msk [vmem:[%s3 + $0x1c] sm:$0xf] %vm9203, %v8810
  %9212 = vst.msk [vmem:[%s3 + $0x20] sm:$0xf] %vm9203, %v8811
  %9213 = vst.msk [vmem:[%s3 + $0x24] sm:$0xf] %vm9203, %v8812
  %9214 = vst.msk [vmem:[%s3 + $0x28] sm:$0xf] %vm9203, %v8813
  %9215 = vst.msk [vmem:[%s3 + $0x2c] sm:$0xf] %vm9203, %v8814
  %9216 = vst.msk [vmem:[%s3 + $0x30] sm:$0xf] %vm9203, %v8815
  %9217 = vst.msk [vmem:[%s3 + $0x34] sm:$0xf] %vm9203, %v8816
  %9218 = vst.msk [vmem:[%s3 + $0x38] sm:$0xf] %vm9203, %v8817
  %9219 = vst.msk [vmem:[%s3 + $0x3c] sm:$0xf] %vm9203, %v8818
  %9220 = vst.msk [vmem:[%s3 + $0x40] sm:$0xf] %vm9203, %v8819
  %9221 = vst.msk [vmem:[%s3 + $0x44] sm:$0xf] %vm9203, %v8820
  %9222 = vst.msk [vmem:[%s3 + $0x48] sm:$0xf] %vm9203, %v8821
  %9223 = vst.msk [vmem:[%s3 + $0x4c] sm:$0xf] %vm9203, %v8822
  %9224 = vst.msk [vmem:[%s3 + $0x50] sm:$0xf] %vm9203, %v8823
  %9225 = vst.msk [vmem:[%s3 + $0x54] sm:$0xf] %vm9203, %v8824
  %9226 = vst.msk [vmem:[%s3 + $0x58] sm:$0xf] %vm9203, %v8825
  %9227 = vst.msk [vmem:[%s3 + $0x5c] sm:$0xf] %vm9203, %v8826
  %9228 = vst.msk [vmem:[%s3 + $0x60] sm:$0xf] %vm9203, %v8827
  %9229 = vst.msk [vmem:[%s3 + $0x64] sm:$0xf] %vm9203, %v8828
  %9230 = vst.msk [vmem:[%s3 + $0x68] sm:$0xf] %vm9203, %v8829
  %9231 = vst.msk [vmem:[%s3 + $0x6c] sm:$0xf] %vm9203, %v8830
  %9232 = vst.msk [vmem:[%s3 + $0x70] sm:$0xf] %vm9203, %v8831
  %9233 = vst.msk [vmem:[%s3 + $0x74] sm:$0xf] %vm9203, %v8832
  %9234 = vst.msk [vmem:[%s3 + $0x78] sm:$0xf] %vm9203, %v8833
  %9235 = vst.msk [vmem:[%s3 + $0x7c] sm:$0xf] %vm9203, %v8834
  %9236 = vst.msk [vmem:[%s3 + $0x80] sm:$0xf] %vm9203, %v8835
  %9237 = vst.msk [vmem:[%s3 + $0x84] sm:$0xf] %vm9203, %v8836
  %9238 = vst.msk [vmem:[%s3 + $0x88] sm:$0xf] %vm9203, %v8837
  %9239 = vst.msk [vmem:[%s3 + $0x8c] sm:$0xf] %vm9203, %v8838
  %9240 = vst.msk [vmem:[%s3 + $0x90] sm:$0xf] %vm9203, %v8839
  %9241 = vst.msk [vmem:[%s3 + $0x94] sm:$0xf] %vm9203, %v8840
  %9242 = vst.msk [vmem:[%s3 + $0x98] sm:$0xf] %vm9203, %v8841
  %9243 = vst.msk [vmem:[%s3 + $0x9c] sm:$0xf] %vm9203, %v8842
  %9244 = vst.msk [vmem:[%s3 + $0xa0] sm:$0xf] %vm9203, %v8843
  %9245 = vst.msk [vmem:[%s3 + $0xa4] sm:$0xf] %vm9203, %v8844
  %9246 = vst.msk [vmem:[%s3 + $0xa8] sm:$0xf] %vm9203, %v8845
  %9247 = vst.msk [vmem:[%s3 + $0xac] sm:$0xf] %vm9203, %v8846
  %9248 = vst.msk [vmem:[%s3 + $0xb0] sm:$0xf] %vm9203, %v8847
  %9249 = vst.msk [vmem:[%s3 + $0xb4] sm:$0xf] %vm9203, %v8848
  %9250 = vst.msk [vmem:[%s3 + $0xb8] sm:$0xf] %vm9203, %v8849
  %9251 = vst.msk [vmem:[%s3 + $0xbc] sm:$0xf] %vm9203, %v8850
  %9252 = vst.msk [vmem:[%s3 + $0xc0] sm:$0xf] %vm9203, %v8851
  %9253 = vst.msk [vmem:[%s3 + $0xc4] sm:$0xf] %vm9203, %v8852
  %9254 = vst.msk [vmem:[%s3 + $0xc8] sm:$0xf] %vm9203, %v8853
  %9255 = vst.msk [vmem:[%s3 + $0xcc] sm:$0xf] %vm9203, %v8854
  %9256 = vst.msk [vmem:[%s3 + $0xd0] sm:$0xf] %vm9203, %v8855
  %9257 = vst.msk [vmem:[%s3 + $0xd4] sm:$0xf] %vm9203, %v8856
  %9258 = vst.msk [vmem:[%s3 + $0xd8] sm:$0xf] %vm9203, %v8857
  %9259 = vst.msk [vmem:[%s3 + $0xdc] sm:$0xf] %vm9203, %v8858
  %9260 = vst.msk [vmem:[%s3 + $0xe0] sm:$0xf] %vm9203, %v8859
  %9261 = vst.msk [vmem:[%s3 + $0xe4] sm:$0xf] %vm9203, %v8860
  %9262 = vst.msk [vmem:[%s3 + $0xe8] sm:$0xf] %vm9203, %v8861
  %9263 = vst.msk [vmem:[%s3 + $0xec] sm:$0xf] %vm9203, %v8862
  %9264 = vst.msk [vmem:[%s3 + $0xf0] sm:$0xf] %vm9203, %v8863
  %9265 = vst.msk [vmem:[%s3 + $0xf4] sm:$0xf] %vm9203, %v8864
  %9266 = vst.msk [vmem:[%s3 + $0xf8] sm:$0xf] %vm9203, %v8865
  %9267 = vst.msk [vmem:[%s3 + $0xfc] sm:$0xf] %vm9203, %v8866
  %9268 = vst.msk [vmem:[%s3 + $0x100] sm:$0xf] %vm9203, %v8867
  %9269 = vst.msk [vmem:[%s3 + $0x104] sm:$0xf] %vm9203, %v8868
  %9270 = vst.msk [vmem:[%s3 + $0x108] sm:$0xf] %vm9203, %v8869
  %9271 = vst.msk [vmem:[%s3 + $0x10c] sm:$0xf] %vm9203, %v8870
  %9272 = vst.msk [vmem:[%s3 + $0x110] sm:$0xf] %vm9203, %v8871
  %9273 = vst.msk [vmem:[%s3 + $0x114] sm:$0xf] %vm9203, %v8872
  %9274 = vst.msk [vmem:[%s3 + $0x118] sm:$0xf] %vm9203, %v8873
  %9275 = vst.msk [vmem:[%s3 + $0x11c] sm:$0xf] %vm9203, %v8874
  %9276 = vst.msk [vmem:[%s3 + $0x120] sm:$0xf] %vm9203, %v8875
  %9277 = vst.msk [vmem:[%s3 + $0x124] sm:$0xf] %vm9203, %v8876
  %9278 = vst.msk [vmem:[%s3 + $0x128] sm:$0xf] %vm9203, %v8877
  %9279 = vst.msk [vmem:[%s3 + $0x12c] sm:$0xf] %vm9203, %v8878
  %9280 = vst.msk [vmem:[%s3 + $0x130] sm:$0xf] %vm9203, %v8879
  %9281 = vst.msk [vmem:[%s3 + $0x134] sm:$0xf] %vm9203, %v8880
  %9282 = vst.msk [vmem:[%s3 + $0x138] sm:$0xf] %vm9203, %v8881
  %9283 = vst.msk [vmem:[%s3 + $0x13c] sm:$0xf] %vm9203, %v8882
  %9284 = vst.msk [vmem:[%s3 + $0x140] sm:$0xf] %vm9203, %v8883
  %9285 = vst.msk [vmem:[%s3 + $0x144] sm:$0xf] %vm9203, %v8884
  %9286 = vst.msk [vmem:[%s3 + $0x148] sm:$0xf] %vm9203, %v8885
  %9287 = vst.msk [vmem:[%s3 + $0x14c] sm:$0xf] %vm9203, %v8886
  %9288 = vst.msk [vmem:[%s3 + $0x150] sm:$0xf] %vm9203, %v8887
  %9289 = vst.msk [vmem:[%s3 + $0x154] sm:$0xf] %vm9203, %v8888
  %9290 = vst.msk [vmem:[%s3 + $0x158] sm:$0xf] %vm9203, %v8889
  %9291 = vst.msk [vmem:[%s3 + $0x15c] sm:$0xf] %vm9203, %v8890
  %9292 = vst.msk [vmem:[%s3 + $0x160] sm:$0xf] %vm9203, %v8891
  %9293 = vst.msk [vmem:[%s3 + $0x164] sm:$0xf] %vm9203, %v8892
  %9294 = vst.msk [vmem:[%s3 + $0x168] sm:$0xf] %vm9203, %v8893
  %9295 = vst.msk [vmem:[%s3 + $0x16c] sm:$0xf] %vm9203, %v8894
  %9296 = vst.msk [vmem:[%s3 + $0x170] sm:$0xf] %vm9203, %v8895
  %9297 = vst.msk [vmem:[%s3 + $0x174] sm:$0xf] %vm9203, %v8896
  %9298 = vst.msk [vmem:[%s3 + $0x178] sm:$0xf] %vm9203, %v8897
  %9299 = vst.msk [vmem:[%s3 + $0x17c] sm:$0xf] %vm9203, %v8898
  %9300 = vst.msk [vmem:[%s3 + $0x180] sm:$0xf] %vm9203, %v8899
  %9301 = vst.msk [vmem:[%s3 + $0x184] sm:$0xf] %vm9203, %v8900
  %9302 = vst.msk [vmem:[%s3 + $0x188] sm:$0xf] %vm9203, %v8901
  %9303 = vst.msk [vmem:[%s3 + $0x18c] sm:$0xf] %vm9203, %v8902
  %9304 = vst.msk [vmem:[%s3 + $0x190] sm:$0xf] %vm9203, %v8903
  %9305 = vst.msk [vmem:[%s3 + $0x194] sm:$0xf] %vm9203, %v8904
  %9306 = vst.msk [vmem:[%s3 + $0x198] sm:$0xf] %vm9203, %v8905
  %9307 = vst.msk [vmem:[%s3 + $0x19c] sm:$0xf] %vm9203, %v8906
  %9308 = vst.msk [vmem:[%s3 + $0x1a0] sm:$0xf] %vm9203, %v8907
  %9309 = vst.msk [vmem:[%s3 + $0x1a4] sm:$0xf] %vm9203, %v8908
  %9310 = vst.msk [vmem:[%s3 + $0x1a8] sm:$0xf] %vm9203, %v8909
  %9311 = vst.msk [vmem:[%s3 + $0x1ac] sm:$0xf] %vm9203, %v8910
  %9312 = vst.msk [vmem:[%s3 + $0x1b0] sm:$0xf] %vm9203, %v8911
  %9313 = vst.msk [vmem:[%s3 + $0x1b4] sm:$0xf] %vm9203, %v8912
  %9314 = vst.msk [vmem:[%s3 + $0x1b8] sm:$0xf] %vm9203, %v8913
  %9315 = vst.msk [vmem:[%s3 + $0x1bc] sm:$0xf] %vm9203, %v8914
  %9316 = vst.msk [vmem:[%s3 + $0x1c0] sm:$0xf] %vm9203, %v8915
  %9317 = vst.msk [vmem:[%s3 + $0x1c4] sm:$0xf] %vm9203, %v8916
  %9318 = vst.msk [vmem:[%s3 + $0x1c8] sm:$0xf] %vm9203, %v8917
  %9319 = vst.msk [vmem:[%s3 + $0x1cc] sm:$0xf] %vm9203, %v8918
  %9320 = vst.msk [vmem:[%s3 + $0x1d0] sm:$0xf] %vm9203, %v8919
  %9321 = vst.msk [vmem:[%s3 + $0x1d4] sm:$0xf] %vm9203, %v8920
  %9322 = vst.msk [vmem:[%s3 + $0x1d8] sm:$0xf] %vm9203, %v8921
  %9323 = vst.msk [vmem:[%s3 + $0x1dc] sm:$0xf] %vm9203, %v8922
  %9324 = vst.msk [vmem:[%s3 + $0x1e0] sm:$0xf] %vm9203, %v8923
  %9325 = vst.msk [vmem:[%s3 + $0x1e4] sm:$0xf] %vm9203, %v8924
  %9326 = vst.msk [vmem:[%s3 + $0x1e8] sm:$0xf] %vm9203, %v8925
  %9327 = vst.msk [vmem:[%s3 + $0x1ec] sm:$0xf] %vm9203, %v8926
  %9328 = vst.msk [vmem:[%s3 + $0x1f0] sm:$0xf] %vm9203, %v8927
  %9329 = vst.msk [vmem:[%s3 + $0x1f4] sm:$0xf] %vm9203, %v8928
  %9330 = vst.msk [vmem:[%s3 + $0x1f8] sm:$0xf] %vm9203, %v8929
  %9331 = vst.msk [vmem:[%s3 + $0x1fc] sm:$0xf] %vm9203, %v8930
  %9332 = vst.msk [vmem:[%s3 + $0x200] sm:$0xf] %vm9203, %v8931
  %9333 = vst.msk [vmem:[%s3 + $0x204] sm:$0xf] %vm9203, %v8932
  %9334 = vst.msk [vmem:[%s3 + $0x208] sm:$0xf] %vm9203, %v8933
  %9335 = vst.msk [vmem:[%s3 + $0x20c] sm:$0xf] %vm9203, %v8934
  %9336 = vst.msk [vmem:[%s3 + $0x210] sm:$0xf] %vm9203, %v8935
  %9337 = vst.msk [vmem:[%s3 + $0x214] sm:$0xf] %vm9203, %v8936
  %9338 = vst.msk [vmem:[%s3 + $0x218] sm:$0xf] %vm9203, %v8937
  %9339 = vst.msk [vmem:[%s3 + $0x21c] sm:$0xf] %vm9203, %v8938
  %9340 = vst.msk [vmem:[%s3 + $0x220] sm:$0xf] %vm9203, %v8939
  %9341 = vst.msk [vmem:[%s3 + $0x224] sm:$0xf] %vm9203, %v8940
  %9342 = vst.msk [vmem:[%s3 + $0x228] sm:$0xf] %vm9203, %v8941
  %9343 = vst.msk [vmem:[%s3 + $0x22c] sm:$0xf] %vm9203, %v8942
  %9344 = vst.msk [vmem:[%s3 + $0x230] sm:$0xf] %vm9203, %v8943
  %9345 = vst.msk [vmem:[%s3 + $0x234] sm:$0xf] %vm9203, %v8944
  %9346 = vst.msk [vmem:[%s3 + $0x238] sm:$0xf] %vm9203, %v8945
  %9347 = vst.msk [vmem:[%s3 + $0x23c] sm:$0xf] %vm9203, %v8946
  %9348 = vst.msk [vmem:[%s3 + $0x240] sm:$0xf] %vm9203, %v8947
  %9349 = vst.msk [vmem:[%s3 + $0x244] sm:$0xf] %vm9203, %v8948
  %9350 = vst.msk [vmem:[%s3 + $0x248] sm:$0xf] %vm9203, %v8949
  %9351 = vst.msk [vmem:[%s3 + $0x24c] sm:$0xf] %vm9203, %v8950
  %9352 = vst.msk [vmem:[%s3 + $0x250] sm:$0xf] %vm9203, %v8951
  %9353 = vst.msk [vmem:[%s3 + $0x254] sm:$0xf] %vm9203, %v8952
  %9354 = vst.msk [vmem:[%s3 + $0x258] sm:$0xf] %vm9203, %v8953
  %9355 = vst.msk [vmem:[%s3 + $0x25c] sm:$0xf] %vm9203, %v8954
  %9356 = vst.msk [vmem:[%s3 + $0x260] sm:$0xf] %vm9203, %v8955
  %9357 = vst.msk [vmem:[%s3 + $0x264] sm:$0xf] %vm9203, %v8956
  %9358 = vst.msk [vmem:[%s3 + $0x268] sm:$0xf] %vm9203, %v8957
  %9359 = vst.msk [vmem:[%s3 + $0x26c] sm:$0xf] %vm9203, %v8958
  %9360 = vst.msk [vmem:[%s3 + $0x270] sm:$0xf] %vm9203, %v8959
  %9361 = vst.msk [vmem:[%s3 + $0x274] sm:$0xf] %vm9203, %v8960
  %9362 = vst.msk [vmem:[%s3 + $0x278] sm:$0xf] %vm9203, %v8961
  %9363 = vst.msk [vmem:[%s3 + $0x27c] sm:$0xf] %vm9203, %v8962
  %9364 = vst.msk [vmem:[%s3 + $0x280] sm:$0xf] %vm9203, %v8963
  %9365 = vst.msk [vmem:[%s3 + $0x284] sm:$0xf] %vm9203, %v8964
  %9366 = vst.msk [vmem:[%s3 + $0x288] sm:$0xf] %vm9203, %v8965
  %9367 = vst.msk [vmem:[%s3 + $0x28c] sm:$0xf] %vm9203, %v8966
  %9368 = vst.msk [vmem:[%s3 + $0x290] sm:$0xf] %vm9203, %v8967
  %9369 = vst.msk [vmem:[%s3 + $0x294] sm:$0xf] %vm9203, %v8968
  %9370 = vst.msk [vmem:[%s3 + $0x298] sm:$0xf] %vm9203, %v8969
  %9371 = vst.msk [vmem:[%s3 + $0x29c] sm:$0xf] %vm9203, %v8970
  %9372 = vst.msk [vmem:[%s3 + $0x2a0] sm:$0xf] %vm9203, %v8971
  %9373 = vst.msk [vmem:[%s3 + $0x2a4] sm:$0xf] %vm9203, %v8972
  %9374 = vst.msk [vmem:[%s3 + $0x2a8] sm:$0xf] %vm9203, %v8973
  %9375 = vst.msk [vmem:[%s3 + $0x2ac] sm:$0xf] %vm9203, %v8974
  %9376 = vst.msk [vmem:[%s3 + $0x2b0] sm:$0xf] %vm9203, %v8975
  %9377 = vst.msk [vmem:[%s3 + $0x2b4] sm:$0xf] %vm9203, %v8976
  %9378 = vst.msk [vmem:[%s3 + $0x2b8] sm:$0xf] %vm9203, %v8977
  %9379 = vst.msk [vmem:[%s3 + $0x2bc] sm:$0xf] %vm9203, %v8978
  %9380 = vst.msk [vmem:[%s3 + $0x2c0] sm:$0xf] %vm9203, %v8979
  %9381 = vst.msk [vmem:[%s3 + $0x2c4] sm:$0xf] %vm9203, %v8980
  %9382 = vst.msk [vmem:[%s3 + $0x2c8] sm:$0xf] %vm9203, %v8981
  %9383 = vst.msk [vmem:[%s3 + $0x2cc] sm:$0xf] %vm9203, %v8982
  %9384 = vst.msk [vmem:[%s3 + $0x2d0] sm:$0xf] %vm9203, %v8983
  %9385 = vst.msk [vmem:[%s3 + $0x2d4] sm:$0xf] %vm9203, %v8984
  %9386 = vst.msk [vmem:[%s3 + $0x2d8] sm:$0xf] %vm9203, %v8985
  %9387 = vst.msk [vmem:[%s3 + $0x2dc] sm:$0xf] %vm9203, %v8986
  %9388 = vst.msk [vmem:[%s3 + $0x2e0] sm:$0xf] %vm9203, %v8987
  %9389 = vst.msk [vmem:[%s3 + $0x2e4] sm:$0xf] %vm9203, %v8988
  %9390 = vst.msk [vmem:[%s3 + $0x2e8] sm:$0xf] %vm9203, %v8989
  %9391 = vst.msk [vmem:[%s3 + $0x2ec] sm:$0xf] %vm9203, %v8990
  %9392 = vst.msk [vmem:[%s3 + $0x2f0] sm:$0xf] %vm9203, %v8991
  %9393 = vst.msk [vmem:[%s3 + $0x2f4] sm:$0xf] %vm9203, %v8992
  %9394 = vst.msk [vmem:[%s3 + $0x2f8] sm:$0xf] %vm9203, %v8993
  %9395 = vst.msk [vmem:[%s3 + $0x2fc] sm:$0xf] %vm9203, %v8994
  %9396 = vst.msk [vmem:[%s3 + $0x300] sm:$0xf] %vm9203, %v8995
  %9397 = vst.msk [vmem:[%s3 + $0x304] sm:$0xf] %vm9203, %v8996
  %9398 = vst.msk [vmem:[%s3 + $0x308] sm:$0xf] %vm9203, %v8997
  %9399 = vst.msk [vmem:[%s3 + $0x30c] sm:$0xf] %vm9203, %v8998
  %9400 = vst.msk [vmem:[%s3 + $0x310] sm:$0xf] %vm9203, %v8999
  %9401 = vst.msk [vmem:[%s3 + $0x314] sm:$0xf] %vm9203, %v9000
  %9402 = vst.msk [vmem:[%s3 + $0x318] sm:$0xf] %vm9203, %v9001
  %9403 = vst.msk [vmem:[%s3 + $0x31c] sm:$0xf] %vm9203, %v9002
  // Predicated region
  $region14: #{cifar10net_forward.3} parent=0 // pred_check
    _
  $region15: #{cifar10net_forward.3} parent=0 // pred_check_branch
    %9405 = sbr.rel (0) target = $region17
  $region16: #{cifar10net_forward.3} parent=0 // pred_region
    _
  $region17: #{cifar10net_forward.3} parent=0 // pred_fallthru
    _
  // Predicated region
  $region18: #{cifar10net_forward.3} parent=0 // pred_check
    _
  $region19: #{cifar10net_forward.3} parent=0 // pred_check_branch
    %9407 = sbr.rel (0) target = $region21
  $region20: #{cifar10net_forward.3} parent=0 // pred_region
    _
  $region21: #{cifar10net_forward.3} parent=0 // pred_fallthru
    _

// kernel: cifar10net_forward.4
$region0: #{cifar10net_forward.4}
  #allocation0 [shape = 'u32[]', space=smem, size = 0x4, offset = 0x4, fixed_abs, tag = 'smem constant byte address 0x4 - core index']
  #allocation1 [shape = 'u32[144,128]{1,0:T(1,128)}', space=vmem, size = 0x12000, scoped, tag = 'internal scratch']
  %s0 = inlined_call_operand.vmem [shape: bf16[8,128,152], index: 0, kind: input, shape index: {}]
  %s1 = inlined_call_operand.vmem [shape: bf16[152,128], index: 1, kind: input, shape index: {}]
  %s2 = inlined_call_operand.vmem [shape: f32[1,128], index: 2, kind: input, shape index: {}]
  %s3 = inlined_call_operand.vmem [shape: bf16[8,32,16], index: 3, kind: output, shape index: {}]
  %s4 = sld [smem:[#allocation0]]
  $region22: #{cifar10net_forward.4} parent=0
    _
  %s6 = ssub.s32 1, %s4
  %s7 = scalar_select 0, %s6, %s4
  // Predicated region
  $region2: #{cifar10net_forward.4} parent=0 // pred_check
    _
  $region3: #{cifar10net_forward.4} parent=0 // pred_check_branch
    %9 = sbr.rel (0) target = $region5
  $region4: #{cifar10net_forward.4} parent=0 // pred_region
    _
  $region5: #{cifar10net_forward.4} parent=0 // pred_fallthru
    _
  // Predicated region
  $region6: #{cifar10net_forward.4} parent=0 // pred_check
    _
  $region7: #{cifar10net_forward.4} parent=0 // pred_check_branch
    %11 = sbr.rel (0) target = $region9
  $region8: #{cifar10net_forward.4} parent=0 // pred_region
    _
  $region9: #{cifar10net_forward.4} parent=0 // pred_fallthru
    _
  // Predicated region
  $region10: #{cifar10net_forward.4} parent=0 // pred_check
    _
  $region11: #{cifar10net_forward.4} parent=0 // pred_check_branch
    %13 = sbr.rel (0) target = $region13
  $region12: #{cifar10net_forward.4} parent=0 // pred_region
    _
  $region13: #{cifar10net_forward.4} parent=0 // pred_fallthru
    _
  %v15 = vld [vmem:[%s1] sm:$0xf]
  %v16 = vld [vmem:[%s1 + $0x4] sm:$0xf]
  %v17 = vld [vmem:[%s1 + $0x8] sm:$0xf]
  %v18 = vld [vmem:[%s1 + $0xc] sm:$0xf]
  %v19 = vld [vmem:[%s1 + $0x10] sm:$0xf]
  %v20 = vld [vmem:[%s1 + $0x14] sm:$0xf]
  %v21 = vld [vmem:[%s1 + $0x18] sm:$0xf]
  %v22 = vld [vmem:[%s1 + $0x1c] sm:$0xf]
  %v23 = vld [vmem:[%s1 + $0x20] sm:$0xf]
  %v24 = vld [vmem:[%s1 + $0x24] sm:$0xf]
  %v25 = vld [vmem:[%s1 + $0x28] sm:$0xf]
  %v26 = vld [vmem:[%s1 + $0x2c] sm:$0xf]
  %v27 = vld [vmem:[%s1 + $0x30] sm:$0xf]
  %v28 = vld [vmem:[%s1 + $0x34] sm:$0xf]
  %v29 = vld [vmem:[%s1 + $0x38] sm:$0xf]
  %v30 = vld [vmem:[%s1 + $0x3c] sm:$0xf]
  %v31 = vld [vmem:[%s1 + $0x40] sm:$0xf]
  %v32 = vld [vmem:[%s1 + $0x44] sm:$0xf]
  %v33 = vld [vmem:[%s1 + $0x48] sm:$0xf]
  %v34 = vld [vmem:[%s0] sm:$0xff]
  %v35 = vld [vmem:[%s0 + $0x8] sm:$0xff]
  %v36 = vld [vmem:[%s0 + $0x10] sm:$0xff]
  %v37 = vld [vmem:[%s0 + $0x18] sm:$0xff]
  %v38 = vld [vmem:[%s0 + $0x80] sm:$0xff]
  %v39 = vld [vmem:[%s0 + $0x88] sm:$0xff]
  %v40 = vld [vmem:[%s0 + $0x90] sm:$0xff]
  %v41 = vld [vmem:[%s0 + $0x98] sm:$0xff]
  %v42 = vld [vmem:[%s0 + $0x100] sm:$0xff]
  %v43 = vld [vmem:[%s0 + $0x108] sm:$0xff]
  %v44 = vld [vmem:[%s0 + $0x110] sm:$0xff]
  %v45 = vld [vmem:[%s0 + $0x118] sm:$0xff]
  %v46 = vld [vmem:[%s0 + $0x180] sm:$0xff]
  %v47 = vld [vmem:[%s0 + $0x188] sm:$0xff]
  %v48 = vld [vmem:[%s0 + $0x190] sm:$0xff]
  %v49 = vld [vmem:[%s0 + $0x198] sm:$0xff]
  %v50 = vld [vmem:[%s0 + $0x200] sm:$0xff]
  %v51 = vld [vmem:[%s0 + $0x208] sm:$0xff]
  %v52 = vld [vmem:[%s0 + $0x210] sm:$0xff]
  %v53 = vld [vmem:[%s0 + $0x218] sm:$0xff]
  %v54 = vld [vmem:[%s0 + $0x280] sm:$0xff]
  %v55 = vld [vmem:[%s0 + $0x288] sm:$0xff]
  %v56 = vld [vmem:[%s0 + $0x290] sm:$0xff]
  %v57 = vld [vmem:[%s0 + $0x298] sm:$0xff]
  %v58 = vld [vmem:[%s0 + $0x300] sm:$0xff]
  %v59 = vld [vmem:[%s0 + $0x308] sm:$0xff]
  %v60 = vld [vmem:[%s0 + $0x310] sm:$0xff]
  %v61 = vld [vmem:[%s0 + $0x318] sm:$0xff]
  %v62 = vld [vmem:[%s0 + $0x380] sm:$0xff]
  %v63 = vld [vmem:[%s0 + $0x388] sm:$0xff]
  %v64 = vld [vmem:[%s0 + $0x390] sm:$0xff]
  %v65 = vld [vmem:[%s0 + $0x398] sm:$0xff]
  %v98 = vunpack.c.l.b16 %v34
  %v99 = vunpack.c.h.b16 %v34
  %v100 = vunpack.c.l.b16 %v35
  %v101 = vunpack.c.h.b16 %v35
  %v102 = vunpack.c.l.b16 %v36
  %v103 = vunpack.c.h.b16 %v36
  %v104 = vunpack.c.l.b16 %v37
  %v105 = vunpack.c.h.b16 %v37
  %v106 = vunpack.c.l.b16 %v38
  %v107 = vunpack.c.h.b16 %v38
  %v108 = vunpack.c.l.b16 %v39
  %v109 = vunpack.c.h.b16 %v39
  %v110 = vunpack.c.l.b16 %v40
  %v111 = vunpack.c.h.b16 %v40
  %v112 = vunpack.c.l.b16 %v41
  %v113 = vunpack.c.h.b16 %v41
  %v114 = vunpack.c.l.b16 %v42
  %v115 = vunpack.c.h.b16 %v42
  %v116 = vunpack.c.l.b16 %v43
  %v117 = vunpack.c.h.b16 %v43
  %v118 = vunpack.c.l.b16 %v44
  %v119 = vunpack.c.h.b16 %v44
  %v120 = vunpack.c.l.b16 %v45
  %v121 = vunpack.c.h.b16 %v45
  %v122 = vunpack.c.l.b16 %v46
  %v123 = vunpack.c.h.b16 %v46
  %v124 = vunpack.c.l.b16 %v47
  %v125 = vunpack.c.h.b16 %v47
  %v126 = vunpack.c.l.b16 %v48
  %v127 = vunpack.c.h.b16 %v48
  %v128 = vunpack.c.l.b16 %v49
  %v129 = vunpack.c.h.b16 %v49
  %v130 = vunpack.c.l.b16 %v50
  %v131 = vunpack.c.h.b16 %v50
  %v132 = vunpack.c.l.b16 %v51
  %v133 = vunpack.c.h.b16 %v51
  %v134 = vunpack.c.l.b16 %v52
  %v135 = vunpack.c.h.b16 %v52
  %v136 = vunpack.c.l.b16 %v53
  %v137 = vunpack.c.h.b16 %v53
  %v138 = vunpack.c.l.b16 %v54
  %v139 = vunpack.c.h.b16 %v54
  %v140 = vunpack.c.l.b16 %v55
  %v141 = vunpack.c.h.b16 %v55
  %v142 = vunpack.c.l.b16 %v56
  %v143 = vunpack.c.h.b16 %v56
  %v144 = vunpack.c.l.b16 %v57
  %v145 = vunpack.c.h.b16 %v57
  %v146 = vunpack.c.l.b16 %v58
  %v147 = vunpack.c.h.b16 %v58
  %v148 = vunpack.c.l.b16 %v59
  %v149 = vunpack.c.h.b16 %v59
  %v150 = vunpack.c.l.b16 %v60
  %v151 = vunpack.c.h.b16 %v60
  %v152 = vunpack.c.l.b16 %v61
  %v153 = vunpack.c.h.b16 %v61
  %v154 = vunpack.c.l.b16 %v62
  %v155 = vunpack.c.h.b16 %v62
  %v156 = vunpack.c.l.b16 %v63
  %v157 = vunpack.c.h.b16 %v63
  %v158 = vunpack.c.l.b16 %v64
  %v159 = vunpack.c.h.b16 %v64
  %v160 = vunpack.c.l.b16 %v65
  %v161 = vunpack.c.h.b16 %v65
  %v162 = vpack.c.b16 %v100, %v98
  %v163 = vpack.c.b16 %v101, %v99
  %v164 = vpack.c.b16 %v104, %v102
  %v165 = vpack.c.b16 %v105, %v103
  %v166 = vpack.c.b16 %v108, %v106
  %v167 = vpack.c.b16 %v109, %v107
  %v168 = vpack.c.b16 %v112, %v110
  %v169 = vpack.c.b16 %v113, %v111
  %v170 = vpack.c.b16 %v116, %v114
  %v171 = vpack.c.b16 %v117, %v115
  %v172 = vpack.c.b16 %v120, %v118
  %v173 = vpack.c.b16 %v121, %v119
  %v174 = vpack.c.b16 %v124, %v122
  %v175 = vpack.c.b16 %v125, %v123
  %v176 = vpack.c.b16 %v128, %v126
  %v177 = vpack.c.b16 %v129, %v127
  %v178 = vpack.c.b16 %v132, %v130
  %v179 = vpack.c.b16 %v133, %v131
  %v180 = vpack.c.b16 %v136, %v134
  %v181 = vpack.c.b16 %v137, %v135
  %v182 = vpack.c.b16 %v140, %v138
  %v183 = vpack.c.b16 %v141, %v139
  %v184 = vpack.c.b16 %v144, %v142
  %v185 = vpack.c.b16 %v145, %v143
  %v186 = vpack.c.b16 %v148, %v146
  %v187 = vpack.c.b16 %v149, %v147
  %v188 = vpack.c.b16 %v152, %v150
  %v189 = vpack.c.b16 %v153, %v151
  %v190 = vpack.c.b16 %v156, %v154
  %v191 = vpack.c.b16 %v157, %v155
  %v192 = vpack.c.b16 %v160, %v158
  %v193 = vpack.c.b16 %v161, %v159
  %v229 = vunpack.c.l.b16 %v15
  %v230 = vunpack.c.l.b16 %v16
  %v231 = vunpack.c.l.b16 %v17
  %v232 = vunpack.c.l.b16 %v18
  %v233 = vunpack.c.l.b16 %v19
  %v234 = vunpack.c.l.b16 %v20
  %v235 = vunpack.c.l.b16 %v21
  %v236 = vunpack.c.l.b16 %v22
  %v237 = vunpack.c.l.b16 %v23
  %v238 = vunpack.c.l.b16 %v24
  %v239 = vunpack.c.l.b16 %v25
  %v240 = vunpack.c.l.b16 %v26
  %v241 = vunpack.c.l.b16 %v27
  %v242 = vunpack.c.l.b16 %v28
  %v243 = vunpack.c.l.b16 %v29
  %v244 = vunpack.c.l.b16 %v30
  %v245 = vunpack.c.l.b16 %v31
  %v246 = vunpack.c.l.b16 %v32
  %v247 = vunpack.c.l.b16 %v33
  %v248 = vpack.c.b16 %v230, %v229
  %v249 = vpack.c.b16 %v232, %v231
  %v250 = vpack.c.b16 %v234, %v233
  %v251 = vpack.c.b16 %v236, %v235
  %v252 = vpack.c.b16 %v238, %v237
  %v253 = vpack.c.b16 %v240, %v239
  %v254 = vpack.c.b16 %v242, %v241
  %v255 = vpack.c.b16 %v244, %v243
  %v256 = vpack.c.b16 %v246, %v245
  %v257 = vpack.c.b16 %v247, %v247
  %vm267 = vcmask 195584
  %v269 = vsel %vm267, %v163, 0
  %v272 = vsel %vm267, %v165, 0
  %v275 = vsel %vm267, %v167, 0
  %v278 = vsel %vm267, %v169, 0
  %v281 = vsel %vm267, %v171, 0
  %v284 = vsel %vm267, %v173, 0
  %v287 = vsel %vm267, %v175, 0
  %v290 = vsel %vm267, %v177, 0
  %v293 = vsel %vm267, %v179, 0
  %v296 = vsel %vm267, %v181, 0
  %v299 = vsel %vm267, %v183, 0
  %v302 = vsel %vm267, %v185, 0
  %v305 = vsel %vm267, %v187, 0
  %v308 = vsel %vm267, %v189, 0
  %v311 = vsel %vm267, %v191, 0
  %v314 = vsel %vm267, %v193, 0
  %vm316 = vcmask 1043456
  %v318 = vsel %vm316, %v257, 0
  %320 = vmatprep.subr.bf16.mxu0 0
  %321 = vmatpush1.bf16.msra.mxu0 %v255
  %322 = vmatprep.subr.bf16.mxu0 0
  %323 = vmatpush1.bf16.msra.mxu0 %v254
  %324 = vmatprep.subr.bf16.mxu0 0
  %325 = vmatpush1.bf16.msra.mxu0 %v253
  %326 = vmatprep.subr.bf16.mxu0 0
  %327 = vmatpush1.bf16.msra.mxu0 %v252
  %328 = vmatprep.subr.bf16.mxu0 0
  %329 = vmatpush1.bf16.msra.mxu0 %v251
  %330 = vmatprep.subr.bf16.mxu0 0
  %331 = vmatpush1.bf16.msra.mxu0 %v250
  %332 = vmatprep.subr.bf16.mxu0 0
  %333 = vmatpush1.bf16.msra.mxu0 %v249
  %334 = vmatprep.subr.bf16.mxu0 0
  %335 = vmatpush1.bf16.msra.mxu0 %v248
  %336 = vmatprep.subr.bf16.mxu0 0
  %337 = vmatpush2.bf16.msra.mxu0 0
  %338 = vmatprep.subr.bf16.mxu0 0
  %339 = vmatpush2.bf16.msra.mxu0 0
  %340 = vmatprep.subr.bf16.mxu0 0
  %341 = vmatpush2.bf16.msra.mxu0 0
  %342 = vmatprep.subr.bf16.mxu0 0
  %343 = vmatpush2.bf16.msra.mxu0 0
  %344 = vmatprep.subr.bf16.mxu0 0
  %345 = vmatpush2.bf16.msra.mxu0 0
  %346 = vmatprep.subr.bf16.mxu0 0
  %347 = vmatpush2.bf16.msra.mxu0 0
  %348 = vmatprep.subr.bf16.mxu0 0
  %349 = vmatpush2.bf16.msra.mxu0 %v318
  %350 = vmatprep.subr.bf16.mxu0 0
  %351 = vmatpush2.bf16.msra.mxu0 %v256
  %352 = vmatprep.mubr.bf16.mxu0 %v269
  %353 = vmatmul.mubr.bf16.gmra.mxu0 %v162
  %v354 = vpop.f32.mrf.mxu0
  %v355 = vadd.f32 0.0, %v354
  %v356 = vpop.f32.mrf.mxu0
  %v357 = vpop.f32.mrf.mxu0
  %v358 = vadd.f32 0.0, %v357
  %v359 = vpop.f32.mrf.mxu0
  %360 = vmatprep.mubr.bf16.mxu0 %v272
  %361 = vmatmul.mubr.bf16.gmra.mxu0 %v164
  %v362 = vpop.f32.mrf.mxu0
  %v363 = vadd.f32 0.0, %v362
  %v364 = vpop.f32.mrf.mxu0
  %v365 = vpop.f32.mrf.mxu0
  %v366 = vadd.f32 0.0, %v365
  %v367 = vpop.f32.mrf.mxu0
  %368 = vmatprep.mubr.bf16.mxu0 %v275
  %369 = vmatmul.mubr.bf16.gmra.mxu0 %v166
  %v370 = vpop.f32.mrf.mxu0
  %v371 = vadd.f32 0.0, %v370
  %v372 = vpop.f32.mrf.mxu0
  %v373 = vpop.f32.mrf.mxu0
  %v374 = vadd.f32 0.0, %v373
  %v375 = vpop.f32.mrf.mxu0
  %376 = vmatprep.mubr.bf16.mxu0 %v278
  %377 = vmatmul.mubr.bf16.gmra.mxu0 %v168
  %v378 = vpop.f32.mrf.mxu0
  %v379 = vadd.f32 0.0, %v378
  %v380 = vpop.f32.mrf.mxu0
  %v381 = vpop.f32.mrf.mxu0
  %v382 = vadd.f32 0.0, %v381
  %v383 = vpop.f32.mrf.mxu0
  %384 = vmatprep.mubr.bf16.mxu0 %v281
  %385 = vmatmul.mubr.bf16.gmra.mxu0 %v170
  %v386 = vpop.f32.mrf.mxu0
  %v387 = vadd.f32 0.0, %v386
  %v388 = vpop.f32.mrf.mxu0
  %v389 = vpop.f32.mrf.mxu0
  %v390 = vadd.f32 0.0, %v389
  %v391 = vpop.f32.mrf.mxu0
  %392 = vmatprep.mubr.bf16.mxu0 %v284
  %393 = vmatmul.mubr.bf16.gmra.mxu0 %v172
  %v394 = vpop.f32.mrf.mxu0
  %v395 = vadd.f32 0.0, %v394
  %v396 = vpop.f32.mrf.mxu0
  %v397 = vpop.f32.mrf.mxu0
  %v398 = vadd.f32 0.0, %v397
  %v399 = vpop.f32.mrf.mxu0
  %400 = vmatprep.mubr.bf16.mxu0 %v287
  %401 = vmatmul.mubr.bf16.gmra.mxu0 %v174
  %v402 = vpop.f32.mrf.mxu0
  %v403 = vadd.f32 0.0, %v402
  %v404 = vpop.f32.mrf.mxu0
  %v405 = vpop.f32.mrf.mxu0
  %v406 = vadd.f32 0.0, %v405
  %v407 = vpop.f32.mrf.mxu0
  %408 = vmatprep.mubr.bf16.mxu0 %v290
  %409 = vmatmul.mubr.bf16.gmra.mxu0 %v176
  %v410 = vpop.f32.mrf.mxu0
  %v411 = vadd.f32 0.0, %v410
  %v412 = vpop.f32.mrf.mxu0
  %v413 = vpop.f32.mrf.mxu0
  %v414 = vadd.f32 0.0, %v413
  %v415 = vpop.f32.mrf.mxu0
  %416 = vmatprep.mubr.bf16.mxu0 %v293
  %417 = vmatmul.mubr.bf16.gmra.mxu0 %v178
  %v418 = vpop.f32.mrf.mxu0
  %v419 = vadd.f32 0.0, %v418
  %v420 = vpop.f32.mrf.mxu0
  %v421 = vpop.f32.mrf.mxu0
  %v422 = vadd.f32 0.0, %v421
  %v423 = vpop.f32.mrf.mxu0
  %424 = vmatprep.mubr.bf16.mxu0 %v296
  %425 = vmatmul.mubr.bf16.gmra.mxu0 %v180
  %v426 = vpop.f32.mrf.mxu0
  %v427 = vadd.f32 0.0, %v426
  %v428 = vpop.f32.mrf.mxu0
  %v429 = vpop.f32.mrf.mxu0
  %v430 = vadd.f32 0.0, %v429
  %v431 = vpop.f32.mrf.mxu0
  %432 = vmatprep.mubr.bf16.mxu0 %v299
  %433 = vmatmul.mubr.bf16.gmra.mxu0 %v182
  %v434 = vpop.f32.mrf.mxu0
  %v435 = vadd.f32 0.0, %v434
  %v436 = vpop.f32.mrf.mxu0
  %v437 = vpop.f32.mrf.mxu0
  %v438 = vadd.f32 0.0, %v437
  %v439 = vpop.f32.mrf.mxu0
  %440 = vmatprep.mubr.bf16.mxu0 %v302
  %441 = vmatmul.mubr.bf16.gmra.mxu0 %v184
  %v442 = vpop.f32.mrf.mxu0
  %v443 = vadd.f32 0.0, %v442
  %v444 = vpop.f32.mrf.mxu0
  %v445 = vpop.f32.mrf.mxu0
  %v446 = vadd.f32 0.0, %v445
  %v447 = vpop.f32.mrf.mxu0
  %448 = vmatprep.mubr.bf16.mxu0 %v305
  %449 = vmatmul.mubr.bf16.gmra.mxu0 %v186
  %v450 = vpop.f32.mrf.mxu0
  %v451 = vadd.f32 0.0, %v450
  %v452 = vpop.f32.mrf.mxu0
  %v453 = vpop.f32.mrf.mxu0
  %v454 = vadd.f32 0.0, %v453
  %v455 = vpop.f32.mrf.mxu0
  %456 = vmatprep.mubr.bf16.mxu0 %v308
  %457 = vmatmul.mubr.bf16.gmra.mxu0 %v188
  %v458 = vpop.f32.mrf.mxu0
  %v459 = vadd.f32 0.0, %v458
  %v460 = vpop.f32.mrf.mxu0
  %v461 = vpop.f32.mrf.mxu0
  %v462 = vadd.f32 0.0, %v461
  %v463 = vpop.f32.mrf.mxu0
  %464 = vmatprep.mubr.bf16.mxu0 %v311
  %465 = vmatmul.mubr.bf16.gmra.mxu0 %v190
  %v466 = vpop.f32.mrf.mxu0
  %v467 = vadd.f32 0.0, %v466
  %v468 = vpop.f32.mrf.mxu0
  %v469 = vpop.f32.mrf.mxu0
  %v470 = vadd.f32 0.0, %v469
  %v471 = vpop.f32.mrf.mxu0
  %472 = vmatprep.mubr.bf16.mxu0 %v314
  %473 = vmatmul.mubr.bf16.gmra.mxu0 %v192
  %v474 = vpop.f32.mrf.mxu0
  %v475 = vadd.f32 0.0, %v474
  %v476 = vpop.f32.mrf.mxu0
  %v477 = vpop.f32.mrf.mxu0
  %v478 = vadd.f32 0.0, %v477
  %v479 = vpop.f32.mrf.mxu0
  %480 = vdwg.mxu0
  %v481 = vld [vmem:[%s0 + $0x20] sm:$0xff]
  %v482 = vld [vmem:[%s0 + $0x28] sm:$0xff]
  %v483 = vld [vmem:[%s0 + $0x30] sm:$0xff]
  %v484 = vld [vmem:[%s0 + $0x38] sm:$0xff]
  %v485 = vld [vmem:[%s0 + $0xa0] sm:$0xff]
  %v486 = vld [vmem:[%s0 + $0xa8] sm:$0xff]
  %v487 = vld [vmem:[%s0 + $0xb0] sm:$0xff]
  %v488 = vld [vmem:[%s0 + $0xb8] sm:$0xff]
  %v489 = vld [vmem:[%s0 + $0x120] sm:$0xff]
  %v490 = vld [vmem:[%s0 + $0x128] sm:$0xff]
  %v491 = vld [vmem:[%s0 + $0x130] sm:$0xff]
  %v492 = vld [vmem:[%s0 + $0x138] sm:$0xff]
  %v493 = vld [vmem:[%s0 + $0x1a0] sm:$0xff]
  %v494 = vld [vmem:[%s0 + $0x1a8] sm:$0xff]
  %v495 = vld [vmem:[%s0 + $0x1b0] sm:$0xff]
  %v496 = vld [vmem:[%s0 + $0x1b8] sm:$0xff]
  %v497 = vld [vmem:[%s0 + $0x220] sm:$0xff]
  %v498 = vld [vmem:[%s0 + $0x228] sm:$0xff]
  %v499 = vld [vmem:[%s0 + $0x230] sm:$0xff]
  %v500 = vld [vmem:[%s0 + $0x238] sm:$0xff]
  %v501 = vld [vmem:[%s0 + $0x2a0] sm:$0xff]
  %v502 = vld [vmem:[%s0 + $0x2a8] sm:$0xff]
  %v503 = vld [vmem:[%s0 + $0x2b0] sm:$0xff]
  %v504 = vld [vmem:[%s0 + $0x2b8] sm:$0xff]
  %v505 = vld [vmem:[%s0 + $0x320] sm:$0xff]
  %v506 = vld [vmem:[%s0 + $0x328] sm:$0xff]
  %v507 = vld [vmem:[%s0 + $0x330] sm:$0xff]
  %v508 = vld [vmem:[%s0 + $0x338] sm:$0xff]
  %v509 = vld [vmem:[%s0 + $0x3a0] sm:$0xff]
  %v510 = vld [vmem:[%s0 + $0x3a8] sm:$0xff]
  %v511 = vld [vmem:[%s0 + $0x3b0] sm:$0xff]
  %v512 = vld [vmem:[%s0 + $0x3b8] sm:$0xff]
  %v545 = vunpack.c.l.b16 %v481
  %v546 = vunpack.c.h.b16 %v481
  %v547 = vunpack.c.l.b16 %v482
  %v548 = vunpack.c.h.b16 %v482
  %v549 = vunpack.c.l.b16 %v483
  %v550 = vunpack.c.h.b16 %v483
  %v551 = vunpack.c.l.b16 %v484
  %v552 = vunpack.c.h.b16 %v484
  %v553 = vunpack.c.l.b16 %v485
  %v554 = vunpack.c.h.b16 %v485
  %v555 = vunpack.c.l.b16 %v486
  %v556 = vunpack.c.h.b16 %v486
  %v557 = vunpack.c.l.b16 %v487
  %v558 = vunpack.c.h.b16 %v487
  %v559 = vunpack.c.l.b16 %v488
  %v560 = vunpack.c.h.b16 %v488
  %v561 = vunpack.c.l.b16 %v489
  %v562 = vunpack.c.h.b16 %v489
  %v563 = vunpack.c.l.b16 %v490
  %v564 = vunpack.c.h.b16 %v490
  %v565 = vunpack.c.l.b16 %v491
  %v566 = vunpack.c.h.b16 %v491
  %v567 = vunpack.c.l.b16 %v492
  %v568 = vunpack.c.h.b16 %v492
  %v569 = vunpack.c.l.b16 %v493
  %v570 = vunpack.c.h.b16 %v493
  %v571 = vunpack.c.l.b16 %v494
  %v572 = vunpack.c.h.b16 %v494
  %v573 = vunpack.c.l.b16 %v495
  %v574 = vunpack.c.h.b16 %v495
  %v575 = vunpack.c.l.b16 %v496
  %v576 = vunpack.c.h.b16 %v496
  %v577 = vunpack.c.l.b16 %v497
  %v578 = vunpack.c.h.b16 %v497
  %v579 = vunpack.c.l.b16 %v498
  %v580 = vunpack.c.h.b16 %v498
  %v581 = vunpack.c.l.b16 %v499
  %v582 = vunpack.c.h.b16 %v499
  %v583 = vunpack.c.l.b16 %v500
  %v584 = vunpack.c.h.b16 %v500
  %v585 = vunpack.c.l.b16 %v501
  %v586 = vunpack.c.h.b16 %v501
  %v587 = vunpack.c.l.b16 %v502
  %v588 = vunpack.c.h.b16 %v502
  %v589 = vunpack.c.l.b16 %v503
  %v590 = vunpack.c.h.b16 %v503
  %v591 = vunpack.c.l.b16 %v504
  %v592 = vunpack.c.h.b16 %v504
  %v593 = vunpack.c.l.b16 %v505
  %v594 = vunpack.c.h.b16 %v505
  %v595 = vunpack.c.l.b16 %v506
  %v596 = vunpack.c.h.b16 %v506
  %v597 = vunpack.c.l.b16 %v507
  %v598 = vunpack.c.h.b16 %v507
  %v599 = vunpack.c.l.b16 %v508
  %v600 = vunpack.c.h.b16 %v508
  %v601 = vunpack.c.l.b16 %v509
  %v602 = vunpack.c.h.b16 %v509
  %v603 = vunpack.c.l.b16 %v510
  %v604 = vunpack.c.h.b16 %v510
  %v605 = vunpack.c.l.b16 %v511
  %v606 = vunpack.c.h.b16 %v511
  %v607 = vunpack.c.l.b16 %v512
  %v608 = vunpack.c.h.b16 %v512
  %v609 = vpack.c.b16 %v547, %v545
  %v610 = vpack.c.b16 %v548, %v546
  %v611 = vpack.c.b16 %v551, %v549
  %v612 = vpack.c.b16 %v552, %v550
  %v613 = vpack.c.b16 %v555, %v553
  %v614 = vpack.c.b16 %v556, %v554
  %v615 = vpack.c.b16 %v559, %v557
  %v616 = vpack.c.b16 %v560, %v558
  %v617 = vpack.c.b16 %v563, %v561
  %v618 = vpack.c.b16 %v564, %v562
  %v619 = vpack.c.b16 %v567, %v565
  %v620 = vpack.c.b16 %v568, %v566
  %v621 = vpack.c.b16 %v571, %v569
  %v622 = vpack.c.b16 %v572, %v570
  %v623 = vpack.c.b16 %v575, %v573
  %v624 = vpack.c.b16 %v576, %v574
  %v625 = vpack.c.b16 %v579, %v577
  %v626 = vpack.c.b16 %v580, %v578
  %v627 = vpack.c.b16 %v583, %v581
  %v628 = vpack.c.b16 %v584, %v582
  %v629 = vpack.c.b16 %v587, %v585
  %v630 = vpack.c.b16 %v588, %v586
  %v631 = vpack.c.b16 %v591, %v589
  %v632 = vpack.c.b16 %v592, %v590
  %v633 = vpack.c.b16 %v595, %v593
  %v634 = vpack.c.b16 %v596, %v594
  %v635 = vpack.c.b16 %v599, %v597
  %v636 = vpack.c.b16 %v600, %v598
  %v637 = vpack.c.b16 %v603, %v601
  %v638 = vpack.c.b16 %v604, %v602
  %v639 = vpack.c.b16 %v607, %v605
  %v640 = vpack.c.b16 %v608, %v606
  %v658 = vsel %vm267, %v610, 0
  %v661 = vsel %vm267, %v612, 0
  %v664 = vsel %vm267, %v614, 0
  %v667 = vsel %vm267, %v616, 0
  %v670 = vsel %vm267, %v618, 0
  %v673 = vsel %vm267, %v620, 0
  %v676 = vsel %vm267, %v622, 0
  %v679 = vsel %vm267, %v624, 0
  %v682 = vsel %vm267, %v626, 0
  %v685 = vsel %vm267, %v628, 0
  %v688 = vsel %vm267, %v630, 0
  %v691 = vsel %vm267, %v632, 0
  %v694 = vsel %vm267, %v634, 0
  %v697 = vsel %vm267, %v636, 0
  %v700 = vsel %vm267, %v638, 0
  %v703 = vsel %vm267, %v640, 0
  %705 = vmatprep.subr.bf16.mxu0 0
  %706 = vmatpush1.bf16.msra.mxu0 %v255
  %707 = vmatprep.subr.bf16.mxu0 0
  %708 = vmatpush1.bf16.msra.mxu0 %v254
  %709 = vmatprep.subr.bf16.mxu0 0
  %710 = vmatpush1.bf16.msra.mxu0 %v253
  %711 = vmatprep.subr.bf16.mxu0 0
  %712 = vmatpush1.bf16.msra.mxu0 %v252
  %713 = vmatprep.subr.bf16.mxu0 0
  %714 = vmatpush1.bf16.msra.mxu0 %v251
  %715 = vmatprep.subr.bf16.mxu0 0
  %716 = vmatpush1.bf16.msra.mxu0 %v250
  %717 = vmatprep.subr.bf16.mxu0 0
  %718 = vmatpush1.bf16.msra.mxu0 %v249
  %719 = vmatprep.subr.bf16.mxu0 0
  %720 = vmatpush1.bf16.msra.mxu0 %v248
  %721 = vmatprep.subr.bf16.mxu0 0
  %722 = vmatpush2.bf16.msra.mxu0 0
  %723 = vmatprep.subr.bf16.mxu0 0
  %724 = vmatpush2.bf16.msra.mxu0 0
  %725 = vmatprep.subr.bf16.mxu0 0
  %726 = vmatpush2.bf16.msra.mxu0 0
  %727 = vmatprep.subr.bf16.mxu0 0
  %728 = vmatpush2.bf16.msra.mxu0 0
  %729 = vmatprep.subr.bf16.mxu0 0
  %730 = vmatpush2.bf16.msra.mxu0 0
  %731 = vmatprep.subr.bf16.mxu0 0
  %732 = vmatpush2.bf16.msra.mxu0 0
  %733 = vmatprep.subr.bf16.mxu0 0
  %734 = vmatpush2.bf16.msra.mxu0 %v318
  %735 = vmatprep.subr.bf16.mxu0 0
  %736 = vmatpush2.bf16.msra.mxu0 %v256
  %737 = vmatprep.mubr.bf16.mxu0 %v658
  %738 = vmatmul.mubr.bf16.gmra.mxu0 %v609
  %v739 = vpop.f32.mrf.mxu0
  %v740 = vadd.f32 0.0, %v739
  %v741 = vpop.f32.mrf.mxu0
  %v742 = vpop.f32.mrf.mxu0
  %v743 = vadd.f32 0.0, %v742
  %v744 = vpop.f32.mrf.mxu0
  %745 = vmatprep.mubr.bf16.mxu0 %v661
  %746 = vmatmul.mubr.bf16.gmra.mxu0 %v611
  %v747 = vpop.f32.mrf.mxu0
  %v748 = vadd.f32 0.0, %v747
  %v749 = vpop.f32.mrf.mxu0
  %v750 = vpop.f32.mrf.mxu0
  %v751 = vadd.f32 0.0, %v750
  %v752 = vpop.f32.mrf.mxu0
  %753 = vmatprep.mubr.bf16.mxu0 %v664
  %754 = vmatmul.mubr.bf16.gmra.mxu0 %v613
  %v755 = vpop.f32.mrf.mxu0
  %v756 = vadd.f32 0.0, %v755
  %v757 = vpop.f32.mrf.mxu0
  %v758 = vpop.f32.mrf.mxu0
  %v759 = vadd.f32 0.0, %v758
  %v760 = vpop.f32.mrf.mxu0
  %761 = vmatprep.mubr.bf16.mxu0 %v667
  %762 = vmatmul.mubr.bf16.gmra.mxu0 %v615
  %v763 = vpop.f32.mrf.mxu0
  %v764 = vadd.f32 0.0, %v763
  %v765 = vpop.f32.mrf.mxu0
  %v766 = vpop.f32.mrf.mxu0
  %v767 = vadd.f32 0.0, %v766
  %v768 = vpop.f32.mrf.mxu0
  %769 = vmatprep.mubr.bf16.mxu0 %v670
  %770 = vmatmul.mubr.bf16.gmra.mxu0 %v617
  %v771 = vpop.f32.mrf.mxu0
  %v772 = vadd.f32 0.0, %v771
  %v773 = vpop.f32.mrf.mxu0
  %v774 = vpop.f32.mrf.mxu0
  %v775 = vadd.f32 0.0, %v774
  %v776 = vpop.f32.mrf.mxu0
  %777 = vmatprep.mubr.bf16.mxu0 %v673
  %778 = vmatmul.mubr.bf16.gmra.mxu0 %v619
  %v779 = vpop.f32.mrf.mxu0
  %v780 = vadd.f32 0.0, %v779
  %v781 = vpop.f32.mrf.mxu0
  %v782 = vpop.f32.mrf.mxu0
  %v783 = vadd.f32 0.0, %v782
  %v784 = vpop.f32.mrf.mxu0
  %785 = vmatprep.mubr.bf16.mxu0 %v676
  %786 = vmatmul.mubr.bf16.gmra.mxu0 %v621
  %v787 = vpop.f32.mrf.mxu0
  %v788 = vadd.f32 0.0, %v787
  %v789 = vpop.f32.mrf.mxu0
  %v790 = vpop.f32.mrf.mxu0
  %v791 = vadd.f32 0.0, %v790
  %v792 = vpop.f32.mrf.mxu0
  %793 = vmatprep.mubr.bf16.mxu0 %v679
  %794 = vmatmul.mubr.bf16.gmra.mxu0 %v623
  %v795 = vpop.f32.mrf.mxu0
  %v796 = vadd.f32 0.0, %v795
  %v797 = vpop.f32.mrf.mxu0
  %v798 = vpop.f32.mrf.mxu0
  %v799 = vadd.f32 0.0, %v798
  %v800 = vpop.f32.mrf.mxu0
  %801 = vmatprep.mubr.bf16.mxu0 %v682
  %802 = vmatmul.mubr.bf16.gmra.mxu0 %v625
  %v803 = vpop.f32.mrf.mxu0
  %v804 = vadd.f32 0.0, %v803
  %v805 = vpop.f32.mrf.mxu0
  %v806 = vpop.f32.mrf.mxu0
  %v807 = vadd.f32 0.0, %v806
  %v808 = vpop.f32.mrf.mxu0
  %809 = vmatprep.mubr.bf16.mxu0 %v685
  %810 = vmatmul.mubr.bf16.gmra.mxu0 %v627
  %v811 = vpop.f32.mrf.mxu0
  %v812 = vadd.f32 0.0, %v811
  %v813 = vpop.f32.mrf.mxu0
  %v814 = vpop.f32.mrf.mxu0
  %v815 = vadd.f32 0.0, %v814
  %v816 = vpop.f32.mrf.mxu0
  %817 = vmatprep.mubr.bf16.mxu0 %v688
  %818 = vmatmul.mubr.bf16.gmra.mxu0 %v629
  %v819 = vpop.f32.mrf.mxu0
  %v820 = vadd.f32 0.0, %v819
  %v821 = vpop.f32.mrf.mxu0
  %v822 = vpop.f32.mrf.mxu0
  %v823 = vadd.f32 0.0, %v822
  %v824 = vpop.f32.mrf.mxu0
  %825 = vmatprep.mubr.bf16.mxu0 %v691
  %826 = vmatmul.mubr.bf16.gmra.mxu0 %v631
  %v827 = vpop.f32.mrf.mxu0
  %v828 = vadd.f32 0.0, %v827
  %v829 = vpop.f32.mrf.mxu0
  %v830 = vpop.f32.mrf.mxu0
  %v831 = vadd.f32 0.0, %v830
  %v832 = vpop.f32.mrf.mxu0
  %833 = vmatprep.mubr.bf16.mxu0 %v694
  %834 = vmatmul.mubr.bf16.gmra.mxu0 %v633
  %v835 = vpop.f32.mrf.mxu0
  %v836 = vadd.f32 0.0, %v835
  %v837 = vpop.f32.mrf.mxu0
  %v838 = vpop.f32.mrf.mxu0
  %v839 = vadd.f32 0.0, %v838
  %v840 = vpop.f32.mrf.mxu0
  %841 = vmatprep.mubr.bf16.mxu0 %v697
  %842 = vmatmul.mubr.bf16.gmra.mxu0 %v635
  %v843 = vpop.f32.mrf.mxu0
  %v844 = vadd.f32 0.0, %v843
  %v845 = vpop.f32.mrf.mxu0
  %v846 = vpop.f32.mrf.mxu0
  %v847 = vadd.f32 0.0, %v846
  %v848 = vpop.f32.mrf.mxu0
  %849 = vmatprep.mubr.bf16.mxu0 %v700
  %850 = vmatmul.mubr.bf16.gmra.mxu0 %v637
  %v851 = vpop.f32.mrf.mxu0
  %v852 = vadd.f32 0.0, %v851
  %v853 = vpop.f32.mrf.mxu0
  %v854 = vpop.f32.mrf.mxu0
  %v855 = vadd.f32 0.0, %v854
  %v856 = vpop.f32.mrf.mxu0
  %857 = vmatprep.mubr.bf16.mxu0 %v703
  %858 = vmatmul.mubr.bf16.gmra.mxu0 %v639
  %v859 = vpop.f32.mrf.mxu0
  %v860 = vadd.f32 0.0, %v859
  %v861 = vpop.f32.mrf.mxu0
  %v862 = vpop.f32.mrf.mxu0
  %v863 = vadd.f32 0.0, %v862
  %v864 = vpop.f32.mrf.mxu0
  %865 = vdwg.mxu0
  %v866 = vmax.f32 %v355, %v740
  %v867 = vmax.f32 %v358, %v743
  %v868 = vmax.f32 %v363, %v748
  %v869 = vmax.f32 %v366, %v751
  %v870 = vmax.f32 %v371, %v756
  %v871 = vmax.f32 %v374, %v759
  %v872 = vmax.f32 %v379, %v764
  %v873 = vmax.f32 %v382, %v767
  %v874 = vmax.f32 %v387, %v772
  %v875 = vmax.f32 %v390, %v775
  %v876 = vmax.f32 %v395, %v780
  %v877 = vmax.f32 %v398, %v783
  %v878 = vmax.f32 %v403, %v788
  %v879 = vmax.f32 %v406, %v791
  %v880 = vmax.f32 %v411, %v796
  %v881 = vmax.f32 %v414, %v799
  %v882 = vmax.f32 %v419, %v804
  %v883 = vmax.f32 %v422, %v807
  %v884 = vmax.f32 %v427, %v812
  %v885 = vmax.f32 %v430, %v815
  %v886 = vmax.f32 %v435, %v820
  %v887 = vmax.f32 %v438, %v823
  %v888 = vmax.f32 %v443, %v828
  %v889 = vmax.f32 %v446, %v831
  %v890 = vmax.f32 %v451, %v836
  %v891 = vmax.f32 %v454, %v839
  %v892 = vmax.f32 %v459, %v844
  %v893 = vmax.f32 %v462, %v847
  %v894 = vmax.f32 %v467, %v852
  %v895 = vmax.f32 %v470, %v855
  %v896 = vmax.f32 %v475, %v860
  %v897 = vmax.f32 %v478, %v863
  %v898 = vld [vmem:[%s0 + $0x40] sm:$0xff]
  %v899 = vld [vmem:[%s0 + $0x48] sm:$0xff]
  %v900 = vld [vmem:[%s0 + $0x50] sm:$0xff]
  %v901 = vld [vmem:[%s0 + $0x58] sm:$0xff]
  %v902 = vld [vmem:[%s0 + $0xc0] sm:$0xff]
  %v903 = vld [vmem:[%s0 + $0xc8] sm:$0xff]
  %v904 = vld [vmem:[%s0 + $0xd0] sm:$0xff]
  %v905 = vld [vmem:[%s0 + $0xd8] sm:$0xff]
  %v906 = vld [vmem:[%s0 + $0x140] sm:$0xff]
  %v907 = vld [vmem:[%s0 + $0x148] sm:$0xff]
  %v908 = vld [vmem:[%s0 + $0x150] sm:$0xff]
  %v909 = vld [vmem:[%s0 + $0x158] sm:$0xff]
  %v910 = vld [vmem:[%s0 + $0x1c0] sm:$0xff]
  %v911 = vld [vmem:[%s0 + $0x1c8] sm:$0xff]
  %v912 = vld [vmem:[%s0 + $0x1d0] sm:$0xff]
  %v913 = vld [vmem:[%s0 + $0x1d8] sm:$0xff]
  %v914 = vld [vmem:[%s0 + $0x240] sm:$0xff]
  %v915 = vld [vmem:[%s0 + $0x248] sm:$0xff]
  %v916 = vld [vmem:[%s0 + $0x250] sm:$0xff]
  %v917 = vld [vmem:[%s0 + $0x258] sm:$0xff]
  %v918 = vld [vmem:[%s0 + $0x2c0] sm:$0xff]
  %v919 = vld [vmem:[%s0 + $0x2c8] sm:$0xff]
  %v920 = vld [vmem:[%s0 + $0x2d0] sm:$0xff]
  %v921 = vld [vmem:[%s0 + $0x2d8] sm:$0xff]
  %v922 = vld [vmem:[%s0 + $0x340] sm:$0xff]
  %v923 = vld [vmem:[%s0 + $0x348] sm:$0xff]
  %v924 = vld [vmem:[%s0 + $0x350] sm:$0xff]
  %v925 = vld [vmem:[%s0 + $0x358] sm:$0xff]
  %v926 = vld [vmem:[%s0 + $0x3c0] sm:$0xff]
  %v927 = vld [vmem:[%s0 + $0x3c8] sm:$0xff]
  %v928 = vld [vmem:[%s0 + $0x3d0] sm:$0xff]
  %v929 = vld [vmem:[%s0 + $0x3d8] sm:$0xff]
  %v962 = vunpack.c.l.b16 %v898
  %v963 = vunpack.c.h.b16 %v898
  %v964 = vunpack.c.l.b16 %v899
  %v965 = vunpack.c.h.b16 %v899
  %v966 = vunpack.c.l.b16 %v900
  %v967 = vunpack.c.h.b16 %v900
  %v968 = vunpack.c.l.b16 %v901
  %v969 = vunpack.c.h.b16 %v901
  %v970 = vunpack.c.l.b16 %v902
  %v971 = vunpack.c.h.b16 %v902
  %v972 = vunpack.c.l.b16 %v903
  %v973 = vunpack.c.h.b16 %v903
  %v974 = vunpack.c.l.b16 %v904
  %v975 = vunpack.c.h.b16 %v904
  %v976 = vunpack.c.l.b16 %v905
  %v977 = vunpack.c.h.b16 %v905
  %v978 = vunpack.c.l.b16 %v906
  %v979 = vunpack.c.h.b16 %v906
  %v980 = vunpack.c.l.b16 %v907
  %v981 = vunpack.c.h.b16 %v907
  %v982 = vunpack.c.l.b16 %v908
  %v983 = vunpack.c.h.b16 %v908
  %v984 = vunpack.c.l.b16 %v909
  %v985 = vunpack.c.h.b16 %v909
  %v986 = vunpack.c.l.b16 %v910
  %v987 = vunpack.c.h.b16 %v910
  %v988 = vunpack.c.l.b16 %v911
  %v989 = vunpack.c.h.b16 %v911
  %v990 = vunpack.c.l.b16 %v912
  %v991 = vunpack.c.h.b16 %v912
  %v992 = vunpack.c.l.b16 %v913
  %v993 = vunpack.c.h.b16 %v913
  %v994 = vunpack.c.l.b16 %v914
  %v995 = vunpack.c.h.b16 %v914
  %v996 = vunpack.c.l.b16 %v915
  %v997 = vunpack.c.h.b16 %v915
  %v998 = vunpack.c.l.b16 %v916
  %v999 = vunpack.c.h.b16 %v916
  %v1000 = vunpack.c.l.b16 %v917
  %v1001 = vunpack.c.h.b16 %v917
  %v1002 = vunpack.c.l.b16 %v918
  %v1003 = vunpack.c.h.b16 %v918
  %v1004 = vunpack.c.l.b16 %v919
  %v1005 = vunpack.c.h.b16 %v919
  %v1006 = vunpack.c.l.b16 %v920
  %v1007 = vunpack.c.h.b16 %v920
  %v1008 = vunpack.c.l.b16 %v921
  %v1009 = vunpack.c.h.b16 %v921
  %v1010 = vunpack.c.l.b16 %v922
  %v1011 = vunpack.c.h.b16 %v922
  %v1012 = vunpack.c.l.b16 %v923
  %v1013 = vunpack.c.h.b16 %v923
  %v1014 = vunpack.c.l.b16 %v924
  %v1015 = vunpack.c.h.b16 %v924
  %v1016 = vunpack.c.l.b16 %v925
  %v1017 = vunpack.c.h.b16 %v925
  %v1018 = vunpack.c.l.b16 %v926
  %v1019 = vunpack.c.h.b16 %v926
  %v1020 = vunpack.c.l.b16 %v927
  %v1021 = vunpack.c.h.b16 %v927
  %v1022 = vunpack.c.l.b16 %v928
  %v1023 = vunpack.c.h.b16 %v928
  %v1024 = vunpack.c.l.b16 %v929
  %v1025 = vunpack.c.h.b16 %v929
  %v1026 = vpack.c.b16 %v964, %v962
  %v1027 = vpack.c.b16 %v965, %v963
  %v1028 = vpack.c.b16 %v968, %v966
  %v1029 = vpack.c.b16 %v969, %v967
  %v1030 = vpack.c.b16 %v972, %v970
  %v1031 = vpack.c.b16 %v973, %v971
  %v1032 = vpack.c.b16 %v976, %v974
  %v1033 = vpack.c.b16 %v977, %v975
  %v1034 = vpack.c.b16 %v980, %v978
  %v1035 = vpack.c.b16 %v981, %v979
  %v1036 = vpack.c.b16 %v984, %v982
  %v1037 = vpack.c.b16 %v985, %v983
  %v1038 = vpack.c.b16 %v988, %v986
  %v1039 = vpack.c.b16 %v989, %v987
  %v1040 = vpack.c.b16 %v992, %v990
  %v1041 = vpack.c.b16 %v993, %v991
  %v1042 = vpack.c.b16 %v996, %v994
  %v1043 = vpack.c.b16 %v997, %v995
  %v1044 = vpack.c.b16 %v1000, %v998
  %v1045 = vpack.c.b16 %v1001, %v999
  %v1046 = vpack.c.b16 %v1004, %v1002
  %v1047 = vpack.c.b16 %v1005, %v1003
  %v1048 = vpack.c.b16 %v1008, %v1006
  %v1049 = vpack.c.b16 %v1009, %v1007
  %v1050 = vpack.c.b16 %v1012, %v1010
  %v1051 = vpack.c.b16 %v1013, %v1011
  %v1052 = vpack.c.b16 %v1016, %v1014
  %v1053 = vpack.c.b16 %v1017, %v1015
  %v1054 = vpack.c.b16 %v1020, %v1018
  %v1055 = vpack.c.b16 %v1021, %v1019
  %v1056 = vpack.c.b16 %v1024, %v1022
  %v1057 = vpack.c.b16 %v1025, %v1023
  %v1075 = vsel %vm267, %v1027, 0
  %v1078 = vsel %vm267, %v1029, 0
  %v1081 = vsel %vm267, %v1031, 0
  %v1084 = vsel %vm267, %v1033, 0
  %v1087 = vsel %vm267, %v1035, 0
  %v1090 = vsel %vm267, %v1037, 0
  %v1093 = vsel %vm267, %v1039, 0
  %v1096 = vsel %vm267, %v1041, 0
  %v1099 = vsel %vm267, %v1043, 0
  %v1102 = vsel %vm267, %v1045, 0
  %v1105 = vsel %vm267, %v1047, 0
  %v1108 = vsel %vm267, %v1049, 0
  %v1111 = vsel %vm267, %v1051, 0
  %v1114 = vsel %vm267, %v1053, 0
  %v1117 = vsel %vm267, %v1055, 0
  %v1120 = vsel %vm267, %v1057, 0
  %1122 = vmatprep.subr.bf16.mxu0 0
  %1123 = vmatpush1.bf16.msra.mxu0 %v255
  %1124 = vmatprep.subr.bf16.mxu0 0
  %1125 = vmatpush1.bf16.msra.mxu0 %v254
  %1126 = vmatprep.subr.bf16.mxu0 0
  %1127 = vmatpush1.bf16.msra.mxu0 %v253
  %1128 = vmatprep.subr.bf16.mxu0 0
  %1129 = vmatpush1.bf16.msra.mxu0 %v252
  %1130 = vmatprep.subr.bf16.mxu0 0
  %1131 = vmatpush1.bf16.msra.mxu0 %v251
  %1132 = vmatprep.subr.bf16.mxu0 0
  %1133 = vmatpush1.bf16.msra.mxu0 %v250
  %1134 = vmatprep.subr.bf16.mxu0 0
  %1135 = vmatpush1.bf16.msra.mxu0 %v249
  %1136 = vmatprep.subr.bf16.mxu0 0
  %1137 = vmatpush1.bf16.msra.mxu0 %v248
  %1138 = vmatprep.subr.bf16.mxu0 0
  %1139 = vmatpush2.bf16.msra.mxu0 0
  %1140 = vmatprep.subr.bf16.mxu0 0
  %1141 = vmatpush2.bf16.msra.mxu0 0
  %1142 = vmatprep.subr.bf16.mxu0 0
  %1143 = vmatpush2.bf16.msra.mxu0 0
  %1144 = vmatprep.subr.bf16.mxu0 0
  %1145 = vmatpush2.bf16.msra.mxu0 0
  %1146 = vmatprep.subr.bf16.mxu0 0
  %1147 = vmatpush2.bf16.msra.mxu0 0
  %1148 = vmatprep.subr.bf16.mxu0 0
  %1149 = vmatpush2.bf16.msra.mxu0 0
  %1150 = vmatprep.subr.bf16.mxu0 0
  %1151 = vmatpush2.bf16.msra.mxu0 %v318
  %1152 = vmatprep.subr.bf16.mxu0 0
  %1153 = vmatpush2.bf16.msra.mxu0 %v256
  %1154 = vmatprep.mubr.bf16.mxu0 %v1075
  %1155 = vmatmul.mubr.bf16.gmra.mxu0 %v1026
  %v1156 = vpop.f32.mrf.mxu0
  %v1157 = vadd.f32 0.0, %v1156
  %v1158 = vpop.f32.mrf.mxu0
  %v1159 = vpop.f32.mrf.mxu0
  %v1160 = vadd.f32 0.0, %v1159
  %v1161 = vpop.f32.mrf.mxu0
  %1162 = vmatprep.mubr.bf16.mxu0 %v1078
  %1163 = vmatmul.mubr.bf16.gmra.mxu0 %v1028
  %v1164 = vpop.f32.mrf.mxu0
  %v1165 = vadd.f32 0.0, %v1164
  %v1166 = vpop.f32.mrf.mxu0
  %v1167 = vpop.f32.mrf.mxu0
  %v1168 = vadd.f32 0.0, %v1167
  %v1169 = vpop.f32.mrf.mxu0
  %1170 = vmatprep.mubr.bf16.mxu0 %v1081
  %1171 = vmatmul.mubr.bf16.gmra.mxu0 %v1030
  %v1172 = vpop.f32.mrf.mxu0
  %v1173 = vadd.f32 0.0, %v1172
  %v1174 = vpop.f32.mrf.mxu0
  %v1175 = vpop.f32.mrf.mxu0
  %v1176 = vadd.f32 0.0, %v1175
  %v1177 = vpop.f32.mrf.mxu0
  %1178 = vmatprep.mubr.bf16.mxu0 %v1084
  %1179 = vmatmul.mubr.bf16.gmra.mxu0 %v1032
  %v1180 = vpop.f32.mrf.mxu0
  %v1181 = vadd.f32 0.0, %v1180
  %v1182 = vpop.f32.mrf.mxu0
  %v1183 = vpop.f32.mrf.mxu0
  %v1184 = vadd.f32 0.0, %v1183
  %v1185 = vpop.f32.mrf.mxu0
  %1186 = vmatprep.mubr.bf16.mxu0 %v1087
  %1187 = vmatmul.mubr.bf16.gmra.mxu0 %v1034
  %v1188 = vpop.f32.mrf.mxu0
  %v1189 = vadd.f32 0.0, %v1188
  %v1190 = vpop.f32.mrf.mxu0
  %v1191 = vpop.f32.mrf.mxu0
  %v1192 = vadd.f32 0.0, %v1191
  %v1193 = vpop.f32.mrf.mxu0
  %1194 = vmatprep.mubr.bf16.mxu0 %v1090
  %1195 = vmatmul.mubr.bf16.gmra.mxu0 %v1036
  %v1196 = vpop.f32.mrf.mxu0
  %v1197 = vadd.f32 0.0, %v1196
  %v1198 = vpop.f32.mrf.mxu0
  %v1199 = vpop.f32.mrf.mxu0
  %v1200 = vadd.f32 0.0, %v1199
  %v1201 = vpop.f32.mrf.mxu0
  %1202 = vmatprep.mubr.bf16.mxu0 %v1093
  %1203 = vmatmul.mubr.bf16.gmra.mxu0 %v1038
  %v1204 = vpop.f32.mrf.mxu0
  %v1205 = vadd.f32 0.0, %v1204
  %v1206 = vpop.f32.mrf.mxu0
  %v1207 = vpop.f32.mrf.mxu0
  %v1208 = vadd.f32 0.0, %v1207
  %v1209 = vpop.f32.mrf.mxu0
  %1210 = vmatprep.mubr.bf16.mxu0 %v1096
  %1211 = vmatmul.mubr.bf16.gmra.mxu0 %v1040
  %v1212 = vpop.f32.mrf.mxu0
  %v1213 = vadd.f32 0.0, %v1212
  %v1214 = vpop.f32.mrf.mxu0
  %v1215 = vpop.f32.mrf.mxu0
  %v1216 = vadd.f32 0.0, %v1215
  %v1217 = vpop.f32.mrf.mxu0
  %1218 = vmatprep.mubr.bf16.mxu0 %v1099
  %1219 = vmatmul.mubr.bf16.gmra.mxu0 %v1042
  %v1220 = vpop.f32.mrf.mxu0
  %v1221 = vadd.f32 0.0, %v1220
  %v1222 = vpop.f32.mrf.mxu0
  %v1223 = vpop.f32.mrf.mxu0
  %v1224 = vadd.f32 0.0, %v1223
  %v1225 = vpop.f32.mrf.mxu0
  %1226 = vmatprep.mubr.bf16.mxu0 %v1102
  %1227 = vmatmul.mubr.bf16.gmra.mxu0 %v1044
  %v1228 = vpop.f32.mrf.mxu0
  %v1229 = vadd.f32 0.0, %v1228
  %v1230 = vpop.f32.mrf.mxu0
  %v1231 = vpop.f32.mrf.mxu0
  %v1232 = vadd.f32 0.0, %v1231
  %v1233 = vpop.f32.mrf.mxu0
  %1234 = vmatprep.mubr.bf16.mxu0 %v1105
  %1235 = vmatmul.mubr.bf16.gmra.mxu0 %v1046
  %v1236 = vpop.f32.mrf.mxu0
  %v1237 = vadd.f32 0.0, %v1236
  %v1238 = vpop.f32.mrf.mxu0
  %v1239 = vpop.f32.mrf.mxu0
  %v1240 = vadd.f32 0.0, %v1239
  %v1241 = vpop.f32.mrf.mxu0
  %1242 = vmatprep.mubr.bf16.mxu0 %v1108
  %1243 = vmatmul.mubr.bf16.gmra.mxu0 %v1048
  %v1244 = vpop.f32.mrf.mxu0
  %v1245 = vadd.f32 0.0, %v1244
  %v1246 = vpop.f32.mrf.mxu0
  %v1247 = vpop.f32.mrf.mxu0
  %v1248 = vadd.f32 0.0, %v1247
  %v1249 = vpop.f32.mrf.mxu0
  %1250 = vmatprep.mubr.bf16.mxu0 %v1111
  %1251 = vmatmul.mubr.bf16.gmra.mxu0 %v1050
  %v1252 = vpop.f32.mrf.mxu0
  %v1253 = vadd.f32 0.0, %v1252
  %v1254 = vpop.f32.mrf.mxu0
  %v1255 = vpop.f32.mrf.mxu0
  %v1256 = vadd.f32 0.0, %v1255
  %v1257 = vpop.f32.mrf.mxu0
  %1258 = vmatprep.mubr.bf16.mxu0 %v1114
  %1259 = vmatmul.mubr.bf16.gmra.mxu0 %v1052
  %v1260 = vpop.f32.mrf.mxu0
  %v1261 = vadd.f32 0.0, %v1260
  %v1262 = vpop.f32.mrf.mxu0
  %v1263 = vpop.f32.mrf.mxu0
  %v1264 = vadd.f32 0.0, %v1263
  %v1265 = vpop.f32.mrf.mxu0
  %1266 = vmatprep.mubr.bf16.mxu0 %v1117
  %1267 = vmatmul.mubr.bf16.gmra.mxu0 %v1054
  %v1268 = vpop.f32.mrf.mxu0
  %v1269 = vadd.f32 0.0, %v1268
  %v1270 = vpop.f32.mrf.mxu0
  %v1271 = vpop.f32.mrf.mxu0
  %v1272 = vadd.f32 0.0, %v1271
  %v1273 = vpop.f32.mrf.mxu0
  %1274 = vmatprep.mubr.bf16.mxu0 %v1120
  %1275 = vmatmul.mubr.bf16.gmra.mxu0 %v1056
  %v1276 = vpop.f32.mrf.mxu0
  %v1277 = vadd.f32 0.0, %v1276
  %v1278 = vpop.f32.mrf.mxu0
  %v1279 = vpop.f32.mrf.mxu0
  %v1280 = vadd.f32 0.0, %v1279
  %v1281 = vpop.f32.mrf.mxu0
  %1282 = vdwg.mxu0
  %v1283 = vmax.f32 %v866, %v1157
  %v1284 = vmax.f32 %v867, %v1160
  %v1285 = vmax.f32 %v868, %v1165
  %v1286 = vmax.f32 %v869, %v1168
  %v1287 = vmax.f32 %v870, %v1173
  %v1288 = vmax.f32 %v871, %v1176
  %v1289 = vmax.f32 %v872, %v1181
  %v1290 = vmax.f32 %v873, %v1184
  %v1291 = vmax.f32 %v874, %v1189
  %v1292 = vmax.f32 %v875, %v1192
  %v1293 = vmax.f32 %v876, %v1197
  %v1294 = vmax.f32 %v877, %v1200
  %v1295 = vmax.f32 %v878, %v1205
  %v1296 = vmax.f32 %v879, %v1208
  %v1297 = vmax.f32 %v880, %v1213
  %v1298 = vmax.f32 %v881, %v1216
  %v1299 = vmax.f32 %v882, %v1221
  %v1300 = vmax.f32 %v883, %v1224
  %v1301 = vmax.f32 %v884, %v1229
  %v1302 = vmax.f32 %v885, %v1232
  %v1303 = vmax.f32 %v886, %v1237
  %v1304 = vmax.f32 %v887, %v1240
  %v1305 = vmax.f32 %v888, %v1245
  %v1306 = vmax.f32 %v889, %v1248
  %v1307 = vmax.f32 %v890, %v1253
  %v1308 = vmax.f32 %v891, %v1256
  %v1309 = vmax.f32 %v892, %v1261
  %v1310 = vmax.f32 %v893, %v1264
  %v1311 = vmax.f32 %v894, %v1269
  %v1312 = vmax.f32 %v895, %v1272
  %v1313 = vmax.f32 %v896, %v1277
  %v1314 = vmax.f32 %v897, %v1280
  %v1315 = vld [vmem:[%s0 + $0x60] sm:$0xff]
  %v1316 = vld [vmem:[%s0 + $0x68] sm:$0xff]
  %v1317 = vld [vmem:[%s0 + $0x70] sm:$0xff]
  %v1318 = vld [vmem:[%s0 + $0x78] sm:$0xff]
  %v1319 = vld [vmem:[%s0 + $0xe0] sm:$0xff]
  %v1320 = vld [vmem:[%s0 + $0xe8] sm:$0xff]
  %v1321 = vld [vmem:[%s0 + $0xf0] sm:$0xff]
  %v1322 = vld [vmem:[%s0 + $0xf8] sm:$0xff]
  %v1323 = vld [vmem:[%s0 + $0x160] sm:$0xff]
  %v1324 = vld [vmem:[%s0 + $0x168] sm:$0xff]
  %v1325 = vld [vmem:[%s0 + $0x170] sm:$0xff]
  %v1326 = vld [vmem:[%s0 + $0x178] sm:$0xff]
  %v1327 = vld [vmem:[%s0 + $0x1e0] sm:$0xff]
  %v1328 = vld [vmem:[%s0 + $0x1e8] sm:$0xff]
  %v1329 = vld [vmem:[%s0 + $0x1f0] sm:$0xff]
  %v1330 = vld [vmem:[%s0 + $0x1f8] sm:$0xff]
  %v1331 = vld [vmem:[%s0 + $0x260] sm:$0xff]
  %v1332 = vld [vmem:[%s0 + $0x268] sm:$0xff]
  %v1333 = vld [vmem:[%s0 + $0x270] sm:$0xff]
  %v1334 = vld [vmem:[%s0 + $0x278] sm:$0xff]
  %v1335 = vld [vmem:[%s0 + $0x2e0] sm:$0xff]
  %v1336 = vld [vmem:[%s0 + $0x2e8] sm:$0xff]
  %v1337 = vld [vmem:[%s0 + $0x2f0] sm:$0xff]
  %v1338 = vld [vmem:[%s0 + $0x2f8] sm:$0xff]
  %v1339 = vld [vmem:[%s0 + $0x360] sm:$0xff]
  %v1340 = vld [vmem:[%s0 + $0x368] sm:$0xff]
  %v1341 = vld [vmem:[%s0 + $0x370] sm:$0xff]
  %v1342 = vld [vmem:[%s0 + $0x378] sm:$0xff]
  %v1343 = vld [vmem:[%s0 + $0x3e0] sm:$0xff]
  %v1344 = vld [vmem:[%s0 + $0x3e8] sm:$0xff]
  %v1345 = vld [vmem:[%s0 + $0x3f0] sm:$0xff]
  %v1346 = vld [vmem:[%s0 + $0x3f8] sm:$0xff]
  %v1379 = vunpack.c.l.b16 %v1315
  %v1380 = vunpack.c.h.b16 %v1315
  %v1381 = vunpack.c.l.b16 %v1316
  %v1382 = vunpack.c.h.b16 %v1316
  %v1383 = vunpack.c.l.b16 %v1317
  %v1384 = vunpack.c.h.b16 %v1317
  %v1385 = vunpack.c.l.b16 %v1318
  %v1386 = vunpack.c.h.b16 %v1318
  %v1387 = vunpack.c.l.b16 %v1319
  %v1388 = vunpack.c.h.b16 %v1319
  %v1389 = vunpack.c.l.b16 %v1320
  %v1390 = vunpack.c.h.b16 %v1320
  %v1391 = vunpack.c.l.b16 %v1321
  %v1392 = vunpack.c.h.b16 %v1321
  %v1393 = vunpack.c.l.b16 %v1322
  %v1394 = vunpack.c.h.b16 %v1322
  %v1395 = vunpack.c.l.b16 %v1323
  %v1396 = vunpack.c.h.b16 %v1323
  %v1397 = vunpack.c.l.b16 %v1324
  %v1398 = vunpack.c.h.b16 %v1324
  %v1399 = vunpack.c.l.b16 %v1325
  %v1400 = vunpack.c.h.b16 %v1325
  %v1401 = vunpack.c.l.b16 %v1326
  %v1402 = vunpack.c.h.b16 %v1326
  %v1403 = vunpack.c.l.b16 %v1327
  %v1404 = vunpack.c.h.b16 %v1327
  %v1405 = vunpack.c.l.b16 %v1328
  %v1406 = vunpack.c.h.b16 %v1328
  %v1407 = vunpack.c.l.b16 %v1329
  %v1408 = vunpack.c.h.b16 %v1329
  %v1409 = vunpack.c.l.b16 %v1330
  %v1410 = vunpack.c.h.b16 %v1330
  %v1411 = vunpack.c.l.b16 %v1331
  %v1412 = vunpack.c.h.b16 %v1331
  %v1413 = vunpack.c.l.b16 %v1332
  %v1414 = vunpack.c.h.b16 %v1332
  %v1415 = vunpack.c.l.b16 %v1333
  %v1416 = vunpack.c.h.b16 %v1333
  %v1417 = vunpack.c.l.b16 %v1334
  %v1418 = vunpack.c.h.b16 %v1334
  %v1419 = vunpack.c.l.b16 %v1335
  %v1420 = vunpack.c.h.b16 %v1335
  %v1421 = vunpack.c.l.b16 %v1336
  %v1422 = vunpack.c.h.b16 %v1336
  %v1423 = vunpack.c.l.b16 %v1337
  %v1424 = vunpack.c.h.b16 %v1337
  %v1425 = vunpack.c.l.b16 %v1338
  %v1426 = vunpack.c.h.b16 %v1338
  %v1427 = vunpack.c.l.b16 %v1339
  %v1428 = vunpack.c.h.b16 %v1339
  %v1429 = vunpack.c.l.b16 %v1340
  %v1430 = vunpack.c.h.b16 %v1340
  %v1431 = vunpack.c.l.b16 %v1341
  %v1432 = vunpack.c.h.b16 %v1341
  %v1433 = vunpack.c.l.b16 %v1342
  %v1434 = vunpack.c.h.b16 %v1342
  %v1435 = vunpack.c.l.b16 %v1343
  %v1436 = vunpack.c.h.b16 %v1343
  %v1437 = vunpack.c.l.b16 %v1344
  %v1438 = vunpack.c.h.b16 %v1344
  %v1439 = vunpack.c.l.b16 %v1345
  %v1440 = vunpack.c.h.b16 %v1345
  %v1441 = vunpack.c.l.b16 %v1346
  %v1442 = vunpack.c.h.b16 %v1346
  %v1443 = vpack.c.b16 %v1381, %v1379
  %v1444 = vpack.c.b16 %v1382, %v1380
  %v1445 = vpack.c.b16 %v1385, %v1383
  %v1446 = vpack.c.b16 %v1386, %v1384
  %v1447 = vpack.c.b16 %v1389, %v1387
  %v1448 = vpack.c.b16 %v1390, %v1388
  %v1449 = vpack.c.b16 %v1393, %v1391
  %v1450 = vpack.c.b16 %v1394, %v1392
  %v1451 = vpack.c.b16 %v1397, %v1395
  %v1452 = vpack.c.b16 %v1398, %v1396
  %v1453 = vpack.c.b16 %v1401, %v1399
  %v1454 = vpack.c.b16 %v1402, %v1400
  %v1455 = vpack.c.b16 %v1405, %v1403
  %v1456 = vpack.c.b16 %v1406, %v1404
  %v1457 = vpack.c.b16 %v1409, %v1407
  %v1458 = vpack.c.b16 %v1410, %v1408
  %v1459 = vpack.c.b16 %v1413, %v1411
  %v1460 = vpack.c.b16 %v1414, %v1412
  %v1461 = vpack.c.b16 %v1417, %v1415
  %v1462 = vpack.c.b16 %v1418, %v1416
  %v1463 = vpack.c.b16 %v1421, %v1419
  %v1464 = vpack.c.b16 %v1422, %v1420
  %v1465 = vpack.c.b16 %v1425, %v1423
  %v1466 = vpack.c.b16 %v1426, %v1424
  %v1467 = vpack.c.b16 %v1429, %v1427
  %v1468 = vpack.c.b16 %v1430, %v1428
  %v1469 = vpack.c.b16 %v1433, %v1431
  %v1470 = vpack.c.b16 %v1434, %v1432
  %v1471 = vpack.c.b16 %v1437, %v1435
  %v1472 = vpack.c.b16 %v1438, %v1436
  %v1473 = vpack.c.b16 %v1441, %v1439
  %v1474 = vpack.c.b16 %v1442, %v1440
  %v1492 = vsel %vm267, %v1444, 0
  %v1495 = vsel %vm267, %v1446, 0
  %v1498 = vsel %vm267, %v1448, 0
  %v1501 = vsel %vm267, %v1450, 0
  %v1504 = vsel %vm267, %v1452, 0
  %v1507 = vsel %vm267, %v1454, 0
  %v1510 = vsel %vm267, %v1456, 0
  %v1513 = vsel %vm267, %v1458, 0
  %v1516 = vsel %vm267, %v1460, 0
  %v1519 = vsel %vm267, %v1462, 0
  %v1522 = vsel %vm267, %v1464, 0
  %v1525 = vsel %vm267, %v1466, 0
  %v1528 = vsel %vm267, %v1468, 0
  %v1531 = vsel %vm267, %v1470, 0
  %v1534 = vsel %vm267, %v1472, 0
  %v1537 = vsel %vm267, %v1474, 0
  %1539 = vmatprep.subr.bf16.mxu0 0
  %1540 = vmatpush1.bf16.msra.mxu0 %v255
  %1541 = vmatprep.subr.bf16.mxu0 0
  %1542 = vmatpush1.bf16.msra.mxu0 %v254
  %1543 = vmatprep.subr.bf16.mxu0 0
  %1544 = vmatpush1.bf16.msra.mxu0 %v253
  %1545 = vmatprep.subr.bf16.mxu0 0
  %1546 = vmatpush1.bf16.msra.mxu0 %v252
  %1547 = vmatprep.subr.bf16.mxu0 0
  %1548 = vmatpush1.bf16.msra.mxu0 %v251
  %1549 = vmatprep.subr.bf16.mxu0 0
  %1550 = vmatpush1.bf16.msra.mxu0 %v250
  %1551 = vmatprep.subr.bf16.mxu0 0
  %1552 = vmatpush1.bf16.msra.mxu0 %v249
  %1553 = vmatprep.subr.bf16.mxu0 0
  %1554 = vmatpush1.bf16.msra.mxu0 %v248
  %1555 = vmatprep.subr.bf16.mxu0 0
  %1556 = vmatpush2.bf16.msra.mxu0 0
  %1557 = vmatprep.subr.bf16.mxu0 0
  %1558 = vmatpush2.bf16.msra.mxu0 0
  %1559 = vmatprep.subr.bf16.mxu0 0
  %1560 = vmatpush2.bf16.msra.mxu0 0
  %1561 = vmatprep.subr.bf16.mxu0 0
  %1562 = vmatpush2.bf16.msra.mxu0 0
  %1563 = vmatprep.subr.bf16.mxu0 0
  %1564 = vmatpush2.bf16.msra.mxu0 0
  %1565 = vmatprep.subr.bf16.mxu0 0
  %1566 = vmatpush2.bf16.msra.mxu0 0
  %1567 = vmatprep.subr.bf16.mxu0 0
  %1568 = vmatpush2.bf16.msra.mxu0 %v318
  %1569 = vmatprep.subr.bf16.mxu0 0
  %1570 = vmatpush2.bf16.msra.mxu0 %v256
  %1571 = vmatprep.mubr.bf16.mxu0 %v1492
  %1572 = vmatmul.mubr.bf16.gmra.mxu0 %v1443
  %v1573 = vpop.f32.mrf.mxu0
  %v1574 = vadd.f32 0.0, %v1573
  %v1575 = vpop.f32.mrf.mxu0
  %v1576 = vpop.f32.mrf.mxu0
  %v1577 = vadd.f32 0.0, %v1576
  %v1578 = vpop.f32.mrf.mxu0
  %1579 = vmatprep.mubr.bf16.mxu0 %v1495
  %1580 = vmatmul.mubr.bf16.gmra.mxu0 %v1445
  %v1581 = vpop.f32.mrf.mxu0
  %v1582 = vadd.f32 0.0, %v1581
  %v1583 = vpop.f32.mrf.mxu0
  %v1584 = vpop.f32.mrf.mxu0
  %v1585 = vadd.f32 0.0, %v1584
  %v1586 = vpop.f32.mrf.mxu0
  %1587 = vmatprep.mubr.bf16.mxu0 %v1498
  %1588 = vmatmul.mubr.bf16.gmra.mxu0 %v1447
  %v1589 = vpop.f32.mrf.mxu0
  %v1590 = vadd.f32 0.0, %v1589
  %v1591 = vpop.f32.mrf.mxu0
  %v1592 = vpop.f32.mrf.mxu0
  %v1593 = vadd.f32 0.0, %v1592
  %v1594 = vpop.f32.mrf.mxu0
  %1595 = vmatprep.mubr.bf16.mxu0 %v1501
  %1596 = vmatmul.mubr.bf16.gmra.mxu0 %v1449
  %v1597 = vpop.f32.mrf.mxu0
  %v1598 = vadd.f32 0.0, %v1597
  %v1599 = vpop.f32.mrf.mxu0
  %v1600 = vpop.f32.mrf.mxu0
  %v1601 = vadd.f32 0.0, %v1600
  %v1602 = vpop.f32.mrf.mxu0
  %1603 = vmatprep.mubr.bf16.mxu0 %v1504
  %1604 = vmatmul.mubr.bf16.gmra.mxu0 %v1451
  %v1605 = vpop.f32.mrf.mxu0
  %v1606 = vadd.f32 0.0, %v1605
  %v1607 = vpop.f32.mrf.mxu0
  %v1608 = vpop.f32.mrf.mxu0
  %v1609 = vadd.f32 0.0, %v1608
  %v1610 = vpop.f32.mrf.mxu0
  %1611 = vmatprep.mubr.bf16.mxu0 %v1507
  %1612 = vmatmul.mubr.bf16.gmra.mxu0 %v1453
  %v1613 = vpop.f32.mrf.mxu0
  %v1614 = vadd.f32 0.0, %v1613
  %v1615 = vpop.f32.mrf.mxu0
  %v1616 = vpop.f32.mrf.mxu0
  %v1617 = vadd.f32 0.0, %v1616
  %v1618 = vpop.f32.mrf.mxu0
  %1619 = vmatprep.mubr.bf16.mxu0 %v1510
  %1620 = vmatmul.mubr.bf16.gmra.mxu0 %v1455
  %v1621 = vpop.f32.mrf.mxu0
  %v1622 = vadd.f32 0.0, %v1621
  %v1623 = vpop.f32.mrf.mxu0
  %v1624 = vpop.f32.mrf.mxu0
  %v1625 = vadd.f32 0.0, %v1624
  %v1626 = vpop.f32.mrf.mxu0
  %1627 = vmatprep.mubr.bf16.mxu0 %v1513
  %1628 = vmatmul.mubr.bf16.gmra.mxu0 %v1457
  %v1629 = vpop.f32.mrf.mxu0
  %v1630 = vadd.f32 0.0, %v1629
  %v1631 = vpop.f32.mrf.mxu0
  %v1632 = vpop.f32.mrf.mxu0
  %v1633 = vadd.f32 0.0, %v1632
  %v1634 = vpop.f32.mrf.mxu0
  %1635 = vmatprep.mubr.bf16.mxu0 %v1516
  %1636 = vmatmul.mubr.bf16.gmra.mxu0 %v1459
  %v1637 = vpop.f32.mrf.mxu0
  %v1638 = vadd.f32 0.0, %v1637
  %v1639 = vpop.f32.mrf.mxu0
  %v1640 = vpop.f32.mrf.mxu0
  %v1641 = vadd.f32 0.0, %v1640
  %v1642 = vpop.f32.mrf.mxu0
  %1643 = vmatprep.mubr.bf16.mxu0 %v1519
  %1644 = vmatmul.mubr.bf16.gmra.mxu0 %v1461
  %v1645 = vpop.f32.mrf.mxu0
  %v1646 = vadd.f32 0.0, %v1645
  %v1647 = vpop.f32.mrf.mxu0
  %v1648 = vpop.f32.mrf.mxu0
  %v1649 = vadd.f32 0.0, %v1648
  %v1650 = vpop.f32.mrf.mxu0
  %1651 = vmatprep.mubr.bf16.mxu0 %v1522
  %1652 = vmatmul.mubr.bf16.gmra.mxu0 %v1463
  %v1653 = vpop.f32.mrf.mxu0
  %v1654 = vadd.f32 0.0, %v1653
  %v1655 = vpop.f32.mrf.mxu0
  %v1656 = vpop.f32.mrf.mxu0
  %v1657 = vadd.f32 0.0, %v1656
  %v1658 = vpop.f32.mrf.mxu0
  %1659 = vmatprep.mubr.bf16.mxu0 %v1525
  %1660 = vmatmul.mubr.bf16.gmra.mxu0 %v1465
  %v1661 = vpop.f32.mrf.mxu0
  %v1662 = vadd.f32 0.0, %v1661
  %v1663 = vpop.f32.mrf.mxu0
  %v1664 = vpop.f32.mrf.mxu0
  %v1665 = vadd.f32 0.0, %v1664
  %v1666 = vpop.f32.mrf.mxu0
  %1667 = vmatprep.mubr.bf16.mxu0 %v1528
  %1668 = vmatmul.mubr.bf16.gmra.mxu0 %v1467
  %v1669 = vpop.f32.mrf.mxu0
  %v1670 = vadd.f32 0.0, %v1669
  %v1671 = vpop.f32.mrf.mxu0
  %v1672 = vpop.f32.mrf.mxu0
  %v1673 = vadd.f32 0.0, %v1672
  %v1674 = vpop.f32.mrf.mxu0
  %1675 = vmatprep.mubr.bf16.mxu0 %v1531
  %1676 = vmatmul.mubr.bf16.gmra.mxu0 %v1469
  %v1677 = vpop.f32.mrf.mxu0
  %v1678 = vadd.f32 0.0, %v1677
  %v1679 = vpop.f32.mrf.mxu0
  %v1680 = vpop.f32.mrf.mxu0
  %v1681 = vadd.f32 0.0, %v1680
  %v1682 = vpop.f32.mrf.mxu0
  %1683 = vmatprep.mubr.bf16.mxu0 %v1534
  %1684 = vmatmul.mubr.bf16.gmra.mxu0 %v1471
  %v1685 = vpop.f32.mrf.mxu0
  %v1686 = vadd.f32 0.0, %v1685
  %v1687 = vpop.f32.mrf.mxu0
  %v1688 = vpop.f32.mrf.mxu0
  %v1689 = vadd.f32 0.0, %v1688
  %v1690 = vpop.f32.mrf.mxu0
  %1691 = vmatprep.mubr.bf16.mxu0 %v1537
  %1692 = vmatmul.mubr.bf16.gmra.mxu0 %v1473
  %v1693 = vpop.f32.mrf.mxu0
  %v1694 = vadd.f32 0.0, %v1693
  %v1695 = vpop.f32.mrf.mxu0
  %v1696 = vpop.f32.mrf.mxu0
  %v1697 = vadd.f32 0.0, %v1696
  %v1698 = vpop.f32.mrf.mxu0
  %1699 = vdwg.mxu0
  %v1700 = vmax.f32 %v1283, %v1574
  %v1701 = vmax.f32 %v1284, %v1577
  %v1702 = vmax.f32 %v1285, %v1582
  %v1703 = vmax.f32 %v1286, %v1585
  %v1704 = vmax.f32 %v1287, %v1590
  %v1705 = vmax.f32 %v1288, %v1593
  %v1706 = vmax.f32 %v1289, %v1598
  %v1707 = vmax.f32 %v1290, %v1601
  %v1708 = vmax.f32 %v1291, %v1606
  %v1709 = vmax.f32 %v1292, %v1609
  %v1710 = vmax.f32 %v1293, %v1614
  %v1711 = vmax.f32 %v1294, %v1617
  %v1712 = vmax.f32 %v1295, %v1622
  %v1713 = vmax.f32 %v1296, %v1625
  %v1714 = vmax.f32 %v1297, %v1630
  %v1715 = vmax.f32 %v1298, %v1633
  %v1716 = vmax.f32 %v1299, %v1638
  %v1717 = vmax.f32 %v1300, %v1641
  %v1718 = vmax.f32 %v1301, %v1646
  %v1719 = vmax.f32 %v1302, %v1649
  %v1720 = vmax.f32 %v1303, %v1654
  %v1721 = vmax.f32 %v1304, %v1657
  %v1722 = vmax.f32 %v1305, %v1662
  %v1723 = vmax.f32 %v1306, %v1665
  %v1724 = vmax.f32 %v1307, %v1670
  %v1725 = vmax.f32 %v1308, %v1673
  %v1726 = vmax.f32 %v1309, %v1678
  %v1727 = vmax.f32 %v1310, %v1681
  %v1728 = vmax.f32 %v1311, %v1686
  %v1729 = vmax.f32 %v1312, %v1689
  %v1730 = vmax.f32 %v1313, %v1694
  %v1731 = vmax.f32 %v1314, %v1697
  %v1732 = vld [vmem:[%s2] sm:$0x1]
  %v1734 = vlaneseq
  %v1735 = vshrl.u32 %v1734, 7
  %v1736 = vsub.s32 0, %v1735
  %v1737 = vrot.slane %v1732, %v1736
  %v1739 = vadd.f32 %v1700, %v1737
  %v1740 = vadd.f32 %v1701, %v1737
  %v1741 = vadd.f32 %v1702, %v1737
  %v1742 = vadd.f32 %v1703, %v1737
  %v1743 = vadd.f32 %v1704, %v1737
  %v1744 = vadd.f32 %v1705, %v1737
  %v1745 = vadd.f32 %v1706, %v1737
  %v1746 = vadd.f32 %v1707, %v1737
  %v1747 = vadd.f32 %v1708, %v1737
  %v1748 = vadd.f32 %v1709, %v1737
  %v1749 = vadd.f32 %v1710, %v1737
  %v1750 = vadd.f32 %v1711, %v1737
  %v1751 = vadd.f32 %v1712, %v1737
  %v1752 = vadd.f32 %v1713, %v1737
  %v1753 = vadd.f32 %v1714, %v1737
  %v1754 = vadd.f32 %v1715, %v1737
  %v1755 = vadd.f32 %v1716, %v1737
  %v1756 = vadd.f32 %v1717, %v1737
  %v1757 = vadd.f32 %v1718, %v1737
  %v1758 = vadd.f32 %v1719, %v1737
  %v1759 = vadd.f32 %v1720, %v1737
  %v1760 = vadd.f32 %v1721, %v1737
  %v1761 = vadd.f32 %v1722, %v1737
  %v1762 = vadd.f32 %v1723, %v1737
  %v1763 = vadd.f32 %v1724, %v1737
  %v1764 = vadd.f32 %v1725, %v1737
  %v1765 = vadd.f32 %v1726, %v1737
  %v1766 = vadd.f32 %v1727, %v1737
  %v1767 = vadd.f32 %v1728, %v1737
  %v1768 = vadd.f32 %v1729, %v1737
  %v1769 = vadd.f32 %v1730, %v1737
  %v1770 = vadd.f32 %v1731, %v1737
  %v1771 = vmax.f32 %v1739, 0.0
  %v1772 = vmax.f32 %v1740, 0.0
  %v1773 = vmax.f32 %v1741, 0.0
  %v1774 = vmax.f32 %v1742, 0.0
  %v1775 = vmax.f32 %v1743, 0.0
  %v1776 = vmax.f32 %v1744, 0.0
  %v1777 = vmax.f32 %v1745, 0.0
  %v1778 = vmax.f32 %v1746, 0.0
  %v1779 = vmax.f32 %v1747, 0.0
  %v1780 = vmax.f32 %v1748, 0.0
  %v1781 = vmax.f32 %v1749, 0.0
  %v1782 = vmax.f32 %v1750, 0.0
  %v1783 = vmax.f32 %v1751, 0.0
  %v1784 = vmax.f32 %v1752, 0.0
  %v1785 = vmax.f32 %v1753, 0.0
  %v1786 = vmax.f32 %v1754, 0.0
  %v1787 = vmax.f32 %v1755, 0.0
  %v1788 = vmax.f32 %v1756, 0.0
  %v1789 = vmax.f32 %v1757, 0.0
  %v1790 = vmax.f32 %v1758, 0.0
  %v1791 = vmax.f32 %v1759, 0.0
  %v1792 = vmax.f32 %v1760, 0.0
  %v1793 = vmax.f32 %v1761, 0.0
  %v1794 = vmax.f32 %v1762, 0.0
  %v1795 = vmax.f32 %v1763, 0.0
  %v1796 = vmax.f32 %v1764, 0.0
  %v1797 = vmax.f32 %v1765, 0.0
  %v1798 = vmax.f32 %v1766, 0.0
  %v1799 = vmax.f32 %v1767, 0.0
  %v1800 = vmax.f32 %v1768, 0.0
  %v1801 = vmax.f32 %v1769, 0.0
  %v1802 = vmax.f32 %v1770, 0.0
  %v1803 = vpack.c.bf16 %v1772, %v1771
  %v1804 = vpack.c.bf16 %v1774, %v1773
  %v1805 = vpack.c.bf16 %v1776, %v1775
  %v1806 = vpack.c.bf16 %v1778, %v1777
  %v1807 = vpack.c.bf16 %v1780, %v1779
  %v1808 = vpack.c.bf16 %v1782, %v1781
  %v1809 = vpack.c.bf16 %v1784, %v1783
  %v1810 = vpack.c.bf16 %v1786, %v1785
  %v1811 = vpack.c.bf16 %v1788, %v1787
  %v1812 = vpack.c.bf16 %v1790, %v1789
  %v1813 = vpack.c.bf16 %v1792, %v1791
  %v1814 = vpack.c.bf16 %v1794, %v1793
  %v1815 = vpack.c.bf16 %v1796, %v1795
  %v1816 = vpack.c.bf16 %v1798, %v1797
  %v1817 = vpack.c.bf16 %v1800, %v1799
  %v1818 = vpack.c.bf16 %v1802, %v1801
  %v1835 = vunpack.c.l.b16 %v1803
  %v1836 = vunpack.c.h.b16 %v1803
  %v1837 = vunpack.c.l.b16 %v1804
  %v1838 = vunpack.c.h.b16 %v1804
  %v1839 = vunpack.c.l.b16 %v1805
  %v1840 = vunpack.c.h.b16 %v1805
  %v1841 = vunpack.c.l.b16 %v1806
  %v1842 = vunpack.c.h.b16 %v1806
  %v1843 = vunpack.c.l.b16 %v1807
  %v1844 = vunpack.c.h.b16 %v1807
  %v1845 = vunpack.c.l.b16 %v1808
  %v1846 = vunpack.c.h.b16 %v1808
  %v1847 = vunpack.c.l.b16 %v1809
  %v1848 = vunpack.c.h.b16 %v1809
  %v1849 = vunpack.c.l.b16 %v1810
  %v1850 = vunpack.c.h.b16 %v1810
  %v1851 = vunpack.c.l.b16 %v1811
  %v1852 = vunpack.c.h.b16 %v1811
  %v1853 = vunpack.c.l.b16 %v1812
  %v1854 = vunpack.c.h.b16 %v1812
  %v1855 = vunpack.c.l.b16 %v1813
  %v1856 = vunpack.c.h.b16 %v1813
  %v1857 = vunpack.c.l.b16 %v1814
  %v1858 = vunpack.c.h.b16 %v1814
  %v1859 = vunpack.c.l.b16 %v1815
  %v1860 = vunpack.c.h.b16 %v1815
  %v1861 = vunpack.c.l.b16 %v1816
  %v1862 = vunpack.c.h.b16 %v1816
  %v1863 = vunpack.c.l.b16 %v1817
  %v1864 = vunpack.c.h.b16 %v1817
  %v1865 = vunpack.c.l.b16 %v1818
  %v1866 = vunpack.c.h.b16 %v1818
  %v1867 = vpack.c.b16 %v1835, %v1835
  %v1868 = vpack.c.b16 %v1836, %v1836
  %v1869 = vpack.c.b16 %v1837, %v1837
  %v1870 = vpack.c.b16 %v1838, %v1838
  %v1871 = vpack.c.b16 %v1839, %v1839
  %v1872 = vpack.c.b16 %v1840, %v1840
  %v1873 = vpack.c.b16 %v1841, %v1841
  %v1874 = vpack.c.b16 %v1842, %v1842
  %v1875 = vpack.c.b16 %v1843, %v1843
  %v1876 = vpack.c.b16 %v1844, %v1844
  %v1877 = vpack.c.b16 %v1845, %v1845
  %v1878 = vpack.c.b16 %v1846, %v1846
  %v1879 = vpack.c.b16 %v1847, %v1847
  %v1880 = vpack.c.b16 %v1848, %v1848
  %v1881 = vpack.c.b16 %v1849, %v1849
  %v1882 = vpack.c.b16 %v1850, %v1850
  %v1883 = vpack.c.b16 %v1851, %v1851
  %v1884 = vpack.c.b16 %v1852, %v1852
  %v1885 = vpack.c.b16 %v1853, %v1853
  %v1886 = vpack.c.b16 %v1854, %v1854
  %v1887 = vpack.c.b16 %v1855, %v1855
  %v1888 = vpack.c.b16 %v1856, %v1856
  %v1889 = vpack.c.b16 %v1857, %v1857
  %v1890 = vpack.c.b16 %v1858, %v1858
  %v1891 = vpack.c.b16 %v1859, %v1859
  %v1892 = vpack.c.b16 %v1860, %v1860
  %v1893 = vpack.c.b16 %v1861, %v1861
  %v1894 = vpack.c.b16 %v1862, %v1862
  %v1895 = vpack.c.b16 %v1863, %v1863
  %v1896 = vpack.c.b16 %v1864, %v1864
  %v1897 = vpack.c.b16 %v1865, %v1865
  %v1898 = vpack.c.b16 %v1866, %v1866
  %vm1931 = vcmask 125952
  %1932 = vst.msk [vmem:[%s3] sm:$0xf] %vm1931, %v1867
  %1933 = vst.msk [vmem:[%s3 + $0x4] sm:$0xf] %vm1931, %v1868
  %1934 = vst.msk [vmem:[%s3 + $0x8] sm:$0xf] %vm1931, %v1869
  %1935 = vst.msk [vmem:[%s3 + $0xc] sm:$0xf] %vm1931, %v1870
  %1936 = vst.msk [vmem:[%s3 + $0x10] sm:$0xf] %vm1931, %v1871
  %1937 = vst.msk [vmem:[%s3 + $0x14] sm:$0xf] %vm1931, %v1872
  %1938 = vst.msk [vmem:[%s3 + $0x18] sm:$0xf] %vm1931, %v1873
  %1939 = vst.msk [vmem:[%s3 + $0x1c] sm:$0xf] %vm1931, %v1874
  %1940 = vst.msk [vmem:[%s3 + $0x20] sm:$0xf] %vm1931, %v1875
  %1941 = vst.msk [vmem:[%s3 + $0x24] sm:$0xf] %vm1931, %v1876
  %1942 = vst.msk [vmem:[%s3 + $0x28] sm:$0xf] %vm1931, %v1877
  %1943 = vst.msk [vmem:[%s3 + $0x2c] sm:$0xf] %vm1931, %v1878
  %1944 = vst.msk [vmem:[%s3 + $0x30] sm:$0xf] %vm1931, %v1879
  %1945 = vst.msk [vmem:[%s3 + $0x34] sm:$0xf] %vm1931, %v1880
  %1946 = vst.msk [vmem:[%s3 + $0x38] sm:$0xf] %vm1931, %v1881
  %1947 = vst.msk [vmem:[%s3 + $0x3c] sm:$0xf] %vm1931, %v1882
  %1948 = vst.msk [vmem:[%s3 + $0x40] sm:$0xf] %vm1931, %v1883
  %1949 = vst.msk [vmem:[%s3 + $0x44] sm:$0xf] %vm1931, %v1884
  %1950 = vst.msk [vmem:[%s3 + $0x48] sm:$0xf] %vm1931, %v1885
  %1951 = vst.msk [vmem:[%s3 + $0x4c] sm:$0xf] %vm1931, %v1886
  %1952 = vst.msk [vmem:[%s3 + $0x50] sm:$0xf] %vm1931, %v1887
  %1953 = vst.msk [vmem:[%s3 + $0x54] sm:$0xf] %vm1931, %v1888
  %1954 = vst.msk [vmem:[%s3 + $0x58] sm:$0xf] %vm1931, %v1889
  %1955 = vst.msk [vmem:[%s3 + $0x5c] sm:$0xf] %vm1931, %v1890
  %1956 = vst.msk [vmem:[%s3 + $0x60] sm:$0xf] %vm1931, %v1891
  %1957 = vst.msk [vmem:[%s3 + $0x64] sm:$0xf] %vm1931, %v1892
  %1958 = vst.msk [vmem:[%s3 + $0x68] sm:$0xf] %vm1931, %v1893
  %1959 = vst.msk [vmem:[%s3 + $0x6c] sm:$0xf] %vm1931, %v1894
  %1960 = vst.msk [vmem:[%s3 + $0x70] sm:$0xf] %vm1931, %v1895
  %1961 = vst.msk [vmem:[%s3 + $0x74] sm:$0xf] %vm1931, %v1896
  %1962 = vst.msk [vmem:[%s3 + $0x78] sm:$0xf] %vm1931, %v1897
  %1963 = vst.msk [vmem:[%s3 + $0x7c] sm:$0xf] %vm1931, %v1898
  // Predicated region
  $region14: #{cifar10net_forward.4} parent=0 // pred_check
    _
  $region15: #{cifar10net_forward.4} parent=0 // pred_check_branch
    %1965 = sbr.rel (0) target = $region17
  $region16: #{cifar10net_forward.4} parent=0 // pred_region
    _
  $region17: #{cifar10net_forward.4} parent=0 // pred_fallthru
    _
  // Predicated region
  $region18: #{cifar10net_forward.4} parent=0 // pred_check
    _
  $region19: #{cifar10net_forward.4} parent=0 // pred_check_branch
    %1967 = sbr.rel (0) target = $region21
  $region20: #{cifar10net_forward.4} parent=0 // pred_region
    _
  $region21: #{cifar10net_forward.4} parent=0 // pred_fallthru
    _

// kernel: cifar10net_forward.5
$region0: #{cifar10net_forward.5}
  #allocation0 [shape = 'u32[]', space=smem, size = 0x4, offset = 0x4, fixed_abs, tag = 'smem constant byte address 0x4 - core index']
  #allocation1 [shape = 'u32[144,128]{1,0:T(1,128)}', space=vmem, size = 0x12000, scoped, tag = 'internal scratch']
  %s0 = inlined_call_operand.vmem [shape: bf16[8,400], index: 0, kind: input, shape index: {}]
  %s1 = inlined_call_operand.vmem [shape: bf16[400,128], index: 1, kind: input, shape index: {}]
  %s2 = inlined_call_operand.vmem [shape: f32[1,128], index: 2, kind: input, shape index: {}]
  %s3 = inlined_call_operand.vmem [shape: bf16[128,128], index: 3, kind: input, shape index: {}]
  %s4 = inlined_call_operand.vmem [shape: f32[1,128], index: 4, kind: input, shape index: {}]
  %s5 = inlined_call_operand.vmem [shape: bf16[128,128], index: 5, kind: input, shape index: {}]
  %s6 = inlined_call_operand.vmem [shape: f32[1,128], index: 6, kind: input, shape index: {}]
  %s7 = inlined_call_operand.vmem [shape: f32[8,128], index: 7, kind: output, shape index: {}]
  %s8 = sld [smem:[#allocation0]]
  $region38: #{cifar10net_forward.5} parent=0
    _
  %s10 = ssub.s32 1, %s8
  %s11 = scalar_select 0, %s10, %s8
  // Predicated region
  $region2: #{cifar10net_forward.5} parent=0 // pred_check
    _
  $region3: #{cifar10net_forward.5} parent=0 // pred_check_branch
    %13 = sbr.rel (0) target = $region5
  $region4: #{cifar10net_forward.5} parent=0 // pred_region
    _
  $region5: #{cifar10net_forward.5} parent=0 // pred_fallthru
    _
  // Predicated region
  $region6: #{cifar10net_forward.5} parent=0 // pred_check
    _
  $region7: #{cifar10net_forward.5} parent=0 // pred_check_branch
    %15 = sbr.rel (0) target = $region9
  $region8: #{cifar10net_forward.5} parent=0 // pred_region
    _
  $region9: #{cifar10net_forward.5} parent=0 // pred_fallthru
    _
  // Predicated region
  $region10: #{cifar10net_forward.5} parent=0 // pred_check
    _
  $region11: #{cifar10net_forward.5} parent=0 // pred_check_branch
    %17 = sbr.rel (0) target = $region13
  $region12: #{cifar10net_forward.5} parent=0 // pred_region
    _
  $region13: #{cifar10net_forward.5} parent=0 // pred_fallthru
    _
  // Predicated region
  $region14: #{cifar10net_forward.5} parent=0 // pred_check
    _
  $region15: #{cifar10net_forward.5} parent=0 // pred_check_branch
    %19 = sbr.rel (0) target = $region17
  $region16: #{cifar10net_forward.5} parent=0 // pred_region
    _
  $region17: #{cifar10net_forward.5} parent=0 // pred_fallthru
    _
  // Predicated region
  $region18: #{cifar10net_forward.5} parent=0 // pred_check
    _
  $region19: #{cifar10net_forward.5} parent=0 // pred_check_branch
    %21 = sbr.rel (0) target = $region21
  $region20: #{cifar10net_forward.5} parent=0 // pred_region
    _
  $region21: #{cifar10net_forward.5} parent=0 // pred_fallthru
    _
  // Predicated region
  $region22: #{cifar10net_forward.5} parent=0 // pred_check
    _
  $region23: #{cifar10net_forward.5} parent=0 // pred_check_branch
    %23 = sbr.rel (0) target = $region25
  $region24: #{cifar10net_forward.5} parent=0 // pred_region
    _
  $region25: #{cifar10net_forward.5} parent=0 // pred_fallthru
    _
  // Predicated region
  $region26: #{cifar10net_forward.5} parent=0 // pred_check
    _
  $region27: #{cifar10net_forward.5} parent=0 // pred_check_branch
    %25 = sbr.rel (0) target = $region29
  $region28: #{cifar10net_forward.5} parent=0 // pred_region
    _
  $region29: #{cifar10net_forward.5} parent=0 // pred_fallthru
    _
  %v27 = vld [vmem:[%s0] sm:$0xff]
  %v28 = vld [vmem:[%s0 + $0x8] sm:$0xff]
  %v29 = vld [vmem:[%s1] sm:$0xf]
  %v30 = vld [vmem:[%s1 + $0x4] sm:$0xf]
  %v31 = vld [vmem:[%s1 + $0x8] sm:$0xf]
  %v32 = vld [vmem:[%s1 + $0xc] sm:$0xf]
  %v33 = vld [vmem:[%s1 + $0x10] sm:$0xf]
  %v34 = vld [vmem:[%s1 + $0x14] sm:$0xf]
  %v35 = vld [vmem:[%s1 + $0x18] sm:$0xf]
  %v36 = vld [vmem:[%s1 + $0x1c] sm:$0xf]
  %v37 = vld [vmem:[%s1 + $0x20] sm:$0xf]
  %v38 = vld [vmem:[%s1 + $0x24] sm:$0xf]
  %v39 = vld [vmem:[%s1 + $0x28] sm:$0xf]
  %v40 = vld [vmem:[%s1 + $0x2c] sm:$0xf]
  %v41 = vld [vmem:[%s1 + $0x30] sm:$0xf]
  %v42 = vld [vmem:[%s1 + $0x34] sm:$0xf]
  %v43 = vld [vmem:[%s1 + $0x38] sm:$0xf]
  %v44 = vld [vmem:[%s1 + $0x3c] sm:$0xf]
  %v45 = vld [vmem:[%s1 + $0x40] sm:$0xf]
  %v46 = vld [vmem:[%s1 + $0x44] sm:$0xf]
  %v47 = vld [vmem:[%s1 + $0x48] sm:$0xf]
  %v48 = vld [vmem:[%s1 + $0x4c] sm:$0xf]
  %v49 = vld [vmem:[%s1 + $0x50] sm:$0xf]
  %v50 = vld [vmem:[%s1 + $0x54] sm:$0xf]
  %v51 = vld [vmem:[%s1 + $0x58] sm:$0xf]
  %v52 = vld [vmem:[%s1 + $0x5c] sm:$0xf]
  %v53 = vld [vmem:[%s1 + $0x60] sm:$0xf]
  %v54 = vld [vmem:[%s1 + $0x64] sm:$0xf]
  %v55 = vld [vmem:[%s1 + $0x68] sm:$0xf]
  %v56 = vld [vmem:[%s1 + $0x6c] sm:$0xf]
  %v57 = vld [vmem:[%s1 + $0x70] sm:$0xf]
  %v58 = vld [vmem:[%s1 + $0x74] sm:$0xf]
  %v59 = vld [vmem:[%s1 + $0x78] sm:$0xf]
  %v60 = vld [vmem:[%s1 + $0x7c] sm:$0xf]
  %v61 = vld [vmem:[%s1 + $0x80] sm:$0xf]
  %v62 = vld [vmem:[%s1 + $0x84] sm:$0xf]
  %v63 = vld [vmem:[%s1 + $0x88] sm:$0xf]
  %v64 = vld [vmem:[%s1 + $0x8c] sm:$0xf]
  %v65 = vld [vmem:[%s1 + $0x90] sm:$0xf]
  %v66 = vld [vmem:[%s1 + $0x94] sm:$0xf]
  %v67 = vld [vmem:[%s1 + $0x98] sm:$0xf]
  %v68 = vld [vmem:[%s1 + $0x9c] sm:$0xf]
  %v69 = vld [vmem:[%s1 + $0xa0] sm:$0xf]
  %v70 = vld [vmem:[%s1 + $0xa4] sm:$0xf]
  %v71 = vld [vmem:[%s1 + $0xa8] sm:$0xf]
  %v72 = vld [vmem:[%s1 + $0xac] sm:$0xf]
  %v73 = vld [vmem:[%s1 + $0xb0] sm:$0xf]
  %v74 = vld [vmem:[%s1 + $0xb4] sm:$0xf]
  %v75 = vld [vmem:[%s1 + $0xb8] sm:$0xf]
  %v76 = vld [vmem:[%s1 + $0xbc] sm:$0xf]
  %v77 = vld [vmem:[%s1 + $0xc0] sm:$0xf]
  %v78 = vld [vmem:[%s1 + $0xc4] sm:$0xf]
  %v79 = vld [vmem:[%s2] sm:$0x1]
  %v81 = vlaneseq
  %v82 = vshrl.u32 %v81, 7
  %v83 = vsub.s32 0, %v82
  %v84 = vrot.slane %v79, %v83
  %v88 = vunpack.c.l.b16 %v27
  %v89 = vunpack.c.h.b16 %v27
  %v90 = vunpack.c.l.b16 %v28
  %v91 = vunpack.c.h.b16 %v28
  %v92 = vpack.c.b16 %v88, %v88
  %v93 = vpack.c.b16 %v89, %v89
  %v94 = vpack.c.b16 %v90, %v90
  %v95 = vpack.c.b16 %v91, %v91
  %v149 = vunpack.c.l.b16 %v29
  %v150 = vunpack.c.l.b16 %v30
  %v151 = vunpack.c.l.b16 %v31
  %v152 = vunpack.c.l.b16 %v32
  %v153 = vunpack.c.l.b16 %v33
  %v154 = vunpack.c.l.b16 %v34
  %v155 = vunpack.c.l.b16 %v35
  %v156 = vunpack.c.l.b16 %v36
  %v157 = vunpack.c.l.b16 %v37
  %v158 = vunpack.c.l.b16 %v38
  %v159 = vunpack.c.l.b16 %v39
  %v160 = vunpack.c.l.b16 %v40
  %v161 = vunpack.c.l.b16 %v41
  %v162 = vunpack.c.l.b16 %v42
  %v163 = vunpack.c.l.b16 %v43
  %v164 = vunpack.c.l.b16 %v44
  %v165 = vunpack.c.l.b16 %v45
  %v166 = vunpack.c.l.b16 %v46
  %v167 = vunpack.c.l.b16 %v47
  %v168 = vunpack.c.l.b16 %v48
  %v169 = vunpack.c.l.b16 %v49
  %v170 = vunpack.c.l.b16 %v50
  %v171 = vunpack.c.l.b16 %v51
  %v172 = vunpack.c.l.b16 %v52
  %v173 = vunpack.c.l.b16 %v53
  %v174 = vunpack.c.l.b16 %v54
  %v175 = vunpack.c.l.b16 %v55
  %v176 = vunpack.c.l.b16 %v56
  %v177 = vunpack.c.l.b16 %v57
  %v178 = vunpack.c.l.b16 %v58
  %v179 = vunpack.c.l.b16 %v59
  %v180 = vunpack.c.l.b16 %v60
  %v181 = vunpack.c.l.b16 %v61
  %v182 = vunpack.c.l.b16 %v62
  %v183 = vunpack.c.l.b16 %v63
  %v184 = vunpack.c.l.b16 %v64
  %v185 = vunpack.c.l.b16 %v65
  %v186 = vunpack.c.l.b16 %v66
  %v187 = vunpack.c.l.b16 %v67
  %v188 = vunpack.c.l.b16 %v68
  %v189 = vunpack.c.l.b16 %v69
  %v190 = vunpack.c.l.b16 %v70
  %v191 = vunpack.c.l.b16 %v71
  %v192 = vunpack.c.l.b16 %v72
  %v193 = vunpack.c.l.b16 %v73
  %v194 = vunpack.c.l.b16 %v74
  %v195 = vunpack.c.l.b16 %v75
  %v196 = vunpack.c.l.b16 %v76
  %v197 = vunpack.c.l.b16 %v77
  %v198 = vunpack.c.l.b16 %v78
  %v199 = vpack.c.b16 %v150, %v149
  %v200 = vpack.c.b16 %v152, %v151
  %v201 = vpack.c.b16 %v154, %v153
  %v202 = vpack.c.b16 %v156, %v155
  %v203 = vpack.c.b16 %v158, %v157
  %v204 = vpack.c.b16 %v160, %v159
  %v205 = vpack.c.b16 %v162, %v161
  %v206 = vpack.c.b16 %v164, %v163
  %v207 = vpack.c.b16 %v166, %v165
  %v208 = vpack.c.b16 %v168, %v167
  %v209 = vpack.c.b16 %v170, %v169
  %v210 = vpack.c.b16 %v172, %v171
  %v211 = vpack.c.b16 %v174, %v173
  %v212 = vpack.c.b16 %v176, %v175
  %v213 = vpack.c.b16 %v178, %v177
  %v214 = vpack.c.b16 %v180, %v179
  %v215 = vpack.c.b16 %v182, %v181
  %v216 = vpack.c.b16 %v184, %v183
  %v217 = vpack.c.b16 %v186, %v185
  %v218 = vpack.c.b16 %v188, %v187
  %v219 = vpack.c.b16 %v190, %v189
  %v220 = vpack.c.b16 %v192, %v191
  %v221 = vpack.c.b16 %v194, %v193
  %v222 = vpack.c.b16 %v196, %v195
  %v223 = vpack.c.b16 %v198, %v197
  %vm249 = vcmask 130048
  %v251 = vsel %vm249, %v95, 0
  %253 = vmatprep.subr.bf16.mxu0 0
  %254 = vmatpush1.bf16.msra.mxu0 %v206
  %255 = vmatprep.subr.bf16.mxu0 0
  %256 = vmatpush1.bf16.msra.mxu0 %v205
  %257 = vmatprep.subr.bf16.mxu0 0
  %258 = vmatpush1.bf16.msra.mxu0 %v204
  %259 = vmatprep.subr.bf16.mxu0 0
  %260 = vmatpush1.bf16.msra.mxu0 %v203
  %261 = vmatprep.subr.bf16.mxu0 0
  %262 = vmatpush1.bf16.msra.mxu0 %v202
  %263 = vmatprep.subr.bf16.mxu0 0
  %264 = vmatpush1.bf16.msra.mxu0 %v201
  %265 = vmatprep.subr.bf16.mxu0 0
  %266 = vmatpush1.bf16.msra.mxu0 %v200
  %267 = vmatprep.subr.bf16.mxu0 0
  %268 = vmatpush1.bf16.msra.mxu0 %v199
  %269 = vmatprep.subr.bf16.mxu0 0
  %270 = vmatpush2.bf16.msra.mxu0 %v214
  %271 = vmatprep.subr.bf16.mxu0 0
  %272 = vmatpush2.bf16.msra.mxu0 %v213
  %273 = vmatprep.subr.bf16.mxu0 0
  %274 = vmatpush2.bf16.msra.mxu0 %v212
  %275 = vmatprep.subr.bf16.mxu0 0
  %276 = vmatpush2.bf16.msra.mxu0 %v211
  %277 = vmatprep.subr.bf16.mxu0 0
  %278 = vmatpush2.bf16.msra.mxu0 %v210
  %279 = vmatprep.subr.bf16.mxu0 0
  %280 = vmatpush2.bf16.msra.mxu0 %v209
  %281 = vmatprep.subr.bf16.mxu0 0
  %282 = vmatpush2.bf16.msra.mxu0 %v208
  %283 = vmatprep.subr.bf16.mxu0 0
  %284 = vmatpush2.bf16.msra.mxu0 %v207
  %285 = vmatprep.mubr.bf16.mxu0 %v93
  %286 = vmatmul.mubr.bf16.gmra.mxu0 %v92
  %v287 = vpop.f32.mrf.mxu0
  %v288 = vadd.f32 %v84, %v287
  %v289 = vpop.f32.mrf.mxu0
  %v290 = vpop.f32.mrf.mxu0
  %v291 = vpop.f32.mrf.mxu0
  %292 = vdwg.mxu0
  %293 = vmatprep.subr.bf16.mxu0 0
  %294 = vmatpush1.bf16.msra.mxu0 %v222
  %295 = vmatprep.subr.bf16.mxu0 0
  %296 = vmatpush1.bf16.msra.mxu0 %v221
  %297 = vmatprep.subr.bf16.mxu0 0
  %298 = vmatpush1.bf16.msra.mxu0 %v220
  %299 = vmatprep.subr.bf16.mxu0 0
  %300 = vmatpush1.bf16.msra.mxu0 %v219
  %301 = vmatprep.subr.bf16.mxu0 0
  %302 = vmatpush1.bf16.msra.mxu0 %v218
  %303 = vmatprep.subr.bf16.mxu0 0
  %304 = vmatpush1.bf16.msra.mxu0 %v217
  %305 = vmatprep.subr.bf16.mxu0 0
  %306 = vmatpush1.bf16.msra.mxu0 %v216
  %307 = vmatprep.subr.bf16.mxu0 0
  %308 = vmatpush1.bf16.msra.mxu0 %v215
  %309 = vmatprep.subr.bf16.mxu0 0
  %310 = vmatpush2.bf16.msra.mxu0 0
  %311 = vmatprep.subr.bf16.mxu0 0
  %312 = vmatpush2.bf16.msra.mxu0 0
  %313 = vmatprep.subr.bf16.mxu0 0
  %314 = vmatpush2.bf16.msra.mxu0 0
  %315 = vmatprep.subr.bf16.mxu0 0
  %316 = vmatpush2.bf16.msra.mxu0 0
  %317 = vmatprep.subr.bf16.mxu0 0
  %318 = vmatpush2.bf16.msra.mxu0 0
  %319 = vmatprep.subr.bf16.mxu0 0
  %320 = vmatpush2.bf16.msra.mxu0 0
  %321 = vmatprep.subr.bf16.mxu0 0
  %322 = vmatpush2.bf16.msra.mxu0 0
  %323 = vmatprep.subr.bf16.mxu0 0
  %324 = vmatpush2.bf16.msra.mxu0 %v223
  %325 = vmatprep.mubr.bf16.mxu0 %v251
  %326 = vmatmul.mubr.bf16.gmra.mxu0 %v94
  %v327 = vpop.f32.mrf.mxu0
  %v328 = vadd.f32 %v288, %v327
  %v329 = vpop.f32.mrf.mxu0
  %v330 = vpop.f32.mrf.mxu0
  %v331 = vpop.f32.mrf.mxu0
  %332 = vdwg.mxu0
  %v333 = vmax.f32 %v328, 0.0
  %v334 = vpack.c.bf16 %v333, %v333
  %v335 = vld [vmem:[%s3] sm:$0xf]
  %v336 = vld [vmem:[%s3 + $0x4] sm:$0xf]
  %v337 = vld [vmem:[%s3 + $0x8] sm:$0xf]
  %v338 = vld [vmem:[%s3 + $0xc] sm:$0xf]
  %v339 = vld [vmem:[%s3 + $0x10] sm:$0xf]
  %v340 = vld [vmem:[%s3 + $0x14] sm:$0xf]
  %v341 = vld [vmem:[%s3 + $0x18] sm:$0xf]
  %v342 = vld [vmem:[%s3 + $0x1c] sm:$0xf]
  %v343 = vld [vmem:[%s3 + $0x20] sm:$0xf]
  %v344 = vld [vmem:[%s3 + $0x24] sm:$0xf]
  %v345 = vld [vmem:[%s3 + $0x28] sm:$0xf]
  %v346 = vld [vmem:[%s3 + $0x2c] sm:$0xf]
  %v347 = vld [vmem:[%s3 + $0x30] sm:$0xf]
  %v348 = vld [vmem:[%s3 + $0x34] sm:$0xf]
  %v349 = vld [vmem:[%s3 + $0x38] sm:$0xf]
  %v350 = vld [vmem:[%s3 + $0x3c] sm:$0xf]
  %v351 = vld [vmem:[%s4] sm:$0x1]
  %v353 = vlaneseq
  %v354 = vshrl.u32 %v353, 7
  %v355 = vsub.s32 0, %v354
  %v356 = vrot.slane %v351, %v355
  %v374 = vunpack.c.l.b16 %v335
  %v375 = vunpack.c.l.b16 %v336
  %v376 = vunpack.c.l.b16 %v337
  %v377 = vunpack.c.l.b16 %v338
  %v378 = vunpack.c.l.b16 %v339
  %v379 = vunpack.c.l.b16 %v340
  %v380 = vunpack.c.l.b16 %v341
  %v381 = vunpack.c.l.b16 %v342
  %v382 = vunpack.c.l.b16 %v343
  %v383 = vunpack.c.l.b16 %v344
  %v384 = vunpack.c.l.b16 %v345
  %v385 = vunpack.c.l.b16 %v346
  %v386 = vunpack.c.l.b16 %v347
  %v387 = vunpack.c.l.b16 %v348
  %v388 = vunpack.c.l.b16 %v349
  %v389 = vunpack.c.l.b16 %v350
  %v390 = vpack.c.b16 %v375, %v374
  %v391 = vpack.c.b16 %v377, %v376
  %v392 = vpack.c.b16 %v379, %v378
  %v393 = vpack.c.b16 %v381, %v380
  %v394 = vpack.c.b16 %v383, %v382
  %v395 = vpack.c.b16 %v385, %v384
  %v396 = vpack.c.b16 %v387, %v386
  %v397 = vpack.c.b16 %v389, %v388
  %406 = vmatprep.subr.bf16.mxu0 0
  %407 = vmatpush1.bf16.msra.mxu0 %v397
  %408 = vmatprep.subr.bf16.mxu0 0
  %409 = vmatpush1.bf16.msra.mxu0 %v396
  %410 = vmatprep.subr.bf16.mxu0 0
  %411 = vmatpush1.bf16.msra.mxu0 %v395
  %412 = vmatprep.subr.bf16.mxu0 0
  %413 = vmatpush1.bf16.msra.mxu0 %v394
  %414 = vmatprep.subr.bf16.mxu0 0
  %415 = vmatpush1.bf16.msra.mxu0 %v393
  %416 = vmatprep.subr.bf16.mxu0 0
  %417 = vmatpush1.bf16.msra.mxu0 %v392
  %418 = vmatprep.subr.bf16.mxu0 0
  %419 = vmatpush1.bf16.msra.mxu0 %v391
  %420 = vmatprep.subr.bf16.mxu0 0
  %421 = vmatpush1.bf16.msra.mxu0 %v390
  %422 = vmatprep.subr.bf16.mxu0 0
  %423 = vmatpush2.bf16.msra.mxu0 0
  %424 = vmatprep.subr.bf16.mxu0 0
  %425 = vmatpush2.bf16.msra.mxu0 0
  %426 = vmatprep.subr.bf16.mxu0 0
  %427 = vmatpush2.bf16.msra.mxu0 0
  %428 = vmatprep.subr.bf16.mxu0 0
  %429 = vmatpush2.bf16.msra.mxu0 0
  %430 = vmatprep.subr.bf16.mxu0 0
  %431 = vmatpush2.bf16.msra.mxu0 0
  %432 = vmatprep.subr.bf16.mxu0 0
  %433 = vmatpush2.bf16.msra.mxu0 0
  %434 = vmatprep.subr.bf16.mxu0 0
  %435 = vmatpush2.bf16.msra.mxu0 0
  %436 = vmatprep.subr.bf16.mxu0 0
  %437 = vmatpush2.bf16.msra.mxu0 0
  %438 = vmatprep.mubr.bf16.mxu0 0
  %439 = vmatmul.mubr.bf16.gmra.mxu0 %v334
  %v440 = vpop.f32.mrf.mxu0
  %v441 = vadd.f32 %v356, %v440
  %v442 = vpop.f32.mrf.mxu0
  %v443 = vpop.f32.mrf.mxu0
  %v444 = vpop.f32.mrf.mxu0
  %445 = vdwg.mxu0
  %v446 = vmax.f32 %v441, 0.0
  %v447 = vpack.c.bf16 %v446, %v446
  %v448 = vld [vmem:[%s5] sm:$0xf]
  %v449 = vld [vmem:[%s5 + $0x4] sm:$0xf]
  %v450 = vld [vmem:[%s5 + $0x8] sm:$0xf]
  %v451 = vld [vmem:[%s5 + $0xc] sm:$0xf]
  %v452 = vld [vmem:[%s5 + $0x10] sm:$0xf]
  %v453 = vld [vmem:[%s5 + $0x14] sm:$0xf]
  %v454 = vld [vmem:[%s5 + $0x18] sm:$0xf]
  %v455 = vld [vmem:[%s5 + $0x1c] sm:$0xf]
  %v456 = vld [vmem:[%s5 + $0x20] sm:$0xf]
  %v457 = vld [vmem:[%s5 + $0x24] sm:$0xf]
  %v458 = vld [vmem:[%s5 + $0x28] sm:$0xf]
  %v459 = vld [vmem:[%s5 + $0x2c] sm:$0xf]
  %v460 = vld [vmem:[%s5 + $0x30] sm:$0xf]
  %v461 = vld [vmem:[%s5 + $0x34] sm:$0xf]
  %v462 = vld [vmem:[%s5 + $0x38] sm:$0xf]
  %v463 = vld [vmem:[%s5 + $0x3c] sm:$0xf]
  %v464 = vld [vmem:[%s6] sm:$0x1]
  %v466 = vlaneseq
  %v467 = vshrl.u32 %v466, 7
  %v468 = vsub.s32 0, %v467
  %v469 = vrot.slane %v464, %v468
  %v487 = vunpack.c.l.b16 %v448
  %v488 = vunpack.c.l.b16 %v449
  %v489 = vunpack.c.l.b16 %v450
  %v490 = vunpack.c.l.b16 %v451
  %v491 = vunpack.c.l.b16 %v452
  %v492 = vunpack.c.l.b16 %v453
  %v493 = vunpack.c.l.b16 %v454
  %v494 = vunpack.c.l.b16 %v455
  %v495 = vunpack.c.l.b16 %v456
  %v496 = vunpack.c.l.b16 %v457
  %v497 = vunpack.c.l.b16 %v458
  %v498 = vunpack.c.l.b16 %v459
  %v499 = vunpack.c.l.b16 %v460
  %v500 = vunpack.c.l.b16 %v461
  %v501 = vunpack.c.l.b16 %v462
  %v502 = vunpack.c.l.b16 %v463
  %v503 = vpack.c.b16 %v488, %v487
  %v504 = vpack.c.b16 %v490, %v489
  %v505 = vpack.c.b16 %v492, %v491
  %v506 = vpack.c.b16 %v494, %v493
  %v507 = vpack.c.b16 %v496, %v495
  %v508 = vpack.c.b16 %v498, %v497
  %v509 = vpack.c.b16 %v500, %v499
  %v510 = vpack.c.b16 %v502, %v501
  %519 = vmatprep.subr.bf16.mxu0 0
  %520 = vmatpush1.bf16.msra.mxu0 %v510
  %521 = vmatprep.subr.bf16.mxu0 0
  %522 = vmatpush1.bf16.msra.mxu0 %v509
  %523 = vmatprep.subr.bf16.mxu0 0
  %524 = vmatpush1.bf16.msra.mxu0 %v508
  %525 = vmatprep.subr.bf16.mxu0 0
  %526 = vmatpush1.bf16.msra.mxu0 %v507
  %527 = vmatprep.subr.bf16.mxu0 0
  %528 = vmatpush1.bf16.msra.mxu0 %v506
  %529 = vmatprep.subr.bf16.mxu0 0
  %530 = vmatpush1.bf16.msra.mxu0 %v505
  %531 = vmatprep.subr.bf16.mxu0 0
  %532 = vmatpush1.bf16.msra.mxu0 %v504
  %533 = vmatprep.subr.bf16.mxu0 0
  %534 = vmatpush1.bf16.msra.mxu0 %v503
  %535 = vmatprep.subr.bf16.mxu0 0
  %536 = vmatpush2.bf16.msra.mxu0 0
  %537 = vmatprep.subr.bf16.mxu0 0
  %538 = vmatpush2.bf16.msra.mxu0 0
  %539 = vmatprep.subr.bf16.mxu0 0
  %540 = vmatpush2.bf16.msra.mxu0 0
  %541 = vmatprep.subr.bf16.mxu0 0
  %542 = vmatpush2.bf16.msra.mxu0 0
  %543 = vmatprep.subr.bf16.mxu0 0
  %544 = vmatpush2.bf16.msra.mxu0 0
  %545 = vmatprep.subr.bf16.mxu0 0
  %546 = vmatpush2.bf16.msra.mxu0 0
  %547 = vmatprep.subr.bf16.mxu0 0
  %548 = vmatpush2.bf16.msra.mxu0 0
  %549 = vmatprep.subr.bf16.mxu0 0
  %550 = vmatpush2.bf16.msra.mxu0 0
  %551 = vmatprep.mubr.bf16.mxu0 0
  %552 = vmatmul.mubr.bf16.gmra.mxu0 %v447
  %v553 = vpop.f32.mrf.mxu0
  %v554 = vadd.f32 %v469, %v553
  %v555 = vpop.f32.mrf.mxu0
  %v556 = vpop.f32.mrf.mxu0
  %v557 = vpop.f32.mrf.mxu0
  %558 = vdwg.mxu0
  %559 = vst [vmem:[%s7] sm:$0xff] %v554
  // Predicated region
  $region30: #{cifar10net_forward.5} parent=0 // pred_check
    _
  $region31: #{cifar10net_forward.5} parent=0 // pred_check_branch
    %561 = sbr.rel (0) target = $region33
  $region32: #{cifar10net_forward.5} parent=0 // pred_region
    _
  $region33: #{cifar10net_forward.5} parent=0 // pred_fallthru
    _
  // Predicated region
  $region34: #{cifar10net_forward.5} parent=0 // pred_check
    _
  $region35: #{cifar10net_forward.5} parent=0 // pred_check_branch
    %563 = sbr.rel (0) target = $region37
  $region36: #{cifar10net_forward.5} parent=0 // pred_region
    _
  $region37: #{cifar10net_forward.5} parent=0 // pred_fallthru
    _

</llo_original>
